<compile_context>
chip_gen: v7x
topology: tpu7x:2x2x1
jax: 0.10.0
libtpu: 0.0.40
codegen_flags: <defaults>
</compile_context>

<pallas_src>
import functools
import numpy as np
import jax
import jax.numpy as jnp
from jax import lax
from jax.experimental import pallas as pl
from jax.experimental.pallas import tpu as pltpu

EPS = 1e-5
LANE = 128


def _round_up(v, m):
    return ((v + m - 1) // m) * m


# ----------------------------- in-kernel helpers -----------------------------
def _mish(x):
    # numerically stable softplus (exp/log/tanh run on the EUP slot)
    sp = jnp.log(1.0 + jnp.exp(-jnp.abs(x))) + jnp.maximum(x, 0.0)
    return x * jnp.tanh(sp)


# --------------- fused conv stack + attention + flatten-LayerNorm -------------
def _fused_encoder_kernel(*refs, num_layers, hw_out, bp, c_final):
    # refs = [x, S0, S1, (wcat, gproj, gamma, beta) x num_layers,
    #         att_A, att_B, att_b, ln0_g2d, ln0_b2d, out, pcat_scratch]
    x_ref, s0_ref, s1_ref = refs[0], refs[1], refs[2]
    lrefs = [refs[3 + 4 * i: 3 + 4 * (i + 1)] for i in range(num_layers)]
    base = 3 + 4 * num_layers
    a_ref, b_ref, attb_ref, lng_ref, lnb_ref = refs[base:base + 5]
    o_ref = refs[base + 5]
    pcat_ref = refs[base + 6]

    x = x_ref[...]                                        # (hw_in, CP0) bf16
    for i in range(num_layers):
        w_ref, gp_ref, gm_ref, bt_ref = lrefs[i]
        s_ref = s0_ref if i == 0 else s1_ref
        cp = x.shape[1]                                   # packed width (x128)

        # --- 3x3 conv: one gather matmul + one conv matmul per layer ---
        p_all = jnp.dot(s_ref[...], x.astype(jnp.bfloat16),
                        preferred_element_type=jnp.float32)
        p_all = p_all.astype(jnp.bfloat16)                # (9*hw_out, cp)
        # place the 9 shifted copies side by side (128-aligned lane offsets)
        for s in range(9):
            pcat_ref[:, s * cp:(s + 1) * cp] = p_all[s * hw_out:(s + 1) * hw_out, :]
        p_cat = pcat_ref[:, :9 * cp]                      # (hw_out, 9*cp)
        y = jnp.dot(p_cat, w_ref[...],
                    preferred_element_type=jnp.float32)   # (hw_out, co) f32

        # --- GroupNorm (block-diagonal per-sample/group projection) ---
        ysum = jnp.sum(y, axis=0, keepdims=True)          # (1, co)
        ysq = jnp.sum(y * y, axis=0, keepdims=True)       # (1, co)
        mean_c = jnp.dot(ysum, gp_ref[...], preferred_element_type=jnp.float32)
        msq_c = jnp.dot(ysq, gp_ref[...], preferred_element_type=jnp.float32)
        var_c = jnp.maximum(msq_c - mean_c * mean_c, 0.0)
        yn = (y - mean_c) * lax.rsqrt(var_c + EPS) * gm_ref[...] + bt_ref[...]
        x = _mish(yn)                                     # (hw_out, co) f32
        # Dropout2d(0.1 * i / num_layers) -> identity in eval mode.

    co = x.shape[1]
    lane_ids = lax.broadcasted_iota(jnp.int32, (1, co), 1)
    masks = []
    for b in range(bp):
        masks.append(jnp.logical_and(lane_ids >= b * c_final,
                                     lane_ids < (b + 1) * c_final))

    # --- spatial attention (7x7 conv folded into (hw, hw) operators) ---
    att_acc = jnp.zeros_like(x)
    for b in range(bp):
        mf = masks[b].astype(jnp.float32)
        avg_b = jnp.sum(x * mf, axis=1, keepdims=True) * (1.0 / c_final)
        mx_b = jnp.max(jnp.where(masks[b], x, -jnp.inf), axis=1, keepdims=True)
        att_b = (jnp.dot(a_ref[...], avg_b, preferred_element_type=jnp.float32)
                 + jnp.dot(b_ref[...], mx_b, preferred_element_type=jnp.float32)
                 + attb_ref[...])
        att_b = 1.0 / (1.0 + jnp.exp(-att_b))             # sigmoid((conv+b)/T)
        att_acc = att_acc + att_b * mf
    x = x * (1.0 + att_acc)                               # x + x * attention_map

    # --- self.ln: LayerNorm over each sample's flattened (hw*C) vector ---
    n_el = float(hw_out * c_final)
    mu_map = jnp.zeros((1, co), jnp.float32)
    for b in range(bp):
        mf = masks[b].astype(jnp.float32)
        mu_map = mu_map + (jnp.sum(x * mf) / n_el) * mf
    dev = x - mu_map
    inv_map = jnp.zeros((1, co), jnp.float32)
    for b in range(bp):
        mf = masks[b].astype(jnp.float32)
        var_b = jnp.sum(dev * dev * mf) / n_el
        inv_map = inv_map + lax.rsqrt(var_b + EPS) * mf
    o_ref[...] = (dev * inv_map * lng_ref[...] + lnb_ref[...]).astype(o_ref.dtype)


def fused_conv_stack(x2d, params, n_packs, hw_in, hw_out):
    convs = params["convs"]
    co_final = convs[-1]["co"]
    cp0 = convs[0]["cp"]
    cp_max = max(lyr["cp"] for lyr in convs)

    arrays = [x2d, params["S0"], params["S1"]]
    specs = [
        pl.BlockSpec((hw_in, cp0), lambda p: (p, 0)),
        pl.BlockSpec(params["S0"].shape, lambda p: (0, 0)),
        pl.BlockSpec(params["S1"].shape, lambda p: (0, 0)),
    ]
    for lyr in convs:
        for name in ("w", "gproj", "gamma", "beta"):
            arr = lyr[name]
            arrays.append(arr)
            specs.append(pl.BlockSpec(arr.shape, lambda p: (0, 0)))
    for name in ("att_A", "att_B", "att_b", "ln0_g2d", "ln0_b2d"):
        arr = params[name]
        arrays.append(arr)
        specs.append(pl.BlockSpec(arr.shape, lambda p: (0, 0)))

    kern = functools.partial(_fused_encoder_kernel,
                             num_layers=len(convs), hw_out=hw_out,
                             bp=params["bp"], c_final=params["c_final"])
    return pl.pallas_call(
        kern,
        out_shape=jax.ShapeDtypeStruct((n_packs * hw_out, co_final), jnp.bfloat16),
        grid=(n_packs,),
        in_specs=specs,
        out_specs=pl.BlockSpec((hw_out, co_final), lambda p: (p, 0)),
        scratch_shapes=[pltpu.VMEM((hw_out, 9 * cp_max), jnp.bfloat16)],
        compiler_params=pltpu.CompilerParams(
            dimension_semantics=("parallel",),
            vmem_limit_bytes=32 * 1024 * 1024),
    )(*arrays)


# --------------------------------- MLP head ----------------------------------
def _head_kernel(x_ref, w1_ref, b1_ref, g1_ref, bb1_ref,
                 w2_ref, b2_ref, g2_ref, bb2_ref, o_ref, *, f2, feat):
    h = jnp.dot(x_ref[...], w1_ref[...],
                preferred_element_type=jnp.float32) + b1_ref[...]
    # LayerNorm over the f2 real features (padded lanes are exactly zero,
    # padded gamma/beta are zero -> padded lanes stay zero)
    mu = jnp.sum(h, axis=-1, keepdims=True) / f2
    var = jnp.maximum(jnp.sum(h * h, axis=-1, keepdims=True) / f2 - mu * mu, 0.0)
    h = (h - mu) * lax.rsqrt(var + EPS) * g1_ref[...] + bb1_ref[...]
    h = _mish(h)
    # Dropout(0.1) -> identity in eval mode
    h = jnp.dot(h, w2_ref[...], preferred_element_type=jnp.float32) + b2_ref[...]
    mu2 = jnp.sum(h, axis=-1, keepdims=True) / feat
    var2 = jnp.maximum(jnp.sum(h * h, axis=-1, keepdims=True) / feat - mu2 * mu2, 0.0)
    h = (h - mu2) * lax.rsqrt(var2 + EPS) * g2_ref[...] + bb2_ref[...]
    o_ref[...] = jnp.tanh(h)


def head_forward(xh, hp):
    B, D = xh.shape
    f2p = hp["w1"].shape[1]
    featp = hp["w2"].shape[1]
    kern = functools.partial(_head_kernel, f2=hp["f2"], feat=hp["feat"])
    return pl.pallas_call(
        kern,
        out_shape=jax.ShapeDtypeStruct((B, featp), jnp.float32),
        grid=(1,),
        in_specs=[
            pl.BlockSpec((B, D), lambda i: (0, 0)),
            pl.BlockSpec(hp["w1"].shape, lambda i: (0, 0)),
            pl.BlockSpec((1, f2p), lambda i: (0, 0)),
            pl.BlockSpec((1, f2p), lambda i: (0, 0)),
            pl.BlockSpec((1, f2p), lambda i: (0, 0)),
            pl.BlockSpec((f2p, featp), lambda i: (0, 0)),
            pl.BlockSpec((1, featp), lambda i: (0, 0)),
            pl.BlockSpec((1, featp), lambda i: (0, 0)),
            pl.BlockSpec((1, featp), lambda i: (0, 0)),
        ],
        out_specs=pl.BlockSpec((B, featp), lambda i: (0, 0)),
        compiler_params=pltpu.CompilerParams(
            dimension_semantics=("arbitrary",),
            vmem_limit_bytes=32 * 1024 * 1024),
    )(xh, hp["w1"], hp["b1"], hp["ln1_g"], hp["ln1_b"],
      hp["w2"], hp["b2"], hp["ln2_g"], hp["ln2_b"])


# ------------------------- host-side operator builders ------------------------
def _build_shift_matrices(h_in, w_in, h_out, w_out, ksize, stride, pad):
    """0/1 gather matrices: S[s*hw_out + r_out, r_in] = 1 for kernel offset s."""
    hw_out, hw_in = h_out * w_out, h_in * w_in
    S = np.zeros((ksize * ksize, hw_out, hw_in), np.float32)
    for di in range(ksize):
        for dj in range(ksize):
            s = di * ksize + dj
            for ho in range(h_out):
                hi = ho * stride + di - pad
                if hi < 0 or hi >= h_in:
                    continue
                for wo in range(w_out):
                    wi = wo * stride + dj - pad
                    if wi < 0 or wi >= w_in:
                        continue
                    S[s, ho * w_out + wo, hi * w_in + wi] = 1.0
    return S.reshape(ksize * ksize * hw_out, hw_in)


def _build_attention_operators(h, w, ksize, pad, w7):
    """Fold the 7x7 2->1 conv into two (hw, hw) operators (avg / max channels)."""
    hw = h * w
    A = np.zeros((hw, hw), np.float32)
    Bm = np.zeros((hw, hw), np.float32)
    for di in range(ksize):
        for dj in range(ksize):
            for ho in range(h):
                hi = ho + di - pad
                if hi < 0 or hi >= h:
                    continue
                for wo in range(w):
                    wi = wo + dj - pad
                    if wi < 0 or wi >= w:
                        continue
                    A[ho * w + wo, hi * w + wi] += w7[di, dj, 0]
                    Bm[ho * w + wo, hi * w + wi] += w7[di, dj, 1]
    return A, Bm


# ------------------------------- parameter init -------------------------------
def init_params(key, obs_shape, feature_dim, num_layers, num_filters, batch_pack):
    c0, h, w = obs_shape
    channels = [c0] + [num_filters * 2 ** min(i, 3) for i in range(num_layers)]
    keys = jax.random.split(key, num_layers + 3)
    bp = batch_pack

    h1 = (h + 2 - 3) // 2 + 1
    w1 = (w + 2 - 3) // 2 + 1
    hw_in, hw_out = h * w, h1 * w1
    assert hw_out % 8 == 0, "TODO(synk): pad hw_out to x8 + masked GN/LN stats"

    S0 = _build_shift_matrices(h, w, h1, w1, 3, 2, 1)    # stride-2 first layer
    S1 = _build_shift_matrices(h1, w1, h1, w1, 3, 1, 1)  # stride-1 layers (shared)

    convs = []
    for i in range(num_layers):
        cin, cout = channels[i], channels[i + 1]
        cp = _round_up(bp * cin, LANE)                   # packed (lane) in width
        co = _round_up(bp * cout, LANE)                  # packed out width
        std = float(np.sqrt(2.0 / (cout * 9)))           # kaiming fan_out
        wt = np.asarray(jax.random.normal(keys[i], (3, 3, cin, cout),
                                          jnp.float32)) * std
        # exact spectral norm (PyTorch uses a running power iteration)
        sigma = float(np.linalg.svd(wt.reshape(9 * cin, cout),
                                    compute_uv=False)[0])
        wt = wt / sigma
        # block-diagonal packed weight for a single (hw,9*cp)@(9*cp,co) matmul
        wcat = np.zeros((9 * cp, co), np.float32)
        for di in range(3):
            for dj in range(3):
                s = di * 3 + dj
                for b in range(bp):
                    wcat[s * cp + b * cin: s * cp + (b + 1) * cin,
                         b * cout:(b + 1) * cout] = wt[di, dj]

        groups = min(32, cout // 4)
        cper = cout // groups
        gid = np.arange(cout) // cper
        blk = (gid[:, None] == gid[None, :]).astype(np.float32) / float(hw_out * cper)
        gproj = np.zeros((co, co), np.float32)
        gamma = np.zeros((1, co), np.float32)
        for b in range(bp):
            gproj[b * cout:(b + 1) * cout, b * cout:(b + 1) * cout] = blk
            gamma[0, b * cout:(b + 1) * cout] = 1.0
        beta = np.zeros((1, co), np.float32)

        convs.append(dict(
            w=jnp.asarray(wcat, jnp.bfloat16),
            gproj=jnp.asarray(gproj),
            gamma=jnp.asarray(gamma),
            beta=jnp.asarray(beta),
            cin=cin, cout=cout, cp=cp, co=co))

    c_final = channels[-1]
    co_final = convs[-1]["co"]
    conv_out_dim = c_final * hw_out

    # SpatialAttention: channel_reduce is unused in the reference forward().
    att_std = float(np.sqrt(2.0 / 49.0))                 # kaiming fan_out
    w7 = np.asarray(jax.random.normal(keys[num_layers], (7, 7, 2),
                                      jnp.float32)) * att_std
    temperature = 1.0
    A, Bm = _build_attention_operators(h1, w1, 7, 3, w7)
    att_A = jnp.asarray(A / temperature, jnp.float32)
    att_B = jnp.asarray(Bm / temperature, jnp.float32)
    att_b = jnp.zeros((1, 1), jnp.float32)               # conv bias / temperature

    # self.ln params in PyTorch NCHW-flatten order -> packed (hw, co) layout
    ln_g_pt = np.ones((conv_out_dim,), np.float32)
    ln_b_pt = np.zeros((conv_out_dim,), np.float32)
    g2d = np.ascontiguousarray(ln_g_pt.reshape(c_final, hw_out).T)
    b2d = np.ascontiguousarray(ln_b_pt.reshape(c_final, hw_out).T)
    lng = np.zeros((hw_out, co_final), np.float32)
    lnb = np.zeros((hw_out, co_final), np.float32)
    for b in range(bp):
        lng[:, b * c_final:(b + 1) * c_final] = g2d
        lnb[:, b * c_final:(b + 1) * c_final] = b2d

    # MLP head (f2 / feature dims padded to 128 lanes; padded gamma/beta = 0)
    f2 = feature_dim * 2
    f2p = _round_up(f2, LANE)
    featp = _round_up(feature_dim, LANE)
    lim1 = float(np.sqrt(6.0 / (conv_out_dim + f2)))     # xavier uniform
    w1_pt = np.asarray(jax.random.uniform(keys[num_layers + 1],
                                          (conv_out_dim, f2), jnp.float32,
                                          -lim1, lim1))
    # permute rows from PyTorch order (c*HW + r) to kernel order (r*C + c)
    w1_ours = np.ascontiguousarray(
        w1_pt.reshape(c_final, hw_out, f2).transpose(1, 0, 2)
             .reshape(conv_out_dim, f2))
    w1_pad = np.zeros((conv_out_dim, f2p), np.float32)
    w1_pad[:, :f2] = w1_ours
    lim2 = float(np.sqrt(6.0 / (f2 + feature_dim)))
    w2 = np.asarray(jax.random.uniform(keys[num_layers + 2], (f2, feature_dim),
                                       jnp.float32, -lim2, lim2))
    w2_pad = np.zeros((f2p, featp), np.float32)
    w2_pad[:f2, :feature_dim] = w2
    g1 = np.zeros((1, f2p), np.float32); g1[0, :f2] = 1.0
    g2h = np.zeros((1, featp), np.float32); g2h[0, :feature_dim] = 1.0

    head = dict(
        w1=jnp.asarray(w1_pad, jnp.bfloat16),
        b1=jnp.zeros((1, f2p), jnp.float32),
        ln1_g=jnp.asarray(g1),
        ln1_b=jnp.zeros((1, f2p), jnp.float32),
        w2=jnp.asarray(w2_pad),
        b2=jnp.zeros((1, featp), jnp.float32),
        ln2_g=jnp.asarray(g2h),
        ln2_b=jnp.zeros((1, featp), jnp.float32),
        f2=f2, feat=feature_dim)

    return dict(
        S0=jnp.asarray(S0, jnp.bfloat16),
        S1=jnp.asarray(S1, jnp.bfloat16),
        convs=convs,
        att_A=att_A, att_B=att_B, att_b=att_b,
        ln0_g2d=jnp.asarray(lng), ln0_b2d=jnp.asarray(lnb),
        head=head,
        bp=bp, hw_out=hw_out, c_final=c_final, feature_dim=feature_dim)


# ------------------------------- forward wrapper ------------------------------
def drqv2_encoder_forward(x_nchw, params):
    if x_nchw.dtype == jnp.uint8:
        x_nchw = x_nchw.astype(jnp.float32) / 255.0
    x_nchw = x_nchw.astype(jnp.float32)
    B, C0, H, W = x_nchw.shape
    bp = params["bp"]
    assert B % bp == 0, "TODO(synk): pad the batch to a multiple of the pack size"
    n_packs = B // bp
    hw_in = H * W
    hw_out = params["hw_out"]
    c_final = params["c_final"]
    cp0 = params["convs"][0]["cp"]
    co_final = params["convs"][-1]["co"]

    # NCHW -> per-pack rows (hw, bp*C0): bp samples packed along lanes,
    # padded with zero lanes up to 128 (matching conv-weight rows are zero).
    xh = jnp.transpose(x_nchw, (0, 2, 3, 1))             # (B, H, W, C0)
    xh = xh.reshape(n_packs, bp, hw_in, C0)
    xh = jnp.transpose(xh, (0, 2, 1, 3)).reshape(n_packs * hw_in, bp * C0)
    if cp0 > bp * C0:
        xh = jnp.pad(xh, ((0, 0), (0, cp0 - bp * C0)))
    xh = xh.astype(jnp.bfloat16)

    # fused conv stack + GroupNorm + Mish + spatial attention + flatten-LN
    feat2d = fused_conv_stack(xh, params, n_packs, hw_in, hw_out)  # bf16

    # unpack to (B, hw*C) in (r*C + c) order; the head's w1 rows were permuted
    # on the host to absorb PyTorch's NCHW flatten, so no runtime transpose of
    # weights is needed.  (tiny bf16 tensor; relayout left to XLA)
    t = feat2d.reshape(n_packs, hw_out, co_final)[:, :, :bp * c_final]
    t = t.reshape(n_packs, hw_out, bp, c_final)
    xflat = jnp.transpose(t, (0, 2, 1, 3)).reshape(B, hw_out * c_final)

    out = head_forward(xflat, params["head"])            # (B, featp) f32
    return out[:, :params["feature_dim"]]


if __name__ == "__main__":
    key = jax.random.PRNGKey(0)
    pkey, xkey = jax.random.split(key)

    obs_shape = (4, 16, 16)      # (C, H, W) -- small synthetic config
    feature_dim = 16
    num_layers = 4
    num_filters = 8              # channels: 4 -> 8 -> 16 -> 32 -> 64
    batch = 4
    batch_pack = 2               # samples packed per grid step (lane axis)

    params = init_params(pkey, obs_shape, feature_dim, num_layers, num_filters,
                         batch_pack)
    x = jax.random.uniform(xkey, (batch,) + obs_shape, jnp.float32)  # NCHW

    feats = drqv2_encoder_forward(x, params)
    feats = jax.block_until_ready(feats)

    assert feats.shape == (batch, feature_dim), feats.shape
    assert bool(jnp.all(jnp.isfinite(feats)))
    assert bool(jnp.all(jnp.abs(feats) <= 1.0 + 1e-6))   # tanh output range
    print("KERNEL_OK")
</pallas_src>

<mosaic_0001>
module attributes {stable_mosaic.version = 11 : i64} {
  func.func @_fused_encoder_kernel(%arg0: i32, %arg1: memref<256x128xbf16, #tpu.memory_space<vmem>>, %arg2: memref<576x256xbf16, #tpu.memory_space<vmem>>, %arg3: memref<576x64xbf16, #tpu.memory_space<vmem>>, %arg4: memref<1152x128xbf16, #tpu.memory_space<vmem>>, %arg5: memref<128x128xf32, #tpu.memory_space<vmem>>, %arg6: memref<1x128xf32, #tpu.memory_space<vmem>>, %arg7: memref<1x128xf32, #tpu.memory_space<vmem>>, %arg8: memref<1152x128xbf16, #tpu.memory_space<vmem>>, %arg9: memref<128x128xf32, #tpu.memory_space<vmem>>, %arg10: memref<1x128xf32, #tpu.memory_space<vmem>>, %arg11: memref<1x128xf32, #tpu.memory_space<vmem>>, %arg12: memref<1152x128xbf16, #tpu.memory_space<vmem>>, %arg13: memref<128x128xf32, #tpu.memory_space<vmem>>, %arg14: memref<1x128xf32, #tpu.memory_space<vmem>>, %arg15: memref<1x128xf32, #tpu.memory_space<vmem>>, %arg16: memref<1152x128xbf16, #tpu.memory_space<vmem>>, %arg17: memref<128x128xf32, #tpu.memory_space<vmem>>, %arg18: memref<1x128xf32, #tpu.memory_space<vmem>>, %arg19: memref<1x128xf32, #tpu.memory_space<vmem>>, %arg20: memref<64x64xf32, #tpu.memory_space<vmem>>, %arg21: memref<64x64xf32, #tpu.memory_space<vmem>>, %arg22: memref<1x1xf32, #tpu.memory_space<vmem>>, %arg23: memref<64x128xf32, #tpu.memory_space<vmem>>, %arg24: memref<64x128xf32, #tpu.memory_space<vmem>>, %arg25: memref<64x128xbf16, #tpu.memory_space<vmem>>, %arg26: memref<64x1152xbf16, #tpu.memory_space<vmem>>) attributes {dimension_semantics = [#tpu.dimension_semantics<parallel>], iteration_bounds = array<i64: 2>, scalar_prefetch = 0 : i64, scratch_operands = 1 : i64, tpu.core_type = #tpu.core_type<tc>, window_params = [{transform_indices = @transform_0, window_bounds = array<i64: 256, 128>}, {pipeline_mode = #tpu.pipeline_mode<synchronous>, transform_indices = @transform_1, window_bounds = array<i64: 576, 256>}, {pipeline_mode = #tpu.pipeline_mode<synchronous>, transform_indices = @transform_2, window_bounds = array<i64: 576, 64>}, {pipeline_mode = #tpu.pipeline_mode<synchronous>, transform_indices = @transform_3, window_bounds = array<i64: 1152, 128>}, {pipeline_mode = #tpu.pipeline_mode<synchronous>, transform_indices = @transform_4, window_bounds = array<i64: 128, 128>}, {pipeline_mode = #tpu.pipeline_mode<synchronous>, transform_indices = @transform_5, window_bounds = array<i64: 1, 128>}, {pipeline_mode = #tpu.pipeline_mode<synchronous>, transform_indices = @transform_6, window_bounds = array<i64: 1, 128>}, {pipeline_mode = #tpu.pipeline_mode<synchronous>, transform_indices = @transform_7, window_bounds = array<i64: 1152, 128>}, {pipeline_mode = #tpu.pipeline_mode<synchronous>, transform_indices = @transform_8, window_bounds = array<i64: 128, 128>}, {pipeline_mode = #tpu.pipeline_mode<synchronous>, transform_indices = @transform_9, window_bounds = array<i64: 1, 128>}, {pipeline_mode = #tpu.pipeline_mode<synchronous>, transform_indices = @transform_10, window_bounds = array<i64: 1, 128>}, {pipeline_mode = #tpu.pipeline_mode<synchronous>, transform_indices = @transform_11, window_bounds = array<i64: 1152, 128>}, {pipeline_mode = #tpu.pipeline_mode<synchronous>, transform_indices = @transform_12, window_bounds = array<i64: 128, 128>}, {pipeline_mode = #tpu.pipeline_mode<synchronous>, transform_indices = @transform_13, window_bounds = array<i64: 1, 128>}, {pipeline_mode = #tpu.pipeline_mode<synchronous>, transform_indices = @transform_14, window_bounds = array<i64: 1, 128>}, {pipeline_mode = #tpu.pipeline_mode<synchronous>, transform_indices = @transform_15, window_bounds = array<i64: 1152, 128>}, {pipeline_mode = #tpu.pipeline_mode<synchronous>, transform_indices = @transform_16, window_bounds = array<i64: 128, 128>}, {pipeline_mode = #tpu.pipeline_mode<synchronous>, transform_indices = @transform_17, window_bounds = array<i64: 1, 128>}, {pipeline_mode = #tpu.pipeline_mode<synchronous>, transform_indices = @transform_18, window_bounds = array<i64: 1, 128>}, {pipeline_mode = #tpu.pipeline_mode<synchronous>, transform_indices = @transform_19, window_bounds = array<i64: 64, 64>}, {pipeline_mode = #tpu.pipeline_mode<synchronous>, transform_indices = @transform_20, window_bounds = array<i64: 64, 64>}, {pipeline_mode = #tpu.pipeline_mode<synchronous>, transform_indices = @transform_21, window_bounds = array<i64: 1, 1>}, {pipeline_mode = #tpu.pipeline_mode<synchronous>, transform_indices = @transform_22, window_bounds = array<i64: 64, 128>}, {pipeline_mode = #tpu.pipeline_mode<synchronous>, transform_indices = @transform_23, window_bounds = array<i64: 64, 128>}, {transform_indices = @transform_24, window_bounds = array<i64: 64, 128>}]} {
    %c0 = arith.constant 0 : index
    %c0_0 = arith.constant 0 : index
    %0 = vector.load %arg1[%c0, %c0_0] : memref<256x128xbf16, #tpu.memory_space<vmem>>, vector<256x128xbf16>
    %c0_1 = arith.constant 0 : index
    %c0_2 = arith.constant 0 : index
    %1 = vector.load %arg2[%c0_1, %c0_2] : memref<576x256xbf16, #tpu.memory_space<vmem>>, vector<576x256xbf16>
    %cst = arith.constant dense<0.000000e+00> : vector<576x128xf32>
    %2 = tpu.matmul %1, %0, %cst {dimension_numbers = #tpu.dot_dimension_numbers<[1], [0], [0], [1], [0, 0, 1, 1], [], []>} : vector<576x256xbf16>, vector<256x128xbf16>, vector<576x128xf32> -> vector<576x128xf32>
    %3 = arith.truncf %2 : vector<576x128xf32> to vector<576x128xbf16>
    %4 = vector.extract_strided_slice %3 {offsets = [0, 0], sizes = [64, 128], strides = [1, 1]} : vector<576x128xbf16> to vector<64x128xbf16>
    %c0_3 = arith.constant 0 : index
    %c0_4 = arith.constant 0 : index
    %5 = vector.load %arg26[%c0_3, %c0_4] : memref<64x1152xbf16, #tpu.memory_space<vmem>>, vector<64x128xbf16>
    tpu.vector_store %arg26[%c0_3, %c0_4], %4 {strides = array<i32>} : memref<64x1152xbf16, #tpu.memory_space<vmem>>, vector<64x128xbf16>,
    %6 = vector.extract_strided_slice %3 {offsets = [64, 0], sizes = [64, 128], strides = [1, 1]} : vector<576x128xbf16> to vector<64x128xbf16>
    %c0_5 = arith.constant 0 : index
    %c128 = arith.constant 128 : index
    %7 = vector.load %arg26[%c0_5, %c128] : memref<64x1152xbf16, #tpu.memory_space<vmem>>, vector<64x128xbf16>
    tpu.vector_store %arg26[%c0_5, %c128], %6 {strides = array<i32>} : memref<64x1152xbf16, #tpu.memory_space<vmem>>, vector<64x128xbf16>,
    %8 = vector.extract_strided_slice %3 {offsets = [128, 0], sizes = [64, 128], strides = [1, 1]} : vector<576x128xbf16> to vector<64x128xbf16>
    %c0_6 = arith.constant 0 : index
    %c256 = arith.constant 256 : index
    %9 = vector.load %arg26[%c0_6, %c256] : memref<64x1152xbf16, #tpu.memory_space<vmem>>, vector<64x128xbf16>
    tpu.vector_store %arg26[%c0_6, %c256], %8 {strides = array<i32>} : memref<64x1152xbf16, #tpu.memory_space<vmem>>, vector<64x128xbf16>,
    %10 = vector.extract_strided_slice %3 {offsets = [192, 0], sizes = [64, 128], strides = [1, 1]} : vector<576x128xbf16> to vector<64x128xbf16>
    %c0_7 = arith.constant 0 : index
    %c384 = arith.constant 384 : index
    %11 = vector.load %arg26[%c0_7, %c384] : memref<64x1152xbf16, #tpu.memory_space<vmem>>, vector<64x128xbf16>
    tpu.vector_store %arg26[%c0_7, %c384], %10 {strides = array<i32>} : memref<64x1152xbf16, #tpu.memory_space<vmem>>, vector<64x128xbf16>,
    %12 = vector.extract_strided_slice %3 {offsets = [256, 0], sizes = [64, 128], strides = [1, 1]} : vector<576x128xbf16> to vector<64x128xbf16>
    %c0_8 = arith.constant 0 : index
    %c512 = arith.constant 512 : index
    %13 = vector.load %arg26[%c0_8, %c512] : memref<64x1152xbf16, #tpu.memory_space<vmem>>, vector<64x128xbf16>
    tpu.vector_store %arg26[%c0_8, %c512], %12 {strides = array<i32>} : memref<64x1152xbf16, #tpu.memory_space<vmem>>, vector<64x128xbf16>,
    %14 = vector.extract_strided_slice %3 {offsets = [320, 0], sizes = [64, 128], strides = [1, 1]} : vector<576x128xbf16> to vector<64x128xbf16>
    %c0_9 = arith.constant 0 : index
    %c640 = arith.constant 640 : index
    %15 = vector.load %arg26[%c0_9, %c640] : memref<64x1152xbf16, #tpu.memory_space<vmem>>, vector<64x128xbf16>
    tpu.vector_store %arg26[%c0_9, %c640], %14 {strides = array<i32>} : memref<64x1152xbf16, #tpu.memory_space<vmem>>, vector<64x128xbf16>,
    %16 = vector.extract_strided_slice %3 {offsets = [384, 0], sizes = [64, 128], strides = [1, 1]} : vector<576x128xbf16> to vector<64x128xbf16>
    %c0_10 = arith.constant 0 : index
    %c768 = arith.constant 768 : index
    %17 = vector.load %arg26[%c0_10, %c768] : memref<64x1152xbf16, #tpu.memory_space<vmem>>, vector<64x128xbf16>
    tpu.vector_store %arg26[%c0_10, %c768], %16 {strides = array<i32>} : memref<64x1152xbf16, #tpu.memory_space<vmem>>, vector<64x128xbf16>,
    %18 = vector.extract_strided_slice %3 {offsets = [448, 0], sizes = [64, 128], strides = [1, 1]} : vector<576x128xbf16> to vector<64x128xbf16>
    %c0_11 = arith.constant 0 : index
    %c896 = arith.constant 896 : index
    %19 = vector.load %arg26[%c0_11, %c896] : memref<64x1152xbf16, #tpu.memory_space<vmem>>, vector<64x128xbf16>
    tpu.vector_store %arg26[%c0_11, %c896], %18 {strides = array<i32>} : memref<64x1152xbf16, #tpu.memory_space<vmem>>, vector<64x128xbf16>,
    %20 = vector.extract_strided_slice %3 {offsets = [512, 0], sizes = [64, 128], strides = [1, 1]} : vector<576x128xbf16> to vector<64x128xbf16>
    %c0_12 = arith.constant 0 : index
    %c1024 = arith.constant 1024 : index
    %21 = vector.load %arg26[%c0_12, %c1024] : memref<64x1152xbf16, #tpu.memory_space<vmem>>, vector<64x128xbf16>
    tpu.vector_store %arg26[%c0_12, %c1024], %20 {strides = array<i32>} : memref<64x1152xbf16, #tpu.memory_space<vmem>>, vector<64x128xbf16>,
    %c0_13 = arith.constant 0 : index
    %c0_14 = arith.constant 0 : index
    %22 = vector.load %arg26[%c0_13, %c0_14] : memref<64x1152xbf16, #tpu.memory_space<vmem>>, vector<64x1152xbf16>
    %c0_15 = arith.constant 0 : index
    %c0_16 = arith.constant 0 : index
    %23 = vector.load %arg4[%c0_15, %c0_16] : memref<1152x128xbf16, #tpu.memory_space<vmem>>, vector<1152x128xbf16>
    %cst_17 = arith.constant dense<0.000000e+00> : vector<64x128xf32>
    %24 = tpu.matmul %22, %23, %cst_17 {dimension_numbers = #tpu.dot_dimension_numbers<[1], [0], [0], [1], [0, 0, 1, 1], [], []>} : vector<64x1152xbf16>, vector<1152x128xbf16>, vector<64x128xf32> -> vector<64x128xf32>
    %cst_18 = arith.constant dense<0.000000e+00> : vector<128xf32>
    %25 = vector.multi_reduction <add>, %24, %cst_18 [0] : vector<64x128xf32> to vector<128xf32>
    %26 = vector.shape_cast %25 : vector<128xf32> to vector<1x128xf32>
    %27 = arith.mulf %24, %24 : vector<64x128xf32>
    %cst_19 = arith.constant dense<0.000000e+00> : vector<128xf32>
    %28 = vector.multi_reduction <add>, %27, %cst_19 [0] : vector<64x128xf32> to vector<128xf32>
    %29 = vector.shape_cast %28 : vector<128xf32> to vector<1x128xf32>
    %c0_20 = arith.constant 0 : index
    %c0_21 = arith.constant 0 : index
    %30 = vector.load %arg5[%c0_20, %c0_21] : memref<128x128xf32, #tpu.memory_space<vmem>>, vector<128x128xf32>
    %cst_22 = arith.constant dense<0.000000e+00> : vector<1x128xf32>
    %31 = tpu.matmul %26, %30, %cst_22 {dimension_numbers = #tpu.dot_dimension_numbers<[1], [0], [0], [1], [0, 0, 1, 1], [], []>} : vector<1x128xf32>, vector<128x128xf32>, vector<1x128xf32> -> vector<1x128xf32>
    %c0_23 = arith.constant 0 : index
    %c0_24 = arith.constant 0 : index
    %32 = vector.load %arg5[%c0_23, %c0_24] : memref<128x128xf32, #tpu.memory_space<vmem>>, vector<128x128xf32>
    %cst_25 = arith.constant dense<0.000000e+00> : vector<1x128xf32>
    %33 = tpu.matmul %29, %32, %cst_25 {dimension_numbers = #tpu.dot_dimension_numbers<[1], [0], [0], [1], [0, 0, 1, 1], [], []>} : vector<1x128xf32>, vector<128x128xf32>, vector<1x128xf32> -> vector<1x128xf32>
    %34 = arith.mulf %31, %31 : vector<1x128xf32>
    %35 = arith.subf %33, %34 : vector<1x128xf32>
    %cst_26 = arith.constant 0.000000e+00 : f32
    %36 = vector.broadcast %cst_26 : f32 to vector<1x128xf32>
    %37 = arith.maximumf %35, %36 : vector<1x128xf32>
    %38 = vector.broadcast %31 : vector<1x128xf32> to vector<64x128xf32>
    %39 = arith.subf %24, %38 : vector<64x128xf32>
    %cst_27 = arith.constant 9.99999974E-6 : f32
    %40 = vector.broadcast %cst_27 : f32 to vector<1x128xf32>
    %41 = arith.addf %37, %40 : vector<1x128xf32>
    %42 = math.rsqrt %41 : vector<1x128xf32>
    %43 = vector.broadcast %42 : vector<1x128xf32> to vector<64x128xf32>
    %44 = arith.mulf %39, %43 : vector<64x128xf32>
    %c0_28 = arith.constant 0 : index
    %c0_29 = arith.constant 0 : index
    %45 = vector.load %arg6[%c0_28, %c0_29] : memref<1x128xf32, #tpu.memory_space<vmem>>, vector<1x128xf32>
    %46 = vector.broadcast %45 : vector<1x128xf32> to vector<64x128xf32>
    %47 = arith.mulf %44, %46 : vector<64x128xf32>
    %c0_30 = arith.constant 0 : index
    %c0_31 = arith.constant 0 : index
    %48 = vector.load %arg7[%c0_30, %c0_31] : memref<1x128xf32, #tpu.memory_space<vmem>>, vector<1x128xf32>
    %49 = vector.broadcast %48 : vector<1x128xf32> to vector<64x128xf32>
    %50 = arith.addf %47, %49 : vector<64x128xf32>
    %51 = math.absf %50 : vector<64x128xf32>
    %cst_32 = arith.constant 0.000000e+00 : f32
    %52 = vector.broadcast %cst_32 : f32 to vector<64x128xf32>
    %53 = arith.subf %52, %51 : vector<64x128xf32>
    %54 = math.exp %53 : vector<64x128xf32>
    %cst_33 = arith.constant 1.000000e+00 : f32
    %55 = vector.broadcast %cst_33 : f32 to vector<64x128xf32>
    %56 = arith.addf %55, %54 : vector<64x128xf32>
    %57 = math.log %56 : vector<64x128xf32>
    %cst_34 = arith.constant 0.000000e+00 : f32
    %58 = vector.broadcast %cst_34 : f32 to vector<64x128xf32>
    %59 = arith.maximumf %50, %58 : vector<64x128xf32>
    %60 = arith.addf %57, %59 : vector<64x128xf32>
    %61 = math.tanh %60 : vector<64x128xf32>
    %62 = arith.mulf %50, %61 : vector<64x128xf32>
    %c0_35 = arith.constant 0 : index
    %c0_36 = arith.constant 0 : index
    %63 = vector.load %arg3[%c0_35, %c0_36] : memref<576x64xbf16, #tpu.memory_space<vmem>>, vector<576x64xbf16>
    %64 = arith.truncf %62 : vector<64x128xf32> to vector<64x128xbf16>
    %cst_37 = arith.constant dense<0.000000e+00> : vector<576x128xf32>
    %65 = tpu.matmul %63, %64, %cst_37 {dimension_numbers = #tpu.dot_dimension_numbers<[1], [0], [0], [1], [0, 0, 1, 1], [], []>} : vector<576x64xbf16>, vector<64x128xbf16>, vector<576x128xf32> -> vector<576x128xf32>
    %66 = arith.truncf %65 : vector<576x128xf32> to vector<576x128xbf16>
    %67 = vector.extract_strided_slice %66 {offsets = [0, 0], sizes = [64, 128], strides = [1, 1]} : vector<576x128xbf16> to vector<64x128xbf16>
    %c0_38 = arith.constant 0 : index
    %c0_39 = arith.constant 0 : index
    %68 = vector.load %arg26[%c0_38, %c0_39] : memref<64x1152xbf16, #tpu.memory_space<vmem>>, vector<64x128xbf16>
    tpu.vector_store %arg26[%c0_38, %c0_39], %67 {strides = array<i32>} : memref<64x1152xbf16, #tpu.memory_space<vmem>>, vector<64x128xbf16>,
    %69 = vector.extract_strided_slice %66 {offsets = [64, 0], sizes = [64, 128], strides = [1, 1]} : vector<576x128xbf16> to vector<64x128xbf16>
    %c0_40 = arith.constant 0 : index
    %c128_41 = arith.constant 128 : index
    %70 = vector.load %arg26[%c0_40, %c128_41] : memref<64x1152xbf16, #tpu.memory_space<vmem>>, vector<64x128xbf16>
    tpu.vector_store %arg26[%c0_40, %c128_41], %69 {strides = array<i32>} : memref<64x1152xbf16, #tpu.memory_space<vmem>>, vector<64x128xbf16>,
    %71 = vector.extract_strided_slice %66 {offsets = [128, 0], sizes = [64, 128], strides = [1, 1]} : vector<576x128xbf16> to vector<64x128xbf16>
    %c0_42 = arith.constant 0 : index
    %c256_43 = arith.constant 256 : index
    %72 = vector.load %arg26[%c0_42, %c256_43] : memref<64x1152xbf16, #tpu.memory_space<vmem>>, vector<64x128xbf16>
    tpu.vector_store %arg26[%c0_42, %c256_43], %71 {strides = array<i32>} : memref<64x1152xbf16, #tpu.memory_space<vmem>>, vector<64x128xbf16>,
    %73 = vector.extract_strided_slice %66 {offsets = [192, 0], sizes = [64, 128], strides = [1, 1]} : vector<576x128xbf16> to vector<64x128xbf16>
    %c0_44 = arith.constant 0 : index
    %c384_45 = arith.constant 384 : index
    %74 = vector.load %arg26[%c0_44, %c384_45] : memref<64x1152xbf16, #tpu.memory_space<vmem>>, vector<64x128xbf16>
    tpu.vector_store %arg26[%c0_44, %c384_45], %73 {strides = array<i32>} : memref<64x1152xbf16, #tpu.memory_space<vmem>>, vector<64x128xbf16>,
    %75 = vector.extract_strided_slice %66 {offsets = [256, 0], sizes = [64, 128], strides = [1, 1]} : vector<576x128xbf16> to vector<64x128xbf16>
    %c0_46 = arith.constant 0 : index
    %c512_47 = arith.constant 512 : index
    %76 = vector.load %arg26[%c0_46, %c512_47] : memref<64x1152xbf16, #tpu.memory_space<vmem>>, vector<64x128xbf16>
    tpu.vector_store %arg26[%c0_46, %c512_47], %75 {strides = array<i32>} : memref<64x1152xbf16, #tpu.memory_space<vmem>>, vector<64x128xbf16>,
    %77 = vector.extract_strided_slice %66 {offsets = [320, 0], sizes = [64, 128], strides = [1, 1]} : vector<576x128xbf16> to vector<64x128xbf16>
    %c0_48 = arith.constant 0 : index
    %c640_49 = arith.constant 640 : index
    %78 = vector.load %arg26[%c0_48, %c640_49] : memref<64x1152xbf16, #tpu.memory_space<vmem>>, vector<64x128xbf16>
    tpu.vector_store %arg26[%c0_48, %c640_49], %77 {strides = array<i32>} : memref<64x1152xbf16, #tpu.memory_space<vmem>>, vector<64x128xbf16>,
    %79 = vector.extract_strided_slice %66 {offsets = [384, 0], sizes = [64, 128], strides = [1, 1]} : vector<576x128xbf16> to vector<64x128xbf16>
    %c0_50 = arith.constant 0 : index
    %c768_51 = arith.constant 768 : index
    %80 = vector.load %arg26[%c0_50, %c768_51] : memref<64x1152xbf16, #tpu.memory_space<vmem>>, vector<64x128xbf16>
    tpu.vector_store %arg26[%c0_50, %c768_51], %79 {strides = array<i32>} : memref<64x1152xbf16, #tpu.memory_space<vmem>>, vector<64x128xbf16>,
    %81 = vector.extract_strided_slice %66 {offsets = [448, 0], sizes = [64, 128], strides = [1, 1]} : vector<576x128xbf16> to vector<64x128xbf16>
    %c0_52 = arith.constant 0 : index
    %c896_53 = arith.constant 896 : index
    %82 = vector.load %arg26[%c0_52, %c896_53] : memref<64x1152xbf16, #tpu.memory_space<vmem>>, vector<64x128xbf16>
    tpu.vector_store %arg26[%c0_52, %c896_53], %81 {strides = array<i32>} : memref<64x1152xbf16, #tpu.memory_space<vmem>>, vector<64x128xbf16>,
    %83 = vector.extract_strided_slice %66 {offsets = [512, 0], sizes = [64, 128], strides = [1, 1]} : vector<576x128xbf16> to vector<64x128xbf16>
    %c0_54 = arith.constant 0 : index
    %c1024_55 = arith.constant 1024 : index
    %84 = vector.load %arg26[%c0_54, %c1024_55] : memref<64x1152xbf16, #tpu.memory_space<vmem>>, vector<64x128xbf16>
    tpu.vector_store %arg26[%c0_54, %c1024_55], %83 {strides = array<i32>} : memref<64x1152xbf16, #tpu.memory_space<vmem>>, vector<64x128xbf16>,
    %c0_56 = arith.constant 0 : index
    %c0_57 = arith.constant 0 : index
    %85 = vector.load %arg26[%c0_56, %c0_57] : memref<64x1152xbf16, #tpu.memory_space<vmem>>, vector<64x1152xbf16>
    %c0_58 = arith.constant 0 : index
    %c0_59 = arith.constant 0 : index
    %86 = vector.load %arg8[%c0_58, %c0_59] : memref<1152x128xbf16, #tpu.memory_space<vmem>>, vector<1152x128xbf16>
    %cst_60 = arith.constant dense<0.000000e+00> : vector<64x128xf32>
    %87 = tpu.matmul %85, %86, %cst_60 {dimension_numbers = #tpu.dot_dimension_numbers<[1], [0], [0], [1], [0, 0, 1, 1], [], []>} : vector<64x1152xbf16>, vector<1152x128xbf16>, vector<64x128xf32> -> vector<64x128xf32>
    %cst_61 = arith.constant dense<0.000000e+00> : vector<128xf32>
    %88 = vector.multi_reduction <add>, %87, %cst_61 [0] : vector<64x128xf32> to vector<128xf32>
    %89 = vector.shape_cast %88 : vector<128xf32> to vector<1x128xf32>
    %90 = arith.mulf %87, %87 : vector<64x128xf32>
    %cst_62 = arith.constant dense<0.000000e+00> : vector<128xf32>
    %91 = vector.multi_reduction <add>, %90, %cst_62 [0] : vector<64x128xf32> to vector<128xf32>
    %92 = vector.shape_cast %91 : vector<128xf32> to vector<1x128xf32>
    %c0_63 = arith.constant 0 : index
    %c0_64 = arith.constant 0 : index
    %93 = vector.load %arg9[%c0_63, %c0_64] : memref<128x128xf32, #tpu.memory_space<vmem>>, vector<128x128xf32>
    %cst_65 = arith.constant dense<0.000000e+00> : vector<1x128xf32>
    %94 = tpu.matmul %89, %93, %cst_65 {dimension_numbers = #tpu.dot_dimension_numbers<[1], [0], [0], [1], [0, 0, 1, 1], [], []>} : vector<1x128xf32>, vector<128x128xf32>, vector<1x128xf32> -> vector<1x128xf32>
    %c0_66 = arith.constant 0 : index
    %c0_67 = arith.constant 0 : index
    %95 = vector.load %arg9[%c0_66, %c0_67] : memref<128x128xf32, #tpu.memory_space<vmem>>, vector<128x128xf32>
    %cst_68 = arith.constant dense<0.000000e+00> : vector<1x128xf32>
    %96 = tpu.matmul %92, %95, %cst_68 {dimension_numbers = #tpu.dot_dimension_numbers<[1], [0], [0], [1], [0, 0, 1, 1], [], []>} : vector<1x128xf32>, vector<128x128xf32>, vector<1x128xf32> -> vector<1x128xf32>
    %97 = arith.mulf %94, %94 : vector<1x128xf32>
    %98 = arith.subf %96, %97 : vector<1x128xf32>
    %cst_69 = arith.constant 0.000000e+00 : f32
    %99 = vector.broadcast %cst_69 : f32 to vector<1x128xf32>
    %100 = arith.maximumf %98, %99 : vector<1x128xf32>
    %101 = vector.broadcast %94 : vector<1x128xf32> to vector<64x128xf32>
    %102 = arith.subf %87, %101 : vector<64x128xf32>
    %cst_70 = arith.constant 9.99999974E-6 : f32
    %103 = vector.broadcast %cst_70 : f32 to vector<1x128xf32>
    %104 = arith.addf %100, %103 : vector<1x128xf32>
    %105 = math.rsqrt %104 : vector<1x128xf32>
    %106 = vector.broadcast %105 : vector<1x128xf32> to vector<64x128xf32>
    %107 = arith.mulf %102, %106 : vector<64x128xf32>
    %c0_71 = arith.constant 0 : index
    %c0_72 = arith.constant 0 : index
    %108 = vector.load %arg10[%c0_71, %c0_72] : memref<1x128xf32, #tpu.memory_space<vmem>>, vector<1x128xf32>
    %109 = vector.broadcast %108 : vector<1x128xf32> to vector<64x128xf32>
    %110 = arith.mulf %107, %109 : vector<64x128xf32>
    %c0_73 = arith.constant 0 : index
    %c0_74 = arith.constant 0 : index
    %111 = vector.load %arg11[%c0_73, %c0_74] : memref<1x128xf32, #tpu.memory_space<vmem>>, vector<1x128xf32>
    %112 = vector.broadcast %111 : vector<1x128xf32> to vector<64x128xf32>
    %113 = arith.addf %110, %112 : vector<64x128xf32>
    %114 = math.absf %113 : vector<64x128xf32>
    %cst_75 = arith.constant 0.000000e+00 : f32
    %115 = vector.broadcast %cst_75 : f32 to vector<64x128xf32>
    %116 = arith.subf %115, %114 : vector<64x128xf32>
    %117 = math.exp %116 : vector<64x128xf32>
    %cst_76 = arith.constant 1.000000e+00 : f32
    %118 = vector.broadcast %cst_76 : f32 to vector<64x128xf32>
    %119 = arith.addf %118, %117 : vector<64x128xf32>
    %120 = math.log %119 : vector<64x128xf32>
    %cst_77 = arith.constant 0.000000e+00 : f32
    %121 = vector.broadcast %cst_77 : f32 to vector<64x128xf32>
    %122 = arith.maximumf %113, %121 : vector<64x128xf32>
    %123 = arith.addf %120, %122 : vector<64x128xf32>
    %124 = math.tanh %123 : vector<64x128xf32>
    %125 = arith.mulf %113, %124 : vector<64x128xf32>
    %c0_78 = arith.constant 0 : index
    %c0_79 = arith.constant 0 : index
    %126 = vector.load %arg3[%c0_78, %c0_79] : memref<576x64xbf16, #tpu.memory_space<vmem>>, vector<576x64xbf16>
    %127 = arith.truncf %125 : vector<64x128xf32> to vector<64x128xbf16>
    %cst_80 = arith.constant dense<0.000000e+00> : vector<576x128xf32>
    %128 = tpu.matmul %126, %127, %cst_80 {dimension_numbers = #tpu.dot_dimension_numbers<[1], [0], [0], [1], [0, 0, 1, 1], [], []>} : vector<576x64xbf16>, vector<64x128xbf16>, vector<576x128xf32> -> vector<576x128xf32>
    %129 = arith.truncf %128 : vector<576x128xf32> to vector<576x128xbf16>
    %130 = vector.extract_strided_slice %129 {offsets = [0, 0], sizes = [64, 128], strides = [1, 1]} : vector<576x128xbf16> to vector<64x128xbf16>
    %c0_81 = arith.constant 0 : index
    %c0_82 = arith.constant 0 : index
    %131 = vector.load %arg26[%c0_81, %c0_82] : memref<64x1152xbf16, #tpu.memory_space<vmem>>, vector<64x128xbf16>
    tpu.vector_store %arg26[%c0_81, %c0_82], %130 {strides = array<i32>} : memref<64x1152xbf16, #tpu.memory_space<vmem>>, vector<64x128xbf16>,
    %132 = vector.extract_strided_slice %129 {offsets = [64, 0], sizes = [64, 128], strides = [1, 1]} : vector<576x128xbf16> to vector<64x128xbf16>
    %c0_83 = arith.constant 0 : index
    %c128_84 = arith.constant 128 : index
    %133 = vector.load %arg26[%c0_83, %c128_84] : memref<64x1152xbf16, #tpu.memory_space<vmem>>, vector<64x128xbf16>
    tpu.vector_store %arg26[%c0_83, %c128_84], %132 {strides = array<i32>} : memref<64x1152xbf16, #tpu.memory_space<vmem>>, vector<64x128xbf16>,
    %134 = vector.extract_strided_slice %129 {offsets = [128, 0], sizes = [64, 128], strides = [1, 1]} : vector<576x128xbf16> to vector<64x128xbf16>
    %c0_85 = arith.constant 0 : index
    %c256_86 = arith.constant 256 : index
    %135 = vector.load %arg26[%c0_85, %c256_86] : memref<64x1152xbf16, #tpu.memory_space<vmem>>, vector<64x128xbf16>
    tpu.vector_store %arg26[%c0_85, %c256_86], %134 {strides = array<i32>} : memref<64x1152xbf16, #tpu.memory_space<vmem>>, vector<64x128xbf16>,
    %136 = vector.extract_strided_slice %129 {offsets = [192, 0], sizes = [64, 128], strides = [1, 1]} : vector<576x128xbf16> to vector<64x128xbf16>
    %c0_87 = arith.constant 0 : index
    %c384_88 = arith.constant 384 : index
    %137 = vector.load %arg26[%c0_87, %c384_88] : memref<64x1152xbf16, #tpu.memory_space<vmem>>, vector<64x128xbf16>
    tpu.vector_store %arg26[%c0_87, %c384_88], %136 {strides = array<i32>} : memref<64x1152xbf16, #tpu.memory_space<vmem>>, vector<64x128xbf16>,
    %138 = vector.extract_strided_slice %129 {offsets = [256, 0], sizes = [64, 128], strides = [1, 1]} : vector<576x128xbf16> to vector<64x128xbf16>
    %c0_89 = arith.constant 0 : index
    %c512_90 = arith.constant 512 : index
    %139 = vector.load %arg26[%c0_89, %c512_90] : memref<64x1152xbf16, #tpu.memory_space<vmem>>, vector<64x128xbf16>
    tpu.vector_store %arg26[%c0_89, %c512_90], %138 {strides = array<i32>} : memref<64x1152xbf16, #tpu.memory_space<vmem>>, vector<64x128xbf16>,
    %140 = vector.extract_strided_slice %129 {offsets = [320, 0], sizes = [64, 128], strides = [1, 1]} : vector<576x128xbf16> to vector<64x128xbf16>
    %c0_91 = arith.constant 0 : index
    %c640_92 = arith.constant 640 : index
    %141 = vector.load %arg26[%c0_91, %c640_92] : memref<64x1152xbf16, #tpu.memory_space<vmem>>, vector<64x128xbf16>
    tpu.vector_store %arg26[%c0_91, %c640_92], %140 {strides = array<i32>} : memref<64x1152xbf16, #tpu.memory_space<vmem>>, vector<64x128xbf16>,
    %142 = vector.extract_strided_slice %129 {offsets = [384, 0], sizes = [64, 128], strides = [1, 1]} : vector<576x128xbf16> to vector<64x128xbf16>
    %c0_93 = arith.constant 0 : index
    %c768_94 = arith.constant 768 : index
    %143 = vector.load %arg26[%c0_93, %c768_94] : memref<64x1152xbf16, #tpu.memory_space<vmem>>, vector<64x128xbf16>
    tpu.vector_store %arg26[%c0_93, %c768_94], %142 {strides = array<i32>} : memref<64x1152xbf16, #tpu.memory_space<vmem>>, vector<64x128xbf16>,
    %144 = vector.extract_strided_slice %129 {offsets = [448, 0], sizes = [64, 128], strides = [1, 1]} : vector<576x128xbf16> to vector<64x128xbf16>
    %c0_95 = arith.constant 0 : index
    %c896_96 = arith.constant 896 : index
    %145 = vector.load %arg26[%c0_95, %c896_96] : memref<64x1152xbf16, #tpu.memory_space<vmem>>, vector<64x128xbf16>
    tpu.vector_store %arg26[%c0_95, %c896_96], %144 {strides = array<i32>} : memref<64x1152xbf16, #tpu.memory_space<vmem>>, vector<64x128xbf16>,
    %146 = vector.extract_strided_slice %129 {offsets = [512, 0], sizes = [64, 128], strides = [1, 1]} : vector<576x128xbf16> to vector<64x128xbf16>
    %c0_97 = arith.constant 0 : index
    %c1024_98 = arith.constant 1024 : index
    %147 = vector.load %arg26[%c0_97, %c1024_98] : memref<64x1152xbf16, #tpu.memory_space<vmem>>, vector<64x128xbf16>
    tpu.vector_store %arg26[%c0_97, %c1024_98], %146 {strides = array<i32>} : memref<64x1152xbf16, #tpu.memory_space<vmem>>, vector<64x128xbf16>,
    %c0_99 = arith.constant 0 : index
    %c0_100 = arith.constant 0 : index
    %148 = vector.load %arg26[%c0_99, %c0_100] : memref<64x1152xbf16, #tpu.memory_space<vmem>>, vector<64x1152xbf16>
    %c0_101 = arith.constant 0 : index
    %c0_102 = arith.constant 0 : index
    %149 = vector.load %arg12[%c0_101, %c0_102] : memref<1152x128xbf16, #tpu.memory_space<vmem>>, vector<1152x128xbf16>
    %cst_103 = arith.constant dense<0.000000e+00> : vector<64x128xf32>
    %150 = tpu.matmul %148, %149, %cst_103 {dimension_numbers = #tpu.dot_dimension_numbers<[1], [0], [0], [1], [0, 0, 1, 1], [], []>} : vector<64x1152xbf16>, vector<1152x128xbf16>, vector<64x128xf32> -> vector<64x128xf32>
    %cst_104 = arith.constant dense<0.000000e+00> : vector<128xf32>
    %151 = vector.multi_reduction <add>, %150, %cst_104 [0] : vector<64x128xf32> to vector<128xf32>
    %152 = vector.shape_cast %151 : vector<128xf32> to vector<1x128xf32>
    %153 = arith.mulf %150, %150 : vector<64x128xf32>
    %cst_105 = arith.constant dense<0.000000e+00> : vector<128xf32>
    %154 = vector.multi_reduction <add>, %153, %cst_105 [0] : vector<64x128xf32> to vector<128xf32>
    %155 = vector.shape_cast %154 : vector<128xf32> to vector<1x128xf32>
    %c0_106 = arith.constant 0 : index
    %c0_107 = arith.constant 0 : index
    %156 = vector.load %arg13[%c0_106, %c0_107] : memref<128x128xf32, #tpu.memory_space<vmem>>, vector<128x128xf32>
    %cst_108 = arith.constant dense<0.000000e+00> : vector<1x128xf32>
    %157 = tpu.matmul %152, %156, %cst_108 {dimension_numbers = #tpu.dot_dimension_numbers<[1], [0], [0], [1], [0, 0, 1, 1], [], []>} : vector<1x128xf32>, vector<128x128xf32>, vector<1x128xf32> -> vector<1x128xf32>
    %c0_109 = arith.constant 0 : index
    %c0_110 = arith.constant 0 : index
    %158 = vector.load %arg13[%c0_109, %c0_110] : memref<128x128xf32, #tpu.memory_space<vmem>>, vector<128x128xf32>
    %cst_111 = arith.constant dense<0.000000e+00> : vector<1x128xf32>
    %159 = tpu.matmul %155, %158, %cst_111 {dimension_numbers = #tpu.dot_dimension_numbers<[1], [0], [0], [1], [0, 0, 1, 1], [], []>} : vector<1x128xf32>, vector<128x128xf32>, vector<1x128xf32> -> vector<1x128xf32>
    %160 = arith.mulf %157, %157 : vector<1x128xf32>
    %161 = arith.subf %159, %160 : vector<1x128xf32>
    %cst_112 = arith.constant 0.000000e+00 : f32
    %162 = vector.broadcast %cst_112 : f32 to vector<1x128xf32>
    %163 = arith.maximumf %161, %162 : vector<1x128xf32>
    %164 = vector.broadcast %157 : vector<1x128xf32> to vector<64x128xf32>
    %165 = arith.subf %150, %164 : vector<64x128xf32>
    %cst_113 = arith.constant 9.99999974E-6 : f32
    %166 = vector.broadcast %cst_113 : f32 to vector<1x128xf32>
    %167 = arith.addf %163, %166 : vector<1x128xf32>
    %168 = math.rsqrt %167 : vector<1x128xf32>
    %169 = vector.broadcast %168 : vector<1x128xf32> to vector<64x128xf32>
    %170 = arith.mulf %165, %169 : vector<64x128xf32>
    %c0_114 = arith.constant 0 : index
    %c0_115 = arith.constant 0 : index
    %171 = vector.load %arg14[%c0_114, %c0_115] : memref<1x128xf32, #tpu.memory_space<vmem>>, vector<1x128xf32>
    %172 = vector.broadcast %171 : vector<1x128xf32> to vector<64x128xf32>
    %173 = arith.mulf %170, %172 : vector<64x128xf32>
    %c0_116 = arith.constant 0 : index
    %c0_117 = arith.constant 0 : index
    %174 = vector.load %arg15[%c0_116, %c0_117] : memref<1x128xf32, #tpu.memory_space<vmem>>, vector<1x128xf32>
    %175 = vector.broadcast %174 : vector<1x128xf32> to vector<64x128xf32>
    %176 = arith.addf %173, %175 : vector<64x128xf32>
    %177 = math.absf %176 : vector<64x128xf32>
    %cst_118 = arith.constant 0.000000e+00 : f32
    %178 = vector.broadcast %cst_118 : f32 to vector<64x128xf32>
    %179 = arith.subf %178, %177 : vector<64x128xf32>
    %180 = math.exp %179 : vector<64x128xf32>
    %cst_119 = arith.constant 1.000000e+00 : f32
    %181 = vector.broadcast %cst_119 : f32 to vector<64x128xf32>
    %182 = arith.addf %181, %180 : vector<64x128xf32>
    %183 = math.log %182 : vector<64x128xf32>
    %cst_120 = arith.constant 0.000000e+00 : f32
    %184 = vector.broadcast %cst_120 : f32 to vector<64x128xf32>
    %185 = arith.maximumf %176, %184 : vector<64x128xf32>
    %186 = arith.addf %183, %185 : vector<64x128xf32>
    %187 = math.tanh %186 : vector<64x128xf32>
    %188 = arith.mulf %176, %187 : vector<64x128xf32>
    %c0_121 = arith.constant 0 : index
    %c0_122 = arith.constant 0 : index
    %189 = vector.load %arg3[%c0_121, %c0_122] : memref<576x64xbf16, #tpu.memory_space<vmem>>, vector<576x64xbf16>
    %190 = arith.truncf %188 : vector<64x128xf32> to vector<64x128xbf16>
    %cst_123 = arith.constant dense<0.000000e+00> : vector<576x128xf32>
    %191 = tpu.matmul %189, %190, %cst_123 {dimension_numbers = #tpu.dot_dimension_numbers<[1], [0], [0], [1], [0, 0, 1, 1], [], []>} : vector<576x64xbf16>, vector<64x128xbf16>, vector<576x128xf32> -> vector<576x128xf32>
    %192 = arith.truncf %191 : vector<576x128xf32> to vector<576x128xbf16>
    %193 = vector.extract_strided_slice %192 {offsets = [0, 0], sizes = [64, 128], strides = [1, 1]} : vector<576x128xbf16> to vector<64x128xbf16>
    %c0_124 = arith.constant 0 : index
    %c0_125 = arith.constant 0 : index
    %194 = vector.load %arg26[%c0_124, %c0_125] : memref<64x1152xbf16, #tpu.memory_space<vmem>>, vector<64x128xbf16>
    tpu.vector_store %arg26[%c0_124, %c0_125], %193 {strides = array<i32>} : memref<64x1152xbf16, #tpu.memory_space<vmem>>, vector<64x128xbf16>,
    %195 = vector.extract_strided_slice %192 {offsets = [64, 0], sizes = [64, 128], strides = [1, 1]} : vector<576x128xbf16> to vector<64x128xbf16>
    %c0_126 = arith.constant 0 : index
    %c128_127 = arith.constant 128 : index
    %196 = vector.load %arg26[%c0_126, %c128_127] : memref<64x1152xbf16, #tpu.memory_space<vmem>>, vector<64x128xbf16>
    tpu.vector_store %arg26[%c0_126, %c128_127], %195 {strides = array<i32>} : memref<64x1152xbf16, #tpu.memory_space<vmem>>, vector<64x128xbf16>,
    %197 = vector.extract_strided_slice %192 {offsets = [128, 0], sizes = [64, 128], strides = [1, 1]} : vector<576x128xbf16> to vector<64x128xbf16>
    %c0_128 = arith.constant 0 : index
    %c256_129 = arith.constant 256 : index
    %198 = vector.load %arg26[%c0_128, %c256_129] : memref<64x1152xbf16, #tpu.memory_space<vmem>>, vector<64x128xbf16>
    tpu.vector_store %arg26[%c0_128, %c256_129], %197 {strides = array<i32>} : memref<64x1152xbf16, #tpu.memory_space<vmem>>, vector<64x128xbf16>,
    %199 = vector.extract_strided_slice %192 {offsets = [192, 0], sizes = [64, 128], strides = [1, 1]} : vector<576x128xbf16> to vector<64x128xbf16>
    %c0_130 = arith.constant 0 : index
    %c384_131 = arith.constant 384 : index
    %200 = vector.load %arg26[%c0_130, %c384_131] : memref<64x1152xbf16, #tpu.memory_space<vmem>>, vector<64x128xbf16>
    tpu.vector_store %arg26[%c0_130, %c384_131], %199 {strides = array<i32>} : memref<64x1152xbf16, #tpu.memory_space<vmem>>, vector<64x128xbf16>,
    %201 = vector.extract_strided_slice %192 {offsets = [256, 0], sizes = [64, 128], strides = [1, 1]} : vector<576x128xbf16> to vector<64x128xbf16>
    %c0_132 = arith.constant 0 : index
    %c512_133 = arith.constant 512 : index
    %202 = vector.load %arg26[%c0_132, %c512_133] : memref<64x1152xbf16, #tpu.memory_space<vmem>>, vector<64x128xbf16>
    tpu.vector_store %arg26[%c0_132, %c512_133], %201 {strides = array<i32>} : memref<64x1152xbf16, #tpu.memory_space<vmem>>, vector<64x128xbf16>,
    %203 = vector.extract_strided_slice %192 {offsets = [320, 0], sizes = [64, 128], strides = [1, 1]} : vector<576x128xbf16> to vector<64x128xbf16>
    %c0_134 = arith.constant 0 : index
    %c640_135 = arith.constant 640 : index
    %204 = vector.load %arg26[%c0_134, %c640_135] : memref<64x1152xbf16, #tpu.memory_space<vmem>>, vector<64x128xbf16>
    tpu.vector_store %arg26[%c0_134, %c640_135], %203 {strides = array<i32>} : memref<64x1152xbf16, #tpu.memory_space<vmem>>, vector<64x128xbf16>,
    %205 = vector.extract_strided_slice %192 {offsets = [384, 0], sizes = [64, 128], strides = [1, 1]} : vector<576x128xbf16> to vector<64x128xbf16>
    %c0_136 = arith.constant 0 : index
    %c768_137 = arith.constant 768 : index
    %206 = vector.load %arg26[%c0_136, %c768_137] : memref<64x1152xbf16, #tpu.memory_space<vmem>>, vector<64x128xbf16>
    tpu.vector_store %arg26[%c0_136, %c768_137], %205 {strides = array<i32>} : memref<64x1152xbf16, #tpu.memory_space<vmem>>, vector<64x128xbf16>,
    %207 = vector.extract_strided_slice %192 {offsets = [448, 0], sizes = [64, 128], strides = [1, 1]} : vector<576x128xbf16> to vector<64x128xbf16>
    %c0_138 = arith.constant 0 : index
    %c896_139 = arith.constant 896 : index
    %208 = vector.load %arg26[%c0_138, %c896_139] : memref<64x1152xbf16, #tpu.memory_space<vmem>>, vector<64x128xbf16>
    tpu.vector_store %arg26[%c0_138, %c896_139], %207 {strides = array<i32>} : memref<64x1152xbf16, #tpu.memory_space<vmem>>, vector<64x128xbf16>,
    %209 = vector.extract_strided_slice %192 {offsets = [512, 0], sizes = [64, 128], strides = [1, 1]} : vector<576x128xbf16> to vector<64x128xbf16>
    %c0_140 = arith.constant 0 : index
    %c1024_141 = arith.constant 1024 : index
    %210 = vector.load %arg26[%c0_140, %c1024_141] : memref<64x1152xbf16, #tpu.memory_space<vmem>>, vector<64x128xbf16>
    tpu.vector_store %arg26[%c0_140, %c1024_141], %209 {strides = array<i32>} : memref<64x1152xbf16, #tpu.memory_space<vmem>>, vector<64x128xbf16>,
    %c0_142 = arith.constant 0 : index
    %c0_143 = arith.constant 0 : index
    %211 = vector.load %arg26[%c0_142, %c0_143] : memref<64x1152xbf16, #tpu.memory_space<vmem>>, vector<64x1152xbf16>
    %c0_144 = arith.constant 0 : index
    %c0_145 = arith.constant 0 : index
    %212 = vector.load %arg16[%c0_144, %c0_145] : memref<1152x128xbf16, #tpu.memory_space<vmem>>, vector<1152x128xbf16>
    %cst_146 = arith.constant dense<0.000000e+00> : vector<64x128xf32>
    %213 = tpu.matmul %211, %212, %cst_146 {dimension_numbers = #tpu.dot_dimension_numbers<[1], [0], [0], [1], [0, 0, 1, 1], [], []>} : vector<64x1152xbf16>, vector<1152x128xbf16>, vector<64x128xf32> -> vector<64x128xf32>
    %cst_147 = arith.constant dense<0.000000e+00> : vector<128xf32>
    %214 = vector.multi_reduction <add>, %213, %cst_147 [0] : vector<64x128xf32> to vector<128xf32>
    %215 = vector.shape_cast %214 : vector<128xf32> to vector<1x128xf32>
    %216 = arith.mulf %213, %213 : vector<64x128xf32>
    %cst_148 = arith.constant dense<0.000000e+00> : vector<128xf32>
    %217 = vector.multi_reduction <add>, %216, %cst_148 [0] : vector<64x128xf32> to vector<128xf32>
    %218 = vector.shape_cast %217 : vector<128xf32> to vector<1x128xf32>
    %c0_149 = arith.constant 0 : index
    %c0_150 = arith.constant 0 : index
    %219 = vector.load %arg17[%c0_149, %c0_150] : memref<128x128xf32, #tpu.memory_space<vmem>>, vector<128x128xf32>
    %cst_151 = arith.constant dense<0.000000e+00> : vector<1x128xf32>
    %220 = tpu.matmul %215, %219, %cst_151 {dimension_numbers = #tpu.dot_dimension_numbers<[1], [0], [0], [1], [0, 0, 1, 1], [], []>} : vector<1x128xf32>, vector<128x128xf32>, vector<1x128xf32> -> vector<1x128xf32>
    %c0_152 = arith.constant 0 : index
    %c0_153 = arith.constant 0 : index
    %221 = vector.load %arg17[%c0_152, %c0_153] : memref<128x128xf32, #tpu.memory_space<vmem>>, vector<128x128xf32>
    %cst_154 = arith.constant dense<0.000000e+00> : vector<1x128xf32>
    %222 = tpu.matmul %218, %221, %cst_154 {dimension_numbers = #tpu.dot_dimension_numbers<[1], [0], [0], [1], [0, 0, 1, 1], [], []>} : vector<1x128xf32>, vector<128x128xf32>, vector<1x128xf32> -> vector<1x128xf32>
    %223 = arith.mulf %220, %220 : vector<1x128xf32>
    %224 = arith.subf %222, %223 : vector<1x128xf32>
    %cst_155 = arith.constant 0.000000e+00 : f32
    %225 = vector.broadcast %cst_155 : f32 to vector<1x128xf32>
    %226 = arith.maximumf %224, %225 : vector<1x128xf32>
    %227 = vector.broadcast %220 : vector<1x128xf32> to vector<64x128xf32>
    %228 = arith.subf %213, %227 : vector<64x128xf32>
    %cst_156 = arith.constant 9.99999974E-6 : f32
    %229 = vector.broadcast %cst_156 : f32 to vector<1x128xf32>
    %230 = arith.addf %226, %229 : vector<1x128xf32>
    %231 = math.rsqrt %230 : vector<1x128xf32>
    %232 = vector.broadcast %231 : vector<1x128xf32> to vector<64x128xf32>
    %233 = arith.mulf %228, %232 : vector<64x128xf32>
    %c0_157 = arith.constant 0 : index
    %c0_158 = arith.constant 0 : index
    %234 = vector.load %arg18[%c0_157, %c0_158] : memref<1x128xf32, #tpu.memory_space<vmem>>, vector<1x128xf32>
    %235 = vector.broadcast %234 : vector<1x128xf32> to vector<64x128xf32>
    %236 = arith.mulf %233, %235 : vector<64x128xf32>
    %c0_159 = arith.constant 0 : index
    %c0_160 = arith.constant 0 : index
    %237 = vector.load %arg19[%c0_159, %c0_160] : memref<1x128xf32, #tpu.memory_space<vmem>>, vector<1x128xf32>
    %238 = vector.broadcast %237 : vector<1x128xf32> to vector<64x128xf32>
    %239 = arith.addf %236, %238 : vector<64x128xf32>
    %240 = math.absf %239 : vector<64x128xf32>
    %cst_161 = arith.constant 0.000000e+00 : f32
    %241 = vector.broadcast %cst_161 : f32 to vector<64x128xf32>
    %242 = arith.subf %241, %240 : vector<64x128xf32>
    %243 = math.exp %242 : vector<64x128xf32>
    %cst_162 = arith.constant 1.000000e+00 : f32
    %244 = vector.broadcast %cst_162 : f32 to vector<64x128xf32>
    %245 = arith.addf %244, %243 : vector<64x128xf32>
    %246 = math.log %245 : vector<64x128xf32>
    %cst_163 = arith.constant 0.000000e+00 : f32
    %247 = vector.broadcast %cst_163 : f32 to vector<64x128xf32>
    %248 = arith.maximumf %239, %247 : vector<64x128xf32>
    %249 = arith.addf %246, %248 : vector<64x128xf32>
    %250 = math.tanh %249 : vector<64x128xf32>
    %251 = arith.mulf %239, %250 : vector<64x128xf32>
    %252 = tpu.iota {dimensions = array<i32: 1>} : vector<1x128xi32>
    %c0_i32 = arith.constant 0 : i32
    %253 = vector.broadcast %c0_i32 : i32 to vector<1x128xi32>
    %254 = arith.cmpi sge, %252, %253 : vector<1x128xi32>
    %c64_i32 = arith.constant 64 : i32
    %255 = vector.broadcast %c64_i32 : i32 to vector<1x128xi32>
    %256 = arith.cmpi slt, %252, %255 : vector<1x128xi32>
    %257 = arith.andi %254, %256 : vector<1x128xi1>
    %c64_i32_164 = arith.constant 64 : i32
    %258 = vector.broadcast %c64_i32_164 : i32 to vector<1x128xi32>
    %259 = arith.cmpi sge, %252, %258 : vector<1x128xi32>
    %c128_i32 = arith.constant 128 : i32
    %260 = vector.broadcast %c128_i32 : i32 to vector<1x128xi32>
    %261 = arith.cmpi slt, %252, %260 : vector<1x128xi32>
    %262 = arith.andi %259, %261 : vector<1x128xi1>
    %cst_165 = arith.constant 0.000000e+00 : f32
    %263 = vector.broadcast %cst_165 : f32 to vector<64x128xf32>
    %264 = arith.extui %257 : vector<1x128xi1> to vector<1x128xi32>
    %265 = arith.sitofp %264 : vector<1x128xi32> to vector<1x128xf32>
    %266 = vector.broadcast %265 : vector<1x128xf32> to vector<64x128xf32>
    %267 = arith.mulf %251, %266 : vector<64x128xf32>
    %cst_166 = arith.constant dense<0.000000e+00> : vector<64xf32>
    %268 = vector.multi_reduction <add>, %267, %cst_166 [1] : vector<64x128xf32> to vector<64xf32>
    %269 = vector.shape_cast %268 : vector<64xf32> to vector<64x1xf32>
    %cst_167 = arith.constant 1.562500e-02 : f32
    %270 = vector.broadcast %cst_167 : f32 to vector<64x1xf32>
    %271 = arith.mulf %269, %270 : vector<64x1xf32>
    %cst_168 = arith.constant 0xFF800000 : f32
    %272 = vector.shape_cast %257 : vector<1x128xi1> to vector<1x128xi1>
    %273 = vector.broadcast %272 : vector<1x128xi1> to vector<64x128xi1>
    %274 = vector.broadcast %cst_168 : f32 to vector<64x128xf32>
    %275 = arith.select %273, %251, %274 : vector<64x128xi1>, vector<64x128xf32>
    %cst_169 = arith.constant dense<0xFF800000> : vector<64xf32>
    %276 = vector.multi_reduction <maximumf>, %275, %cst_169 [1] : vector<64x128xf32> to vector<64xf32>
    %277 = vector.shape_cast %276 : vector<64xf32> to vector<64x1xf32>
    %c0_170 = arith.constant 0 : index
    %c0_171 = arith.constant 0 : index
    %278 = vector.load %arg20[%c0_170, %c0_171] : memref<64x64xf32, #tpu.memory_space<vmem>>, vector<64x64xf32>
    %cst_172 = arith.constant dense<0.000000e+00> : vector<64x1xf32>
    %279 = tpu.matmul %278, %271, %cst_172 {dimension_numbers = #tpu.dot_dimension_numbers<[1], [0], [0], [1], [0, 0, 1, 1], [], []>} : vector<64x64xf32>, vector<64x1xf32>, vector<64x1xf32> -> vector<64x1xf32>
    %c0_173 = arith.constant 0 : index
    %c0_174 = arith.constant 0 : index
    %280 = vector.load %arg21[%c0_173, %c0_174] : memref<64x64xf32, #tpu.memory_space<vmem>>, vector<64x64xf32>
    %cst_175 = arith.constant dense<0.000000e+00> : vector<64x1xf32>
    %281 = tpu.matmul %280, %277, %cst_175 {dimension_numbers = #tpu.dot_dimension_numbers<[1], [0], [0], [1], [0, 0, 1, 1], [], []>} : vector<64x64xf32>, vector<64x1xf32>, vector<64x1xf32> -> vector<64x1xf32>
    %282 = arith.addf %279, %281 : vector<64x1xf32>
    %c0_176 = arith.constant 0 : index
    %c0_177 = arith.constant 0 : index
    %283 = vector.load %arg22[%c0_176, %c0_177] : memref<1x1xf32, #tpu.memory_space<vmem>>, vector<1x1xf32>
    %284 = vector.broadcast %283 : vector<1x1xf32> to vector<64x1xf32>
    %285 = arith.addf %282, %284 : vector<64x1xf32>
    %cst_178 = arith.constant 0.000000e+00 : f32
    %286 = vector.broadcast %cst_178 : f32 to vector<64x1xf32>
    %287 = arith.subf %286, %285 : vector<64x1xf32>
    %288 = math.exp %287 : vector<64x1xf32>
    %cst_179 = arith.constant 1.000000e+00 : f32
    %289 = vector.broadcast %cst_179 : f32 to vector<64x1xf32>
    %290 = arith.addf %289, %288 : vector<64x1xf32>
    %cst_180 = arith.constant 1.000000e+00 : f32
    %291 = vector.broadcast %cst_180 : f32 to vector<64x1xf32>
    %292 = arith.divf %291, %290 : vector<64x1xf32>
    %293 = vector.broadcast %292 : vector<64x1xf32> to vector<64x128xf32>
    %294 = vector.broadcast %265 : vector<1x128xf32> to vector<64x128xf32>
    %295 = arith.mulf %293, %294 : vector<64x128xf32>
    %296 = arith.addf %263, %295 : vector<64x128xf32>
    %297 = arith.extui %262 : vector<1x128xi1> to vector<1x128xi32>
    %298 = arith.sitofp %297 : vector<1x128xi32> to vector<1x128xf32>
    %299 = vector.broadcast %298 : vector<1x128xf32> to vector<64x128xf32>
    %300 = arith.mulf %251, %299 : vector<64x128xf32>
    %cst_181 = arith.constant dense<0.000000e+00> : vector<64xf32>
    %301 = vector.multi_reduction <add>, %300, %cst_181 [1] : vector<64x128xf32> to vector<64xf32>
    %302 = vector.shape_cast %301 : vector<64xf32> to vector<64x1xf32>
    %cst_182 = arith.constant 1.562500e-02 : f32
    %303 = vector.broadcast %cst_182 : f32 to vector<64x1xf32>
    %304 = arith.mulf %302, %303 : vector<64x1xf32>
    %cst_183 = arith.constant 0xFF800000 : f32
    %305 = vector.shape_cast %262 : vector<1x128xi1> to vector<1x128xi1>
    %306 = vector.broadcast %305 : vector<1x128xi1> to vector<64x128xi1>
    %307 = vector.broadcast %cst_183 : f32 to vector<64x128xf32>
    %308 = arith.select %306, %251, %307 : vector<64x128xi1>, vector<64x128xf32>
    %cst_184 = arith.constant dense<0xFF800000> : vector<64xf32>
    %309 = vector.multi_reduction <maximumf>, %308, %cst_184 [1] : vector<64x128xf32> to vector<64xf32>
    %310 = vector.shape_cast %309 : vector<64xf32> to vector<64x1xf32>
    %c0_185 = arith.constant 0 : index
    %c0_186 = arith.constant 0 : index
    %311 = vector.load %arg20[%c0_185, %c0_186] : memref<64x64xf32, #tpu.memory_space<vmem>>, vector<64x64xf32>
    %cst_187 = arith.constant dense<0.000000e+00> : vector<64x1xf32>
    %312 = tpu.matmul %311, %304, %cst_187 {dimension_numbers = #tpu.dot_dimension_numbers<[1], [0], [0], [1], [0, 0, 1, 1], [], []>} : vector<64x64xf32>, vector<64x1xf32>, vector<64x1xf32> -> vector<64x1xf32>
    %c0_188 = arith.constant 0 : index
    %c0_189 = arith.constant 0 : index
    %313 = vector.load %arg21[%c0_188, %c0_189] : memref<64x64xf32, #tpu.memory_space<vmem>>, vector<64x64xf32>
    %cst_190 = arith.constant dense<0.000000e+00> : vector<64x1xf32>
    %314 = tpu.matmul %313, %310, %cst_190 {dimension_numbers = #tpu.dot_dimension_numbers<[1], [0], [0], [1], [0, 0, 1, 1], [], []>} : vector<64x64xf32>, vector<64x1xf32>, vector<64x1xf32> -> vector<64x1xf32>
    %315 = arith.addf %312, %314 : vector<64x1xf32>
    %c0_191 = arith.constant 0 : index
    %c0_192 = arith.constant 0 : index
    %316 = vector.load %arg22[%c0_191, %c0_192] : memref<1x1xf32, #tpu.memory_space<vmem>>, vector<1x1xf32>
    %317 = vector.broadcast %316 : vector<1x1xf32> to vector<64x1xf32>
    %318 = arith.addf %315, %317 : vector<64x1xf32>
    %cst_193 = arith.constant 0.000000e+00 : f32
    %319 = vector.broadcast %cst_193 : f32 to vector<64x1xf32>
    %320 = arith.subf %319, %318 : vector<64x1xf32>
    %321 = math.exp %320 : vector<64x1xf32>
    %cst_194 = arith.constant 1.000000e+00 : f32
    %322 = vector.broadcast %cst_194 : f32 to vector<64x1xf32>
    %323 = arith.addf %322, %321 : vector<64x1xf32>
    %cst_195 = arith.constant 1.000000e+00 : f32
    %324 = vector.broadcast %cst_195 : f32 to vector<64x1xf32>
    %325 = arith.divf %324, %323 : vector<64x1xf32>
    %326 = vector.broadcast %325 : vector<64x1xf32> to vector<64x128xf32>
    %327 = vector.broadcast %298 : vector<1x128xf32> to vector<64x128xf32>
    %328 = arith.mulf %326, %327 : vector<64x128xf32>
    %329 = arith.addf %296, %328 : vector<64x128xf32>
    %cst_196 = arith.constant 1.000000e+00 : f32
    %330 = vector.broadcast %cst_196 : f32 to vector<64x128xf32>
    %331 = arith.addf %330, %329 : vector<64x128xf32>
    %332 = arith.mulf %251, %331 : vector<64x128xf32>
    %cst_197 = arith.constant 0.000000e+00 : f32
    %333 = vector.broadcast %cst_197 : f32 to vector<1x128xf32>
    %334 = arith.extui %257 : vector<1x128xi1> to vector<1x128xi32>
    %335 = arith.sitofp %334 : vector<1x128xi32> to vector<1x128xf32>
    %336 = vector.broadcast %335 : vector<1x128xf32> to vector<64x128xf32>
    %337 = arith.mulf %332, %336 : vector<64x128xf32>
    %338 = vector.shape_cast %337 : vector<64x128xf32> to vector<1x64x128xf32>
    %cst_198 = arith.constant dense<0.000000e+00> : vector<1xf32>
    %339 = vector.multi_reduction <add>, %338, %cst_198 [1, 2] : vector<1x64x128xf32> to vector<1xf32>
    %340 = vector.shape_cast %339 : vector<1xf32> to vector<1x1x1xf32>
    %341 = vector.extract %340[0, 0, 0] : f32 from vector<1x1x1xf32>
    %cst_199 = arith.constant 4.096000e+03 : f32
    %342 = arith.divf %341, %cst_199 : f32
    %343 = vector.broadcast %342 : f32 to vector<1x128xf32>
    %344 = arith.mulf %343, %335 : vector<1x128xf32>
    %345 = arith.addf %333, %344 : vector<1x128xf32>
    %346 = arith.extui %262 : vector<1x128xi1> to vector<1x128xi32>
    %347 = arith.sitofp %346 : vector<1x128xi32> to vector<1x128xf32>
    %348 = vector.broadcast %347 : vector<1x128xf32> to vector<64x128xf32>
    %349 = arith.mulf %332, %348 : vector<64x128xf32>
    %350 = vector.shape_cast %349 : vector<64x128xf32> to vector<1x64x128xf32>
    %cst_200 = arith.constant dense<0.000000e+00> : vector<1xf32>
    %351 = vector.multi_reduction <add>, %350, %cst_200 [1, 2] : vector<1x64x128xf32> to vector<1xf32>
    %352 = vector.shape_cast %351 : vector<1xf32> to vector<1x1x1xf32>
    %353 = vector.extract %352[0, 0, 0] : f32 from vector<1x1x1xf32>
    %cst_201 = arith.constant 4.096000e+03 : f32
    %354 = arith.divf %353, %cst_201 : f32
    %355 = vector.broadcast %354 : f32 to vector<1x128xf32>
    %356 = arith.mulf %355, %347 : vector<1x128xf32>
    %357 = arith.addf %345, %356 : vector<1x128xf32>
    %358 = vector.broadcast %357 : vector<1x128xf32> to vector<64x128xf32>
    %359 = arith.subf %332, %358 : vector<64x128xf32>
    %cst_202 = arith.constant 0.000000e+00 : f32
    %360 = vector.broadcast %cst_202 : f32 to vector<1x128xf32>
    %361 = arith.extui %257 : vector<1x128xi1> to vector<1x128xi32>
    %362 = arith.sitofp %361 : vector<1x128xi32> to vector<1x128xf32>
    %363 = arith.mulf %359, %359 : vector<64x128xf32>
    %364 = vector.broadcast %362 : vector<1x128xf32> to vector<64x128xf32>
    %365 = arith.mulf %363, %364 : vector<64x128xf32>
    %366 = vector.shape_cast %365 : vector<64x128xf32> to vector<1x64x128xf32>
    %cst_203 = arith.constant dense<0.000000e+00> : vector<1xf32>
    %367 = vector.multi_reduction <add>, %366, %cst_203 [1, 2] : vector<1x64x128xf32> to vector<1xf32>
    %368 = vector.shape_cast %367 : vector<1xf32> to vector<1x1x1xf32>
    %369 = vector.extract %368[0, 0, 0] : f32 from vector<1x1x1xf32>
    %cst_204 = arith.constant 4.096000e+03 : f32
    %370 = arith.divf %369, %cst_204 : f32
    %cst_205 = arith.constant 9.99999974E-6 : f32
    %371 = arith.addf %370, %cst_205 : f32
    %372 = math.rsqrt %371 : f32
    %373 = vector.broadcast %372 : f32 to vector<1x128xf32>
    %374 = arith.mulf %373, %362 : vector<1x128xf32>
    %375 = arith.addf %360, %374 : vector<1x128xf32>
    %376 = arith.extui %262 : vector<1x128xi1> to vector<1x128xi32>
    %377 = arith.sitofp %376 : vector<1x128xi32> to vector<1x128xf32>
    %378 = arith.mulf %359, %359 : vector<64x128xf32>
    %379 = vector.broadcast %377 : vector<1x128xf32> to vector<64x128xf32>
    %380 = arith.mulf %378, %379 : vector<64x128xf32>
    %381 = vector.shape_cast %380 : vector<64x128xf32> to vector<1x64x128xf32>
    %cst_206 = arith.constant dense<0.000000e+00> : vector<1xf32>
    %382 = vector.multi_reduction <add>, %381, %cst_206 [1, 2] : vector<1x64x128xf32> to vector<1xf32>
    %383 = vector.shape_cast %382 : vector<1xf32> to vector<1x1x1xf32>
    %384 = vector.extract %383[0, 0, 0] : f32 from vector<1x1x1xf32>
    %cst_207 = arith.constant 4.096000e+03 : f32
    %385 = arith.divf %384, %cst_207 : f32
    %cst_208 = arith.constant 9.99999974E-6 : f32
    %386 = arith.addf %385, %cst_208 : f32
    %387 = math.rsqrt %386 : f32
    %388 = vector.broadcast %387 : f32 to vector<1x128xf32>
    %389 = arith.mulf %388, %377 : vector<1x128xf32>
    %390 = arith.addf %375, %389 : vector<1x128xf32>
    %391 = vector.broadcast %390 : vector<1x128xf32> to vector<64x128xf32>
    %392 = arith.mulf %359, %391 : vector<64x128xf32>
    %c0_209 = arith.constant 0 : index
    %c0_210 = arith.constant 0 : index
    %393 = vector.load %arg23[%c0_209, %c0_210] : memref<64x128xf32, #tpu.memory_space<vmem>>, vector<64x128xf32>
    %394 = arith.mulf %392, %393 : vector<64x128xf32>
    %c0_211 = arith.constant 0 : index
    %c0_212 = arith.constant 0 : index
    %395 = vector.load %arg24[%c0_211, %c0_212] : memref<64x128xf32, #tpu.memory_space<vmem>>, vector<64x128xf32>
    %396 = arith.addf %394, %395 : vector<64x128xf32>
    %397 = arith.truncf %396 : vector<64x128xf32> to vector<64x128xbf16>
    %c0_213 = arith.constant 0 : index
    %c0_214 = arith.constant 0 : index
    %398 = vector.load %arg25[%c0_213, %c0_214] : memref<64x128xbf16, #tpu.memory_space<vmem>>, vector<64x128xbf16>
    tpu.vector_store %arg25[%c0_213, %c0_214], %397 {strides = array<i32>} : memref<64x128xbf16, #tpu.memory_space<vmem>>, vector<64x128xbf16>,
    return
  }
  func.func @transform_0(%arg0: i32) -> (i32, i32) {
    %c0_i32 = arith.constant 0 : i32
    %c0_i32_0 = arith.constant 0 : i32
    return %arg0, %c0_i32 : i32, i32
  }
  func.func @transform_1(%arg0: i32) -> (i32, i32) {
    %c0_i32 = arith.constant 0 : i32
    %c0_i32_0 = arith.constant 0 : i32
    %c0_i32_1 = arith.constant 0 : i32
    return %c0_i32, %c0_i32_0 : i32, i32
  }
  func.func @transform_2(%arg0: i32) -> (i32, i32) {
    %c0_i32 = arith.constant 0 : i32
    %c0_i32_0 = arith.constant 0 : i32
    %c0_i32_1 = arith.constant 0 : i32
    return %c0_i32, %c0_i32_0 : i32, i32
  }
  func.func @transform_3(%arg0: i32) -> (i32, i32) {
    %c0_i32 = arith.constant 0 : i32
    %c0_i32_0 = arith.constant 0 : i32
    %c0_i32_1 = arith.constant 0 : i32
    return %c0_i32, %c0_i32_0 : i32, i32
  }
  func.func @transform_4(%arg0: i32) -> (i32, i32) {
    %c0_i32 = arith.constant 0 : i32
    %c0_i32_0 = arith.constant 0 : i32
    %c0_i32_1 = arith.constant 0 : i32
    return %c0_i32, %c0_i32_0 : i32, i32
  }
  func.func @transform_5(%arg0: i32) -> (i32, i32) {
    %c0_i32 = arith.constant 0 : i32
    %c0_i32_0 = arith.constant 0 : i32
    %c0_i32_1 = arith.constant 0 : i32
    return %c0_i32, %c0_i32_0 : i32, i32
  }
  func.func @transform_6(%arg0: i32) -> (i32, i32) {
    %c0_i32 = arith.constant 0 : i32
    %c0_i32_0 = arith.constant 0 : i32
    %c0_i32_1 = arith.constant 0 : i32
    return %c0_i32, %c0_i32_0 : i32, i32
  }
  func.func @transform_7(%arg0: i32) -> (i32, i32) {
    %c0_i32 = arith.constant 0 : i32
    %c0_i32_0 = arith.constant 0 : i32
    %c0_i32_1 = arith.constant 0 : i32
    return %c0_i32, %c0_i32_0 : i32, i32
  }
  func.func @transform_8(%arg0: i32) -> (i32, i32) {
    %c0_i32 = arith.constant 0 : i32
    %c0_i32_0 = arith.constant 0 : i32
    %c0_i32_1 = arith.constant 0 : i32
    return %c0_i32, %c0_i32_0 : i32, i32
  }
  func.func @transform_9(%arg0: i32) -> (i32, i32) {
    %c0_i32 = arith.constant 0 : i32
    %c0_i32_0 = arith.constant 0 : i32
    %c0_i32_1 = arith.constant 0 : i32
    return %c0_i32, %c0_i32_0 : i32, i32
  }
  func.func @transform_10(%arg0: i32) -> (i32, i32) {
    %c0_i32 = arith.constant 0 : i32
    %c0_i32_0 = arith.constant 0 : i32
    %c0_i32_1 = arith.constant 0 : i32
    return %c0_i32, %c0_i32_0 : i32, i32
  }
  func.func @transform_11(%arg0: i32) -> (i32, i32) {
    %c0_i32 = arith.constant 0 : i32
    %c0_i32_0 = arith.constant 0 : i32
    %c0_i32_1 = arith.constant 0 : i32
    return %c0_i32, %c0_i32_0 : i32, i32
  }
  func.func @transform_12(%arg0: i32) -> (i32, i32) {
    %c0_i32 = arith.constant 0 : i32
    %c0_i32_0 = arith.constant 0 : i32
    %c0_i32_1 = arith.constant 0 : i32
    return %c0_i32, %c0_i32_0 : i32, i32
  }
  func.func @transform_13(%arg0: i32) -> (i32, i32) {
    %c0_i32 = arith.constant 0 : i32
    %c0_i32_0 = arith.constant 0 : i32
    %c0_i32_1 = arith.constant 0 : i32
    return %c0_i32, %c0_i32_0 : i32, i32
  }
  func.func @transform_14(%arg0: i32) -> (i32, i32) {
    %c0_i32 = arith.constant 0 : i32
    %c0_i32_0 = arith.constant 0 : i32
    %c0_i32_1 = arith.constant 0 : i32
    return %c0_i32, %c0_i32_0 : i32, i32
  }
  func.func @transform_15(%arg0: i32) -> (i32, i32) {
    %c0_i32 = arith.constant 0 : i32
    %c0_i32_0 = arith.constant 0 : i32
    %c0_i32_1 = arith.constant 0 : i32
    return %c0_i32, %c0_i32_0 : i32, i32
  }
  func.func @transform_16(%arg0: i32) -> (i32, i32) {
    %c0_i32 = arith.constant 0 : i32
    %c0_i32_0 = arith.constant 0 : i32
    %c0_i32_1 = arith.constant 0 : i32
    return %c0_i32, %c0_i32_0 : i32, i32
  }
  func.func @transform_17(%arg0: i32) -> (i32, i32) {
    %c0_i32 = arith.constant 0 : i32
    %c0_i32_0 = arith.constant 0 : i32
    %c0_i32_1 = arith.constant 0 : i32
    return %c0_i32, %c0_i32_0 : i32, i32
  }
  func.func @transform_18(%arg0: i32) -> (i32, i32) {
    %c0_i32 = arith.constant 0 : i32
    %c0_i32_0 = arith.constant 0 : i32
    %c0_i32_1 = arith.constant 0 : i32
    return %c0_i32, %c0_i32_0 : i32, i32
  }
  func.func @transform_19(%arg0: i32) -> (i32, i32) {
    %c0_i32 = arith.constant 0 : i32
    %c0_i32_0 = arith.constant 0 : i32
    %c0_i32_1 = arith.constant 0 : i32
    return %c0_i32, %c0_i32_0 : i32, i32
  }
  func.func @transform_20(%arg0: i32) -> (i32, i32) {
    %c0_i32 = arith.constant 0 : i32
    %c0_i32_0 = arith.constant 0 : i32
    %c0_i32_1 = arith.constant 0 : i32
    return %c0_i32, %c0_i32_0 : i32, i32
  }
  func.func @transform_21(%arg0: i32) -> (i32, i32) {
    %c0_i32 = arith.constant 0 : i32
    %c0_i32_0 = arith.constant 0 : i32
    %c0_i32_1 = arith.constant 0 : i32
    return %c0_i32, %c0_i32_0 : i32, i32
  }
  func.func @transform_22(%arg0: i32) -> (i32, i32) {
    %c0_i32 = arith.constant 0 : i32
    %c0_i32_0 = arith.constant 0 : i32
    %c0_i32_1 = arith.constant 0 : i32
    return %c0_i32, %c0_i32_0 : i32, i32
  }
  func.func @transform_23(%arg0: i32) -> (i32, i32) {
    %c0_i32 = arith.constant 0 : i32
    %c0_i32_0 = arith.constant 0 : i32
    %c0_i32_1 = arith.constant 0 : i32
    return %c0_i32, %c0_i32_0 : i32, i32
  }
  func.func @transform_24(%arg0: i32) -> (i32, i32) {
    %c0_i32 = arith.constant 0 : i32
    %c0_i32_0 = arith.constant 0 : i32
    return %arg0, %c0_i32 : i32, i32
  }
}

</mosaic_0001>

<llo_original>
// kernel: tpu_custom_call.1
$region0: #{tpu_custom_call.1}
  #allocation0 [shape = 'u32[]', space=smem, size = 0x4, offset = 0x4, fixed_abs, tag = 'smem constant byte address 0x4 - core index']
  #allocation1 [shape = 'u32[144,128]{1,0:T(1,128)}', space=vmem, size = 0x12000, scoped, tag = 'internal scratch']
  #allocation2 [shape = 'bf16[64,1152]{1,0:T(16,128)(2,1)}', space=vmem, size = 0x24000, scoped, tag = 'scratch operand']
  #allocation3 [shape = 'f32[1,1]{1,0:T(1,128)S(1)}', space=vmem, size = 0x200, scoped, tag = 'scoped memory for tpu_custom_call.1']
  %s0 = inlined_call_operand.vmem [shape: bf16[512,128], index: 0, kind: input, shape index: {}]
  %s1 = inlined_call_operand.hbm [shape: bf16[576,256], index: 1, kind: input, shape index: {}]
  %s2 = inlined_call_operand.vmem [shape: bf16[576,64], index: 2, kind: input, shape index: {}]
  %s3 = inlined_call_operand.hbm [shape: bf16[1152,128], index: 3, kind: input, shape index: {}]
  %s4 = inlined_call_operand.vmem [shape: f32[128,128], index: 4, kind: input, shape index: {}]
  %s5 = inlined_call_operand.vmem [shape: f32[1,128], index: 5, kind: input, shape index: {}]
  %s6 = inlined_call_operand.vmem [shape: f32[1,128], index: 6, kind: input, shape index: {}]
  %s7 = inlined_call_operand.hbm [shape: bf16[1152,128], index: 7, kind: input, shape index: {}]
  %s8 = inlined_call_operand.hbm [shape: f32[128,128], index: 8, kind: input, shape index: {}]
  %s9 = inlined_call_operand.vmem [shape: f32[1,128], index: 9, kind: input, shape index: {}]
  %s10 = inlined_call_operand.vmem [shape: f32[1,128], index: 10, kind: input, shape index: {}]
  %s11 = inlined_call_operand.hbm [shape: bf16[1152,128], index: 11, kind: input, shape index: {}]
  %s12 = inlined_call_operand.hbm [shape: f32[128,128], index: 12, kind: input, shape index: {}]
  %s13 = inlined_call_operand.hbm [shape: f32[1,128], index: 13, kind: input, shape index: {}]
  %s14 = inlined_call_operand.hbm [shape: f32[1,128], index: 14, kind: input, shape index: {}]
  %s15 = inlined_call_operand.hbm [shape: bf16[1152,128], index: 15, kind: input, shape index: {}]
  %s16 = inlined_call_operand.hbm [shape: f32[128,128], index: 16, kind: input, shape index: {}]
  %s17 = inlined_call_operand.hbm [shape: f32[1,128], index: 17, kind: input, shape index: {}]
  %s18 = inlined_call_operand.hbm [shape: f32[1,128], index: 18, kind: input, shape index: {}]
  %s19 = inlined_call_operand.vmem [shape: f32[64,64], index: 19, kind: input, shape index: {}]
  %s20 = inlined_call_operand.vmem [shape: f32[64,64], index: 20, kind: input, shape index: {}]
  %s21 = inlined_call_operand.<no memory space> [shape: f32[1,1], index: 21, kind: input, shape index: {}]
  %s22 = inlined_call_operand.hbm [shape: f32[64,128], index: 22, kind: input, shape index: {}]
  %s23 = inlined_call_operand.hbm [shape: f32[64,128], index: 23, kind: input, shape index: {}]
  %s24 = inlined_call_operand.hbm [shape: bf16[128,128], index: 24, kind: output, shape index: {}]
  %s25 = sld [smem:[#allocation0]]
  $region185: #{tpu_custom_call.1} parent=0
    _
  %s27 = ssub.s32 1, %s25
  %s28 = scalar_select 0, %s27, %s25
  %v29 = vstv %s21
  %30 = vst [vmem:[#allocation3] sm:$0x1] %v29
  $region1: #{tpu_custom_call.1} parent=0
    #allocation4 [shape = 'u8[294912]{0}', space=vmem, size = 0x48000, scoped, tag = 'input window, operand 1, single buffered']
    #allocation5 [shape = 's32[2]{0}', space=sflag, size = 0x8, scoped, tag = 'scoped memory for tpu_custom_call.1']
    #allocation6 [shape = 's32[2]{0}', space=sflag, size = 0x8, scoped, tag = 'scoped memory for tpu_custom_call.1']
    #allocation7 [shape = 'u8[294912]{0}', space=vmem, size = 0x48000, scoped, tag = 'input window, operand 3, single buffered']
    #allocation8 [shape = 's32[1]{0}', space=sflag, size = 0x4, scoped, tag = 'scoped memory for tpu_custom_call.1']
    #allocation9 [shape = 'u8[294912]{0}', space=vmem, size = 0x48000, scoped, tag = 'input window, operand 7, single buffered']
    #allocation10 [shape = 'u8[65536]{0}', space=vmem, size = 0x10000, scoped, tag = 'input window, operand 8, single buffered']
    #allocation11 [shape = 's32[1]{0}', space=sflag, size = 0x4, scoped, tag = 'scoped memory for tpu_custom_call.1']
    #allocation12 [shape = 'u8[294912]{0}', space=vmem, size = 0x48000, scoped, tag = 'input window, operand 11, single buffered']
    #allocation13 [shape = 'u8[65536]{0}', space=vmem, size = 0x10000, scoped, tag = 'input window, operand 12, single buffered']
    #allocation14 [shape = 's32[1]{0}', space=sflag, size = 0x4, scoped, tag = 'scoped memory for tpu_custom_call.1']
    #allocation15 [shape = 'u8[512]{0}', space=vmem, size = 0x400, scoped, tag = 'input window, operand 13, single buffered']
    #allocation16 [shape = 'u8[512]{0}', space=vmem, size = 0x400, scoped, tag = 'input window, operand 14, single buffered']
    #allocation17 [shape = 's32[1]{0}', space=sflag, size = 0x4, scoped, tag = 'scoped memory for tpu_custom_call.1']
    #allocation18 [shape = 'u8[294912]{0}', space=vmem, size = 0x48000, scoped, tag = 'input window, operand 15, single buffered']
    #allocation19 [shape = 'u8[65536]{0}', space=vmem, size = 0x10000, scoped, tag = 'input window, operand 16, single buffered']
    #allocation20 [shape = 's32[1]{0}', space=sflag, size = 0x4, scoped, tag = 'scoped memory for tpu_custom_call.1']
    #allocation21 [shape = 'u8[512]{0}', space=vmem, size = 0x400, scoped, tag = 'input window, operand 17, single buffered']
    #allocation22 [shape = 'u8[512]{0}', space=vmem, size = 0x400, scoped, tag = 'input window, operand 18, single buffered']
    #allocation23 [shape = 's32[1]{0}', space=sflag, size = 0x4, scoped, tag = 'scoped memory for tpu_custom_call.1']
    #allocation24 [shape = 'u8[32768]{0}', space=vmem, size = 0x8000, scoped, tag = 'input window, operand 22, single buffered']
    #allocation25 [shape = 'u8[32768]{0}', space=vmem, size = 0x8000, scoped, tag = 'input window, operand 23, single buffered']
    #allocation26 [shape = 's32[1]{0}', space=sflag, size = 0x4, scoped, tag = 'scoped memory for tpu_custom_call.1']
    #allocation27 [shape = 'u8[32768]{0}', space=vmem, size = 0x8000, scoped, tag = 'output window, operand 0']
    %31 = vsyncpa [#allocation5], 0
    %32 = vsyncpa [#allocation8], 0
    %33 = vsyncpa [#allocation11], 0
    %34 = vsyncpa [#allocation14], 0
    %35 = vsyncpa [#allocation17], 0
    %36 = vsyncpa [#allocation20], 0
    %37 = vsyncpa [#allocation23], 0
    %38 = vsyncpa [#allocation26], 0
    %39 = vsyncpa [#allocation6], 0
    %s40 = scalar_lea.sflag [#allocation6], 1
    %41 = vsyncpa %s40, 0
    loop: start=0, step=1, limit=4
    $region2: #{tpu_custom_call.1} parent=1 // loop_pre_header
      _
    $region3: #{tpu_custom_call.1} parent=1 // loop_header
      %s43 = sphi 0, %s47
      %p44 = scmp.ge.s32.totalorder %s43, 4
      %s53 = sphi 0, %s55
      %s56 = sphi 0, %s53
      %s57 = sphi 0, %s56
      %s73 = sphi 0, %s57
      %s77 = sphi 0, %s77
      %s79 = sphi 0, %s77
      %s80 = sphi 0, %s79
      %s94 = sphi 0, %s80
      %s98 = sphi 0, %s98
      %s100 = sphi 0, %s98
      %s101 = sphi 0, %s100
      %s115 = sphi 0, %s101
      %s119 = sphi 0, %s119
      %s121 = sphi 0, %s119
      %s122 = sphi 0, %s121
      %s136 = sphi 0, %s122
      %s140 = sphi 0, %s140
      %s142 = sphi 0, %s140
      %s143 = sphi 0, %s142
      %s157 = sphi 0, %s143
      %s161 = sphi 0, %s161
      %s163 = sphi 0, %s161
      %s164 = sphi 0, %s163
      %s178 = sphi 0, %s164
      %s182 = sphi 0, %s182
      %s184 = sphi 0, %s182
      %s185 = sphi 0, %s184
      %s199 = sphi 0, %s185
      %s203 = sphi 0, %s203
      %s205 = sphi 0, %s203
      %s206 = sphi 0, %s205
      %s220 = sphi 0, %s206
      %s224 = sphi 0, %s224
      %s226 = sphi 0, %s224
      %s227 = sphi 0, %s226
      %s241 = sphi 0, %s227
      %s245 = sphi 0, %s245
      %s247 = sphi 0, %s245
      %s248 = sphi 0, %s247
      %s262 = sphi 0, %s248
      %s266 = sphi 0, %s266
      %s268 = sphi 0, %s266
      %s269 = sphi 0, %s268
      %s283 = sphi 0, %s269
      %s287 = sphi 0, %s287
      %s289 = sphi 0, %s287
      %s290 = sphi 0, %s289
      %s304 = sphi 0, %s290
      %s308 = sphi 0, %s308
      %s310 = sphi 0, %s308
      %s311 = sphi 0, %s310
      %s325 = sphi 0, %s311
      %s329 = sphi 0, %s329
      %s331 = sphi 0, %s329
      %s332 = sphi 0, %s331
      %s346 = sphi 0, %s332
      %s350 = sphi 0, %s350
      %s352 = sphi 0, %s350
      %s353 = sphi 0, %s352
      %s367 = sphi 0, %s353
      %s371 = sphi 0, %s371
      %s373 = sphi 0, %s371
      %s374 = sphi 0, %s373
      %s388 = sphi 0, %s374
      %s392 = sphi 0, %s392
      %s394 = sphi 0, %s392
      %s395 = sphi 0, %s394
      %s409 = sphi 0, %s395
      %s413 = sphi 0, %s413
      %s415 = sphi 0, %s413
      %s416 = sphi 0, %s415
      %s430 = sphi 0, %s416
      %s434 = sphi 0, %s434
      %s436 = sphi 0, %s434
      %s437 = sphi 0, %s436
      %s451 = sphi 0, %s437
      %s455 = sphi 0, %s455
      %s457 = sphi 0, %s455
      %s458 = sphi 0, %s457
      %s472 = sphi 0, %s458
      %s476 = sphi 0, %s476
      %s478 = sphi 0, %s476
      %s479 = sphi 0, %s478
      %s493 = sphi 0, %s479
      %s497 = sphi 0, %s497
      %s499 = sphi 0, %s497
      %s500 = sphi 0, %s499
      %s514 = sphi 0, %s500
      %s518 = sphi 0, %s518
      %s520 = sphi 0, %s518
      %s521 = sphi 0, %s520
      %s535 = sphi 0, %s521
      %s539 = sphi 0, %s539
      %s541 = sphi 0, %s539
      %s542 = sphi 0, %s541
      %s556 = sphi 0, %s542
      %s562 = sphi 0, %s564
      %s565 = sphi 0, %s562
      %s566 = sphi 0, %s565
      %s582 = sphi 0, %s566
    $region4: #{tpu_custom_call.1} parent=1 // loop_header_branch
      %46 = sbr.rel (%p44) target = $region8
    $region5: #{tpu_custom_call.1} parent=1 // loop_body
      %s48 = ssub.s32 %s43, 1
      %s49 = ssub.s32 %s43, 2
      %s50 = sadd.s32 %s43, 1
      %s51 = ssub.s32 %s43, %s50
      %p52 = scmp.eq.s32.totalorder %s51, 0
      %s54 = sadd.s32 %s53, 1
      %s55 = scalar_select %p52, %s53, %s54
      %p58 = pneg %p52
      %p59 = scmp.eq.s32.totalorder %s43, 1
      %p60 = por %p58, %p59
      %p61 = scmp.ne.s32.totalorder %s53, %s56
      %p62 = scmp.eq.s32.totalorder %s43, 0
      %p63 = por %p61, %p62
      %p64 = scmp.ne.s32.totalorder %s53, %s56
      %p65 = scmp.eq.s32.totalorder %s48, 1
      %p66 = por %p64, %p65
      %p67 = scmp.ne.s32.totalorder %s56, %s57
      %p68 = scmp.eq.s32.totalorder %s48, 0
      %p69 = por %p67, %p68
      %p70 = scmp.ne.s32.totalorder %s56, %s57
      %p71 = scmp.eq.s32.totalorder %s49, 1
      %p72 = por %p70, %p71
      %p74 = scmp.ne.s32.totalorder %s57, %s73
      %p75 = scmp.eq.s32.totalorder %s49, 0
      %p76 = por %p74, %p75
      %s78 = sadd.s32 %s77, 1
      %p81 = scmp.eq.s32.totalorder %s43, 1
      %p82 = scmp.ne.s32.totalorder %s77, %s79
      %p83 = scmp.eq.s32.totalorder %s43, 0
      %p84 = por %p82, %p83
      %p85 = scmp.ne.s32.totalorder %s77, %s79
      %p86 = scmp.eq.s32.totalorder %s48, 1
      %p87 = por %p85, %p86
      %p88 = scmp.ne.s32.totalorder %s79, %s80
      %p89 = scmp.eq.s32.totalorder %s48, 0
      %p90 = por %p88, %p89
      %p91 = scmp.ne.s32.totalorder %s79, %s80
      %p92 = scmp.eq.s32.totalorder %s49, 1
      %p93 = por %p91, %p92
      %p95 = scmp.ne.s32.totalorder %s80, %s94
      %p96 = scmp.eq.s32.totalorder %s49, 0
      %p97 = por %p95, %p96
      %s99 = sadd.s32 %s98, 1
      %p102 = scmp.eq.s32.totalorder %s43, 1
      %p103 = scmp.ne.s32.totalorder %s98, %s100
      %p104 = scmp.eq.s32.totalorder %s43, 0
      %p105 = por %p103, %p104
      %p106 = scmp.ne.s32.totalorder %s98, %s100
      %p107 = scmp.eq.s32.totalorder %s48, 1
      %p108 = por %p106, %p107
      %p109 = scmp.ne.s32.totalorder %s100, %s101
      %p110 = scmp.eq.s32.totalorder %s48, 0
      %p111 = por %p109, %p110
      %p112 = scmp.ne.s32.totalorder %s100, %s101
      %p113 = scmp.eq.s32.totalorder %s49, 1
      %p114 = por %p112, %p113
      %p116 = scmp.ne.s32.totalorder %s101, %s115
      %p117 = scmp.eq.s32.totalorder %s49, 0
      %p118 = por %p116, %p117
      %s120 = sadd.s32 %s119, 1
      %p123 = scmp.eq.s32.totalorder %s43, 1
      %p124 = scmp.ne.s32.totalorder %s119, %s121
      %p125 = scmp.eq.s32.totalorder %s43, 0
      %p126 = por %p124, %p125
      %p127 = scmp.ne.s32.totalorder %s119, %s121
      %p128 = scmp.eq.s32.totalorder %s48, 1
      %p129 = por %p127, %p128
      %p130 = scmp.ne.s32.totalorder %s121, %s122
      %p131 = scmp.eq.s32.totalorder %s48, 0
      %p132 = por %p130, %p131
      %p133 = scmp.ne.s32.totalorder %s121, %s122
      %p134 = scmp.eq.s32.totalorder %s49, 1
      %p135 = por %p133, %p134
      %p137 = scmp.ne.s32.totalorder %s122, %s136
      %p138 = scmp.eq.s32.totalorder %s49, 0
      %p139 = por %p137, %p138
      %s141 = sadd.s32 %s140, 1
      %p144 = scmp.eq.s32.totalorder %s43, 1
      %p145 = scmp.ne.s32.totalorder %s140, %s142
      %p146 = scmp.eq.s32.totalorder %s43, 0
      %p147 = por %p145, %p146
      %p148 = scmp.ne.s32.totalorder %s140, %s142
      %p149 = scmp.eq.s32.totalorder %s48, 1
      %p150 = por %p148, %p149
      %p151 = scmp.ne.s32.totalorder %s142, %s143
      %p152 = scmp.eq.s32.totalorder %s48, 0
      %p153 = por %p151, %p152
      %p154 = scmp.ne.s32.totalorder %s142, %s143
      %p155 = scmp.eq.s32.totalorder %s49, 1
      %p156 = por %p154, %p155
      %p158 = scmp.ne.s32.totalorder %s143, %s157
      %p159 = scmp.eq.s32.totalorder %s49, 0
      %p160 = por %p158, %p159
      %s162 = sadd.s32 %s161, 1
      %p165 = scmp.eq.s32.totalorder %s43, 1
      %p166 = scmp.ne.s32.totalorder %s161, %s163
      %p167 = scmp.eq.s32.totalorder %s43, 0
      %p168 = por %p166, %p167
      %p169 = scmp.ne.s32.totalorder %s161, %s163
      %p170 = scmp.eq.s32.totalorder %s48, 1
      %p171 = por %p169, %p170
      %p172 = scmp.ne.s32.totalorder %s163, %s164
      %p173 = scmp.eq.s32.totalorder %s48, 0
      %p174 = por %p172, %p173
      %p175 = scmp.ne.s32.totalorder %s163, %s164
      %p176 = scmp.eq.s32.totalorder %s49, 1
      %p177 = por %p175, %p176
      %p179 = scmp.ne.s32.totalorder %s164, %s178
      %p180 = scmp.eq.s32.totalorder %s49, 0
      %p181 = por %p179, %p180
      %s183 = sadd.s32 %s182, 1
      %p186 = scmp.eq.s32.totalorder %s43, 1
      %p187 = scmp.ne.s32.totalorder %s182, %s184
      %p188 = scmp.eq.s32.totalorder %s43, 0
      %p189 = por %p187, %p188
      %p190 = scmp.ne.s32.totalorder %s182, %s184
      %p191 = scmp.eq.s32.totalorder %s48, 1
      %p192 = por %p190, %p191
      %p193 = scmp.ne.s32.totalorder %s184, %s185
      %p194 = scmp.eq.s32.totalorder %s48, 0
      %p195 = por %p193, %p194
      %p196 = scmp.ne.s32.totalorder %s184, %s185
      %p197 = scmp.eq.s32.totalorder %s49, 1
      %p198 = por %p196, %p197
      %p200 = scmp.ne.s32.totalorder %s185, %s199
      %p201 = scmp.eq.s32.totalorder %s49, 0
      %p202 = por %p200, %p201
      %s204 = sadd.s32 %s203, 1
      %p207 = scmp.eq.s32.totalorder %s43, 1
      %p208 = scmp.ne.s32.totalorder %s203, %s205
      %p209 = scmp.eq.s32.totalorder %s43, 0
      %p210 = por %p208, %p209
      %p211 = scmp.ne.s32.totalorder %s203, %s205
      %p212 = scmp.eq.s32.totalorder %s48, 1
      %p213 = por %p211, %p212
      %p214 = scmp.ne.s32.totalorder %s205, %s206
      %p215 = scmp.eq.s32.totalorder %s48, 0
      %p216 = por %p214, %p215
      %p217 = scmp.ne.s32.totalorder %s205, %s206
      %p218 = scmp.eq.s32.totalorder %s49, 1
      %p219 = por %p217, %p218
      %p221 = scmp.ne.s32.totalorder %s206, %s220
      %p222 = scmp.eq.s32.totalorder %s49, 0
      %p223 = por %p221, %p222
      %s225 = sadd.s32 %s224, 1
      %p228 = scmp.eq.s32.totalorder %s43, 1
      %p229 = scmp.ne.s32.totalorder %s224, %s226
      %p230 = scmp.eq.s32.totalorder %s43, 0
      %p231 = por %p229, %p230
      %p232 = scmp.ne.s32.totalorder %s224, %s226
      %p233 = scmp.eq.s32.totalorder %s48, 1
      %p234 = por %p232, %p233
      %p235 = scmp.ne.s32.totalorder %s226, %s227
      %p236 = scmp.eq.s32.totalorder %s48, 0
      %p237 = por %p235, %p236
      %p238 = scmp.ne.s32.totalorder %s226, %s227
      %p239 = scmp.eq.s32.totalorder %s49, 1
      %p240 = por %p238, %p239
      %p242 = scmp.ne.s32.totalorder %s227, %s241
      %p243 = scmp.eq.s32.totalorder %s49, 0
      %p244 = por %p242, %p243
      %s246 = sadd.s32 %s245, 1
      %p249 = scmp.eq.s32.totalorder %s43, 1
      %p250 = scmp.ne.s32.totalorder %s245, %s247
      %p251 = scmp.eq.s32.totalorder %s43, 0
      %p252 = por %p250, %p251
      %p253 = scmp.ne.s32.totalorder %s245, %s247
      %p254 = scmp.eq.s32.totalorder %s48, 1
      %p255 = por %p253, %p254
      %p256 = scmp.ne.s32.totalorder %s247, %s248
      %p257 = scmp.eq.s32.totalorder %s48, 0
      %p258 = por %p256, %p257
      %p259 = scmp.ne.s32.totalorder %s247, %s248
      %p260 = scmp.eq.s32.totalorder %s49, 1
      %p261 = por %p259, %p260
      %p263 = scmp.ne.s32.totalorder %s248, %s262
      %p264 = scmp.eq.s32.totalorder %s49, 0
      %p265 = por %p263, %p264
      %s267 = sadd.s32 %s266, 1
      %p270 = scmp.eq.s32.totalorder %s43, 1
      %p271 = scmp.ne.s32.totalorder %s266, %s268
      %p272 = scmp.eq.s32.totalorder %s43, 0
      %p273 = por %p271, %p272
      %p274 = scmp.ne.s32.totalorder %s266, %s268
      %p275 = scmp.eq.s32.totalorder %s48, 1
      %p276 = por %p274, %p275
      %p277 = scmp.ne.s32.totalorder %s268, %s269
      %p278 = scmp.eq.s32.totalorder %s48, 0
      %p279 = por %p277, %p278
      %p280 = scmp.ne.s32.totalorder %s268, %s269
      %p281 = scmp.eq.s32.totalorder %s49, 1
      %p282 = por %p280, %p281
      %p284 = scmp.ne.s32.totalorder %s269, %s283
      %p285 = scmp.eq.s32.totalorder %s49, 0
      %p286 = por %p284, %p285
      %s288 = sadd.s32 %s287, 1
      %p291 = scmp.eq.s32.totalorder %s43, 1
      %p292 = scmp.ne.s32.totalorder %s287, %s289
      %p293 = scmp.eq.s32.totalorder %s43, 0
      %p294 = por %p292, %p293
      %p295 = scmp.ne.s32.totalorder %s287, %s289
      %p296 = scmp.eq.s32.totalorder %s48, 1
      %p297 = por %p295, %p296
      %p298 = scmp.ne.s32.totalorder %s289, %s290
      %p299 = scmp.eq.s32.totalorder %s48, 0
      %p300 = por %p298, %p299
      %p301 = scmp.ne.s32.totalorder %s289, %s290
      %p302 = scmp.eq.s32.totalorder %s49, 1
      %p303 = por %p301, %p302
      %p305 = scmp.ne.s32.totalorder %s290, %s304
      %p306 = scmp.eq.s32.totalorder %s49, 0
      %p307 = por %p305, %p306
      %s309 = sadd.s32 %s308, 1
      %p312 = scmp.eq.s32.totalorder %s43, 1
      %p313 = scmp.ne.s32.totalorder %s308, %s310
      %p314 = scmp.eq.s32.totalorder %s43, 0
      %p315 = por %p313, %p314
      %p316 = scmp.ne.s32.totalorder %s308, %s310
      %p317 = scmp.eq.s32.totalorder %s48, 1
      %p318 = por %p316, %p317
      %p319 = scmp.ne.s32.totalorder %s310, %s311
      %p320 = scmp.eq.s32.totalorder %s48, 0
      %p321 = por %p319, %p320
      %p322 = scmp.ne.s32.totalorder %s310, %s311
      %p323 = scmp.eq.s32.totalorder %s49, 1
      %p324 = por %p322, %p323
      %p326 = scmp.ne.s32.totalorder %s311, %s325
      %p327 = scmp.eq.s32.totalorder %s49, 0
      %p328 = por %p326, %p327
      %s330 = sadd.s32 %s329, 1
      %p333 = scmp.eq.s32.totalorder %s43, 1
      %p334 = scmp.ne.s32.totalorder %s329, %s331
      %p335 = scmp.eq.s32.totalorder %s43, 0
      %p336 = por %p334, %p335
      %p337 = scmp.ne.s32.totalorder %s329, %s331
      %p338 = scmp.eq.s32.totalorder %s48, 1
      %p339 = por %p337, %p338
      %p340 = scmp.ne.s32.totalorder %s331, %s332
      %p341 = scmp.eq.s32.totalorder %s48, 0
      %p342 = por %p340, %p341
      %p343 = scmp.ne.s32.totalorder %s331, %s332
      %p344 = scmp.eq.s32.totalorder %s49, 1
      %p345 = por %p343, %p344
      %p347 = scmp.ne.s32.totalorder %s332, %s346
      %p348 = scmp.eq.s32.totalorder %s49, 0
      %p349 = por %p347, %p348
      %s351 = sadd.s32 %s350, 1
      %p354 = scmp.eq.s32.totalorder %s43, 1
      %p355 = scmp.ne.s32.totalorder %s350, %s352
      %p356 = scmp.eq.s32.totalorder %s43, 0
      %p357 = por %p355, %p356
      %p358 = scmp.ne.s32.totalorder %s350, %s352
      %p359 = scmp.eq.s32.totalorder %s48, 1
      %p360 = por %p358, %p359
      %p361 = scmp.ne.s32.totalorder %s352, %s353
      %p362 = scmp.eq.s32.totalorder %s48, 0
      %p363 = por %p361, %p362
      %p364 = scmp.ne.s32.totalorder %s352, %s353
      %p365 = scmp.eq.s32.totalorder %s49, 1
      %p366 = por %p364, %p365
      %p368 = scmp.ne.s32.totalorder %s353, %s367
      %p369 = scmp.eq.s32.totalorder %s49, 0
      %p370 = por %p368, %p369
      %s372 = sadd.s32 %s371, 1
      %p375 = scmp.eq.s32.totalorder %s43, 1
      %p376 = scmp.ne.s32.totalorder %s371, %s373
      %p377 = scmp.eq.s32.totalorder %s43, 0
      %p378 = por %p376, %p377
      %p379 = scmp.ne.s32.totalorder %s371, %s373
      %p380 = scmp.eq.s32.totalorder %s48, 1
      %p381 = por %p379, %p380
      %p382 = scmp.ne.s32.totalorder %s373, %s374
      %p383 = scmp.eq.s32.totalorder %s48, 0
      %p384 = por %p382, %p383
      %p385 = scmp.ne.s32.totalorder %s373, %s374
      %p386 = scmp.eq.s32.totalorder %s49, 1
      %p387 = por %p385, %p386
      %p389 = scmp.ne.s32.totalorder %s374, %s388
      %p390 = scmp.eq.s32.totalorder %s49, 0
      %p391 = por %p389, %p390
      %s393 = sadd.s32 %s392, 1
      %p396 = scmp.eq.s32.totalorder %s43, 1
      %p397 = scmp.ne.s32.totalorder %s392, %s394
      %p398 = scmp.eq.s32.totalorder %s43, 0
      %p399 = por %p397, %p398
      %p400 = scmp.ne.s32.totalorder %s392, %s394
      %p401 = scmp.eq.s32.totalorder %s48, 1
      %p402 = por %p400, %p401
      %p403 = scmp.ne.s32.totalorder %s394, %s395
      %p404 = scmp.eq.s32.totalorder %s48, 0
      %p405 = por %p403, %p404
      %p406 = scmp.ne.s32.totalorder %s394, %s395
      %p407 = scmp.eq.s32.totalorder %s49, 1
      %p408 = por %p406, %p407
      %p410 = scmp.ne.s32.totalorder %s395, %s409
      %p411 = scmp.eq.s32.totalorder %s49, 0
      %p412 = por %p410, %p411
      %s414 = sadd.s32 %s413, 1
      %p417 = scmp.eq.s32.totalorder %s43, 1
      %p418 = scmp.ne.s32.totalorder %s413, %s415
      %p419 = scmp.eq.s32.totalorder %s43, 0
      %p420 = por %p418, %p419
      %p421 = scmp.ne.s32.totalorder %s413, %s415
      %p422 = scmp.eq.s32.totalorder %s48, 1
      %p423 = por %p421, %p422
      %p424 = scmp.ne.s32.totalorder %s415, %s416
      %p425 = scmp.eq.s32.totalorder %s48, 0
      %p426 = por %p424, %p425
      %p427 = scmp.ne.s32.totalorder %s415, %s416
      %p428 = scmp.eq.s32.totalorder %s49, 1
      %p429 = por %p427, %p428
      %p431 = scmp.ne.s32.totalorder %s416, %s430
      %p432 = scmp.eq.s32.totalorder %s49, 0
      %p433 = por %p431, %p432
      %s435 = sadd.s32 %s434, 1
      %p438 = scmp.eq.s32.totalorder %s43, 1
      %p439 = scmp.ne.s32.totalorder %s434, %s436
      %p440 = scmp.eq.s32.totalorder %s43, 0
      %p441 = por %p439, %p440
      %p442 = scmp.ne.s32.totalorder %s434, %s436
      %p443 = scmp.eq.s32.totalorder %s48, 1
      %p444 = por %p442, %p443
      %p445 = scmp.ne.s32.totalorder %s436, %s437
      %p446 = scmp.eq.s32.totalorder %s48, 0
      %p447 = por %p445, %p446
      %p448 = scmp.ne.s32.totalorder %s436, %s437
      %p449 = scmp.eq.s32.totalorder %s49, 1
      %p450 = por %p448, %p449
      %p452 = scmp.ne.s32.totalorder %s437, %s451
      %p453 = scmp.eq.s32.totalorder %s49, 0
      %p454 = por %p452, %p453
      %s456 = sadd.s32 %s455, 1
      %p459 = scmp.eq.s32.totalorder %s43, 1
      %p460 = scmp.ne.s32.totalorder %s455, %s457
      %p461 = scmp.eq.s32.totalorder %s43, 0
      %p462 = por %p460, %p461
      %p463 = scmp.ne.s32.totalorder %s455, %s457
      %p464 = scmp.eq.s32.totalorder %s48, 1
      %p465 = por %p463, %p464
      %p466 = scmp.ne.s32.totalorder %s457, %s458
      %p467 = scmp.eq.s32.totalorder %s48, 0
      %p468 = por %p466, %p467
      %p469 = scmp.ne.s32.totalorder %s457, %s458
      %p470 = scmp.eq.s32.totalorder %s49, 1
      %p471 = por %p469, %p470
      %p473 = scmp.ne.s32.totalorder %s458, %s472
      %p474 = scmp.eq.s32.totalorder %s49, 0
      %p475 = por %p473, %p474
      %s477 = sadd.s32 %s476, 1
      %p480 = scmp.eq.s32.totalorder %s43, 1
      %p481 = scmp.ne.s32.totalorder %s476, %s478
      %p482 = scmp.eq.s32.totalorder %s43, 0
      %p483 = por %p481, %p482
      %p484 = scmp.ne.s32.totalorder %s476, %s478
      %p485 = scmp.eq.s32.totalorder %s48, 1
      %p486 = por %p484, %p485
      %p487 = scmp.ne.s32.totalorder %s478, %s479
      %p488 = scmp.eq.s32.totalorder %s48, 0
      %p489 = por %p487, %p488
      %p490 = scmp.ne.s32.totalorder %s478, %s479
      %p491 = scmp.eq.s32.totalorder %s49, 1
      %p492 = por %p490, %p491
      %p494 = scmp.ne.s32.totalorder %s479, %s493
      %p495 = scmp.eq.s32.totalorder %s49, 0
      %p496 = por %p494, %p495
      %s498 = sadd.s32 %s497, 1
      %p501 = scmp.eq.s32.totalorder %s43, 1
      %p502 = scmp.ne.s32.totalorder %s497, %s499
      %p503 = scmp.eq.s32.totalorder %s43, 0
      %p504 = por %p502, %p503
      %p505 = scmp.ne.s32.totalorder %s497, %s499
      %p506 = scmp.eq.s32.totalorder %s48, 1
      %p507 = por %p505, %p506
      %p508 = scmp.ne.s32.totalorder %s499, %s500
      %p509 = scmp.eq.s32.totalorder %s48, 0
      %p510 = por %p508, %p509
      %p511 = scmp.ne.s32.totalorder %s499, %s500
      %p512 = scmp.eq.s32.totalorder %s49, 1
      %p513 = por %p511, %p512
      %p515 = scmp.ne.s32.totalorder %s500, %s514
      %p516 = scmp.eq.s32.totalorder %s49, 0
      %p517 = por %p515, %p516
      %s519 = sadd.s32 %s518, 1
      %p522 = scmp.eq.s32.totalorder %s43, 1
      %p523 = scmp.ne.s32.totalorder %s518, %s520
      %p524 = scmp.eq.s32.totalorder %s43, 0
      %p525 = por %p523, %p524
      %p526 = scmp.ne.s32.totalorder %s518, %s520
      %p527 = scmp.eq.s32.totalorder %s48, 1
      %p528 = por %p526, %p527
      %p529 = scmp.ne.s32.totalorder %s520, %s521
      %p530 = scmp.eq.s32.totalorder %s48, 0
      %p531 = por %p529, %p530
      %p532 = scmp.ne.s32.totalorder %s520, %s521
      %p533 = scmp.eq.s32.totalorder %s49, 1
      %p534 = por %p532, %p533
      %p536 = scmp.ne.s32.totalorder %s521, %s535
      %p537 = scmp.eq.s32.totalorder %s49, 0
      %p538 = por %p536, %p537
      %s540 = sadd.s32 %s539, 1
      %p543 = scmp.eq.s32.totalorder %s43, 1
      %p544 = scmp.ne.s32.totalorder %s539, %s541
      %p545 = scmp.eq.s32.totalorder %s43, 0
      %p546 = por %p544, %p545
      %p547 = scmp.ne.s32.totalorder %s539, %s541
      %p548 = scmp.eq.s32.totalorder %s48, 1
      %p549 = por %p547, %p548
      %p550 = scmp.ne.s32.totalorder %s541, %s542
      %p551 = scmp.eq.s32.totalorder %s48, 0
      %p552 = por %p550, %p551
      %p553 = scmp.ne.s32.totalorder %s541, %s542
      %p554 = scmp.eq.s32.totalorder %s49, 1
      %p555 = por %p553, %p554
      %p557 = scmp.ne.s32.totalorder %s542, %s556
      %p558 = scmp.eq.s32.totalorder %s49, 0
      %p559 = por %p557, %p558
      %s560 = ssub.s32 %s43, %s50
      %p561 = scmp.eq.s32.totalorder %s560, 0
      %s563 = sadd.s32 %s562, 1
      %s564 = scalar_select %p561, %s562, %s563
      %p567 = pneg %p561
      %p568 = scmp.eq.s32.totalorder %s43, 1
      %p569 = por %p567, %p568
      %p570 = scmp.ne.s32.totalorder %s562, %s565
      %p571 = scmp.eq.s32.totalorder %s43, 0
      %p572 = por %p570, %p571
      %p573 = scmp.ne.s32.totalorder %s562, %s565
      %p574 = scmp.eq.s32.totalorder %s48, 1
      %p575 = por %p573, %p574
      %p576 = scmp.ne.s32.totalorder %s565, %s566
      %p577 = scmp.eq.s32.totalorder %s48, 0
      %p578 = por %p576, %p577
      %p579 = scmp.ne.s32.totalorder %s565, %s566
      %p580 = scmp.eq.s32.totalorder %s49, 1
      %p581 = por %p579, %p580
      %p583 = scmp.ne.s32.totalorder %s566, %s582
      %p584 = scmp.eq.s32.totalorder %s49, 0
      %p585 = por %p583, %p584
      %p586 = scmp.le.s32.totalorder 1, %s43
      %p587 = scmp.lt.s32.totalorder %s43, 3
      %p588 = pnand %p586, %p587
      %p589 = pneg %p588
      // Predicated region
      $region9: #{tpu_custom_call.1} parent=5 // pred_check
        _
      $region10: #{tpu_custom_call.1} parent=5 // pred_check_branch
        %591 = sbr.rel (%p588) target = $region12
      $region11: #{tpu_custom_call.1} parent=5 // pred_region
        %s592 = ssub.s32 %s43, 1
        // Predicated region
        $region13: #{tpu_custom_call.1} parent=11 // pred_check
          %p593 = pneg %p90
        $region14: #{tpu_custom_call.1} parent=11 // pred_check_branch
          %595 = sbr.rel (%p593) target = $region16
        $region15: #{tpu_custom_call.1} parent=11 // pred_region
          %s597 = ssub.s32 9216, 9216
          %598 = vsyncadd [#allocation5], %s597
          %s599 = sshll.u32 [#allocation4], 4
          %s600 = int_to_ptr.vmem [resolvable:$true] %s599
          %605 = dma.hbm_to_vmem [thread:$0]  %s1, 9216, %s600, [#allocation5], 128, 128, 8
        $region16: #{tpu_custom_call.1} parent=11 // pred_fallthru
          _
        // Predicated region
        $region17: #{tpu_custom_call.1} parent=11 // pred_check
          %p606 = pneg %p111
        $region18: #{tpu_custom_call.1} parent=11 // pred_check_branch
          %608 = sbr.rel (%p606) target = $region20
        $region19: #{tpu_custom_call.1} parent=11 // pred_region
          _
        $region20: #{tpu_custom_call.1} parent=11 // pred_fallthru
          _
        // Predicated region
        $region21: #{tpu_custom_call.1} parent=11 // pred_check
          %p609 = pneg %p132
        $region22: #{tpu_custom_call.1} parent=11 // pred_check_branch
          %611 = sbr.rel (%p609) target = $region24
        $region23: #{tpu_custom_call.1} parent=11 // pred_region
          %s613 = ssub.s32 9216, 9216
          %614 = vsyncadd [#allocation8], %s613
          %s615 = sshll.u32 [#allocation7], 4
          %s616 = int_to_ptr.vmem [resolvable:$true] %s615
          %621 = dma.hbm_to_vmem [thread:$0]  %s3, 9216, %s616, [#allocation8], 64, 64, 4
        $region24: #{tpu_custom_call.1} parent=11 // pred_fallthru
          _
        // Predicated region
        $region25: #{tpu_custom_call.1} parent=11 // pred_check
          %p622 = pneg %p153
        $region26: #{tpu_custom_call.1} parent=11 // pred_check_branch
          %624 = sbr.rel (%p622) target = $region28
        $region27: #{tpu_custom_call.1} parent=11 // pred_region
          _
        $region28: #{tpu_custom_call.1} parent=11 // pred_fallthru
          _
        // Predicated region
        $region29: #{tpu_custom_call.1} parent=11 // pred_check
          %p625 = pneg %p174
        $region30: #{tpu_custom_call.1} parent=11 // pred_check_branch
          %627 = sbr.rel (%p625) target = $region32
        $region31: #{tpu_custom_call.1} parent=11 // pred_region
          _
        $region32: #{tpu_custom_call.1} parent=11 // pred_fallthru
          _
        // Predicated region
        $region33: #{tpu_custom_call.1} parent=11 // pred_check
          %p628 = pneg %p195
        $region34: #{tpu_custom_call.1} parent=11 // pred_check_branch
          %630 = sbr.rel (%p628) target = $region36
        $region35: #{tpu_custom_call.1} parent=11 // pred_region
          _
        $region36: #{tpu_custom_call.1} parent=11 // pred_fallthru
          _
        // Predicated region
        $region37: #{tpu_custom_call.1} parent=11 // pred_check
          %p631 = pneg %p216
        $region38: #{tpu_custom_call.1} parent=11 // pred_check_branch
          %633 = sbr.rel (%p631) target = $region40
        $region39: #{tpu_custom_call.1} parent=11 // pred_region
          %s635 = ssub.s32 9216, 9216
          %636 = vsyncadd [#allocation8], %s635
          %s637 = sshll.u32 [#allocation9], 4
          %s638 = int_to_ptr.vmem [resolvable:$true] %s637
          %643 = dma.hbm_to_vmem [thread:$0]  %s7, 9216, %s638, [#allocation8], 64, 64, 4
        $region40: #{tpu_custom_call.1} parent=11 // pred_fallthru
          _
        // Predicated region
        $region41: #{tpu_custom_call.1} parent=11 // pred_check
          %p644 = pneg %p237
        $region42: #{tpu_custom_call.1} parent=11 // pred_check_branch
          %646 = sbr.rel (%p644) target = $region44
        $region43: #{tpu_custom_call.1} parent=11 // pred_region
          %s648 = ssub.s32 2048, 2048
          %649 = vsyncadd [#allocation11], %s648
          %s650 = sshll.u32 [#allocation10], 4
          %s651 = int_to_ptr.vmem [resolvable:$true] %s650
          %656 = dma.hbm_to_vmem [thread:$0]  %s8, 2048, %s651, [#allocation11], 128, 128, 8
        $region44: #{tpu_custom_call.1} parent=11 // pred_fallthru
          _
        // Predicated region
        $region45: #{tpu_custom_call.1} parent=11 // pred_check
          %p657 = pneg %p258
        $region46: #{tpu_custom_call.1} parent=11 // pred_check_branch
          %659 = sbr.rel (%p657) target = $region48
        $region47: #{tpu_custom_call.1} parent=11 // pred_region
          _
        $region48: #{tpu_custom_call.1} parent=11 // pred_fallthru
          _
        // Predicated region
        $region49: #{tpu_custom_call.1} parent=11 // pred_check
          %p660 = pneg %p279
        $region50: #{tpu_custom_call.1} parent=11 // pred_check_branch
          %662 = sbr.rel (%p660) target = $region52
        $region51: #{tpu_custom_call.1} parent=11 // pred_region
          _
        $region52: #{tpu_custom_call.1} parent=11 // pred_fallthru
          _
        // Predicated region
        $region53: #{tpu_custom_call.1} parent=11 // pred_check
          %p663 = pneg %p300
        $region54: #{tpu_custom_call.1} parent=11 // pred_check_branch
          %665 = sbr.rel (%p663) target = $region56
        $region55: #{tpu_custom_call.1} parent=11 // pred_region
          %s667 = ssub.s32 9216, 9216
          %668 = vsyncadd [#allocation11], %s667
          %s669 = sshll.u32 [#allocation12], 4
          %s670 = int_to_ptr.vmem [resolvable:$true] %s669
          %675 = dma.hbm_to_vmem [thread:$0]  %s11, 9216, %s670, [#allocation11], 64, 64, 4
        $region56: #{tpu_custom_call.1} parent=11 // pred_fallthru
          _
        // Predicated region
        $region57: #{tpu_custom_call.1} parent=11 // pred_check
          %p676 = pneg %p321
        $region58: #{tpu_custom_call.1} parent=11 // pred_check_branch
          %678 = sbr.rel (%p676) target = $region60
        $region59: #{tpu_custom_call.1} parent=11 // pred_region
          %s680 = ssub.s32 2048, 2048
          %681 = vsyncadd [#allocation14], %s680
          %s682 = sshll.u32 [#allocation13], 4
          %s683 = int_to_ptr.vmem [resolvable:$true] %s682
          %688 = dma.hbm_to_vmem [thread:$0]  %s12, 2048, %s683, [#allocation14], 128, 128, 8
        $region60: #{tpu_custom_call.1} parent=11 // pred_fallthru
          _
        // Predicated region
        $region61: #{tpu_custom_call.1} parent=11 // pred_check
          %p689 = pneg %p342
        $region62: #{tpu_custom_call.1} parent=11 // pred_check_branch
          %691 = sbr.rel (%p689) target = $region64
        $region63: #{tpu_custom_call.1} parent=11 // pred_region
          %s693 = ssub.s32 16, 16
          %694 = vsyncadd [#allocation14], %s693
          %s696 = sshll.u32 [#allocation15], 4
          %s697 = int_to_ptr.vmem [resolvable:$true] %s696
          %699 = dma.hbm_to_vmem [thread:$0]  %s13, 16, %s697, [#allocation14]
        $region64: #{tpu_custom_call.1} parent=11 // pred_fallthru
          _
        // Predicated region
        $region65: #{tpu_custom_call.1} parent=11 // pred_check
          %p700 = pneg %p363
        $region66: #{tpu_custom_call.1} parent=11 // pred_check_branch
          %702 = sbr.rel (%p700) target = $region68
        $region67: #{tpu_custom_call.1} parent=11 // pred_region
          %s704 = ssub.s32 16, 16
          %705 = vsyncadd [#allocation17], %s704
          %s707 = sshll.u32 [#allocation16], 4
          %s708 = int_to_ptr.vmem [resolvable:$true] %s707
          %710 = dma.hbm_to_vmem [thread:$0]  %s14, 16, %s708, [#allocation17]
        $region68: #{tpu_custom_call.1} parent=11 // pred_fallthru
          _
        // Predicated region
        $region69: #{tpu_custom_call.1} parent=11 // pred_check
          %p711 = pneg %p384
        $region70: #{tpu_custom_call.1} parent=11 // pred_check_branch
          %713 = sbr.rel (%p711) target = $region72
        $region71: #{tpu_custom_call.1} parent=11 // pred_region
          %s715 = ssub.s32 9216, 9216
          %716 = vsyncadd [#allocation17], %s715
          %s717 = sshll.u32 [#allocation18], 4
          %s718 = int_to_ptr.vmem [resolvable:$true] %s717
          %723 = dma.hbm_to_vmem [thread:$0]  %s15, 9216, %s718, [#allocation17], 64, 64, 4
        $region72: #{tpu_custom_call.1} parent=11 // pred_fallthru
          _
        // Predicated region
        $region73: #{tpu_custom_call.1} parent=11 // pred_check
          %p724 = pneg %p405
        $region74: #{tpu_custom_call.1} parent=11 // pred_check_branch
          %726 = sbr.rel (%p724) target = $region76
        $region75: #{tpu_custom_call.1} parent=11 // pred_region
          %s728 = ssub.s32 2048, 2048
          %729 = vsyncadd [#allocation20], %s728
          %s730 = sshll.u32 [#allocation19], 4
          %s731 = int_to_ptr.vmem [resolvable:$true] %s730
          %736 = dma.hbm_to_vmem [thread:$0]  %s16, 2048, %s731, [#allocation20], 128, 128, 8
        $region76: #{tpu_custom_call.1} parent=11 // pred_fallthru
          _
        // Predicated region
        $region77: #{tpu_custom_call.1} parent=11 // pred_check
          %p737 = pneg %p426
        $region78: #{tpu_custom_call.1} parent=11 // pred_check_branch
          %739 = sbr.rel (%p737) target = $region80
        $region79: #{tpu_custom_call.1} parent=11 // pred_region
          %s741 = ssub.s32 16, 16
          %742 = vsyncadd [#allocation20], %s741
          %s744 = sshll.u32 [#allocation21], 4
          %s745 = int_to_ptr.vmem [resolvable:$true] %s744
          %747 = dma.hbm_to_vmem [thread:$0]  %s17, 16, %s745, [#allocation20]
        $region80: #{tpu_custom_call.1} parent=11 // pred_fallthru
          _
        // Predicated region
        $region81: #{tpu_custom_call.1} parent=11 // pred_check
          %p748 = pneg %p447
        $region82: #{tpu_custom_call.1} parent=11 // pred_check_branch
          %750 = sbr.rel (%p748) target = $region84
        $region83: #{tpu_custom_call.1} parent=11 // pred_region
          %s752 = ssub.s32 16, 16
          %753 = vsyncadd [#allocation23], %s752
          %s755 = sshll.u32 [#allocation22], 4
          %s756 = int_to_ptr.vmem [resolvable:$true] %s755
          %758 = dma.hbm_to_vmem [thread:$0]  %s18, 16, %s756, [#allocation23]
        $region84: #{tpu_custom_call.1} parent=11 // pred_fallthru
          _
        // Predicated region
        $region85: #{tpu_custom_call.1} parent=11 // pred_check
          %p759 = pneg %p468
        $region86: #{tpu_custom_call.1} parent=11 // pred_check_branch
          %761 = sbr.rel (%p759) target = $region88
        $region87: #{tpu_custom_call.1} parent=11 // pred_region
          _
        $region88: #{tpu_custom_call.1} parent=11 // pred_fallthru
          _
        // Predicated region
        $region89: #{tpu_custom_call.1} parent=11 // pred_check
          %p762 = pneg %p489
        $region90: #{tpu_custom_call.1} parent=11 // pred_check_branch
          %764 = sbr.rel (%p762) target = $region92
        $region91: #{tpu_custom_call.1} parent=11 // pred_region
          _
        $region92: #{tpu_custom_call.1} parent=11 // pred_fallthru
          _
        // Predicated region
        $region93: #{tpu_custom_call.1} parent=11 // pred_check
          %p765 = pneg %p510
        $region94: #{tpu_custom_call.1} parent=11 // pred_check_branch
          %767 = sbr.rel (%p765) target = $region96
        $region95: #{tpu_custom_call.1} parent=11 // pred_region
          _
        $region96: #{tpu_custom_call.1} parent=11 // pred_fallthru
          _
        // Predicated region
        $region97: #{tpu_custom_call.1} parent=11 // pred_check
          %p768 = pneg %p531
        $region98: #{tpu_custom_call.1} parent=11 // pred_check_branch
          %770 = sbr.rel (%p768) target = $region100
        $region99: #{tpu_custom_call.1} parent=11 // pred_region
          %s772 = ssub.s32 1024, 1024
          %773 = vsyncadd [#allocation23], %s772
          %s774 = sshll.u32 [#allocation24], 4
          %s775 = int_to_ptr.vmem [resolvable:$true] %s774
          %780 = dma.hbm_to_vmem [thread:$0]  %s22, 1024, %s775, [#allocation23], 128, 128, 8
        $region100: #{tpu_custom_call.1} parent=11 // pred_fallthru
          _
        // Predicated region
        $region101: #{tpu_custom_call.1} parent=11 // pred_check
          %p781 = pneg %p552
        $region102: #{tpu_custom_call.1} parent=11 // pred_check_branch
          %783 = sbr.rel (%p781) target = $region104
        $region103: #{tpu_custom_call.1} parent=11 // pred_region
          %s785 = ssub.s32 1024, 1024
          %786 = vsyncadd [#allocation26], %s785
          %s787 = sshll.u32 [#allocation25], 4
          %s788 = int_to_ptr.vmem [resolvable:$true] %s787
          %793 = dma.hbm_to_vmem [thread:$0]  %s23, 1024, %s788, [#allocation26], 128, 128, 8
        $region104: #{tpu_custom_call.1} parent=11 // pred_fallthru
          _
      $region12: #{tpu_custom_call.1} parent=5 // pred_fallthru
        _
      %p794 = scmp.lt.s32.totalorder %s43, 2
      // Predicated region
      $region105: #{tpu_custom_call.1} parent=5 // pred_check
        %p795 = pneg %p794
      $region106: #{tpu_custom_call.1} parent=5 // pred_check_branch
        %797 = sbr.rel (%p795) target = $region108
      $region107: #{tpu_custom_call.1} parent=5 // pred_region
        // Predicated region
        $region109: #{tpu_custom_call.1} parent=107 // pred_check
          %p798 = pneg %p63
        $region110: #{tpu_custom_call.1} parent=107 // pred_check_branch
          %800 = sbr.rel (%p798) target = $region112
        $region111: #{tpu_custom_call.1} parent=107 // pred_region
          %s801 = smul.u32 32, %s43
          %p802 = scmp.lt.s32.totalorder %s801, 63
          %s803 = scalar_select %p802, %s801, 63
          %s804 = smul.addr %s803, 4
          %s805 = scalar_lea.vmem %s0, %s804
          %s806 = smul.u32 32, %s43
        $region112: #{tpu_custom_call.1} parent=107 // pred_fallthru
          _
      $region108: #{tpu_custom_call.1} parent=5 // pred_fallthru
        _
      %p807 = scmp.le.s32.totalorder 1, %s43
      %p808 = scmp.lt.s32.totalorder %s43, 3
      %p809 = pnand %p807, %p808
      %p810 = pneg %p809
      // Predicated region
      $region113: #{tpu_custom_call.1} parent=5 // pred_check
        _
      $region114: #{tpu_custom_call.1} parent=5 // pred_check_branch
        %812 = sbr.rel (%p809) target = $region116
      $region115: #{tpu_custom_call.1} parent=5 // pred_region
        %s813 = ssub.s32 %s43, 1
        // Predicated region
        $region117: #{tpu_custom_call.1} parent=115 // pred_check
          %p814 = pneg %p90
        $region118: #{tpu_custom_call.1} parent=115 // pred_check_branch
          %816 = sbr.rel (%p814) target = $region120
        $region119: #{tpu_custom_call.1} parent=115 // pred_region
          %817 = dma.done [#allocation5], 9216
        $region120: #{tpu_custom_call.1} parent=115 // pred_fallthru
          _
        // Predicated region
        $region121: #{tpu_custom_call.1} parent=115 // pred_check
          %p818 = pneg %p132
        $region122: #{tpu_custom_call.1} parent=115 // pred_check_branch
          %820 = sbr.rel (%p818) target = $region124
        $region123: #{tpu_custom_call.1} parent=115 // pred_region
          %821 = dma.done [#allocation8], 9216
        $region124: #{tpu_custom_call.1} parent=115 // pred_fallthru
          _
        // Predicated region
        $region125: #{tpu_custom_call.1} parent=115 // pred_check
          %p822 = pneg %p216
        $region126: #{tpu_custom_call.1} parent=115 // pred_check_branch
          %824 = sbr.rel (%p822) target = $region128
        $region127: #{tpu_custom_call.1} parent=115 // pred_region
          %825 = dma.done [#allocation8], 9216
        $region128: #{tpu_custom_call.1} parent=115 // pred_fallthru
          _
        // Predicated region
        $region129: #{tpu_custom_call.1} parent=115 // pred_check
          %p826 = pneg %p237
        $region130: #{tpu_custom_call.1} parent=115 // pred_check_branch
          %828 = sbr.rel (%p826) target = $region132
        $region131: #{tpu_custom_call.1} parent=115 // pred_region
          %829 = dma.done [#allocation11], 2048
        $region132: #{tpu_custom_call.1} parent=115 // pred_fallthru
          _
        // Predicated region
        $region133: #{tpu_custom_call.1} parent=115 // pred_check
          %p830 = pneg %p300
        $region134: #{tpu_custom_call.1} parent=115 // pred_check_branch
          %832 = sbr.rel (%p830) target = $region136
        $region135: #{tpu_custom_call.1} parent=115 // pred_region
          %833 = dma.done [#allocation11], 9216
        $region136: #{tpu_custom_call.1} parent=115 // pred_fallthru
          _
        // Predicated region
        $region137: #{tpu_custom_call.1} parent=115 // pred_check
          %p834 = pneg %p321
        $region138: #{tpu_custom_call.1} parent=115 // pred_check_branch
          %836 = sbr.rel (%p834) target = $region140
        $region139: #{tpu_custom_call.1} parent=115 // pred_region
          %837 = dma.done [#allocation14], 2048
        $region140: #{tpu_custom_call.1} parent=115 // pred_fallthru
          _
        // Predicated region
        $region141: #{tpu_custom_call.1} parent=115 // pred_check
          %p838 = pneg %p342
        $region142: #{tpu_custom_call.1} parent=115 // pred_check_branch
          %840 = sbr.rel (%p838) target = $region144
        $region143: #{tpu_custom_call.1} parent=115 // pred_region
          %841 = dma.done [#allocation14], 16
        $region144: #{tpu_custom_call.1} parent=115 // pred_fallthru
          _
        // Predicated region
        $region145: #{tpu_custom_call.1} parent=115 // pred_check
          %p842 = pneg %p363
        $region146: #{tpu_custom_call.1} parent=115 // pred_check_branch
          %844 = sbr.rel (%p842) target = $region148
        $region147: #{tpu_custom_call.1} parent=115 // pred_region
          %845 = dma.done [#allocation17], 16
        $region148: #{tpu_custom_call.1} parent=115 // pred_fallthru
          _
        // Predicated region
        $region149: #{tpu_custom_call.1} parent=115 // pred_check
          %p846 = pneg %p384
        $region150: #{tpu_custom_call.1} parent=115 // pred_check_branch
          %848 = sbr.rel (%p846) target = $region152
        $region151: #{tpu_custom_call.1} parent=115 // pred_region
          %849 = dma.done [#allocation17], 9216
        $region152: #{tpu_custom_call.1} parent=115 // pred_fallthru
          _
        // Predicated region
        $region153: #{tpu_custom_call.1} parent=115 // pred_check
          %p850 = pneg %p405
        $region154: #{tpu_custom_call.1} parent=115 // pred_check_branch
          %852 = sbr.rel (%p850) target = $region156
        $region155: #{tpu_custom_call.1} parent=115 // pred_region
          %853 = dma.done [#allocation20], 2048
        $region156: #{tpu_custom_call.1} parent=115 // pred_fallthru
          _
        // Predicated region
        $region157: #{tpu_custom_call.1} parent=115 // pred_check
          %p854 = pneg %p426
        $region158: #{tpu_custom_call.1} parent=115 // pred_check_branch
          %856 = sbr.rel (%p854) target = $region160
        $region159: #{tpu_custom_call.1} parent=115 // pred_region
          %857 = dma.done [#allocation20], 16
        $region160: #{tpu_custom_call.1} parent=115 // pred_fallthru
          _
        // Predicated region
        $region161: #{tpu_custom_call.1} parent=115 // pred_check
          %p858 = pneg %p447
        $region162: #{tpu_custom_call.1} parent=115 // pred_check_branch
          %860 = sbr.rel (%p858) target = $region164
        $region163: #{tpu_custom_call.1} parent=115 // pred_region
          %861 = dma.done [#allocation23], 16
        $region164: #{tpu_custom_call.1} parent=115 // pred_fallthru
          _
        // Predicated region
        $region165: #{tpu_custom_call.1} parent=115 // pred_check
          %p862 = pneg %p531
        $region166: #{tpu_custom_call.1} parent=115 // pred_check_branch
          %864 = sbr.rel (%p862) target = $region168
        $region167: #{tpu_custom_call.1} parent=115 // pred_region
          %865 = dma.done [#allocation23], 1024
        $region168: #{tpu_custom_call.1} parent=115 // pred_fallthru
          _
        // Predicated region
        $region169: #{tpu_custom_call.1} parent=115 // pred_check
          %p866 = pneg %p552
        $region170: #{tpu_custom_call.1} parent=115 // pred_check_branch
          %868 = sbr.rel (%p866) target = $region172
        $region171: #{tpu_custom_call.1} parent=115 // pred_region
          %869 = dma.done [#allocation26], 1024
        $region172: #{tpu_custom_call.1} parent=115 // pred_fallthru
          _
        %s870 = smul.u32 32, %s48
        %p871 = scmp.lt.s32.totalorder %s870, 63
        %s872 = scalar_select %p871, %s870, 63
        %s873 = smul.addr %s872, 4
        %s874 = scalar_lea.vmem %s0, %s873
        %p875 = pneg %p69
        %p876 = pneg %p66
        %p877 = pneg %p90
        %p878 = pneg %p87
        %p879 = pneg %p111
        %p880 = pneg %p108
        %p881 = pneg %p132
        %p882 = pneg %p129
        %p883 = pneg %p153
        %p884 = pneg %p150
        %p885 = pneg %p174
        %p886 = pneg %p171
        %p887 = pneg %p195
        %p888 = pneg %p192
        %p889 = pneg %p216
        %p890 = pneg %p213
        %p891 = pneg %p237
        %p892 = pneg %p234
        %p893 = pneg %p258
        %p894 = pneg %p255
        %p895 = pneg %p279
        %p896 = pneg %p276
        %p897 = pneg %p300
        %p898 = pneg %p297
        %p899 = pneg %p321
        %p900 = pneg %p318
        %p901 = pneg %p342
        %p902 = pneg %p339
        %p903 = pneg %p363
        %p904 = pneg %p360
        %p905 = pneg %p384
        %p906 = pneg %p381
        %p907 = pneg %p405
        %p908 = pneg %p402
        %p909 = pneg %p426
        %p910 = pneg %p423
        %p911 = pneg %p447
        %p912 = pneg %p444
        %p913 = pneg %p468
        %p914 = pneg %p465
        %p915 = pneg %p489
        %p916 = pneg %p486
        %p917 = pneg %p510
        %p918 = pneg %p507
        %p919 = pneg %p531
        %p920 = pneg %p528
        %p921 = pneg %p552
        %p922 = pneg %p549
        %p923 = pneg %p578
        %p924 = pneg %p575
        %s925 = sand.u32 %s565, 1
        %s926 = scalar_lea.sflag [#allocation6], %s925
        %s927 = sand.u32 %s565, 1
        %s928 = smul.addr %s927, 32
        %s929 = scalar_lea.vmem [#allocation27], %s928
        %s930 = smul.u32 32, %s48
        %p931 = scmp.lt.s32.totalorder %s930, 63
        %s932 = scalar_select %p931, %s930, 63
        %s933 = smul.addr %s932, 4
        %s934 = scalar_lea.vmem %s0, %s933
        %s935 = smul.u32 32, %s48
        %s936 = smul.u32 8, %s48
        %v938 = vld [vmem:[%s934] sm:$0xf]
        %v939 = vld [vmem:[%s934 + $0x4] sm:$0xf]
        %v940 = vld [vmem:[%s934 + $0x8] sm:$0xf]
        %v941 = vld [vmem:[%s934 + $0xc] sm:$0xf]
        %v942 = vld [vmem:[%s934 + $0x10] sm:$0xf]
        %v943 = vld [vmem:[%s934 + $0x14] sm:$0xf]
        %v944 = vld [vmem:[%s934 + $0x18] sm:$0xf]
        %v945 = vld [vmem:[%s934 + $0x1c] sm:$0xf]
        %v946 = vld [vmem:[%s934 + $0x20] sm:$0xf]
        %v947 = vld [vmem:[%s934 + $0x24] sm:$0xf]
        %v948 = vld [vmem:[%s934 + $0x28] sm:$0xf]
        %v949 = vld [vmem:[%s934 + $0x2c] sm:$0xf]
        %v950 = vld [vmem:[%s934 + $0x30] sm:$0xf]
        %v951 = vld [vmem:[%s934 + $0x34] sm:$0xf]
        %v952 = vld [vmem:[%s934 + $0x38] sm:$0xf]
        %v953 = vld [vmem:[%s934 + $0x3c] sm:$0xf]
        %v954 = vld [vmem:[%s934 + $0x40] sm:$0xf]
        %v955 = vld [vmem:[%s934 + $0x44] sm:$0xf]
        %v956 = vld [vmem:[%s934 + $0x48] sm:$0xf]
        %v957 = vld [vmem:[%s934 + $0x4c] sm:$0xf]
        %v958 = vld [vmem:[%s934 + $0x50] sm:$0xf]
        %v959 = vld [vmem:[%s934 + $0x54] sm:$0xf]
        %v960 = vld [vmem:[%s934 + $0x58] sm:$0xf]
        %v961 = vld [vmem:[%s934 + $0x5c] sm:$0xf]
        %v962 = vld [vmem:[%s934 + $0x60] sm:$0xf]
        %v963 = vld [vmem:[%s934 + $0x64] sm:$0xf]
        %v964 = vld [vmem:[%s934 + $0x68] sm:$0xf]
        %v965 = vld [vmem:[%s934 + $0x6c] sm:$0xf]
        %v966 = vld [vmem:[%s934 + $0x70] sm:$0xf]
        %v967 = vld [vmem:[%s934 + $0x74] sm:$0xf]
        %v968 = vld [vmem:[%s934 + $0x78] sm:$0xf]
        %v969 = vld [vmem:[%s934 + $0x7c] sm:$0xf]
        %v970 = vld [vmem:[#allocation4] sm:$0xff]
        %v971 = vld [vmem:[#allocation4 + $0x8] sm:$0xff]
        %v972 = vld [vmem:[#allocation4 + $0x10] sm:$0xff]
        %v973 = vld [vmem:[#allocation4 + $0x18] sm:$0xff]
        %v974 = vld [vmem:[#allocation4 + $0x20] sm:$0xff]
        %v975 = vld [vmem:[#allocation4 + $0x28] sm:$0xff]
        %v976 = vld [vmem:[#allocation4 + $0x30] sm:$0xff]
        %v977 = vld [vmem:[#allocation4 + $0x38] sm:$0xff]
        %v978 = vld [vmem:[#allocation4 + $0x40] sm:$0xff]
        %v979 = vld [vmem:[#allocation4 + $0x48] sm:$0xff]
        %v980 = vld [vmem:[#allocation4 + $0x50] sm:$0xff]
        %v981 = vld [vmem:[#allocation4 + $0x58] sm:$0xff]
        %v982 = vld [vmem:[#allocation4 + $0x60] sm:$0xff]
        %v983 = vld [vmem:[#allocation4 + $0x68] sm:$0xff]
        %v984 = vld [vmem:[#allocation4 + $0x70] sm:$0xff]
        %v985 = vld [vmem:[#allocation4 + $0x78] sm:$0xff]
        %v986 = vld [vmem:[#allocation4 + $0x80] sm:$0xff]
        %v987 = vld [vmem:[#allocation4 + $0x88] sm:$0xff]
        %v988 = vld [vmem:[#allocation4 + $0x90] sm:$0xff]
        %v989 = vld [vmem:[#allocation4 + $0x98] sm:$0xff]
        %v990 = vld [vmem:[#allocation4 + $0xa0] sm:$0xff]
        %v991 = vld [vmem:[#allocation4 + $0xa8] sm:$0xff]
        %v992 = vld [vmem:[#allocation4 + $0xb0] sm:$0xff]
        %v993 = vld [vmem:[#allocation4 + $0xb8] sm:$0xff]
        %v994 = vld [vmem:[#allocation4 + $0xc0] sm:$0xff]
        %v995 = vld [vmem:[#allocation4 + $0xc8] sm:$0xff]
        %v996 = vld [vmem:[#allocation4 + $0xd0] sm:$0xff]
        %v997 = vld [vmem:[#allocation4 + $0xd8] sm:$0xff]
        %v998 = vld [vmem:[#allocation4 + $0xe0] sm:$0xff]
        %v999 = vld [vmem:[#allocation4 + $0xe8] sm:$0xff]
        %v1000 = vld [vmem:[#allocation4 + $0xf0] sm:$0xff]
        %v1001 = vld [vmem:[#allocation4 + $0xf8] sm:$0xff]
        %v1002 = vld [vmem:[#allocation4 + $0x100] sm:$0xff]
        %v1003 = vld [vmem:[#allocation4 + $0x108] sm:$0xff]
        %v1004 = vld [vmem:[#allocation4 + $0x110] sm:$0xff]
        %v1005 = vld [vmem:[#allocation4 + $0x118] sm:$0xff]
        %v1006 = vld [vmem:[#allocation4 + $0x120] sm:$0xff]
        %v1007 = vld [vmem:[#allocation4 + $0x128] sm:$0xff]
        %v1008 = vld [vmem:[#allocation4 + $0x130] sm:$0xff]
        %v1009 = vld [vmem:[#allocation4 + $0x138] sm:$0xff]
        %v1010 = vld [vmem:[#allocation4 + $0x140] sm:$0xff]
        %v1011 = vld [vmem:[#allocation4 + $0x148] sm:$0xff]
        %v1012 = vld [vmem:[#allocation4 + $0x150] sm:$0xff]
        %v1013 = vld [vmem:[#allocation4 + $0x158] sm:$0xff]
        %v1014 = vld [vmem:[#allocation4 + $0x160] sm:$0xff]
        %v1015 = vld [vmem:[#allocation4 + $0x168] sm:$0xff]
        %v1016 = vld [vmem:[#allocation4 + $0x170] sm:$0xff]
        %v1017 = vld [vmem:[#allocation4 + $0x178] sm:$0xff]
        %v1018 = vld [vmem:[#allocation4 + $0x180] sm:$0xff]
        %v1019 = vld [vmem:[#allocation4 + $0x188] sm:$0xff]
        %v1020 = vld [vmem:[#allocation4 + $0x190] sm:$0xff]
        %v1021 = vld [vmem:[#allocation4 + $0x198] sm:$0xff]
        %v1022 = vld [vmem:[#allocation4 + $0x1a0] sm:$0xff]
        %v1023 = vld [vmem:[#allocation4 + $0x1a8] sm:$0xff]
        %v1024 = vld [vmem:[#allocation4 + $0x1b0] sm:$0xff]
        %v1025 = vld [vmem:[#allocation4 + $0x1b8] sm:$0xff]
        %v1026 = vld [vmem:[#allocation4 + $0x1c0] sm:$0xff]
        %v1027 = vld [vmem:[#allocation4 + $0x1c8] sm:$0xff]
        %v1028 = vld [vmem:[#allocation4 + $0x1d0] sm:$0xff]
        %v1029 = vld [vmem:[#allocation4 + $0x1d8] sm:$0xff]
        %v1030 = vld [vmem:[#allocation4 + $0x1e0] sm:$0xff]
        %v1031 = vld [vmem:[#allocation4 + $0x1e8] sm:$0xff]
        %v1032 = vld [vmem:[#allocation4 + $0x1f0] sm:$0xff]
        %v1033 = vld [vmem:[#allocation4 + $0x1f8] sm:$0xff]
        %v1034 = vld [vmem:[#allocation4 + $0x200] sm:$0xff]
        %v1035 = vld [vmem:[#allocation4 + $0x208] sm:$0xff]
        %v1036 = vld [vmem:[#allocation4 + $0x210] sm:$0xff]
        %v1037 = vld [vmem:[#allocation4 + $0x218] sm:$0xff]
        %v1038 = vld [vmem:[#allocation4 + $0x220] sm:$0xff]
        %v1039 = vld [vmem:[#allocation4 + $0x228] sm:$0xff]
        %v1040 = vld [vmem:[#allocation4 + $0x230] sm:$0xff]
        %v1041 = vld [vmem:[#allocation4 + $0x238] sm:$0xff]
        %v1114 = vunpack.c.l.b16 %v970
        %v1115 = vunpack.c.h.b16 %v970
        %v1116 = vunpack.c.l.b16 %v971
        %v1117 = vunpack.c.h.b16 %v971
        %v1118 = vunpack.c.l.b16 %v972
        %v1119 = vunpack.c.h.b16 %v972
        %v1120 = vunpack.c.l.b16 %v973
        %v1121 = vunpack.c.h.b16 %v973
        %v1122 = vunpack.c.l.b16 %v974
        %v1123 = vunpack.c.h.b16 %v974
        %v1124 = vunpack.c.l.b16 %v975
        %v1125 = vunpack.c.h.b16 %v975
        %v1126 = vunpack.c.l.b16 %v976
        %v1127 = vunpack.c.h.b16 %v976
        %v1128 = vunpack.c.l.b16 %v977
        %v1129 = vunpack.c.h.b16 %v977
        %v1130 = vunpack.c.l.b16 %v978
        %v1131 = vunpack.c.h.b16 %v978
        %v1132 = vunpack.c.l.b16 %v979
        %v1133 = vunpack.c.h.b16 %v979
        %v1134 = vunpack.c.l.b16 %v980
        %v1135 = vunpack.c.h.b16 %v980
        %v1136 = vunpack.c.l.b16 %v981
        %v1137 = vunpack.c.h.b16 %v981
        %v1138 = vunpack.c.l.b16 %v982
        %v1139 = vunpack.c.h.b16 %v982
        %v1140 = vunpack.c.l.b16 %v983
        %v1141 = vunpack.c.h.b16 %v983
        %v1142 = vunpack.c.l.b16 %v984
        %v1143 = vunpack.c.h.b16 %v984
        %v1144 = vunpack.c.l.b16 %v985
        %v1145 = vunpack.c.h.b16 %v985
        %v1146 = vunpack.c.l.b16 %v986
        %v1147 = vunpack.c.h.b16 %v986
        %v1148 = vunpack.c.l.b16 %v987
        %v1149 = vunpack.c.h.b16 %v987
        %v1150 = vunpack.c.l.b16 %v988
        %v1151 = vunpack.c.h.b16 %v988
        %v1152 = vunpack.c.l.b16 %v989
        %v1153 = vunpack.c.h.b16 %v989
        %v1154 = vunpack.c.l.b16 %v990
        %v1155 = vunpack.c.h.b16 %v990
        %v1156 = vunpack.c.l.b16 %v991
        %v1157 = vunpack.c.h.b16 %v991
        %v1158 = vunpack.c.l.b16 %v992
        %v1159 = vunpack.c.h.b16 %v992
        %v1160 = vunpack.c.l.b16 %v993
        %v1161 = vunpack.c.h.b16 %v993
        %v1162 = vunpack.c.l.b16 %v994
        %v1163 = vunpack.c.h.b16 %v994
        %v1164 = vunpack.c.l.b16 %v995
        %v1165 = vunpack.c.h.b16 %v995
        %v1166 = vunpack.c.l.b16 %v996
        %v1167 = vunpack.c.h.b16 %v996
        %v1168 = vunpack.c.l.b16 %v997
        %v1169 = vunpack.c.h.b16 %v997
        %v1170 = vunpack.c.l.b16 %v998
        %v1171 = vunpack.c.h.b16 %v998
        %v1172 = vunpack.c.l.b16 %v999
        %v1173 = vunpack.c.h.b16 %v999
        %v1174 = vunpack.c.l.b16 %v1000
        %v1175 = vunpack.c.h.b16 %v1000
        %v1176 = vunpack.c.l.b16 %v1001
        %v1177 = vunpack.c.h.b16 %v1001
        %v1178 = vunpack.c.l.b16 %v1002
        %v1179 = vunpack.c.h.b16 %v1002
        %v1180 = vunpack.c.l.b16 %v1003
        %v1181 = vunpack.c.h.b16 %v1003
        %v1182 = vunpack.c.l.b16 %v1004
        %v1183 = vunpack.c.h.b16 %v1004
        %v1184 = vunpack.c.l.b16 %v1005
        %v1185 = vunpack.c.h.b16 %v1005
        %v1186 = vunpack.c.l.b16 %v1006
        %v1187 = vunpack.c.h.b16 %v1006
        %v1188 = vunpack.c.l.b16 %v1007
        %v1189 = vunpack.c.h.b16 %v1007
        %v1190 = vunpack.c.l.b16 %v1008
        %v1191 = vunpack.c.h.b16 %v1008
        %v1192 = vunpack.c.l.b16 %v1009
        %v1193 = vunpack.c.h.b16 %v1009
        %v1194 = vunpack.c.l.b16 %v1010
        %v1195 = vunpack.c.h.b16 %v1010
        %v1196 = vunpack.c.l.b16 %v1011
        %v1197 = vunpack.c.h.b16 %v1011
        %v1198 = vunpack.c.l.b16 %v1012
        %v1199 = vunpack.c.h.b16 %v1012
        %v1200 = vunpack.c.l.b16 %v1013
        %v1201 = vunpack.c.h.b16 %v1013
        %v1202 = vunpack.c.l.b16 %v1014
        %v1203 = vunpack.c.h.b16 %v1014
        %v1204 = vunpack.c.l.b16 %v1015
        %v1205 = vunpack.c.h.b16 %v1015
        %v1206 = vunpack.c.l.b16 %v1016
        %v1207 = vunpack.c.h.b16 %v1016
        %v1208 = vunpack.c.l.b16 %v1017
        %v1209 = vunpack.c.h.b16 %v1017
        %v1210 = vunpack.c.l.b16 %v1018
        %v1211 = vunpack.c.h.b16 %v1018
        %v1212 = vunpack.c.l.b16 %v1019
        %v1213 = vunpack.c.h.b16 %v1019
        %v1214 = vunpack.c.l.b16 %v1020
        %v1215 = vunpack.c.h.b16 %v1020
        %v1216 = vunpack.c.l.b16 %v1021
        %v1217 = vunpack.c.h.b16 %v1021
        %v1218 = vunpack.c.l.b16 %v1022
        %v1219 = vunpack.c.h.b16 %v1022
        %v1220 = vunpack.c.l.b16 %v1023
        %v1221 = vunpack.c.h.b16 %v1023
        %v1222 = vunpack.c.l.b16 %v1024
        %v1223 = vunpack.c.h.b16 %v1024
        %v1224 = vunpack.c.l.b16 %v1025
        %v1225 = vunpack.c.h.b16 %v1025
        %v1226 = vunpack.c.l.b16 %v1026
        %v1227 = vunpack.c.h.b16 %v1026
        %v1228 = vunpack.c.l.b16 %v1027
        %v1229 = vunpack.c.h.b16 %v1027
        %v1230 = vunpack.c.l.b16 %v1028
        %v1231 = vunpack.c.h.b16 %v1028
        %v1232 = vunpack.c.l.b16 %v1029
        %v1233 = vunpack.c.h.b16 %v1029
        %v1234 = vunpack.c.l.b16 %v1030
        %v1235 = vunpack.c.h.b16 %v1030
        %v1236 = vunpack.c.l.b16 %v1031
        %v1237 = vunpack.c.h.b16 %v1031
        %v1238 = vunpack.c.l.b16 %v1032
        %v1239 = vunpack.c.h.b16 %v1032
        %v1240 = vunpack.c.l.b16 %v1033
        %v1241 = vunpack.c.h.b16 %v1033
        %v1242 = vunpack.c.l.b16 %v1034
        %v1243 = vunpack.c.h.b16 %v1034
        %v1244 = vunpack.c.l.b16 %v1035
        %v1245 = vunpack.c.h.b16 %v1035
        %v1246 = vunpack.c.l.b16 %v1036
        %v1247 = vunpack.c.h.b16 %v1036
        %v1248 = vunpack.c.l.b16 %v1037
        %v1249 = vunpack.c.h.b16 %v1037
        %v1250 = vunpack.c.l.b16 %v1038
        %v1251 = vunpack.c.h.b16 %v1038
        %v1252 = vunpack.c.l.b16 %v1039
        %v1253 = vunpack.c.h.b16 %v1039
        %v1254 = vunpack.c.l.b16 %v1040
        %v1255 = vunpack.c.h.b16 %v1040
        %v1256 = vunpack.c.l.b16 %v1041
        %v1257 = vunpack.c.h.b16 %v1041
        %v1258 = vpack.c.b16 %v1116, %v1114
        %v1259 = vpack.c.b16 %v1117, %v1115
        %v1260 = vpack.c.b16 %v1120, %v1118
        %v1261 = vpack.c.b16 %v1121, %v1119
        %v1262 = vpack.c.b16 %v1124, %v1122
        %v1263 = vpack.c.b16 %v1125, %v1123
        %v1264 = vpack.c.b16 %v1128, %v1126
        %v1265 = vpack.c.b16 %v1129, %v1127
        %v1266 = vpack.c.b16 %v1132, %v1130
        %v1267 = vpack.c.b16 %v1133, %v1131
        %v1268 = vpack.c.b16 %v1136, %v1134
        %v1269 = vpack.c.b16 %v1137, %v1135
        %v1270 = vpack.c.b16 %v1140, %v1138
        %v1271 = vpack.c.b16 %v1141, %v1139
        %v1272 = vpack.c.b16 %v1144, %v1142
        %v1273 = vpack.c.b16 %v1145, %v1143
        %v1274 = vpack.c.b16 %v1148, %v1146
        %v1275 = vpack.c.b16 %v1149, %v1147
        %v1276 = vpack.c.b16 %v1152, %v1150
        %v1277 = vpack.c.b16 %v1153, %v1151
        %v1278 = vpack.c.b16 %v1156, %v1154
        %v1279 = vpack.c.b16 %v1157, %v1155
        %v1280 = vpack.c.b16 %v1160, %v1158
        %v1281 = vpack.c.b16 %v1161, %v1159
        %v1282 = vpack.c.b16 %v1164, %v1162
        %v1283 = vpack.c.b16 %v1165, %v1163
        %v1284 = vpack.c.b16 %v1168, %v1166
        %v1285 = vpack.c.b16 %v1169, %v1167
        %v1286 = vpack.c.b16 %v1172, %v1170
        %v1287 = vpack.c.b16 %v1173, %v1171
        %v1288 = vpack.c.b16 %v1176, %v1174
        %v1289 = vpack.c.b16 %v1177, %v1175
        %v1290 = vpack.c.b16 %v1180, %v1178
        %v1291 = vpack.c.b16 %v1181, %v1179
        %v1292 = vpack.c.b16 %v1184, %v1182
        %v1293 = vpack.c.b16 %v1185, %v1183
        %v1294 = vpack.c.b16 %v1188, %v1186
        %v1295 = vpack.c.b16 %v1189, %v1187
        %v1296 = vpack.c.b16 %v1192, %v1190
        %v1297 = vpack.c.b16 %v1193, %v1191
        %v1298 = vpack.c.b16 %v1196, %v1194
        %v1299 = vpack.c.b16 %v1197, %v1195
        %v1300 = vpack.c.b16 %v1200, %v1198
        %v1301 = vpack.c.b16 %v1201, %v1199
        %v1302 = vpack.c.b16 %v1204, %v1202
        %v1303 = vpack.c.b16 %v1205, %v1203
        %v1304 = vpack.c.b16 %v1208, %v1206
        %v1305 = vpack.c.b16 %v1209, %v1207
        %v1306 = vpack.c.b16 %v1212, %v1210
        %v1307 = vpack.c.b16 %v1213, %v1211
        %v1308 = vpack.c.b16 %v1216, %v1214
        %v1309 = vpack.c.b16 %v1217, %v1215
        %v1310 = vpack.c.b16 %v1220, %v1218
        %v1311 = vpack.c.b16 %v1221, %v1219
        %v1312 = vpack.c.b16 %v1224, %v1222
        %v1313 = vpack.c.b16 %v1225, %v1223
        %v1314 = vpack.c.b16 %v1228, %v1226
        %v1315 = vpack.c.b16 %v1229, %v1227
        %v1316 = vpack.c.b16 %v1232, %v1230
        %v1317 = vpack.c.b16 %v1233, %v1231
        %v1318 = vpack.c.b16 %v1236, %v1234
        %v1319 = vpack.c.b16 %v1237, %v1235
        %v1320 = vpack.c.b16 %v1240, %v1238
        %v1321 = vpack.c.b16 %v1241, %v1239
        %v1322 = vpack.c.b16 %v1244, %v1242
        %v1323 = vpack.c.b16 %v1245, %v1243
        %v1324 = vpack.c.b16 %v1248, %v1246
        %v1325 = vpack.c.b16 %v1249, %v1247
        %v1326 = vpack.c.b16 %v1252, %v1250
        %v1327 = vpack.c.b16 %v1253, %v1251
        %v1328 = vpack.c.b16 %v1256, %v1254
        %v1329 = vpack.c.b16 %v1257, %v1255
        %v1434 = vunpack.c.l.b16 %v938
        %v1435 = vunpack.c.l.b16 %v939
        %v1436 = vunpack.c.l.b16 %v940
        %v1437 = vunpack.c.l.b16 %v941
        %v1438 = vunpack.c.l.b16 %v942
        %v1439 = vunpack.c.l.b16 %v943
        %v1440 = vunpack.c.l.b16 %v944
        %v1441 = vunpack.c.l.b16 %v945
        %v1442 = vunpack.c.l.b16 %v946
        %v1443 = vunpack.c.l.b16 %v947
        %v1444 = vunpack.c.l.b16 %v948
        %v1445 = vunpack.c.l.b16 %v949
        %v1446 = vunpack.c.l.b16 %v950
        %v1447 = vunpack.c.l.b16 %v951
        %v1448 = vunpack.c.l.b16 %v952
        %v1449 = vunpack.c.l.b16 %v953
        %v1450 = vunpack.c.l.b16 %v954
        %v1451 = vunpack.c.l.b16 %v955
        %v1452 = vunpack.c.l.b16 %v956
        %v1453 = vunpack.c.l.b16 %v957
        %v1454 = vunpack.c.l.b16 %v958
        %v1455 = vunpack.c.l.b16 %v959
        %v1456 = vunpack.c.l.b16 %v960
        %v1457 = vunpack.c.l.b16 %v961
        %v1458 = vunpack.c.l.b16 %v962
        %v1459 = vunpack.c.l.b16 %v963
        %v1460 = vunpack.c.l.b16 %v964
        %v1461 = vunpack.c.l.b16 %v965
        %v1462 = vunpack.c.l.b16 %v966
        %v1463 = vunpack.c.l.b16 %v967
        %v1464 = vunpack.c.l.b16 %v968
        %v1465 = vunpack.c.l.b16 %v969
        %v1466 = vpack.c.b16 %v1435, %v1434
        %v1467 = vpack.c.b16 %v1437, %v1436
        %v1468 = vpack.c.b16 %v1439, %v1438
        %v1469 = vpack.c.b16 %v1441, %v1440
        %v1470 = vpack.c.b16 %v1443, %v1442
        %v1471 = vpack.c.b16 %v1445, %v1444
        %v1472 = vpack.c.b16 %v1447, %v1446
        %v1473 = vpack.c.b16 %v1449, %v1448
        %v1474 = vpack.c.b16 %v1451, %v1450
        %v1475 = vpack.c.b16 %v1453, %v1452
        %v1476 = vpack.c.b16 %v1455, %v1454
        %v1477 = vpack.c.b16 %v1457, %v1456
        %v1478 = vpack.c.b16 %v1459, %v1458
        %v1479 = vpack.c.b16 %v1461, %v1460
        %v1480 = vpack.c.b16 %v1463, %v1462
        %v1481 = vpack.c.b16 %v1465, %v1464
        %1498 = vmatprep.subr.bf16.mxu0 0
        %1499 = vmatpush1.bf16.msra.mxu0 %v1466
        %1500 = vmatprep.subr.bf16.mxu0 0
        %1501 = vmatpush1.bf16.msra.mxu0 %v1467
        %1502 = vmatprep.subr.bf16.mxu0 0
        %1503 = vmatpush1.bf16.msra.mxu0 %v1468
        %1504 = vmatprep.subr.bf16.mxu0 0
        %1505 = vmatpush1.bf16.msra.mxu0 %v1469
        %1506 = vmatprep.subr.bf16.mxu0 0
        %1507 = vmatpush1.bf16.msra.mxu0 %v1470
        %1508 = vmatprep.subr.bf16.mxu0 0
        %1509 = vmatpush1.bf16.msra.mxu0 %v1471
        %1510 = vmatprep.subr.bf16.mxu0 0
        %1511 = vmatpush1.bf16.msra.mxu0 %v1472
        %1512 = vmatprep.subr.bf16.mxu0 0
        %1513 = vmatpush1.bf16.msra.mxu0 %v1473
        %1514 = vmatprep.subr.bf16.mxu0 0
        %1515 = vmatpush1.bf16.msra.mxu0 %v1474
        %1516 = vmatprep.subr.bf16.mxu0 0
        %1517 = vmatpush1.bf16.msra.mxu0 %v1475
        %1518 = vmatprep.subr.bf16.mxu0 0
        %1519 = vmatpush1.bf16.msra.mxu0 %v1476
        %1520 = vmatprep.subr.bf16.mxu0 0
        %1521 = vmatpush1.bf16.msra.mxu0 %v1477
        %1522 = vmatprep.subr.bf16.mxu0 0
        %1523 = vmatpush1.bf16.msra.mxu0 %v1478
        %1524 = vmatprep.subr.bf16.mxu0 0
        %1525 = vmatpush1.bf16.msra.mxu0 %v1479
        %1526 = vmatprep.subr.bf16.mxu0 0
        %1527 = vmatpush1.bf16.msra.mxu0 %v1480
        %1528 = vmatprep.subr.bf16.mxu0 0
        %1529 = vmatpush1.bf16.msra.mxu0 %v1481
        %1530 = vmatprep.mubr.bf16.mxu0 %v1259
        %1531 = vmatmul.mubr.bf16.gmra.mrb[0].mxu0 %v1258
        %v1532 = vpop.f32.mrb[0].mxu0
        %v1533 = vadd.f32 0.0, %v1532
        %v1534 = vpop.f32.mrb[0].mxu0
        %v1535 = vpop.f32.mrb[0].mxu0
        %v1536 = vadd.f32 0.0, %v1535
        %v1537 = vpop.f32.mrb[0].mxu0
        %1538 = vmatprep.mubr.bf16.mxu0 %v1261
        %1539 = vmatmul.mubr.bf16.gmra.mrb[0].mxu0 %v1260
        %v1540 = vpop.f32.mrb[0].mxu0
        %v1541 = vadd.f32 0.0, %v1540
        %v1542 = vpop.f32.mrb[0].mxu0
        %v1543 = vpop.f32.mrb[0].mxu0
        %v1544 = vadd.f32 0.0, %v1543
        %v1545 = vpop.f32.mrb[0].mxu0
        %1546 = vmatprep.mubr.bf16.mxu0 %v1263
        %1547 = vmatmul.mubr.bf16.gmra.mrb[0].mxu0 %v1262
        %v1548 = vpop.f32.mrb[0].mxu0
        %v1549 = vadd.f32 0.0, %v1548
        %v1550 = vpop.f32.mrb[0].mxu0
        %v1551 = vpop.f32.mrb[0].mxu0
        %v1552 = vadd.f32 0.0, %v1551
        %v1553 = vpop.f32.mrb[0].mxu0
        %1554 = vmatprep.mubr.bf16.mxu0 %v1265
        %1555 = vmatmul.mubr.bf16.gmra.mrb[0].mxu0 %v1264
        %v1556 = vpop.f32.mrb[0].mxu0
        %v1557 = vadd.f32 0.0, %v1556
        %v1558 = vpop.f32.mrb[0].mxu0
        %v1559 = vpop.f32.mrb[0].mxu0
        %v1560 = vadd.f32 0.0, %v1559
        %v1561 = vpop.f32.mrb[0].mxu0
        %1562 = vmatprep.mubr.bf16.mxu0 %v1267
        %1563 = vmatmul.mubr.bf16.gmra.mrb[0].mxu0 %v1266
        %v1564 = vpop.f32.mrb[0].mxu0
        %v1565 = vadd.f32 0.0, %v1564
        %v1566 = vpop.f32.mrb[0].mxu0
        %v1567 = vpop.f32.mrb[0].mxu0
        %v1568 = vadd.f32 0.0, %v1567
        %v1569 = vpop.f32.mrb[0].mxu0
        %1570 = vmatprep.mubr.bf16.mxu0 %v1269
        %1571 = vmatmul.mubr.bf16.gmra.mrb[0].mxu0 %v1268
        %v1572 = vpop.f32.mrb[0].mxu0
        %v1573 = vadd.f32 0.0, %v1572
        %v1574 = vpop.f32.mrb[0].mxu0
        %v1575 = vpop.f32.mrb[0].mxu0
        %v1576 = vadd.f32 0.0, %v1575
        %v1577 = vpop.f32.mrb[0].mxu0
        %1578 = vmatprep.mubr.bf16.mxu0 %v1271
        %1579 = vmatmul.mubr.bf16.gmra.mrb[0].mxu0 %v1270
        %v1580 = vpop.f32.mrb[0].mxu0
        %v1581 = vadd.f32 0.0, %v1580
        %v1582 = vpop.f32.mrb[0].mxu0
        %v1583 = vpop.f32.mrb[0].mxu0
        %v1584 = vadd.f32 0.0, %v1583
        %v1585 = vpop.f32.mrb[0].mxu0
        %1586 = vmatprep.mubr.bf16.mxu0 %v1273
        %1587 = vmatmul.mubr.bf16.gmra.mrb[0].mxu0 %v1272
        %v1588 = vpop.f32.mrb[0].mxu0
        %v1589 = vadd.f32 0.0, %v1588
        %v1590 = vpop.f32.mrb[0].mxu0
        %v1591 = vpop.f32.mrb[0].mxu0
        %v1592 = vadd.f32 0.0, %v1591
        %v1593 = vpop.f32.mrb[0].mxu0
        %1594 = vmatprep.mubr.bf16.mxu0 %v1275
        %1595 = vmatmul.mubr.bf16.gmra.mrb[0].mxu0 %v1274
        %v1596 = vpop.f32.mrb[0].mxu0
        %v1597 = vadd.f32 0.0, %v1596
        %v1598 = vpop.f32.mrb[0].mxu0
        %v1599 = vpop.f32.mrb[0].mxu0
        %v1600 = vadd.f32 0.0, %v1599
        %v1601 = vpop.f32.mrb[0].mxu0
        %1602 = vmatprep.mubr.bf16.mxu0 %v1277
        %1603 = vmatmul.mubr.bf16.gmra.mrb[0].mxu0 %v1276
        %v1604 = vpop.f32.mrb[0].mxu0
        %v1605 = vadd.f32 0.0, %v1604
        %v1606 = vpop.f32.mrb[0].mxu0
        %v1607 = vpop.f32.mrb[0].mxu0
        %v1608 = vadd.f32 0.0, %v1607
        %v1609 = vpop.f32.mrb[0].mxu0
        %1610 = vmatprep.mubr.bf16.mxu0 %v1279
        %1611 = vmatmul.mubr.bf16.gmra.mrb[0].mxu0 %v1278
        %v1612 = vpop.f32.mrb[0].mxu0
        %v1613 = vadd.f32 0.0, %v1612
        %v1614 = vpop.f32.mrb[0].mxu0
        %v1615 = vpop.f32.mrb[0].mxu0
        %v1616 = vadd.f32 0.0, %v1615
        %v1617 = vpop.f32.mrb[0].mxu0
        %1618 = vmatprep.mubr.bf16.mxu0 %v1281
        %1619 = vmatmul.mubr.bf16.gmra.mrb[0].mxu0 %v1280
        %v1620 = vpop.f32.mrb[0].mxu0
        %v1621 = vadd.f32 0.0, %v1620
        %v1622 = vpop.f32.mrb[0].mxu0
        %v1623 = vpop.f32.mrb[0].mxu0
        %v1624 = vadd.f32 0.0, %v1623
        %v1625 = vpop.f32.mrb[0].mxu0
        %1626 = vmatprep.mubr.bf16.mxu0 %v1283
        %1627 = vmatmul.mubr.bf16.gmra.mrb[0].mxu0 %v1282
        %v1628 = vpop.f32.mrb[0].mxu0
        %v1629 = vadd.f32 0.0, %v1628
        %v1630 = vpop.f32.mrb[0].mxu0
        %v1631 = vpop.f32.mrb[0].mxu0
        %v1632 = vadd.f32 0.0, %v1631
        %v1633 = vpop.f32.mrb[0].mxu0
        %1634 = vmatprep.mubr.bf16.mxu0 %v1285
        %1635 = vmatmul.mubr.bf16.gmra.mrb[0].mxu0 %v1284
        %v1636 = vpop.f32.mrb[0].mxu0
        %v1637 = vadd.f32 0.0, %v1636
        %v1638 = vpop.f32.mrb[0].mxu0
        %v1639 = vpop.f32.mrb[0].mxu0
        %v1640 = vadd.f32 0.0, %v1639
        %v1641 = vpop.f32.mrb[0].mxu0
        %1642 = vmatprep.mubr.bf16.mxu0 %v1287
        %1643 = vmatmul.mubr.bf16.gmra.mrb[0].mxu0 %v1286
        %v1644 = vpop.f32.mrb[0].mxu0
        %v1645 = vadd.f32 0.0, %v1644
        %v1646 = vpop.f32.mrb[0].mxu0
        %v1647 = vpop.f32.mrb[0].mxu0
        %v1648 = vadd.f32 0.0, %v1647
        %v1649 = vpop.f32.mrb[0].mxu0
        %1650 = vmatprep.mubr.bf16.mxu0 %v1289
        %1651 = vmatmul.mubr.bf16.gmra.mrb[0].mxu0 %v1288
        %v1652 = vpop.f32.mrb[0].mxu0
        %v1653 = vadd.f32 0.0, %v1652
        %v1654 = vpop.f32.mrb[0].mxu0
        %v1655 = vpop.f32.mrb[0].mxu0
        %v1656 = vadd.f32 0.0, %v1655
        %v1657 = vpop.f32.mrb[0].mxu0
        %1658 = vmatprep.mubr.bf16.mxu0 %v1291
        %1659 = vmatmul.mubr.bf16.gmra.mrb[0].mxu0 %v1290
        %v1660 = vpop.f32.mrb[0].mxu0
        %v1661 = vadd.f32 0.0, %v1660
        %v1662 = vpop.f32.mrb[0].mxu0
        %v1663 = vpop.f32.mrb[0].mxu0
        %v1664 = vadd.f32 0.0, %v1663
        %v1665 = vpop.f32.mrb[0].mxu0
        %1666 = vmatprep.mubr.bf16.mxu0 %v1293
        %1667 = vmatmul.mubr.bf16.gmra.mrb[0].mxu0 %v1292
        %v1668 = vpop.f32.mrb[0].mxu0
        %v1669 = vadd.f32 0.0, %v1668
        %v1670 = vpop.f32.mrb[0].mxu0
        %v1671 = vpop.f32.mrb[0].mxu0
        %v1672 = vadd.f32 0.0, %v1671
        %v1673 = vpop.f32.mrb[0].mxu0
        %1674 = vmatprep.mubr.bf16.mxu0 %v1295
        %1675 = vmatmul.mubr.bf16.gmra.mrb[0].mxu0 %v1294
        %v1676 = vpop.f32.mrb[0].mxu0
        %v1677 = vadd.f32 0.0, %v1676
        %v1678 = vpop.f32.mrb[0].mxu0
        %v1679 = vpop.f32.mrb[0].mxu0
        %v1680 = vadd.f32 0.0, %v1679
        %v1681 = vpop.f32.mrb[0].mxu0
        %1682 = vmatprep.mubr.bf16.mxu0 %v1297
        %1683 = vmatmul.mubr.bf16.gmra.mrb[0].mxu0 %v1296
        %v1684 = vpop.f32.mrb[0].mxu0
        %v1685 = vadd.f32 0.0, %v1684
        %v1686 = vpop.f32.mrb[0].mxu0
        %v1687 = vpop.f32.mrb[0].mxu0
        %v1688 = vadd.f32 0.0, %v1687
        %v1689 = vpop.f32.mrb[0].mxu0
        %1690 = vmatprep.mubr.bf16.mxu0 %v1299
        %1691 = vmatmul.mubr.bf16.gmra.mrb[0].mxu0 %v1298
        %v1692 = vpop.f32.mrb[0].mxu0
        %v1693 = vadd.f32 0.0, %v1692
        %v1694 = vpop.f32.mrb[0].mxu0
        %v1695 = vpop.f32.mrb[0].mxu0
        %v1696 = vadd.f32 0.0, %v1695
        %v1697 = vpop.f32.mrb[0].mxu0
        %1698 = vmatprep.mubr.bf16.mxu0 %v1301
        %1699 = vmatmul.mubr.bf16.gmra.mrb[0].mxu0 %v1300
        %v1700 = vpop.f32.mrb[0].mxu0
        %v1701 = vadd.f32 0.0, %v1700
        %v1702 = vpop.f32.mrb[0].mxu0
        %v1703 = vpop.f32.mrb[0].mxu0
        %v1704 = vadd.f32 0.0, %v1703
        %v1705 = vpop.f32.mrb[0].mxu0
        %1706 = vmatprep.mubr.bf16.mxu0 %v1303
        %1707 = vmatmul.mubr.bf16.gmra.mrb[0].mxu0 %v1302
        %v1708 = vpop.f32.mrb[0].mxu0
        %v1709 = vadd.f32 0.0, %v1708
        %v1710 = vpop.f32.mrb[0].mxu0
        %v1711 = vpop.f32.mrb[0].mxu0
        %v1712 = vadd.f32 0.0, %v1711
        %v1713 = vpop.f32.mrb[0].mxu0
        %1714 = vmatprep.mubr.bf16.mxu0 %v1305
        %1715 = vmatmul.mubr.bf16.gmra.mrb[0].mxu0 %v1304
        %v1716 = vpop.f32.mrb[0].mxu0
        %v1717 = vadd.f32 0.0, %v1716
        %v1718 = vpop.f32.mrb[0].mxu0
        %v1719 = vpop.f32.mrb[0].mxu0
        %v1720 = vadd.f32 0.0, %v1719
        %v1721 = vpop.f32.mrb[0].mxu0
        %1722 = vmatprep.mubr.bf16.mxu0 %v1307
        %1723 = vmatmul.mubr.bf16.gmra.mrb[0].mxu0 %v1306
        %v1724 = vpop.f32.mrb[0].mxu0
        %v1725 = vadd.f32 0.0, %v1724
        %v1726 = vpop.f32.mrb[0].mxu0
        %v1727 = vpop.f32.mrb[0].mxu0
        %v1728 = vadd.f32 0.0, %v1727
        %v1729 = vpop.f32.mrb[0].mxu0
        %1730 = vmatprep.mubr.bf16.mxu0 %v1309
        %1731 = vmatmul.mubr.bf16.gmra.mrb[0].mxu0 %v1308
        %v1732 = vpop.f32.mrb[0].mxu0
        %v1733 = vadd.f32 0.0, %v1732
        %v1734 = vpop.f32.mrb[0].mxu0
        %v1735 = vpop.f32.mrb[0].mxu0
        %v1736 = vadd.f32 0.0, %v1735
        %v1737 = vpop.f32.mrb[0].mxu0
        %1738 = vmatprep.mubr.bf16.mxu0 %v1311
        %1739 = vmatmul.mubr.bf16.gmra.mrb[0].mxu0 %v1310
        %v1740 = vpop.f32.mrb[0].mxu0
        %v1741 = vadd.f32 0.0, %v1740
        %v1742 = vpop.f32.mrb[0].mxu0
        %v1743 = vpop.f32.mrb[0].mxu0
        %v1744 = vadd.f32 0.0, %v1743
        %v1745 = vpop.f32.mrb[0].mxu0
        %1746 = vmatprep.mubr.bf16.mxu0 %v1313
        %1747 = vmatmul.mubr.bf16.gmra.mrb[0].mxu0 %v1312
        %v1748 = vpop.f32.mrb[0].mxu0
        %v1749 = vadd.f32 0.0, %v1748
        %v1750 = vpop.f32.mrb[0].mxu0
        %v1751 = vpop.f32.mrb[0].mxu0
        %v1752 = vadd.f32 0.0, %v1751
        %v1753 = vpop.f32.mrb[0].mxu0
        %1754 = vmatprep.mubr.bf16.mxu0 %v1315
        %1755 = vmatmul.mubr.bf16.gmra.mrb[0].mxu0 %v1314
        %v1756 = vpop.f32.mrb[0].mxu0
        %v1757 = vadd.f32 0.0, %v1756
        %v1758 = vpop.f32.mrb[0].mxu0
        %v1759 = vpop.f32.mrb[0].mxu0
        %v1760 = vadd.f32 0.0, %v1759
        %v1761 = vpop.f32.mrb[0].mxu0
        %1762 = vmatprep.mubr.bf16.mxu0 %v1317
        %1763 = vmatmul.mubr.bf16.gmra.mrb[0].mxu0 %v1316
        %v1764 = vpop.f32.mrb[0].mxu0
        %v1765 = vadd.f32 0.0, %v1764
        %v1766 = vpop.f32.mrb[0].mxu0
        %v1767 = vpop.f32.mrb[0].mxu0
        %v1768 = vadd.f32 0.0, %v1767
        %v1769 = vpop.f32.mrb[0].mxu0
        %1770 = vmatprep.mubr.bf16.mxu0 %v1319
        %1771 = vmatmul.mubr.bf16.gmra.mrb[0].mxu0 %v1318
        %v1772 = vpop.f32.mrb[0].mxu0
        %v1773 = vadd.f32 0.0, %v1772
        %v1774 = vpop.f32.mrb[0].mxu0
        %v1775 = vpop.f32.mrb[0].mxu0
        %v1776 = vadd.f32 0.0, %v1775
        %v1777 = vpop.f32.mrb[0].mxu0
        %1778 = vmatprep.mubr.bf16.mxu0 %v1321
        %1779 = vmatmul.mubr.bf16.gmra.mrb[0].mxu0 %v1320
        %v1780 = vpop.f32.mrb[0].mxu0
        %v1781 = vadd.f32 0.0, %v1780
        %v1782 = vpop.f32.mrb[0].mxu0
        %v1783 = vpop.f32.mrb[0].mxu0
        %v1784 = vadd.f32 0.0, %v1783
        %v1785 = vpop.f32.mrb[0].mxu0
        %1786 = vmatprep.mubr.bf16.mxu0 %v1323
        %1787 = vmatmul.mubr.bf16.gmra.mrb[0].mxu0 %v1322
        %v1788 = vpop.f32.mrb[0].mxu0
        %v1789 = vadd.f32 0.0, %v1788
        %v1790 = vpop.f32.mrb[0].mxu0
        %v1791 = vpop.f32.mrb[0].mxu0
        %v1792 = vadd.f32 0.0, %v1791
        %v1793 = vpop.f32.mrb[0].mxu0
        %1794 = vmatprep.mubr.bf16.mxu0 %v1325
        %1795 = vmatmul.mubr.bf16.gmra.mrb[0].mxu0 %v1324
        %v1796 = vpop.f32.mrb[0].mxu0
        %v1797 = vadd.f32 0.0, %v1796
        %v1798 = vpop.f32.mrb[0].mxu0
        %v1799 = vpop.f32.mrb[0].mxu0
        %v1800 = vadd.f32 0.0, %v1799
        %v1801 = vpop.f32.mrb[0].mxu0
        %1802 = vmatprep.mubr.bf16.mxu0 %v1327
        %1803 = vmatmul.mubr.bf16.gmra.mrb[0].mxu0 %v1326
        %v1804 = vpop.f32.mrb[0].mxu0
        %v1805 = vadd.f32 0.0, %v1804
        %v1806 = vpop.f32.mrb[0].mxu0
        %v1807 = vpop.f32.mrb[0].mxu0
        %v1808 = vadd.f32 0.0, %v1807
        %v1809 = vpop.f32.mrb[0].mxu0
        %1810 = vmatprep.mubr.bf16.mxu0 %v1329
        %1811 = vmatmul.mubr.bf16.gmra.mrb[0].mxu0 %v1328
        %v1812 = vpop.f32.mrb[0].mxu0
        %v1813 = vadd.f32 0.0, %v1812
        %v1814 = vpop.f32.mrb[0].mxu0
        %v1815 = vpop.f32.mrb[0].mxu0
        %v1816 = vadd.f32 0.0, %v1815
        %v1817 = vpop.f32.mrb[0].mxu0
        %1818 = vdwg.mxu0
        %v1819 = vpack.c.bf16 %v1536, %v1533
        %v1820 = vpack.c.bf16 %v1544, %v1541
        %v1821 = vpack.c.bf16 %v1552, %v1549
        %v1822 = vpack.c.bf16 %v1560, %v1557
        %v1823 = vpack.c.bf16 %v1568, %v1565
        %v1824 = vpack.c.bf16 %v1576, %v1573
        %v1825 = vpack.c.bf16 %v1584, %v1581
        %v1826 = vpack.c.bf16 %v1592, %v1589
        %v1827 = vpack.c.bf16 %v1600, %v1597
        %v1828 = vpack.c.bf16 %v1608, %v1605
        %v1829 = vpack.c.bf16 %v1616, %v1613
        %v1830 = vpack.c.bf16 %v1624, %v1621
        %v1831 = vpack.c.bf16 %v1632, %v1629
        %v1832 = vpack.c.bf16 %v1640, %v1637
        %v1833 = vpack.c.bf16 %v1648, %v1645
        %v1834 = vpack.c.bf16 %v1656, %v1653
        %v1835 = vpack.c.bf16 %v1664, %v1661
        %v1836 = vpack.c.bf16 %v1672, %v1669
        %v1837 = vpack.c.bf16 %v1680, %v1677
        %v1838 = vpack.c.bf16 %v1688, %v1685
        %v1839 = vpack.c.bf16 %v1696, %v1693
        %v1840 = vpack.c.bf16 %v1704, %v1701
        %v1841 = vpack.c.bf16 %v1712, %v1709
        %v1842 = vpack.c.bf16 %v1720, %v1717
        %v1843 = vpack.c.bf16 %v1728, %v1725
        %v1844 = vpack.c.bf16 %v1736, %v1733
        %v1845 = vpack.c.bf16 %v1744, %v1741
        %v1846 = vpack.c.bf16 %v1752, %v1749
        %v1847 = vpack.c.bf16 %v1760, %v1757
        %v1848 = vpack.c.bf16 %v1768, %v1765
        %v1849 = vpack.c.bf16 %v1776, %v1773
        %v1850 = vpack.c.bf16 %v1784, %v1781
        %v1851 = vpack.c.bf16 %v1792, %v1789
        %v1852 = vpack.c.bf16 %v1800, %v1797
        %v1853 = vpack.c.bf16 %v1808, %v1805
        %v1854 = vpack.c.bf16 %v1816, %v1813
        %1855 = vst [vmem:[#allocation2] sm:$0xff] %v1819
        %1856 = vst [vmem:[#allocation2 + $0x48] sm:$0xff] %v1820
        %1857 = vst [vmem:[#allocation2 + $0x90] sm:$0xff] %v1821
        %1858 = vst [vmem:[#allocation2 + $0xd8] sm:$0xff] %v1822
        %1859 = vst [vmem:[#allocation2 + $0x8] sm:$0xff] %v1823
        %1860 = vst [vmem:[#allocation2 + $0x50] sm:$0xff] %v1824
        %1861 = vst [vmem:[#allocation2 + $0x98] sm:$0xff] %v1825
        %1862 = vst [vmem:[#allocation2 + $0xe0] sm:$0xff] %v1826
        %1863 = vst [vmem:[#allocation2 + $0x10] sm:$0xff] %v1827
        %1864 = vst [vmem:[#allocation2 + $0x58] sm:$0xff] %v1828
        %1865 = vst [vmem:[#allocation2 + $0xa0] sm:$0xff] %v1829
        %1866 = vst [vmem:[#allocation2 + $0xe8] sm:$0xff] %v1830
        %1867 = vst [vmem:[#allocation2 + $0x18] sm:$0xff] %v1831
        %1868 = vst [vmem:[#allocation2 + $0x60] sm:$0xff] %v1832
        %1869 = vst [vmem:[#allocation2 + $0xa8] sm:$0xff] %v1833
        %1870 = vst [vmem:[#allocation2 + $0xf0] sm:$0xff] %v1834
        %1871 = vst [vmem:[#allocation2 + $0x20] sm:$0xff] %v1835
        %1872 = vst [vmem:[#allocation2 + $0x68] sm:$0xff] %v1836
        %1873 = vst [vmem:[#allocation2 + $0xb0] sm:$0xff] %v1837
        %1874 = vst [vmem:[#allocation2 + $0xf8] sm:$0xff] %v1838
        %1875 = vst [vmem:[#allocation2 + $0x28] sm:$0xff] %v1839
        %1876 = vst [vmem:[#allocation2 + $0x70] sm:$0xff] %v1840
        %1877 = vst [vmem:[#allocation2 + $0xb8] sm:$0xff] %v1841
        %1878 = vst [vmem:[#allocation2 + $0x100] sm:$0xff] %v1842
        %1879 = vst [vmem:[#allocation2 + $0x30] sm:$0xff] %v1843
        %1880 = vst [vmem:[#allocation2 + $0x78] sm:$0xff] %v1844
        %1881 = vst [vmem:[#allocation2 + $0xc0] sm:$0xff] %v1845
        %1882 = vst [vmem:[#allocation2 + $0x108] sm:$0xff] %v1846
        %1883 = vst [vmem:[#allocation2 + $0x38] sm:$0xff] %v1847
        %1884 = vst [vmem:[#allocation2 + $0x80] sm:$0xff] %v1848
        %1885 = vst [vmem:[#allocation2 + $0xc8] sm:$0xff] %v1849
        %1886 = vst [vmem:[#allocation2 + $0x110] sm:$0xff] %v1850
        %1887 = vst [vmem:[#allocation2 + $0x40] sm:$0xff] %v1851
        %1888 = vst [vmem:[#allocation2 + $0x88] sm:$0xff] %v1852
        %1889 = vst [vmem:[#allocation2 + $0xd0] sm:$0xff] %v1853
        %1890 = vst [vmem:[#allocation2 + $0x118] sm:$0xff] %v1854
        %v1891 = vld [vmem:[#allocation2] sm:$0xff]
        %v1892 = vld [vmem:[#allocation2 + $0x8] sm:$0xff]
        %v1893 = vld [vmem:[#allocation2 + $0x10] sm:$0xff]
        %v1894 = vld [vmem:[#allocation2 + $0x18] sm:$0xff]
        %v1895 = vld [vmem:[#allocation2 + $0x20] sm:$0xff]
        %v1896 = vld [vmem:[#allocation2 + $0x28] sm:$0xff]
        %v1897 = vld [vmem:[#allocation2 + $0x30] sm:$0xff]
        %v1898 = vld [vmem:[#allocation2 + $0x38] sm:$0xff]
        %v1899 = vld [vmem:[#allocation2 + $0x40] sm:$0xff]
        %v1900 = vld [vmem:[#allocation2 + $0x48] sm:$0xff]
        %v1901 = vld [vmem:[#allocation2 + $0x50] sm:$0xff]
        %v1902 = vld [vmem:[#allocation2 + $0x58] sm:$0xff]
        %v1903 = vld [vmem:[#allocation2 + $0x60] sm:$0xff]
        %v1904 = vld [vmem:[#allocation2 + $0x68] sm:$0xff]
        %v1905 = vld [vmem:[#allocation2 + $0x70] sm:$0xff]
        %v1906 = vld [vmem:[#allocation2 + $0x78] sm:$0xff]
        %v1907 = vld [vmem:[#allocation2 + $0x80] sm:$0xff]
        %v1908 = vld [vmem:[#allocation2 + $0x88] sm:$0xff]
        %v1909 = vld [vmem:[#allocation2 + $0x90] sm:$0xff]
        %v1910 = vld [vmem:[#allocation2 + $0x98] sm:$0xff]
        %v1911 = vld [vmem:[#allocation2 + $0xa0] sm:$0xff]
        %v1912 = vld [vmem:[#allocation2 + $0xa8] sm:$0xff]
        %v1913 = vld [vmem:[#allocation2 + $0xb0] sm:$0xff]
        %v1914 = vld [vmem:[#allocation2 + $0xb8] sm:$0xff]
        %v1915 = vld [vmem:[#allocation2 + $0xc0] sm:$0xff]
        %v1916 = vld [vmem:[#allocation2 + $0xc8] sm:$0xff]
        %v1917 = vld [vmem:[#allocation2 + $0xd0] sm:$0xff]
        %v1918 = vld [vmem:[#allocation2 + $0xd8] sm:$0xff]
        %v1919 = vld [vmem:[#allocation2 + $0xe0] sm:$0xff]
        %v1920 = vld [vmem:[#allocation2 + $0xe8] sm:$0xff]
        %v1921 = vld [vmem:[#allocation2 + $0xf0] sm:$0xff]
        %v1922 = vld [vmem:[#allocation2 + $0xf8] sm:$0xff]
        %v1923 = vld [vmem:[#allocation2 + $0x100] sm:$0xff]
        %v1924 = vld [vmem:[#allocation2 + $0x108] sm:$0xff]
        %v1925 = vld [vmem:[#allocation2 + $0x110] sm:$0xff]
        %v1926 = vld [vmem:[#allocation2 + $0x118] sm:$0xff]
        %v1927 = vld [vmem:[#allocation7] sm:$0xf]
        %v1928 = vld [vmem:[#allocation7 + $0x4] sm:$0xf]
        %v1929 = vld [vmem:[#allocation7 + $0x8] sm:$0xf]
        %v1930 = vld [vmem:[#allocation7 + $0xc] sm:$0xf]
        %v1931 = vld [vmem:[#allocation7 + $0x10] sm:$0xf]
        %v1932 = vld [vmem:[#allocation7 + $0x14] sm:$0xf]
        %v1933 = vld [vmem:[#allocation7 + $0x18] sm:$0xf]
        %v1934 = vld [vmem:[#allocation7 + $0x1c] sm:$0xf]
        %v1935 = vld [vmem:[#allocation7 + $0x20] sm:$0xf]
        %v1936 = vld [vmem:[#allocation7 + $0x24] sm:$0xf]
        %v1937 = vld [vmem:[#allocation7 + $0x28] sm:$0xf]
        %v1938 = vld [vmem:[#allocation7 + $0x2c] sm:$0xf]
        %v1939 = vld [vmem:[#allocation7 + $0x30] sm:$0xf]
        %v1940 = vld [vmem:[#allocation7 + $0x34] sm:$0xf]
        %v1941 = vld [vmem:[#allocation7 + $0x38] sm:$0xf]
        %v1942 = vld [vmem:[#allocation7 + $0x3c] sm:$0xf]
        %v1943 = vld [vmem:[#allocation7 + $0x40] sm:$0xf]
        %v1944 = vld [vmem:[#allocation7 + $0x44] sm:$0xf]
        %v1945 = vld [vmem:[#allocation7 + $0x48] sm:$0xf]
        %v1946 = vld [vmem:[#allocation7 + $0x4c] sm:$0xf]
        %v1947 = vld [vmem:[#allocation7 + $0x50] sm:$0xf]
        %v1948 = vld [vmem:[#allocation7 + $0x54] sm:$0xf]
        %v1949 = vld [vmem:[#allocation7 + $0x58] sm:$0xf]
        %v1950 = vld [vmem:[#allocation7 + $0x5c] sm:$0xf]
        %v1951 = vld [vmem:[#allocation7 + $0x60] sm:$0xf]
        %v1952 = vld [vmem:[#allocation7 + $0x64] sm:$0xf]
        %v1953 = vld [vmem:[#allocation7 + $0x68] sm:$0xf]
        %v1954 = vld [vmem:[#allocation7 + $0x6c] sm:$0xf]
        %v1955 = vld [vmem:[#allocation7 + $0x70] sm:$0xf]
        %v1956 = vld [vmem:[#allocation7 + $0x74] sm:$0xf]
        %v1957 = vld [vmem:[#allocation7 + $0x78] sm:$0xf]
        %v1958 = vld [vmem:[#allocation7 + $0x7c] sm:$0xf]
        %v1959 = vld [vmem:[#allocation7 + $0x80] sm:$0xf]
        %v1960 = vld [vmem:[#allocation7 + $0x84] sm:$0xf]
        %v1961 = vld [vmem:[#allocation7 + $0x88] sm:$0xf]
        %v1962 = vld [vmem:[#allocation7 + $0x8c] sm:$0xf]
        %v1963 = vld [vmem:[#allocation7 + $0x90] sm:$0xf]
        %v1964 = vld [vmem:[#allocation7 + $0x94] sm:$0xf]
        %v1965 = vld [vmem:[#allocation7 + $0x98] sm:$0xf]
        %v1966 = vld [vmem:[#allocation7 + $0x9c] sm:$0xf]
        %v1967 = vld [vmem:[#allocation7 + $0xa0] sm:$0xf]
        %v1968 = vld [vmem:[#allocation7 + $0xa4] sm:$0xf]
        %v1969 = vld [vmem:[#allocation7 + $0xa8] sm:$0xf]
        %v1970 = vld [vmem:[#allocation7 + $0xac] sm:$0xf]
        %v1971 = vld [vmem:[#allocation7 + $0xb0] sm:$0xf]
        %v1972 = vld [vmem:[#allocation7 + $0xb4] sm:$0xf]
        %v1973 = vld [vmem:[#allocation7 + $0xb8] sm:$0xf]
        %v1974 = vld [vmem:[#allocation7 + $0xbc] sm:$0xf]
        %v1975 = vld [vmem:[#allocation7 + $0xc0] sm:$0xf]
        %v1976 = vld [vmem:[#allocation7 + $0xc4] sm:$0xf]
        %v1977 = vld [vmem:[#allocation7 + $0xc8] sm:$0xf]
        %v1978 = vld [vmem:[#allocation7 + $0xcc] sm:$0xf]
        %v1979 = vld [vmem:[#allocation7 + $0xd0] sm:$0xf]
        %v1980 = vld [vmem:[#allocation7 + $0xd4] sm:$0xf]
        %v1981 = vld [vmem:[#allocation7 + $0xd8] sm:$0xf]
        %v1982 = vld [vmem:[#allocation7 + $0xdc] sm:$0xf]
        %v1983 = vld [vmem:[#allocation7 + $0xe0] sm:$0xf]
        %v1984 = vld [vmem:[#allocation7 + $0xe4] sm:$0xf]
        %v1985 = vld [vmem:[#allocation7 + $0xe8] sm:$0xf]
        %v1986 = vld [vmem:[#allocation7 + $0xec] sm:$0xf]
        %v1987 = vld [vmem:[#allocation7 + $0xf0] sm:$0xf]
        %v1988 = vld [vmem:[#allocation7 + $0xf4] sm:$0xf]
        %v1989 = vld [vmem:[#allocation7 + $0xf8] sm:$0xf]
        %v1990 = vld [vmem:[#allocation7 + $0xfc] sm:$0xf]
        %v1991 = vld [vmem:[#allocation7 + $0x100] sm:$0xf]
        %v1992 = vld [vmem:[#allocation7 + $0x104] sm:$0xf]
        %v1993 = vld [vmem:[#allocation7 + $0x108] sm:$0xf]
        %v1994 = vld [vmem:[#allocation7 + $0x10c] sm:$0xf]
        %v1995 = vld [vmem:[#allocation7 + $0x110] sm:$0xf]
        %v1996 = vld [vmem:[#allocation7 + $0x114] sm:$0xf]
        %v1997 = vld [vmem:[#allocation7 + $0x118] sm:$0xf]
        %v1998 = vld [vmem:[#allocation7 + $0x11c] sm:$0xf]
        %v1999 = vld [vmem:[#allocation7 + $0x120] sm:$0xf]
        %v2000 = vld [vmem:[#allocation7 + $0x124] sm:$0xf]
        %v2001 = vld [vmem:[#allocation7 + $0x128] sm:$0xf]
        %v2002 = vld [vmem:[#allocation7 + $0x12c] sm:$0xf]
        %v2003 = vld [vmem:[#allocation7 + $0x130] sm:$0xf]
        %v2004 = vld [vmem:[#allocation7 + $0x134] sm:$0xf]
        %v2005 = vld [vmem:[#allocation7 + $0x138] sm:$0xf]
        %v2006 = vld [vmem:[#allocation7 + $0x13c] sm:$0xf]
        %v2007 = vld [vmem:[#allocation7 + $0x140] sm:$0xf]
        %v2008 = vld [vmem:[#allocation7 + $0x144] sm:$0xf]
        %v2009 = vld [vmem:[#allocation7 + $0x148] sm:$0xf]
        %v2010 = vld [vmem:[#allocation7 + $0x14c] sm:$0xf]
        %v2011 = vld [vmem:[#allocation7 + $0x150] sm:$0xf]
        %v2012 = vld [vmem:[#allocation7 + $0x154] sm:$0xf]
        %v2013 = vld [vmem:[#allocation7 + $0x158] sm:$0xf]
        %v2014 = vld [vmem:[#allocation7 + $0x15c] sm:$0xf]
        %v2015 = vld [vmem:[#allocation7 + $0x160] sm:$0xf]
        %v2016 = vld [vmem:[#allocation7 + $0x164] sm:$0xf]
        %v2017 = vld [vmem:[#allocation7 + $0x168] sm:$0xf]
        %v2018 = vld [vmem:[#allocation7 + $0x16c] sm:$0xf]
        %v2019 = vld [vmem:[#allocation7 + $0x170] sm:$0xf]
        %v2020 = vld [vmem:[#allocation7 + $0x174] sm:$0xf]
        %v2021 = vld [vmem:[#allocation7 + $0x178] sm:$0xf]
        %v2022 = vld [vmem:[#allocation7 + $0x17c] sm:$0xf]
        %v2023 = vld [vmem:[#allocation7 + $0x180] sm:$0xf]
        %v2024 = vld [vmem:[#allocation7 + $0x184] sm:$0xf]
        %v2025 = vld [vmem:[#allocation7 + $0x188] sm:$0xf]
        %v2026 = vld [vmem:[#allocation7 + $0x18c] sm:$0xf]
        %v2027 = vld [vmem:[#allocation7 + $0x190] sm:$0xf]
        %v2028 = vld [vmem:[#allocation7 + $0x194] sm:$0xf]
        %v2029 = vld [vmem:[#allocation7 + $0x198] sm:$0xf]
        %v2030 = vld [vmem:[#allocation7 + $0x19c] sm:$0xf]
        %v2031 = vld [vmem:[#allocation7 + $0x1a0] sm:$0xf]
        %v2032 = vld [vmem:[#allocation7 + $0x1a4] sm:$0xf]
        %v2033 = vld [vmem:[#allocation7 + $0x1a8] sm:$0xf]
        %v2034 = vld [vmem:[#allocation7 + $0x1ac] sm:$0xf]
        %v2035 = vld [vmem:[#allocation7 + $0x1b0] sm:$0xf]
        %v2036 = vld [vmem:[#allocation7 + $0x1b4] sm:$0xf]
        %v2037 = vld [vmem:[#allocation7 + $0x1b8] sm:$0xf]
        %v2038 = vld [vmem:[#allocation7 + $0x1bc] sm:$0xf]
        %v2039 = vld [vmem:[#allocation7 + $0x1c0] sm:$0xf]
        %v2040 = vld [vmem:[#allocation7 + $0x1c4] sm:$0xf]
        %v2041 = vld [vmem:[#allocation7 + $0x1c8] sm:$0xf]
        %v2042 = vld [vmem:[#allocation7 + $0x1cc] sm:$0xf]
        %v2043 = vld [vmem:[#allocation7 + $0x1d0] sm:$0xf]
        %v2044 = vld [vmem:[#allocation7 + $0x1d4] sm:$0xf]
        %v2045 = vld [vmem:[#allocation7 + $0x1d8] sm:$0xf]
        %v2046 = vld [vmem:[#allocation7 + $0x1dc] sm:$0xf]
        %v2047 = vld [vmem:[#allocation7 + $0x1e0] sm:$0xf]
        %v2048 = vld [vmem:[#allocation7 + $0x1e4] sm:$0xf]
        %v2049 = vld [vmem:[#allocation7 + $0x1e8] sm:$0xf]
        %v2050 = vld [vmem:[#allocation7 + $0x1ec] sm:$0xf]
        %v2051 = vld [vmem:[#allocation7 + $0x1f0] sm:$0xf]
        %v2052 = vld [vmem:[#allocation7 + $0x1f4] sm:$0xf]
        %v2053 = vld [vmem:[#allocation7 + $0x1f8] sm:$0xf]
        %v2054 = vld [vmem:[#allocation7 + $0x1fc] sm:$0xf]
        %v2055 = vld [vmem:[#allocation7 + $0x200] sm:$0xf]
        %v2056 = vld [vmem:[#allocation7 + $0x204] sm:$0xf]
        %v2057 = vld [vmem:[#allocation7 + $0x208] sm:$0xf]
        %v2058 = vld [vmem:[#allocation7 + $0x20c] sm:$0xf]
        %v2059 = vld [vmem:[#allocation7 + $0x210] sm:$0xf]
        %v2060 = vld [vmem:[#allocation7 + $0x214] sm:$0xf]
        %v2061 = vld [vmem:[#allocation7 + $0x218] sm:$0xf]
        %v2062 = vld [vmem:[#allocation7 + $0x21c] sm:$0xf]
        %v2063 = vld [vmem:[#allocation7 + $0x220] sm:$0xf]
        %v2064 = vld [vmem:[#allocation7 + $0x224] sm:$0xf]
        %v2065 = vld [vmem:[#allocation7 + $0x228] sm:$0xf]
        %v2066 = vld [vmem:[#allocation7 + $0x22c] sm:$0xf]
        %v2067 = vld [vmem:[#allocation7 + $0x230] sm:$0xf]
        %v2068 = vld [vmem:[#allocation7 + $0x234] sm:$0xf]
        %v2069 = vld [vmem:[#allocation7 + $0x238] sm:$0xf]
        %v2070 = vld [vmem:[#allocation7 + $0x23c] sm:$0xf]
        %v2215 = vunpack.c.l.b16 %v1927
        %v2216 = vunpack.c.l.b16 %v1928
        %v2217 = vunpack.c.l.b16 %v1929
        %v2218 = vunpack.c.l.b16 %v1930
        %v2219 = vunpack.c.l.b16 %v1931
        %v2220 = vunpack.c.l.b16 %v1932
        %v2221 = vunpack.c.l.b16 %v1933
        %v2222 = vunpack.c.l.b16 %v1934
        %v2223 = vunpack.c.l.b16 %v1935
        %v2224 = vunpack.c.l.b16 %v1936
        %v2225 = vunpack.c.l.b16 %v1937
        %v2226 = vunpack.c.l.b16 %v1938
        %v2227 = vunpack.c.l.b16 %v1939
        %v2228 = vunpack.c.l.b16 %v1940
        %v2229 = vunpack.c.l.b16 %v1941
        %v2230 = vunpack.c.l.b16 %v1942
        %v2231 = vunpack.c.l.b16 %v1943
        %v2232 = vunpack.c.l.b16 %v1944
        %v2233 = vunpack.c.l.b16 %v1945
        %v2234 = vunpack.c.l.b16 %v1946
        %v2235 = vunpack.c.l.b16 %v1947
        %v2236 = vunpack.c.l.b16 %v1948
        %v2237 = vunpack.c.l.b16 %v1949
        %v2238 = vunpack.c.l.b16 %v1950
        %v2239 = vunpack.c.l.b16 %v1951
        %v2240 = vunpack.c.l.b16 %v1952
        %v2241 = vunpack.c.l.b16 %v1953
        %v2242 = vunpack.c.l.b16 %v1954
        %v2243 = vunpack.c.l.b16 %v1955
        %v2244 = vunpack.c.l.b16 %v1956
        %v2245 = vunpack.c.l.b16 %v1957
        %v2246 = vunpack.c.l.b16 %v1958
        %v2247 = vunpack.c.l.b16 %v1959
        %v2248 = vunpack.c.l.b16 %v1960
        %v2249 = vunpack.c.l.b16 %v1961
        %v2250 = vunpack.c.l.b16 %v1962
        %v2251 = vunpack.c.l.b16 %v1963
        %v2252 = vunpack.c.l.b16 %v1964
        %v2253 = vunpack.c.l.b16 %v1965
        %v2254 = vunpack.c.l.b16 %v1966
        %v2255 = vunpack.c.l.b16 %v1967
        %v2256 = vunpack.c.l.b16 %v1968
        %v2257 = vunpack.c.l.b16 %v1969
        %v2258 = vunpack.c.l.b16 %v1970
        %v2259 = vunpack.c.l.b16 %v1971
        %v2260 = vunpack.c.l.b16 %v1972
        %v2261 = vunpack.c.l.b16 %v1973
        %v2262 = vunpack.c.l.b16 %v1974
        %v2263 = vunpack.c.l.b16 %v1975
        %v2264 = vunpack.c.l.b16 %v1976
        %v2265 = vunpack.c.l.b16 %v1977
        %v2266 = vunpack.c.l.b16 %v1978
        %v2267 = vunpack.c.l.b16 %v1979
        %v2268 = vunpack.c.l.b16 %v1980
        %v2269 = vunpack.c.l.b16 %v1981
        %v2270 = vunpack.c.l.b16 %v1982
        %v2271 = vunpack.c.l.b16 %v1983
        %v2272 = vunpack.c.l.b16 %v1984
        %v2273 = vunpack.c.l.b16 %v1985
        %v2274 = vunpack.c.l.b16 %v1986
        %v2275 = vunpack.c.l.b16 %v1987
        %v2276 = vunpack.c.l.b16 %v1988
        %v2277 = vunpack.c.l.b16 %v1989
        %v2278 = vunpack.c.l.b16 %v1990
        %v2279 = vunpack.c.l.b16 %v1991
        %v2280 = vunpack.c.l.b16 %v1992
        %v2281 = vunpack.c.l.b16 %v1993
        %v2282 = vunpack.c.l.b16 %v1994
        %v2283 = vunpack.c.l.b16 %v1995
        %v2284 = vunpack.c.l.b16 %v1996
        %v2285 = vunpack.c.l.b16 %v1997
        %v2286 = vunpack.c.l.b16 %v1998
        %v2287 = vunpack.c.l.b16 %v1999
        %v2288 = vunpack.c.l.b16 %v2000
        %v2289 = vunpack.c.l.b16 %v2001
        %v2290 = vunpack.c.l.b16 %v2002
        %v2291 = vunpack.c.l.b16 %v2003
        %v2292 = vunpack.c.l.b16 %v2004
        %v2293 = vunpack.c.l.b16 %v2005
        %v2294 = vunpack.c.l.b16 %v2006
        %v2295 = vunpack.c.l.b16 %v2007
        %v2296 = vunpack.c.l.b16 %v2008
        %v2297 = vunpack.c.l.b16 %v2009
        %v2298 = vunpack.c.l.b16 %v2010
        %v2299 = vunpack.c.l.b16 %v2011
        %v2300 = vunpack.c.l.b16 %v2012
        %v2301 = vunpack.c.l.b16 %v2013
        %v2302 = vunpack.c.l.b16 %v2014
        %v2303 = vunpack.c.l.b16 %v2015
        %v2304 = vunpack.c.l.b16 %v2016
        %v2305 = vunpack.c.l.b16 %v2017
        %v2306 = vunpack.c.l.b16 %v2018
        %v2307 = vunpack.c.l.b16 %v2019
        %v2308 = vunpack.c.l.b16 %v2020
        %v2309 = vunpack.c.l.b16 %v2021
        %v2310 = vunpack.c.l.b16 %v2022
        %v2311 = vunpack.c.l.b16 %v2023
        %v2312 = vunpack.c.l.b16 %v2024
        %v2313 = vunpack.c.l.b16 %v2025
        %v2314 = vunpack.c.l.b16 %v2026
        %v2315 = vunpack.c.l.b16 %v2027
        %v2316 = vunpack.c.l.b16 %v2028
        %v2317 = vunpack.c.l.b16 %v2029
        %v2318 = vunpack.c.l.b16 %v2030
        %v2319 = vunpack.c.l.b16 %v2031
        %v2320 = vunpack.c.l.b16 %v2032
        %v2321 = vunpack.c.l.b16 %v2033
        %v2322 = vunpack.c.l.b16 %v2034
        %v2323 = vunpack.c.l.b16 %v2035
        %v2324 = vunpack.c.l.b16 %v2036
        %v2325 = vunpack.c.l.b16 %v2037
        %v2326 = vunpack.c.l.b16 %v2038
        %v2327 = vunpack.c.l.b16 %v2039
        %v2328 = vunpack.c.l.b16 %v2040
        %v2329 = vunpack.c.l.b16 %v2041
        %v2330 = vunpack.c.l.b16 %v2042
        %v2331 = vunpack.c.l.b16 %v2043
        %v2332 = vunpack.c.l.b16 %v2044
        %v2333 = vunpack.c.l.b16 %v2045
        %v2334 = vunpack.c.l.b16 %v2046
        %v2335 = vunpack.c.l.b16 %v2047
        %v2336 = vunpack.c.l.b16 %v2048
        %v2337 = vunpack.c.l.b16 %v2049
        %v2338 = vunpack.c.l.b16 %v2050
        %v2339 = vunpack.c.l.b16 %v2051
        %v2340 = vunpack.c.l.b16 %v2052
        %v2341 = vunpack.c.l.b16 %v2053
        %v2342 = vunpack.c.l.b16 %v2054
        %v2343 = vunpack.c.l.b16 %v2055
        %v2344 = vunpack.c.l.b16 %v2056
        %v2345 = vunpack.c.l.b16 %v2057
        %v2346 = vunpack.c.l.b16 %v2058
        %v2347 = vunpack.c.l.b16 %v2059
        %v2348 = vunpack.c.l.b16 %v2060
        %v2349 = vunpack.c.l.b16 %v2061
        %v2350 = vunpack.c.l.b16 %v2062
        %v2351 = vunpack.c.l.b16 %v2063
        %v2352 = vunpack.c.l.b16 %v2064
        %v2353 = vunpack.c.l.b16 %v2065
        %v2354 = vunpack.c.l.b16 %v2066
        %v2355 = vunpack.c.l.b16 %v2067
        %v2356 = vunpack.c.l.b16 %v2068
        %v2357 = vunpack.c.l.b16 %v2069
        %v2358 = vunpack.c.l.b16 %v2070
        %v2359 = vpack.c.b16 %v2216, %v2215
        %v2360 = vpack.c.b16 %v2218, %v2217
        %v2361 = vpack.c.b16 %v2220, %v2219
        %v2362 = vpack.c.b16 %v2222, %v2221
        %v2363 = vpack.c.b16 %v2224, %v2223
        %v2364 = vpack.c.b16 %v2226, %v2225
        %v2365 = vpack.c.b16 %v2228, %v2227
        %v2366 = vpack.c.b16 %v2230, %v2229
        %v2367 = vpack.c.b16 %v2232, %v2231
        %v2368 = vpack.c.b16 %v2234, %v2233
        %v2369 = vpack.c.b16 %v2236, %v2235
        %v2370 = vpack.c.b16 %v2238, %v2237
        %v2371 = vpack.c.b16 %v2240, %v2239
        %v2372 = vpack.c.b16 %v2242, %v2241
        %v2373 = vpack.c.b16 %v2244, %v2243
        %v2374 = vpack.c.b16 %v2246, %v2245
        %v2375 = vpack.c.b16 %v2248, %v2247
        %v2376 = vpack.c.b16 %v2250, %v2249
        %v2377 = vpack.c.b16 %v2252, %v2251
        %v2378 = vpack.c.b16 %v2254, %v2253
        %v2379 = vpack.c.b16 %v2256, %v2255
        %v2380 = vpack.c.b16 %v2258, %v2257
        %v2381 = vpack.c.b16 %v2260, %v2259
        %v2382 = vpack.c.b16 %v2262, %v2261
        %v2383 = vpack.c.b16 %v2264, %v2263
        %v2384 = vpack.c.b16 %v2266, %v2265
        %v2385 = vpack.c.b16 %v2268, %v2267
        %v2386 = vpack.c.b16 %v2270, %v2269
        %v2387 = vpack.c.b16 %v2272, %v2271
        %v2388 = vpack.c.b16 %v2274, %v2273
        %v2389 = vpack.c.b16 %v2276, %v2275
        %v2390 = vpack.c.b16 %v2278, %v2277
        %v2391 = vpack.c.b16 %v2280, %v2279
        %v2392 = vpack.c.b16 %v2282, %v2281
        %v2393 = vpack.c.b16 %v2284, %v2283
        %v2394 = vpack.c.b16 %v2286, %v2285
        %v2395 = vpack.c.b16 %v2288, %v2287
        %v2396 = vpack.c.b16 %v2290, %v2289
        %v2397 = vpack.c.b16 %v2292, %v2291
        %v2398 = vpack.c.b16 %v2294, %v2293
        %v2399 = vpack.c.b16 %v2296, %v2295
        %v2400 = vpack.c.b16 %v2298, %v2297
        %v2401 = vpack.c.b16 %v2300, %v2299
        %v2402 = vpack.c.b16 %v2302, %v2301
        %v2403 = vpack.c.b16 %v2304, %v2303
        %v2404 = vpack.c.b16 %v2306, %v2305
        %v2405 = vpack.c.b16 %v2308, %v2307
        %v2406 = vpack.c.b16 %v2310, %v2309
        %v2407 = vpack.c.b16 %v2312, %v2311
        %v2408 = vpack.c.b16 %v2314, %v2313
        %v2409 = vpack.c.b16 %v2316, %v2315
        %v2410 = vpack.c.b16 %v2318, %v2317
        %v2411 = vpack.c.b16 %v2320, %v2319
        %v2412 = vpack.c.b16 %v2322, %v2321
        %v2413 = vpack.c.b16 %v2324, %v2323
        %v2414 = vpack.c.b16 %v2326, %v2325
        %v2415 = vpack.c.b16 %v2328, %v2327
        %v2416 = vpack.c.b16 %v2330, %v2329
        %v2417 = vpack.c.b16 %v2332, %v2331
        %v2418 = vpack.c.b16 %v2334, %v2333
        %v2419 = vpack.c.b16 %v2336, %v2335
        %v2420 = vpack.c.b16 %v2338, %v2337
        %v2421 = vpack.c.b16 %v2340, %v2339
        %v2422 = vpack.c.b16 %v2342, %v2341
        %v2423 = vpack.c.b16 %v2344, %v2343
        %v2424 = vpack.c.b16 %v2346, %v2345
        %v2425 = vpack.c.b16 %v2348, %v2347
        %v2426 = vpack.c.b16 %v2350, %v2349
        %v2427 = vpack.c.b16 %v2352, %v2351
        %v2428 = vpack.c.b16 %v2354, %v2353
        %v2429 = vpack.c.b16 %v2356, %v2355
        %v2430 = vpack.c.b16 %v2358, %v2357
        %2503 = vmatprep.subr.bf16.mxu0 0
        %2504 = vmatpush1.bf16.msra.mxu0 %v2359
        %2505 = vmatprep.subr.bf16.mxu0 0
        %2506 = vmatpush1.bf16.msra.mxu0 %v2360
        %2507 = vmatprep.subr.bf16.mxu0 0
        %2508 = vmatpush1.bf16.msra.mxu0 %v2361
        %2509 = vmatprep.subr.bf16.mxu0 0
        %2510 = vmatpush1.bf16.msra.mxu0 %v2362
        %2511 = vmatprep.subr.bf16.mxu0 0
        %2512 = vmatpush1.bf16.msra.mxu0 %v2363
        %2513 = vmatprep.subr.bf16.mxu0 0
        %2514 = vmatpush1.bf16.msra.mxu0 %v2364
        %2515 = vmatprep.subr.bf16.mxu0 0
        %2516 = vmatpush1.bf16.msra.mxu0 %v2365
        %2517 = vmatprep.subr.bf16.mxu0 0
        %2518 = vmatpush1.bf16.msra.mxu0 %v2366
        %2519 = vmatprep.subr.bf16.mxu0 0
        %2520 = vmatpush1.bf16.msra.mxu0 %v2367
        %2521 = vmatprep.subr.bf16.mxu0 0
        %2522 = vmatpush1.bf16.msra.mxu0 %v2368
        %2523 = vmatprep.subr.bf16.mxu0 0
        %2524 = vmatpush1.bf16.msra.mxu0 %v2369
        %2525 = vmatprep.subr.bf16.mxu0 0
        %2526 = vmatpush1.bf16.msra.mxu0 %v2370
        %2527 = vmatprep.subr.bf16.mxu0 0
        %2528 = vmatpush1.bf16.msra.mxu0 %v2371
        %2529 = vmatprep.subr.bf16.mxu0 0
        %2530 = vmatpush1.bf16.msra.mxu0 %v2372
        %2531 = vmatprep.subr.bf16.mxu0 0
        %2532 = vmatpush1.bf16.msra.mxu0 %v2373
        %2533 = vmatprep.subr.bf16.mxu0 0
        %2534 = vmatpush1.bf16.msra.mxu0 %v2374
        %2535 = vmatprep.mubr.bf16.mxu0 %v1892
        %2536 = vmatmul.mubr.bf16.gmra.mrb[0].mxu0 %v1891
        %v2537 = vpop.f32.mrb[0].mxu0
        %v2538 = vadd.f32 0.0, %v2537
        %v2539 = vpop.f32.mrb[0].mxu0
        %v2540 = vpop.f32.mrb[0].mxu0
        %v2541 = vadd.f32 0.0, %v2540
        %v2542 = vpop.f32.mrb[0].mxu0
        %2543 = vmatprep.mubr.bf16.mxu0 %v1901
        %2544 = vmatmul.mubr.bf16.gmra.mrb[0].mxu0 %v1900
        %v2545 = vpop.f32.mrb[0].mxu0
        %v2546 = vadd.f32 0.0, %v2545
        %v2547 = vpop.f32.mrb[0].mxu0
        %v2548 = vpop.f32.mrb[0].mxu0
        %v2549 = vadd.f32 0.0, %v2548
        %v2550 = vpop.f32.mrb[0].mxu0
        %2551 = vmatprep.mubr.bf16.mxu0 %v1910
        %2552 = vmatmul.mubr.bf16.gmra.mrb[0].mxu0 %v1909
        %v2553 = vpop.f32.mrb[0].mxu0
        %v2554 = vadd.f32 0.0, %v2553
        %v2555 = vpop.f32.mrb[0].mxu0
        %v2556 = vpop.f32.mrb[0].mxu0
        %v2557 = vadd.f32 0.0, %v2556
        %v2558 = vpop.f32.mrb[0].mxu0
        %2559 = vmatprep.mubr.bf16.mxu0 %v1919
        %2560 = vmatmul.mubr.bf16.gmra.mrb[0].mxu0 %v1918
        %v2561 = vpop.f32.mrb[0].mxu0
        %v2562 = vadd.f32 0.0, %v2561
        %v2563 = vpop.f32.mrb[0].mxu0
        %v2564 = vpop.f32.mrb[0].mxu0
        %v2565 = vadd.f32 0.0, %v2564
        %v2566 = vpop.f32.mrb[0].mxu0
        %2567 = vdwg.mxu0
        %2568 = vmatprep.subr.bf16.mxu0 0
        %2569 = vmatpush1.bf16.msra.mxu0 %v2375
        %2570 = vmatprep.subr.bf16.mxu0 0
        %2571 = vmatpush1.bf16.msra.mxu0 %v2376
        %2572 = vmatprep.subr.bf16.mxu0 0
        %2573 = vmatpush1.bf16.msra.mxu0 %v2377
        %2574 = vmatprep.subr.bf16.mxu0 0
        %2575 = vmatpush1.bf16.msra.mxu0 %v2378
        %2576 = vmatprep.subr.bf16.mxu0 0
        %2577 = vmatpush1.bf16.msra.mxu0 %v2379
        %2578 = vmatprep.subr.bf16.mxu0 0
        %2579 = vmatpush1.bf16.msra.mxu0 %v2380
        %2580 = vmatprep.subr.bf16.mxu0 0
        %2581 = vmatpush1.bf16.msra.mxu0 %v2381
        %2582 = vmatprep.subr.bf16.mxu0 0
        %2583 = vmatpush1.bf16.msra.mxu0 %v2382
        %2584 = vmatprep.subr.bf16.mxu0 0
        %2585 = vmatpush1.bf16.msra.mxu0 %v2383
        %2586 = vmatprep.subr.bf16.mxu0 0
        %2587 = vmatpush1.bf16.msra.mxu0 %v2384
        %2588 = vmatprep.subr.bf16.mxu0 0
        %2589 = vmatpush1.bf16.msra.mxu0 %v2385
        %2590 = vmatprep.subr.bf16.mxu0 0
        %2591 = vmatpush1.bf16.msra.mxu0 %v2386
        %2592 = vmatprep.subr.bf16.mxu0 0
        %2593 = vmatpush1.bf16.msra.mxu0 %v2387
        %2594 = vmatprep.subr.bf16.mxu0 0
        %2595 = vmatpush1.bf16.msra.mxu0 %v2388
        %2596 = vmatprep.subr.bf16.mxu0 0
        %2597 = vmatpush1.bf16.msra.mxu0 %v2389
        %2598 = vmatprep.subr.bf16.mxu0 0
        %2599 = vmatpush1.bf16.msra.mxu0 %v2390
        %2600 = vmatprep.mubr.bf16.mxu0 %v1894
        %2601 = vmatmul.mubr.bf16.gmra.mrb[0].mxu0 %v1893
        %v2602 = vpop.f32.mrb[0].mxu0
        %v2603 = vadd.f32 %v2538, %v2602
        %v2604 = vpop.f32.mrb[0].mxu0
        %v2605 = vpop.f32.mrb[0].mxu0
        %v2606 = vadd.f32 %v2541, %v2605
        %v2607 = vpop.f32.mrb[0].mxu0
        %2608 = vmatprep.mubr.bf16.mxu0 %v1903
        %2609 = vmatmul.mubr.bf16.gmra.mrb[0].mxu0 %v1902
        %v2610 = vpop.f32.mrb[0].mxu0
        %v2611 = vadd.f32 %v2546, %v2610
        %v2612 = vpop.f32.mrb[0].mxu0
        %v2613 = vpop.f32.mrb[0].mxu0
        %v2614 = vadd.f32 %v2549, %v2613
        %v2615 = vpop.f32.mrb[0].mxu0
        %2616 = vmatprep.mubr.bf16.mxu0 %v1912
        %2617 = vmatmul.mubr.bf16.gmra.mrb[0].mxu0 %v1911
        %v2618 = vpop.f32.mrb[0].mxu0
        %v2619 = vadd.f32 %v2554, %v2618
        %v2620 = vpop.f32.mrb[0].mxu0
        %v2621 = vpop.f32.mrb[0].mxu0
        %v2622 = vadd.f32 %v2557, %v2621
        %v2623 = vpop.f32.mrb[0].mxu0
        %2624 = vmatprep.mubr.bf16.mxu0 %v1921
        %2625 = vmatmul.mubr.bf16.gmra.mrb[0].mxu0 %v1920
        %v2626 = vpop.f32.mrb[0].mxu0
        %v2627 = vadd.f32 %v2562, %v2626
        %v2628 = vpop.f32.mrb[0].mxu0
        %v2629 = vpop.f32.mrb[0].mxu0
        %v2630 = vadd.f32 %v2565, %v2629
        %v2631 = vpop.f32.mrb[0].mxu0
        %2632 = vdwg.mxu0
        %2633 = vmatprep.subr.bf16.mxu0 0
        %2634 = vmatpush1.bf16.msra.mxu0 %v2391
        %2635 = vmatprep.subr.bf16.mxu0 0
        %2636 = vmatpush1.bf16.msra.mxu0 %v2392
        %2637 = vmatprep.subr.bf16.mxu0 0
        %2638 = vmatpush1.bf16.msra.mxu0 %v2393
        %2639 = vmatprep.subr.bf16.mxu0 0
        %2640 = vmatpush1.bf16.msra.mxu0 %v2394
        %2641 = vmatprep.subr.bf16.mxu0 0
        %2642 = vmatpush1.bf16.msra.mxu0 %v2395
        %2643 = vmatprep.subr.bf16.mxu0 0
        %2644 = vmatpush1.bf16.msra.mxu0 %v2396
        %2645 = vmatprep.subr.bf16.mxu0 0
        %2646 = vmatpush1.bf16.msra.mxu0 %v2397
        %2647 = vmatprep.subr.bf16.mxu0 0
        %2648 = vmatpush1.bf16.msra.mxu0 %v2398
        %2649 = vmatprep.subr.bf16.mxu0 0
        %2650 = vmatpush1.bf16.msra.mxu0 %v2399
        %2651 = vmatprep.subr.bf16.mxu0 0
        %2652 = vmatpush1.bf16.msra.mxu0 %v2400
        %2653 = vmatprep.subr.bf16.mxu0 0
        %2654 = vmatpush1.bf16.msra.mxu0 %v2401
        %2655 = vmatprep.subr.bf16.mxu0 0
        %2656 = vmatpush1.bf16.msra.mxu0 %v2402
        %2657 = vmatprep.subr.bf16.mxu0 0
        %2658 = vmatpush1.bf16.msra.mxu0 %v2403
        %2659 = vmatprep.subr.bf16.mxu0 0
        %2660 = vmatpush1.bf16.msra.mxu0 %v2404
        %2661 = vmatprep.subr.bf16.mxu0 0
        %2662 = vmatpush1.bf16.msra.mxu0 %v2405
        %2663 = vmatprep.subr.bf16.mxu0 0
        %2664 = vmatpush1.bf16.msra.mxu0 %v2406
        %2665 = vmatprep.mubr.bf16.mxu0 %v1896
        %2666 = vmatmul.mubr.bf16.gmra.mrb[0].mxu0 %v1895
        %v2667 = vpop.f32.mrb[0].mxu0
        %v2668 = vadd.f32 %v2603, %v2667
        %v2669 = vpop.f32.mrb[0].mxu0
        %v2670 = vpop.f32.mrb[0].mxu0
        %v2671 = vadd.f32 %v2606, %v2670
        %v2672 = vpop.f32.mrb[0].mxu0
        %2673 = vmatprep.mubr.bf16.mxu0 %v1905
        %2674 = vmatmul.mubr.bf16.gmra.mrb[0].mxu0 %v1904
        %v2675 = vpop.f32.mrb[0].mxu0
        %v2676 = vadd.f32 %v2611, %v2675
        %v2677 = vpop.f32.mrb[0].mxu0
        %v2678 = vpop.f32.mrb[0].mxu0
        %v2679 = vadd.f32 %v2614, %v2678
        %v2680 = vpop.f32.mrb[0].mxu0
        %2681 = vmatprep.mubr.bf16.mxu0 %v1914
        %2682 = vmatmul.mubr.bf16.gmra.mrb[0].mxu0 %v1913
        %v2683 = vpop.f32.mrb[0].mxu0
        %v2684 = vadd.f32 %v2619, %v2683
        %v2685 = vpop.f32.mrb[0].mxu0
        %v2686 = vpop.f32.mrb[0].mxu0
        %v2687 = vadd.f32 %v2622, %v2686
        %v2688 = vpop.f32.mrb[0].mxu0
        %2689 = vmatprep.mubr.bf16.mxu0 %v1923
        %2690 = vmatmul.mubr.bf16.gmra.mrb[0].mxu0 %v1922
        %v2691 = vpop.f32.mrb[0].mxu0
        %v2692 = vadd.f32 %v2627, %v2691
        %v2693 = vpop.f32.mrb[0].mxu0
        %v2694 = vpop.f32.mrb[0].mxu0
        %v2695 = vadd.f32 %v2630, %v2694
        %v2696 = vpop.f32.mrb[0].mxu0
        %2697 = vdwg.mxu0
        %2698 = vmatprep.subr.bf16.mxu0 0
        %2699 = vmatpush1.bf16.msra.mxu0 %v2407
        %2700 = vmatprep.subr.bf16.mxu0 0
        %2701 = vmatpush1.bf16.msra.mxu0 %v2408
        %2702 = vmatprep.subr.bf16.mxu0 0
        %2703 = vmatpush1.bf16.msra.mxu0 %v2409
        %2704 = vmatprep.subr.bf16.mxu0 0
        %2705 = vmatpush1.bf16.msra.mxu0 %v2410
        %2706 = vmatprep.subr.bf16.mxu0 0
        %2707 = vmatpush1.bf16.msra.mxu0 %v2411
        %2708 = vmatprep.subr.bf16.mxu0 0
        %2709 = vmatpush1.bf16.msra.mxu0 %v2412
        %2710 = vmatprep.subr.bf16.mxu0 0
        %2711 = vmatpush1.bf16.msra.mxu0 %v2413
        %2712 = vmatprep.subr.bf16.mxu0 0
        %2713 = vmatpush1.bf16.msra.mxu0 %v2414
        %2714 = vmatprep.subr.bf16.mxu0 0
        %2715 = vmatpush1.bf16.msra.mxu0 %v2415
        %2716 = vmatprep.subr.bf16.mxu0 0
        %2717 = vmatpush1.bf16.msra.mxu0 %v2416
        %2718 = vmatprep.subr.bf16.mxu0 0
        %2719 = vmatpush1.bf16.msra.mxu0 %v2417
        %2720 = vmatprep.subr.bf16.mxu0 0
        %2721 = vmatpush1.bf16.msra.mxu0 %v2418
        %2722 = vmatprep.subr.bf16.mxu0 0
        %2723 = vmatpush1.bf16.msra.mxu0 %v2419
        %2724 = vmatprep.subr.bf16.mxu0 0
        %2725 = vmatpush1.bf16.msra.mxu0 %v2420
        %2726 = vmatprep.subr.bf16.mxu0 0
        %2727 = vmatpush1.bf16.msra.mxu0 %v2421
        %2728 = vmatprep.subr.bf16.mxu0 0
        %2729 = vmatpush1.bf16.msra.mxu0 %v2422
        %2730 = vmatprep.mubr.bf16.mxu0 %v1898
        %2731 = vmatmul.mubr.bf16.gmra.mrb[0].mxu0 %v1897
        %v2732 = vpop.f32.mrb[0].mxu0
        %v2733 = vadd.f32 %v2668, %v2732
        %v2734 = vpop.f32.mrb[0].mxu0
        %v2735 = vpop.f32.mrb[0].mxu0
        %v2736 = vadd.f32 %v2671, %v2735
        %v2737 = vpop.f32.mrb[0].mxu0
        %2738 = vmatprep.mubr.bf16.mxu0 %v1907
        %2739 = vmatmul.mubr.bf16.gmra.mrb[0].mxu0 %v1906
        %v2740 = vpop.f32.mrb[0].mxu0
        %v2741 = vadd.f32 %v2676, %v2740
        %v2742 = vpop.f32.mrb[0].mxu0
        %v2743 = vpop.f32.mrb[0].mxu0
        %v2744 = vadd.f32 %v2679, %v2743
        %v2745 = vpop.f32.mrb[0].mxu0
        %2746 = vmatprep.mubr.bf16.mxu0 %v1916
        %2747 = vmatmul.mubr.bf16.gmra.mrb[0].mxu0 %v1915
        %v2748 = vpop.f32.mrb[0].mxu0
        %v2749 = vadd.f32 %v2684, %v2748
        %v2750 = vpop.f32.mrb[0].mxu0
        %v2751 = vpop.f32.mrb[0].mxu0
        %v2752 = vadd.f32 %v2687, %v2751
        %v2753 = vpop.f32.mrb[0].mxu0
        %2754 = vmatprep.mubr.bf16.mxu0 %v1925
        %2755 = vmatmul.mubr.bf16.gmra.mrb[0].mxu0 %v1924
        %v2756 = vpop.f32.mrb[0].mxu0
        %v2757 = vadd.f32 %v2692, %v2756
        %v2758 = vpop.f32.mrb[0].mxu0
        %v2759 = vpop.f32.mrb[0].mxu0
        %v2760 = vadd.f32 %v2695, %v2759
        %v2761 = vpop.f32.mrb[0].mxu0
        %2762 = vdwg.mxu0
        %2763 = vmatprep.subr.bf16.mxu0 0
        %2764 = vmatpush1.bf16.msra.mxu0 %v2423
        %2765 = vmatprep.subr.bf16.mxu0 0
        %2766 = vmatpush1.bf16.msra.mxu0 %v2424
        %2767 = vmatprep.subr.bf16.mxu0 0
        %2768 = vmatpush1.bf16.msra.mxu0 %v2425
        %2769 = vmatprep.subr.bf16.mxu0 0
        %2770 = vmatpush1.bf16.msra.mxu0 %v2426
        %2771 = vmatprep.subr.bf16.mxu0 0
        %2772 = vmatpush1.bf16.msra.mxu0 %v2427
        %2773 = vmatprep.subr.bf16.mxu0 0
        %2774 = vmatpush1.bf16.msra.mxu0 %v2428
        %2775 = vmatprep.subr.bf16.mxu0 0
        %2776 = vmatpush1.bf16.msra.mxu0 %v2429
        %2777 = vmatprep.subr.bf16.mxu0 0
        %2778 = vmatpush1.bf16.msra.mxu0 %v2430
        %2779 = vmatprep.subr.bf16.mxu0 0
        %2780 = vmatpush1.bf16.msra.mxu0 0
        %2781 = vmatprep.subr.bf16.mxu0 0
        %2782 = vmatpush1.bf16.msra.mxu0 0
        %2783 = vmatprep.subr.bf16.mxu0 0
        %2784 = vmatpush1.bf16.msra.mxu0 0
        %2785 = vmatprep.subr.bf16.mxu0 0
        %2786 = vmatpush1.bf16.msra.mxu0 0
        %2787 = vmatprep.subr.bf16.mxu0 0
        %2788 = vmatpush1.bf16.msra.mxu0 0
        %2789 = vmatprep.subr.bf16.mxu0 0
        %2790 = vmatpush1.bf16.msra.mxu0 0
        %2791 = vmatprep.subr.bf16.mxu0 0
        %2792 = vmatpush1.bf16.msra.mxu0 0
        %2793 = vmatprep.subr.bf16.mxu0 0
        %2794 = vmatpush1.bf16.msra.mxu0 0
        %2795 = vmatprep.mubr.bf16.mxu0 0
        %2796 = vmatmul.mubr.bf16.gmra.mrb[0].mxu0 %v1899
        %v2797 = vpop.f32.mrb[0].mxu0
        %v2798 = vadd.f32 %v2733, %v2797
        %v2799 = vpop.f32.mrb[0].mxu0
        %v2800 = vpop.f32.mrb[0].mxu0
        %v2801 = vadd.f32 %v2736, %v2800
        %v2802 = vpop.f32.mrb[0].mxu0
        %2803 = vmatprep.mubr.bf16.mxu0 0
        %2804 = vmatmul.mubr.bf16.gmra.mrb[0].mxu0 %v1908
        %v2805 = vpop.f32.mrb[0].mxu0
        %v2806 = vadd.f32 %v2741, %v2805
        %v2807 = vpop.f32.mrb[0].mxu0
        %v2808 = vpop.f32.mrb[0].mxu0
        %v2809 = vadd.f32 %v2744, %v2808
        %v2810 = vpop.f32.mrb[0].mxu0
        %2811 = vmatprep.mubr.bf16.mxu0 0
        %2812 = vmatmul.mubr.bf16.gmra.mrb[0].mxu0 %v1917
        %v2813 = vpop.f32.mrb[0].mxu0
        %v2814 = vadd.f32 %v2749, %v2813
        %v2815 = vpop.f32.mrb[0].mxu0
        %v2816 = vpop.f32.mrb[0].mxu0
        %v2817 = vadd.f32 %v2752, %v2816
        %v2818 = vpop.f32.mrb[0].mxu0
        %2819 = vmatprep.mubr.bf16.mxu0 0
        %2820 = vmatmul.mubr.bf16.gmra.mrb[0].mxu0 %v1926
        %v2821 = vpop.f32.mrb[0].mxu0
        %v2822 = vadd.f32 %v2757, %v2821
        %v2823 = vpop.f32.mrb[0].mxu0
        %v2824 = vpop.f32.mrb[0].mxu0
        %v2825 = vadd.f32 %v2760, %v2824
        %v2826 = vpop.f32.mrb[0].mxu0
        %2827 = vdwg.mxu0
        %v2828 = vadd.f32 %v2798, %v2801
        %v2829 = vadd.f32 %v2828, %v2806
        %v2830 = vadd.f32 %v2829, %v2809
        %v2831 = vadd.f32 %v2830, %v2814
        %v2832 = vadd.f32 %v2831, %v2817
        %v2833 = vadd.f32 %v2832, %v2822
        %v2834 = vadd.f32 %v2833, %v2825
        %v2835 = vrot.slane %v2834, 4
        %v2836 = vadd.f32 %v2834, %v2835
        %v2837 = vrot.slane %v2836, 2
        %v2838 = vadd.f32 %v2836, %v2837
        %v2839 = vrot.slane %v2838, 1
        %v2840 = vadd.f32 %v2838, %v2839
        %v2841 = vmul.f32 %v2798, %v2798
        %v2842 = vmul.f32 %v2801, %v2801
        %v2843 = vmul.f32 %v2806, %v2806
        %v2844 = vmul.f32 %v2809, %v2809
        %v2845 = vmul.f32 %v2814, %v2814
        %v2846 = vmul.f32 %v2817, %v2817
        %v2847 = vmul.f32 %v2822, %v2822
        %v2848 = vmul.f32 %v2825, %v2825
        %v2849 = vadd.f32 %v2841, %v2842
        %v2850 = vadd.f32 %v2849, %v2843
        %v2851 = vadd.f32 %v2850, %v2844
        %v2852 = vadd.f32 %v2851, %v2845
        %v2853 = vadd.f32 %v2852, %v2846
        %v2854 = vadd.f32 %v2853, %v2847
        %v2855 = vadd.f32 %v2854, %v2848
        %v2856 = vrot.slane %v2855, 4
        %v2857 = vadd.f32 %v2855, %v2856
        %v2858 = vrot.slane %v2857, 2
        %v2859 = vadd.f32 %v2857, %v2858
        %v2860 = vrot.slane %v2859, 1
        %v2861 = vadd.f32 %v2859, %v2860
        %v2862 = vld [vmem:[%s4] sm:$0xff]
        %v2863 = vld [vmem:[%s4 + $0x8] sm:$0xff]
        %v2864 = vld [vmem:[%s4 + $0x10] sm:$0xff]
        %v2865 = vld [vmem:[%s4 + $0x18] sm:$0xff]
        %v2866 = vld [vmem:[%s4 + $0x20] sm:$0xff]
        %v2867 = vld [vmem:[%s4 + $0x28] sm:$0xff]
        %v2868 = vld [vmem:[%s4 + $0x30] sm:$0xff]
        %v2869 = vld [vmem:[%s4 + $0x38] sm:$0xff]
        %v2870 = vld [vmem:[%s4 + $0x40] sm:$0xff]
        %v2871 = vld [vmem:[%s4 + $0x48] sm:$0xff]
        %v2872 = vld [vmem:[%s4 + $0x50] sm:$0xff]
        %v2873 = vld [vmem:[%s4 + $0x58] sm:$0xff]
        %v2874 = vld [vmem:[%s4 + $0x60] sm:$0xff]
        %v2875 = vld [vmem:[%s4 + $0x68] sm:$0xff]
        %v2876 = vld [vmem:[%s4 + $0x70] sm:$0xff]
        %v2877 = vld [vmem:[%s4 + $0x78] sm:$0xff]
        %2878 = vmatprep.subr.mxu0 0.0
        %2879 = vmatpush1.msra.mxu0 %v2862
        %2880 = vmatprep.subr.mxu0 0.0
        %2881 = vmatpush1.msra.mxu0 %v2863
        %2882 = vmatprep.subr.mxu0 0.0
        %2883 = vmatpush1.msra.mxu0 %v2864
        %2884 = vmatprep.subr.mxu0 0.0
        %2885 = vmatpush1.msra.mxu0 %v2865
        %2886 = vmatprep.subr.mxu0 0.0
        %2887 = vmatpush1.msra.mxu0 %v2866
        %2888 = vmatprep.subr.mxu0 0.0
        %2889 = vmatpush1.msra.mxu0 %v2867
        %2890 = vmatprep.subr.mxu0 0.0
        %2891 = vmatpush1.msra.mxu0 %v2868
        %2892 = vmatprep.subr.mxu0 0.0
        %2893 = vmatpush1.msra.mxu0 %v2869
        %2894 = vmatprep.subr.mxu0 0.0
        %2895 = vmatpush1.msra.mxu0 %v2870
        %2896 = vmatprep.subr.mxu0 0.0
        %2897 = vmatpush1.msra.mxu0 %v2871
        %2898 = vmatprep.subr.mxu0 0.0
        %2899 = vmatpush1.msra.mxu0 %v2872
        %2900 = vmatprep.subr.mxu0 0.0
        %2901 = vmatpush1.msra.mxu0 %v2873
        %2902 = vmatprep.subr.mxu0 0.0
        %2903 = vmatpush1.msra.mxu0 %v2874
        %2904 = vmatprep.subr.mxu0 0.0
        %2905 = vmatpush1.msra.mxu0 %v2875
        %2906 = vmatprep.subr.mxu0 0.0
        %2907 = vmatpush1.msra.mxu0 %v2876
        %2908 = vmatprep.subr.mxu0 0.0
        %2909 = vmatpush1.msra.mxu0 %v2877
        %2910 = vmatprep.subr.mxu0 0.0
        %2911 = vmatpush1.msra.mxu0 0.0
        %2912 = vmatprep.subr.mxu0 0.0
        %2913 = vmatpush1.msra.mxu0 0.0
        %2914 = vmatprep.subr.mxu0 0.0
        %2915 = vmatpush1.msra.mxu0 0.0
        %2916 = vmatprep.subr.mxu0 0.0
        %2917 = vmatpush1.msra.mxu0 0.0
        %2918 = vmatprep.subr.mxu0 0.0
        %2919 = vmatpush1.msra.mxu0 0.0
        %2920 = vmatprep.subr.mxu0 0.0
        %2921 = vmatpush1.msra.mxu0 0.0
        %2922 = vmatprep.subr.mxu0 0.0
        %2923 = vmatpush1.msra.mxu0 0.0
        %2924 = vmatprep.subr.mxu0 0.0
        %2925 = vmatpush1.msra.mxu0 0.0
        %2926 = vmatprep.subr.mxu0 0.0
        %2927 = vmatpush1.msra.mxu0 0.0
        %2928 = vmatprep.subr.mxu0 0.0
        %2929 = vmatpush1.msra.mxu0 0.0
        %2930 = vmatprep.subr.mxu0 0.0
        %2931 = vmatpush1.msra.mxu0 0.0
        %2932 = vmatprep.subr.mxu0 0.0
        %2933 = vmatpush1.msra.mxu0 0.0
        %2934 = vmatprep.subr.mxu0 0.0
        %2935 = vmatpush1.msra.mxu0 0.0
        %2936 = vmatprep.subr.mxu0 0.0
        %2937 = vmatpush1.msra.mxu0 0.0
        %2938 = vmatprep.subr.mxu0 0.0
        %2939 = vmatpush1.msra.mxu0 0.0
        %2940 = vmatprep.subr.mxu0 0.0
        %2941 = vmatpush1.msra.mxu0 0.0
        %2942 = vmatprep.mubr.f32.mxu0 0.0
        %2943 = vmatmul.mubr.f32.gmra.mrb[0].mxu0 %v2840
        %v2944 = vpop.f32.mrb[0].mxu0
        %v2945 = vadd.f32 0.0, %v2944
        %v2946 = vpop.f32.mrb[0].mxu0
        %2947 = vdwg.mxu0
        %2948 = vmatprep.subr.mxu0 0.0
        %2949 = vmatpush1.msra.mxu0 %v2862
        %2950 = vmatprep.subr.mxu0 0.0
        %2951 = vmatpush1.msra.mxu0 %v2863
        %2952 = vmatprep.subr.mxu0 0.0
        %2953 = vmatpush1.msra.mxu0 %v2864
        %2954 = vmatprep.subr.mxu0 0.0
        %2955 = vmatpush1.msra.mxu0 %v2865
        %2956 = vmatprep.subr.mxu0 0.0
        %2957 = vmatpush1.msra.mxu0 %v2866
        %2958 = vmatprep.subr.mxu0 0.0
        %2959 = vmatpush1.msra.mxu0 %v2867
        %2960 = vmatprep.subr.mxu0 0.0
        %2961 = vmatpush1.msra.mxu0 %v2868
        %2962 = vmatprep.subr.mxu0 0.0
        %2963 = vmatpush1.msra.mxu0 %v2869
        %2964 = vmatprep.subr.mxu0 0.0
        %2965 = vmatpush1.msra.mxu0 %v2870
        %2966 = vmatprep.subr.mxu0 0.0
        %2967 = vmatpush1.msra.mxu0 %v2871
        %2968 = vmatprep.subr.mxu0 0.0
        %2969 = vmatpush1.msra.mxu0 %v2872
        %2970 = vmatprep.subr.mxu0 0.0
        %2971 = vmatpush1.msra.mxu0 %v2873
        %2972 = vmatprep.subr.mxu0 0.0
        %2973 = vmatpush1.msra.mxu0 %v2874
        %2974 = vmatprep.subr.mxu0 0.0
        %2975 = vmatpush1.msra.mxu0 %v2875
        %2976 = vmatprep.subr.mxu0 0.0
        %2977 = vmatpush1.msra.mxu0 %v2876
        %2978 = vmatprep.subr.mxu0 0.0
        %2979 = vmatpush1.msra.mxu0 %v2877
        %2980 = vmatprep.subr.mxu0 0.0
        %2981 = vmatpush1.msra.mxu0 0.0
        %2982 = vmatprep.subr.mxu0 0.0
        %2983 = vmatpush1.msra.mxu0 0.0
        %2984 = vmatprep.subr.mxu0 0.0
        %2985 = vmatpush1.msra.mxu0 0.0
        %2986 = vmatprep.subr.mxu0 0.0
        %2987 = vmatpush1.msra.mxu0 0.0
        %2988 = vmatprep.subr.mxu0 0.0
        %2989 = vmatpush1.msra.mxu0 0.0
        %2990 = vmatprep.subr.mxu0 0.0
        %2991 = vmatpush1.msra.mxu0 0.0
        %2992 = vmatprep.subr.mxu0 0.0
        %2993 = vmatpush1.msra.mxu0 0.0
        %2994 = vmatprep.subr.mxu0 0.0
        %2995 = vmatpush1.msra.mxu0 0.0
        %2996 = vmatprep.subr.mxu0 0.0
        %2997 = vmatpush1.msra.mxu0 0.0
        %2998 = vmatprep.subr.mxu0 0.0
        %2999 = vmatpush1.msra.mxu0 0.0
        %3000 = vmatprep.subr.mxu0 0.0
        %3001 = vmatpush1.msra.mxu0 0.0
        %3002 = vmatprep.subr.mxu0 0.0
        %3003 = vmatpush1.msra.mxu0 0.0
        %3004 = vmatprep.subr.mxu0 0.0
        %3005 = vmatpush1.msra.mxu0 0.0
        %3006 = vmatprep.subr.mxu0 0.0
        %3007 = vmatpush1.msra.mxu0 0.0
        %3008 = vmatprep.subr.mxu0 0.0
        %3009 = vmatpush1.msra.mxu0 0.0
        %3010 = vmatprep.subr.mxu0 0.0
        %3011 = vmatpush1.msra.mxu0 0.0
        %3012 = vmatprep.mubr.f32.mxu0 0.0
        %3013 = vmatmul.mubr.f32.gmra.mrb[0].mxu0 %v2861
        %v3014 = vpop.f32.mrb[0].mxu0
        %v3015 = vadd.f32 0.0, %v3014
        %v3016 = vpop.f32.mrb[0].mxu0
        %3017 = vdwg.mxu0
        %v3018 = vmul.f32 %v2945, %v2945
        %v3019 = vsub.f32 %v3015, %v3018
        %v3020 = vmax.f32 %v3019, 0.0
        %v3021 = vlaneseq
        %v3022 = vshrl.u32 %v3021, 7
        %v3023 = vsub.s32 0, %v3022
        %v3024 = vrot.slane %v2945, %v3023
        %v3025 = vsub.f32 %v2798, %v3024
        %v3026 = vsub.f32 %v2801, %v3024
        %v3027 = vsub.f32 %v2806, %v3024
        %v3028 = vsub.f32 %v2809, %v3024
        %v3029 = vsub.f32 %v2814, %v3024
        %v3030 = vsub.f32 %v2817, %v3024
        %v3031 = vsub.f32 %v2822, %v3024
        %v3032 = vsub.f32 %v2825, %v3024
        %v3033 = vadd.f32 %v3020, 1e-05
        %v3034 = vrsqrt.pop %v3033
        %v3035 = vlaneseq
        %v3036 = vshrl.u32 %v3035, 7
        %v3037 = vsub.s32 0, %v3036
        %v3038 = vrot.slane %v3034, %v3037
        %v3039 = vmul.f32 %v3025, %v3038
        %v3040 = vmul.f32 %v3026, %v3038
        %v3041 = vmul.f32 %v3027, %v3038
        %v3042 = vmul.f32 %v3028, %v3038
        %v3043 = vmul.f32 %v3029, %v3038
        %v3044 = vmul.f32 %v3030, %v3038
        %v3045 = vmul.f32 %v3031, %v3038
        %v3046 = vmul.f32 %v3032, %v3038
        %v3047 = vld [vmem:[%s5] sm:$0x1]
        %v3049 = vlaneseq
        %v3050 = vshrl.u32 %v3049, 7
        %v3051 = vsub.s32 0, %v3050
        %v3052 = vrot.slane %v3047, %v3051
        %v3054 = vmul.f32 %v3039, %v3052
        %v3055 = vmul.f32 %v3040, %v3052
        %v3056 = vmul.f32 %v3041, %v3052
        %v3057 = vmul.f32 %v3042, %v3052
        %v3058 = vmul.f32 %v3043, %v3052
        %v3059 = vmul.f32 %v3044, %v3052
        %v3060 = vmul.f32 %v3045, %v3052
        %v3061 = vmul.f32 %v3046, %v3052
        %v3062 = vld [vmem:[%s6] sm:$0x1]
        %v3064 = vlaneseq
        %v3065 = vshrl.u32 %v3064, 7
        %v3066 = vsub.s32 0, %v3065
        %v3067 = vrot.slane %v3062, %v3066
        %v3069 = vadd.f32 %v3054, %v3067
        %v3070 = vadd.f32 %v3055, %v3067
        %v3071 = vadd.f32 %v3056, %v3067
        %v3072 = vadd.f32 %v3057, %v3067
        %v3073 = vadd.f32 %v3058, %v3067
        %v3074 = vadd.f32 %v3059, %v3067
        %v3075 = vadd.f32 %v3060, %v3067
        %v3076 = vadd.f32 %v3061, %v3067
        %v3077 = vand.u32 2147483647, %v3069
        %v3078 = vand.u32 2147483647, %v3070
        %v3079 = vand.u32 2147483647, %v3071
        %v3080 = vand.u32 2147483647, %v3072
        %v3081 = vand.u32 2147483647, %v3073
        %v3082 = vand.u32 2147483647, %v3074
        %v3083 = vand.u32 2147483647, %v3075
        %v3084 = vand.u32 2147483647, %v3076
        %v3085 = vsub.f32 0.0, %v3077
        %v3086 = vsub.f32 0.0, %v3078
        %v3087 = vsub.f32 0.0, %v3079
        %v3088 = vsub.f32 0.0, %v3080
        %v3089 = vsub.f32 0.0, %v3081
        %v3090 = vsub.f32 0.0, %v3082
        %v3091 = vsub.f32 0.0, %v3083
        %v3092 = vsub.f32 0.0, %v3084
        %v3093 = vmul.f32 %v3085, 1.442695
        %v3094 = vpow.pop %v3093
        %v3095 = vmul.f32 %v3086, 1.442695
        %v3096 = vpow.pop %v3095
        %v3097 = vmul.f32 %v3087, 1.442695
        %v3098 = vpow.pop %v3097
        %v3099 = vmul.f32 %v3088, 1.442695
        %v3100 = vpow.pop %v3099
        %v3101 = vmul.f32 %v3089, 1.442695
        %v3102 = vpow.pop %v3101
        %v3103 = vmul.f32 %v3090, 1.442695
        %v3104 = vpow.pop %v3103
        %v3105 = vmul.f32 %v3091, 1.442695
        %v3106 = vpow.pop %v3105
        %v3107 = vmul.f32 %v3092, 1.442695
        %v3108 = vpow.pop %v3107
        %v3109 = vadd.f32 %v3094, 1.0
        %v3110 = vadd.f32 %v3096, 1.0
        %v3111 = vadd.f32 %v3098, 1.0
        %v3112 = vadd.f32 %v3100, 1.0
        %v3113 = vadd.f32 %v3102, 1.0
        %v3114 = vadd.f32 %v3104, 1.0
        %v3115 = vadd.f32 %v3106, 1.0
        %v3116 = vadd.f32 %v3108, 1.0
        %v3117 = vlog2.pop %v3109
        %v3118 = vmul.f32 %v3117, 0.6931472
        %v3119 = vlog2.pop %v3110
        %v3120 = vmul.f32 %v3119, 0.6931472
        %v3121 = vlog2.pop %v3111
        %v3122 = vmul.f32 %v3121, 0.6931472
        %v3123 = vlog2.pop %v3112
        %v3124 = vmul.f32 %v3123, 0.6931472
        %v3125 = vlog2.pop %v3113
        %v3126 = vmul.f32 %v3125, 0.6931472
        %v3127 = vlog2.pop %v3114
        %v3128 = vmul.f32 %v3127, 0.6931472
        %v3129 = vlog2.pop %v3115
        %v3130 = vmul.f32 %v3129, 0.6931472
        %v3131 = vlog2.pop %v3116
        %v3132 = vmul.f32 %v3131, 0.6931472
        %v3133 = vmax.f32 %v3069, 0.0
        %v3134 = vmax.f32 %v3070, 0.0
        %v3135 = vmax.f32 %v3071, 0.0
        %v3136 = vmax.f32 %v3072, 0.0
        %v3137 = vmax.f32 %v3073, 0.0
        %v3138 = vmax.f32 %v3074, 0.0
        %v3139 = vmax.f32 %v3075, 0.0
        %v3140 = vmax.f32 %v3076, 0.0
        %v3141 = vadd.f32 %v3118, %v3133
        %v3142 = vadd.f32 %v3120, %v3134
        %v3143 = vadd.f32 %v3122, %v3135
        %v3144 = vadd.f32 %v3124, %v3136
        %v3145 = vadd.f32 %v3126, %v3137
        %v3146 = vadd.f32 %v3128, %v3138
        %v3147 = vadd.f32 %v3130, %v3139
        %v3148 = vadd.f32 %v3132, %v3140
        %v3149 = vtanh.pop %v3141
        %v3150 = vtanh.pop %v3142
        %v3151 = vtanh.pop %v3143
        %v3152 = vtanh.pop %v3144
        %v3153 = vtanh.pop %v3145
        %v3154 = vtanh.pop %v3146
        %v3155 = vtanh.pop %v3147
        %v3156 = vtanh.pop %v3148
        %v3157 = vmul.f32 %v3069, %v3149
        %v3158 = vmul.f32 %v3070, %v3150
        %v3159 = vmul.f32 %v3071, %v3151
        %v3160 = vmul.f32 %v3072, %v3152
        %v3161 = vmul.f32 %v3073, %v3153
        %v3162 = vmul.f32 %v3074, %v3154
        %v3163 = vmul.f32 %v3075, %v3155
        %v3164 = vmul.f32 %v3076, %v3156
        %v3165 = vld [vmem:[%s2] sm:$0xf]
        %v3166 = vld [vmem:[%s2 + $0x4] sm:$0xf]
        %v3167 = vld [vmem:[%s2 + $0x8] sm:$0xf]
        %v3168 = vld [vmem:[%s2 + $0xc] sm:$0xf]
        %v3169 = vld [vmem:[%s2 + $0x10] sm:$0xf]
        %v3170 = vld [vmem:[%s2 + $0x14] sm:$0xf]
        %v3171 = vld [vmem:[%s2 + $0x18] sm:$0xf]
        %v3172 = vld [vmem:[%s2 + $0x1c] sm:$0xf]
        %v3173 = vld [vmem:[%s2 + $0x20] sm:$0xf]
        %v3174 = vld [vmem:[%s2 + $0x24] sm:$0xf]
        %v3175 = vld [vmem:[%s2 + $0x28] sm:$0xf]
        %v3176 = vld [vmem:[%s2 + $0x2c] sm:$0xf]
        %v3177 = vld [vmem:[%s2 + $0x30] sm:$0xf]
        %v3178 = vld [vmem:[%s2 + $0x34] sm:$0xf]
        %v3179 = vld [vmem:[%s2 + $0x38] sm:$0xf]
        %v3180 = vld [vmem:[%s2 + $0x3c] sm:$0xf]
        %v3181 = vld [vmem:[%s2 + $0x40] sm:$0xf]
        %v3182 = vld [vmem:[%s2 + $0x44] sm:$0xf]
        %v3183 = vld [vmem:[%s2 + $0x48] sm:$0xf]
        %v3184 = vld [vmem:[%s2 + $0x4c] sm:$0xf]
        %v3185 = vld [vmem:[%s2 + $0x50] sm:$0xf]
        %v3186 = vld [vmem:[%s2 + $0x54] sm:$0xf]
        %v3187 = vld [vmem:[%s2 + $0x58] sm:$0xf]
        %v3188 = vld [vmem:[%s2 + $0x5c] sm:$0xf]
        %v3189 = vld [vmem:[%s2 + $0x60] sm:$0xf]
        %v3190 = vld [vmem:[%s2 + $0x64] sm:$0xf]
        %v3191 = vld [vmem:[%s2 + $0x68] sm:$0xf]
        %v3192 = vld [vmem:[%s2 + $0x6c] sm:$0xf]
        %v3193 = vld [vmem:[%s2 + $0x70] sm:$0xf]
        %v3194 = vld [vmem:[%s2 + $0x74] sm:$0xf]
        %v3195 = vld [vmem:[%s2 + $0x78] sm:$0xf]
        %v3196 = vld [vmem:[%s2 + $0x7c] sm:$0xf]
        %v3197 = vld [vmem:[%s2 + $0x80] sm:$0xf]
        %v3198 = vld [vmem:[%s2 + $0x84] sm:$0xf]
        %v3199 = vld [vmem:[%s2 + $0x88] sm:$0xf]
        %v3200 = vld [vmem:[%s2 + $0x8c] sm:$0xf]
        %v3201 = vld [vmem:[%s2 + $0x90] sm:$0xf]
        %v3202 = vld [vmem:[%s2 + $0x94] sm:$0xf]
        %v3203 = vld [vmem:[%s2 + $0x98] sm:$0xf]
        %v3204 = vld [vmem:[%s2 + $0x9c] sm:$0xf]
        %v3205 = vld [vmem:[%s2 + $0xa0] sm:$0xf]
        %v3206 = vld [vmem:[%s2 + $0xa4] sm:$0xf]
        %v3207 = vld [vmem:[%s2 + $0xa8] sm:$0xf]
        %v3208 = vld [vmem:[%s2 + $0xac] sm:$0xf]
        %v3209 = vld [vmem:[%s2 + $0xb0] sm:$0xf]
        %v3210 = vld [vmem:[%s2 + $0xb4] sm:$0xf]
        %v3211 = vld [vmem:[%s2 + $0xb8] sm:$0xf]
        %v3212 = vld [vmem:[%s2 + $0xbc] sm:$0xf]
        %v3213 = vld [vmem:[%s2 + $0xc0] sm:$0xf]
        %v3214 = vld [vmem:[%s2 + $0xc4] sm:$0xf]
        %v3215 = vld [vmem:[%s2 + $0xc8] sm:$0xf]
        %v3216 = vld [vmem:[%s2 + $0xcc] sm:$0xf]
        %v3217 = vld [vmem:[%s2 + $0xd0] sm:$0xf]
        %v3218 = vld [vmem:[%s2 + $0xd4] sm:$0xf]
        %v3219 = vld [vmem:[%s2 + $0xd8] sm:$0xf]
        %v3220 = vld [vmem:[%s2 + $0xdc] sm:$0xf]
        %v3221 = vld [vmem:[%s2 + $0xe0] sm:$0xf]
        %v3222 = vld [vmem:[%s2 + $0xe4] sm:$0xf]
        %v3223 = vld [vmem:[%s2 + $0xe8] sm:$0xf]
        %v3224 = vld [vmem:[%s2 + $0xec] sm:$0xf]
        %v3225 = vld [vmem:[%s2 + $0xf0] sm:$0xf]
        %v3226 = vld [vmem:[%s2 + $0xf4] sm:$0xf]
        %v3227 = vld [vmem:[%s2 + $0xf8] sm:$0xf]
        %v3228 = vld [vmem:[%s2 + $0xfc] sm:$0xf]
        %v3229 = vld [vmem:[%s2 + $0x100] sm:$0xf]
        %v3230 = vld [vmem:[%s2 + $0x104] sm:$0xf]
        %v3231 = vld [vmem:[%s2 + $0x108] sm:$0xf]
        %v3232 = vld [vmem:[%s2 + $0x10c] sm:$0xf]
        %v3233 = vld [vmem:[%s2 + $0x110] sm:$0xf]
        %v3234 = vld [vmem:[%s2 + $0x114] sm:$0xf]
        %v3235 = vld [vmem:[%s2 + $0x118] sm:$0xf]
        %v3236 = vld [vmem:[%s2 + $0x11c] sm:$0xf]
        %v3237 = vpack.c.bf16 %v3158, %v3157
        %v3238 = vpack.c.bf16 %v3160, %v3159
        %v3239 = vpack.c.bf16 %v3162, %v3161
        %v3240 = vpack.c.bf16 %v3164, %v3163
        %v3313 = vunpack.c.l.b16 %v3165
        %v3314 = vunpack.c.l.b16 %v3166
        %v3315 = vunpack.c.l.b16 %v3167
        %v3316 = vunpack.c.l.b16 %v3168
        %v3317 = vunpack.c.l.b16 %v3169
        %v3318 = vunpack.c.l.b16 %v3170
        %v3319 = vunpack.c.l.b16 %v3171
        %v3320 = vunpack.c.l.b16 %v3172
        %v3321 = vunpack.c.l.b16 %v3173
        %v3322 = vunpack.c.l.b16 %v3174
        %v3323 = vunpack.c.l.b16 %v3175
        %v3324 = vunpack.c.l.b16 %v3176
        %v3325 = vunpack.c.l.b16 %v3177
        %v3326 = vunpack.c.l.b16 %v3178
        %v3327 = vunpack.c.l.b16 %v3179
        %v3328 = vunpack.c.l.b16 %v3180
        %v3329 = vunpack.c.l.b16 %v3181
        %v3330 = vunpack.c.l.b16 %v3182
        %v3331 = vunpack.c.l.b16 %v3183
        %v3332 = vunpack.c.l.b16 %v3184
        %v3333 = vunpack.c.l.b16 %v3185
        %v3334 = vunpack.c.l.b16 %v3186
        %v3335 = vunpack.c.l.b16 %v3187
        %v3336 = vunpack.c.l.b16 %v3188
        %v3337 = vunpack.c.l.b16 %v3189
        %v3338 = vunpack.c.l.b16 %v3190
        %v3339 = vunpack.c.l.b16 %v3191
        %v3340 = vunpack.c.l.b16 %v3192
        %v3341 = vunpack.c.l.b16 %v3193
        %v3342 = vunpack.c.l.b16 %v3194
        %v3343 = vunpack.c.l.b16 %v3195
        %v3344 = vunpack.c.l.b16 %v3196
        %v3345 = vunpack.c.l.b16 %v3197
        %v3346 = vunpack.c.l.b16 %v3198
        %v3347 = vunpack.c.l.b16 %v3199
        %v3348 = vunpack.c.l.b16 %v3200
        %v3349 = vunpack.c.l.b16 %v3201
        %v3350 = vunpack.c.l.b16 %v3202
        %v3351 = vunpack.c.l.b16 %v3203
        %v3352 = vunpack.c.l.b16 %v3204
        %v3353 = vunpack.c.l.b16 %v3205
        %v3354 = vunpack.c.l.b16 %v3206
        %v3355 = vunpack.c.l.b16 %v3207
        %v3356 = vunpack.c.l.b16 %v3208
        %v3357 = vunpack.c.l.b16 %v3209
        %v3358 = vunpack.c.l.b16 %v3210
        %v3359 = vunpack.c.l.b16 %v3211
        %v3360 = vunpack.c.l.b16 %v3212
        %v3361 = vunpack.c.l.b16 %v3213
        %v3362 = vunpack.c.l.b16 %v3214
        %v3363 = vunpack.c.l.b16 %v3215
        %v3364 = vunpack.c.l.b16 %v3216
        %v3365 = vunpack.c.l.b16 %v3217
        %v3366 = vunpack.c.l.b16 %v3218
        %v3367 = vunpack.c.l.b16 %v3219
        %v3368 = vunpack.c.l.b16 %v3220
        %v3369 = vunpack.c.l.b16 %v3221
        %v3370 = vunpack.c.l.b16 %v3222
        %v3371 = vunpack.c.l.b16 %v3223
        %v3372 = vunpack.c.l.b16 %v3224
        %v3373 = vunpack.c.l.b16 %v3225
        %v3374 = vunpack.c.l.b16 %v3226
        %v3375 = vunpack.c.l.b16 %v3227
        %v3376 = vunpack.c.l.b16 %v3228
        %v3377 = vunpack.c.l.b16 %v3229
        %v3378 = vunpack.c.l.b16 %v3230
        %v3379 = vunpack.c.l.b16 %v3231
        %v3380 = vunpack.c.l.b16 %v3232
        %v3381 = vunpack.c.l.b16 %v3233
        %v3382 = vunpack.c.l.b16 %v3234
        %v3383 = vunpack.c.l.b16 %v3235
        %v3384 = vunpack.c.l.b16 %v3236
        %v3385 = vpack.c.b16 %v3314, %v3313
        %v3386 = vpack.c.b16 %v3316, %v3315
        %v3387 = vpack.c.b16 %v3318, %v3317
        %v3388 = vpack.c.b16 %v3320, %v3319
        %v3389 = vpack.c.b16 %v3322, %v3321
        %v3390 = vpack.c.b16 %v3324, %v3323
        %v3391 = vpack.c.b16 %v3326, %v3325
        %v3392 = vpack.c.b16 %v3328, %v3327
        %v3393 = vpack.c.b16 %v3330, %v3329
        %v3394 = vpack.c.b16 %v3332, %v3331
        %v3395 = vpack.c.b16 %v3334, %v3333
        %v3396 = vpack.c.b16 %v3336, %v3335
        %v3397 = vpack.c.b16 %v3338, %v3337
        %v3398 = vpack.c.b16 %v3340, %v3339
        %v3399 = vpack.c.b16 %v3342, %v3341
        %v3400 = vpack.c.b16 %v3344, %v3343
        %v3401 = vpack.c.b16 %v3346, %v3345
        %v3402 = vpack.c.b16 %v3348, %v3347
        %v3403 = vpack.c.b16 %v3350, %v3349
        %v3404 = vpack.c.b16 %v3352, %v3351
        %v3405 = vpack.c.b16 %v3354, %v3353
        %v3406 = vpack.c.b16 %v3356, %v3355
        %v3407 = vpack.c.b16 %v3358, %v3357
        %v3408 = vpack.c.b16 %v3360, %v3359
        %v3409 = vpack.c.b16 %v3362, %v3361
        %v3410 = vpack.c.b16 %v3364, %v3363
        %v3411 = vpack.c.b16 %v3366, %v3365
        %v3412 = vpack.c.b16 %v3368, %v3367
        %v3413 = vpack.c.b16 %v3370, %v3369
        %v3414 = vpack.c.b16 %v3372, %v3371
        %v3415 = vpack.c.b16 %v3374, %v3373
        %v3416 = vpack.c.b16 %v3376, %v3375
        %v3417 = vpack.c.b16 %v3378, %v3377
        %v3418 = vpack.c.b16 %v3380, %v3379
        %v3419 = vpack.c.b16 %v3382, %v3381
        %v3420 = vpack.c.b16 %v3384, %v3383
        %vm3421 = vcmask 523264
        %v3423 = vsel %vm3421, %v3385, 0
        %v3426 = vsel %vm3421, %v3386, 0
        %v3429 = vsel %vm3421, %v3387, 0
        %v3432 = vsel %vm3421, %v3388, 0
        %v3435 = vsel %vm3421, %v3389, 0
        %v3438 = vsel %vm3421, %v3390, 0
        %v3441 = vsel %vm3421, %v3391, 0
        %v3444 = vsel %vm3421, %v3392, 0
        %v3447 = vsel %vm3421, %v3393, 0
        %v3450 = vsel %vm3421, %v3394, 0
        %v3453 = vsel %vm3421, %v3395, 0
        %v3456 = vsel %vm3421, %v3396, 0
        %v3459 = vsel %vm3421, %v3397, 0
        %v3462 = vsel %vm3421, %v3398, 0
        %v3465 = vsel %vm3421, %v3399, 0
        %v3468 = vsel %vm3421, %v3400, 0
        %v3471 = vsel %vm3421, %v3401, 0
        %v3474 = vsel %vm3421, %v3402, 0
        %v3477 = vsel %vm3421, %v3403, 0
        %v3480 = vsel %vm3421, %v3404, 0
        %v3483 = vsel %vm3421, %v3405, 0
        %v3486 = vsel %vm3421, %v3406, 0
        %v3489 = vsel %vm3421, %v3407, 0
        %v3492 = vsel %vm3421, %v3408, 0
        %v3495 = vsel %vm3421, %v3409, 0
        %v3498 = vsel %vm3421, %v3410, 0
        %v3501 = vsel %vm3421, %v3411, 0
        %v3504 = vsel %vm3421, %v3412, 0
        %v3507 = vsel %vm3421, %v3413, 0
        %v3510 = vsel %vm3421, %v3414, 0
        %v3513 = vsel %vm3421, %v3415, 0
        %v3516 = vsel %vm3421, %v3416, 0
        %v3519 = vsel %vm3421, %v3417, 0
        %v3522 = vsel %vm3421, %v3418, 0
        %v3525 = vsel %vm3421, %v3419, 0
        %v3528 = vsel %vm3421, %v3420, 0
        %3530 = vmatprep.subr.bf16.mxu0 0
        %3531 = vmatpush1.bf16.msra.mxu0 %v3237
        %3532 = vmatprep.subr.bf16.mxu0 0
        %3533 = vmatpush1.bf16.msra.mxu0 %v3238
        %3534 = vmatprep.subr.bf16.mxu0 0
        %3535 = vmatpush1.bf16.msra.mxu0 %v3239
        %3536 = vmatprep.subr.bf16.mxu0 0
        %3537 = vmatpush1.bf16.msra.mxu0 %v3240
        %3538 = vmatprep.subr.bf16.mxu0 0
        %3539 = vmatpush1.bf16.msra.mxu0 0
        %3540 = vmatprep.subr.bf16.mxu0 0
        %3541 = vmatpush1.bf16.msra.mxu0 0
        %3542 = vmatprep.subr.bf16.mxu0 0
        %3543 = vmatpush1.bf16.msra.mxu0 0
        %3544 = vmatprep.subr.bf16.mxu0 0
        %3545 = vmatpush1.bf16.msra.mxu0 0
        %3546 = vmatprep.subr.bf16.mxu0 0
        %3547 = vmatpush1.bf16.msra.mxu0 0
        %3548 = vmatprep.subr.bf16.mxu0 0
        %3549 = vmatpush1.bf16.msra.mxu0 0
        %3550 = vmatprep.subr.bf16.mxu0 0
        %3551 = vmatpush1.bf16.msra.mxu0 0
        %3552 = vmatprep.subr.bf16.mxu0 0
        %3553 = vmatpush1.bf16.msra.mxu0 0
        %3554 = vmatprep.subr.bf16.mxu0 0
        %3555 = vmatpush1.bf16.msra.mxu0 0
        %3556 = vmatprep.subr.bf16.mxu0 0
        %3557 = vmatpush1.bf16.msra.mxu0 0
        %3558 = vmatprep.subr.bf16.mxu0 0
        %3559 = vmatpush1.bf16.msra.mxu0 0
        %3560 = vmatprep.subr.bf16.mxu0 0
        %3561 = vmatpush1.bf16.msra.mxu0 0
        %3562 = vmatprep.mubr.bf16.mxu0 0
        %3563 = vmatmul.mubr.bf16.gmra.mrb[0].mxu0 %v3423
        %v3564 = vpop.f32.mrb[0].mxu0
        %v3565 = vadd.f32 0.0, %v3564
        %v3566 = vpop.f32.mrb[0].mxu0
        %v3567 = vpop.f32.mrb[0].mxu0
        %v3568 = vadd.f32 0.0, %v3567
        %v3569 = vpop.f32.mrb[0].mxu0
        %3570 = vmatprep.mubr.bf16.mxu0 0
        %3571 = vmatmul.mubr.bf16.gmra.mrb[0].mxu0 %v3426
        %v3572 = vpop.f32.mrb[0].mxu0
        %v3573 = vadd.f32 0.0, %v3572
        %v3574 = vpop.f32.mrb[0].mxu0
        %v3575 = vpop.f32.mrb[0].mxu0
        %v3576 = vadd.f32 0.0, %v3575
        %v3577 = vpop.f32.mrb[0].mxu0
        %3578 = vmatprep.mubr.bf16.mxu0 0
        %3579 = vmatmul.mubr.bf16.gmra.mrb[0].mxu0 %v3429
        %v3580 = vpop.f32.mrb[0].mxu0
        %v3581 = vadd.f32 0.0, %v3580
        %v3582 = vpop.f32.mrb[0].mxu0
        %v3583 = vpop.f32.mrb[0].mxu0
        %v3584 = vadd.f32 0.0, %v3583
        %v3585 = vpop.f32.mrb[0].mxu0
        %3586 = vmatprep.mubr.bf16.mxu0 0
        %3587 = vmatmul.mubr.bf16.gmra.mrb[0].mxu0 %v3432
        %v3588 = vpop.f32.mrb[0].mxu0
        %v3589 = vadd.f32 0.0, %v3588
        %v3590 = vpop.f32.mrb[0].mxu0
        %v3591 = vpop.f32.mrb[0].mxu0
        %v3592 = vadd.f32 0.0, %v3591
        %v3593 = vpop.f32.mrb[0].mxu0
        %3594 = vmatprep.mubr.bf16.mxu0 0
        %3595 = vmatmul.mubr.bf16.gmra.mrb[0].mxu0 %v3435
        %v3596 = vpop.f32.mrb[0].mxu0
        %v3597 = vadd.f32 0.0, %v3596
        %v3598 = vpop.f32.mrb[0].mxu0
        %v3599 = vpop.f32.mrb[0].mxu0
        %v3600 = vadd.f32 0.0, %v3599
        %v3601 = vpop.f32.mrb[0].mxu0
        %3602 = vmatprep.mubr.bf16.mxu0 0
        %3603 = vmatmul.mubr.bf16.gmra.mrb[0].mxu0 %v3438
        %v3604 = vpop.f32.mrb[0].mxu0
        %v3605 = vadd.f32 0.0, %v3604
        %v3606 = vpop.f32.mrb[0].mxu0
        %v3607 = vpop.f32.mrb[0].mxu0
        %v3608 = vadd.f32 0.0, %v3607
        %v3609 = vpop.f32.mrb[0].mxu0
        %3610 = vmatprep.mubr.bf16.mxu0 0
        %3611 = vmatmul.mubr.bf16.gmra.mrb[0].mxu0 %v3441
        %v3612 = vpop.f32.mrb[0].mxu0
        %v3613 = vadd.f32 0.0, %v3612
        %v3614 = vpop.f32.mrb[0].mxu0
        %v3615 = vpop.f32.mrb[0].mxu0
        %v3616 = vadd.f32 0.0, %v3615
        %v3617 = vpop.f32.mrb[0].mxu0
        %3618 = vmatprep.mubr.bf16.mxu0 0
        %3619 = vmatmul.mubr.bf16.gmra.mrb[0].mxu0 %v3444
        %v3620 = vpop.f32.mrb[0].mxu0
        %v3621 = vadd.f32 0.0, %v3620
        %v3622 = vpop.f32.mrb[0].mxu0
        %v3623 = vpop.f32.mrb[0].mxu0
        %v3624 = vadd.f32 0.0, %v3623
        %v3625 = vpop.f32.mrb[0].mxu0
        %3626 = vmatprep.mubr.bf16.mxu0 0
        %3627 = vmatmul.mubr.bf16.gmra.mrb[0].mxu0 %v3447
        %v3628 = vpop.f32.mrb[0].mxu0
        %v3629 = vadd.f32 0.0, %v3628
        %v3630 = vpop.f32.mrb[0].mxu0
        %v3631 = vpop.f32.mrb[0].mxu0
        %v3632 = vadd.f32 0.0, %v3631
        %v3633 = vpop.f32.mrb[0].mxu0
        %3634 = vmatprep.mubr.bf16.mxu0 0
        %3635 = vmatmul.mubr.bf16.gmra.mrb[0].mxu0 %v3450
        %v3636 = vpop.f32.mrb[0].mxu0
        %v3637 = vadd.f32 0.0, %v3636
        %v3638 = vpop.f32.mrb[0].mxu0
        %v3639 = vpop.f32.mrb[0].mxu0
        %v3640 = vadd.f32 0.0, %v3639
        %v3641 = vpop.f32.mrb[0].mxu0
        %3642 = vmatprep.mubr.bf16.mxu0 0
        %3643 = vmatmul.mubr.bf16.gmra.mrb[0].mxu0 %v3453
        %v3644 = vpop.f32.mrb[0].mxu0
        %v3645 = vadd.f32 0.0, %v3644
        %v3646 = vpop.f32.mrb[0].mxu0
        %v3647 = vpop.f32.mrb[0].mxu0
        %v3648 = vadd.f32 0.0, %v3647
        %v3649 = vpop.f32.mrb[0].mxu0
        %3650 = vmatprep.mubr.bf16.mxu0 0
        %3651 = vmatmul.mubr.bf16.gmra.mrb[0].mxu0 %v3456
        %v3652 = vpop.f32.mrb[0].mxu0
        %v3653 = vadd.f32 0.0, %v3652
        %v3654 = vpop.f32.mrb[0].mxu0
        %v3655 = vpop.f32.mrb[0].mxu0
        %v3656 = vadd.f32 0.0, %v3655
        %v3657 = vpop.f32.mrb[0].mxu0
        %3658 = vmatprep.mubr.bf16.mxu0 0
        %3659 = vmatmul.mubr.bf16.gmra.mrb[0].mxu0 %v3459
        %v3660 = vpop.f32.mrb[0].mxu0
        %v3661 = vadd.f32 0.0, %v3660
        %v3662 = vpop.f32.mrb[0].mxu0
        %v3663 = vpop.f32.mrb[0].mxu0
        %v3664 = vadd.f32 0.0, %v3663
        %v3665 = vpop.f32.mrb[0].mxu0
        %3666 = vmatprep.mubr.bf16.mxu0 0
        %3667 = vmatmul.mubr.bf16.gmra.mrb[0].mxu0 %v3462
        %v3668 = vpop.f32.mrb[0].mxu0
        %v3669 = vadd.f32 0.0, %v3668
        %v3670 = vpop.f32.mrb[0].mxu0
        %v3671 = vpop.f32.mrb[0].mxu0
        %v3672 = vadd.f32 0.0, %v3671
        %v3673 = vpop.f32.mrb[0].mxu0
        %3674 = vmatprep.mubr.bf16.mxu0 0
        %3675 = vmatmul.mubr.bf16.gmra.mrb[0].mxu0 %v3465
        %v3676 = vpop.f32.mrb[0].mxu0
        %v3677 = vadd.f32 0.0, %v3676
        %v3678 = vpop.f32.mrb[0].mxu0
        %v3679 = vpop.f32.mrb[0].mxu0
        %v3680 = vadd.f32 0.0, %v3679
        %v3681 = vpop.f32.mrb[0].mxu0
        %3682 = vmatprep.mubr.bf16.mxu0 0
        %3683 = vmatmul.mubr.bf16.gmra.mrb[0].mxu0 %v3468
        %v3684 = vpop.f32.mrb[0].mxu0
        %v3685 = vadd.f32 0.0, %v3684
        %v3686 = vpop.f32.mrb[0].mxu0
        %v3687 = vpop.f32.mrb[0].mxu0
        %v3688 = vadd.f32 0.0, %v3687
        %v3689 = vpop.f32.mrb[0].mxu0
        %3690 = vmatprep.mubr.bf16.mxu0 0
        %3691 = vmatmul.mubr.bf16.gmra.mrb[0].mxu0 %v3471
        %v3692 = vpop.f32.mrb[0].mxu0
        %v3693 = vadd.f32 0.0, %v3692
        %v3694 = vpop.f32.mrb[0].mxu0
        %v3695 = vpop.f32.mrb[0].mxu0
        %v3696 = vadd.f32 0.0, %v3695
        %v3697 = vpop.f32.mrb[0].mxu0
        %3698 = vmatprep.mubr.bf16.mxu0 0
        %3699 = vmatmul.mubr.bf16.gmra.mrb[0].mxu0 %v3474
        %v3700 = vpop.f32.mrb[0].mxu0
        %v3701 = vadd.f32 0.0, %v3700
        %v3702 = vpop.f32.mrb[0].mxu0
        %v3703 = vpop.f32.mrb[0].mxu0
        %v3704 = vadd.f32 0.0, %v3703
        %v3705 = vpop.f32.mrb[0].mxu0
        %3706 = vmatprep.mubr.bf16.mxu0 0
        %3707 = vmatmul.mubr.bf16.gmra.mrb[0].mxu0 %v3477
        %v3708 = vpop.f32.mrb[0].mxu0
        %v3709 = vadd.f32 0.0, %v3708
        %v3710 = vpop.f32.mrb[0].mxu0
        %v3711 = vpop.f32.mrb[0].mxu0
        %v3712 = vadd.f32 0.0, %v3711
        %v3713 = vpop.f32.mrb[0].mxu0
        %3714 = vmatprep.mubr.bf16.mxu0 0
        %3715 = vmatmul.mubr.bf16.gmra.mrb[0].mxu0 %v3480
        %v3716 = vpop.f32.mrb[0].mxu0
        %v3717 = vadd.f32 0.0, %v3716
        %v3718 = vpop.f32.mrb[0].mxu0
        %v3719 = vpop.f32.mrb[0].mxu0
        %v3720 = vadd.f32 0.0, %v3719
        %v3721 = vpop.f32.mrb[0].mxu0
        %3722 = vmatprep.mubr.bf16.mxu0 0
        %3723 = vmatmul.mubr.bf16.gmra.mrb[0].mxu0 %v3483
        %v3724 = vpop.f32.mrb[0].mxu0
        %v3725 = vadd.f32 0.0, %v3724
        %v3726 = vpop.f32.mrb[0].mxu0
        %v3727 = vpop.f32.mrb[0].mxu0
        %v3728 = vadd.f32 0.0, %v3727
        %v3729 = vpop.f32.mrb[0].mxu0
        %3730 = vmatprep.mubr.bf16.mxu0 0
        %3731 = vmatmul.mubr.bf16.gmra.mrb[0].mxu0 %v3486
        %v3732 = vpop.f32.mrb[0].mxu0
        %v3733 = vadd.f32 0.0, %v3732
        %v3734 = vpop.f32.mrb[0].mxu0
        %v3735 = vpop.f32.mrb[0].mxu0
        %v3736 = vadd.f32 0.0, %v3735
        %v3737 = vpop.f32.mrb[0].mxu0
        %3738 = vmatprep.mubr.bf16.mxu0 0
        %3739 = vmatmul.mubr.bf16.gmra.mrb[0].mxu0 %v3489
        %v3740 = vpop.f32.mrb[0].mxu0
        %v3741 = vadd.f32 0.0, %v3740
        %v3742 = vpop.f32.mrb[0].mxu0
        %v3743 = vpop.f32.mrb[0].mxu0
        %v3744 = vadd.f32 0.0, %v3743
        %v3745 = vpop.f32.mrb[0].mxu0
        %3746 = vmatprep.mubr.bf16.mxu0 0
        %3747 = vmatmul.mubr.bf16.gmra.mrb[0].mxu0 %v3492
        %v3748 = vpop.f32.mrb[0].mxu0
        %v3749 = vadd.f32 0.0, %v3748
        %v3750 = vpop.f32.mrb[0].mxu0
        %v3751 = vpop.f32.mrb[0].mxu0
        %v3752 = vadd.f32 0.0, %v3751
        %v3753 = vpop.f32.mrb[0].mxu0
        %3754 = vmatprep.mubr.bf16.mxu0 0
        %3755 = vmatmul.mubr.bf16.gmra.mrb[0].mxu0 %v3495
        %v3756 = vpop.f32.mrb[0].mxu0
        %v3757 = vadd.f32 0.0, %v3756
        %v3758 = vpop.f32.mrb[0].mxu0
        %v3759 = vpop.f32.mrb[0].mxu0
        %v3760 = vadd.f32 0.0, %v3759
        %v3761 = vpop.f32.mrb[0].mxu0
        %3762 = vmatprep.mubr.bf16.mxu0 0
        %3763 = vmatmul.mubr.bf16.gmra.mrb[0].mxu0 %v3498
        %v3764 = vpop.f32.mrb[0].mxu0
        %v3765 = vadd.f32 0.0, %v3764
        %v3766 = vpop.f32.mrb[0].mxu0
        %v3767 = vpop.f32.mrb[0].mxu0
        %v3768 = vadd.f32 0.0, %v3767
        %v3769 = vpop.f32.mrb[0].mxu0
        %3770 = vmatprep.mubr.bf16.mxu0 0
        %3771 = vmatmul.mubr.bf16.gmra.mrb[0].mxu0 %v3501
        %v3772 = vpop.f32.mrb[0].mxu0
        %v3773 = vadd.f32 0.0, %v3772
        %v3774 = vpop.f32.mrb[0].mxu0
        %v3775 = vpop.f32.mrb[0].mxu0
        %v3776 = vadd.f32 0.0, %v3775
        %v3777 = vpop.f32.mrb[0].mxu0
        %3778 = vmatprep.mubr.bf16.mxu0 0
        %3779 = vmatmul.mubr.bf16.gmra.mrb[0].mxu0 %v3504
        %v3780 = vpop.f32.mrb[0].mxu0
        %v3781 = vadd.f32 0.0, %v3780
        %v3782 = vpop.f32.mrb[0].mxu0
        %v3783 = vpop.f32.mrb[0].mxu0
        %v3784 = vadd.f32 0.0, %v3783
        %v3785 = vpop.f32.mrb[0].mxu0
        %3786 = vmatprep.mubr.bf16.mxu0 0
        %3787 = vmatmul.mubr.bf16.gmra.mrb[0].mxu0 %v3507
        %v3788 = vpop.f32.mrb[0].mxu0
        %v3789 = vadd.f32 0.0, %v3788
        %v3790 = vpop.f32.mrb[0].mxu0
        %v3791 = vpop.f32.mrb[0].mxu0
        %v3792 = vadd.f32 0.0, %v3791
        %v3793 = vpop.f32.mrb[0].mxu0
        %3794 = vmatprep.mubr.bf16.mxu0 0
        %3795 = vmatmul.mubr.bf16.gmra.mrb[0].mxu0 %v3510
        %v3796 = vpop.f32.mrb[0].mxu0
        %v3797 = vadd.f32 0.0, %v3796
        %v3798 = vpop.f32.mrb[0].mxu0
        %v3799 = vpop.f32.mrb[0].mxu0
        %v3800 = vadd.f32 0.0, %v3799
        %v3801 = vpop.f32.mrb[0].mxu0
        %3802 = vmatprep.mubr.bf16.mxu0 0
        %3803 = vmatmul.mubr.bf16.gmra.mrb[0].mxu0 %v3513
        %v3804 = vpop.f32.mrb[0].mxu0
        %v3805 = vadd.f32 0.0, %v3804
        %v3806 = vpop.f32.mrb[0].mxu0
        %v3807 = vpop.f32.mrb[0].mxu0
        %v3808 = vadd.f32 0.0, %v3807
        %v3809 = vpop.f32.mrb[0].mxu0
        %3810 = vmatprep.mubr.bf16.mxu0 0
        %3811 = vmatmul.mubr.bf16.gmra.mrb[0].mxu0 %v3516
        %v3812 = vpop.f32.mrb[0].mxu0
        %v3813 = vadd.f32 0.0, %v3812
        %v3814 = vpop.f32.mrb[0].mxu0
        %v3815 = vpop.f32.mrb[0].mxu0
        %v3816 = vadd.f32 0.0, %v3815
        %v3817 = vpop.f32.mrb[0].mxu0
        %3818 = vmatprep.mubr.bf16.mxu0 0
        %3819 = vmatmul.mubr.bf16.gmra.mrb[0].mxu0 %v3519
        %v3820 = vpop.f32.mrb[0].mxu0
        %v3821 = vadd.f32 0.0, %v3820
        %v3822 = vpop.f32.mrb[0].mxu0
        %v3823 = vpop.f32.mrb[0].mxu0
        %v3824 = vadd.f32 0.0, %v3823
        %v3825 = vpop.f32.mrb[0].mxu0
        %3826 = vmatprep.mubr.bf16.mxu0 0
        %3827 = vmatmul.mubr.bf16.gmra.mrb[0].mxu0 %v3522
        %v3828 = vpop.f32.mrb[0].mxu0
        %v3829 = vadd.f32 0.0, %v3828
        %v3830 = vpop.f32.mrb[0].mxu0
        %v3831 = vpop.f32.mrb[0].mxu0
        %v3832 = vadd.f32 0.0, %v3831
        %v3833 = vpop.f32.mrb[0].mxu0
        %3834 = vmatprep.mubr.bf16.mxu0 0
        %3835 = vmatmul.mubr.bf16.gmra.mrb[0].mxu0 %v3525
        %v3836 = vpop.f32.mrb[0].mxu0
        %v3837 = vadd.f32 0.0, %v3836
        %v3838 = vpop.f32.mrb[0].mxu0
        %v3839 = vpop.f32.mrb[0].mxu0
        %v3840 = vadd.f32 0.0, %v3839
        %v3841 = vpop.f32.mrb[0].mxu0
        %3842 = vmatprep.mubr.bf16.mxu0 0
        %3843 = vmatmul.mubr.bf16.gmra.mrb[0].mxu0 %v3528
        %v3844 = vpop.f32.mrb[0].mxu0
        %v3845 = vadd.f32 0.0, %v3844
        %v3846 = vpop.f32.mrb[0].mxu0
        %v3847 = vpop.f32.mrb[0].mxu0
        %v3848 = vadd.f32 0.0, %v3847
        %v3849 = vpop.f32.mrb[0].mxu0
        %3850 = vdwg.mxu0
        %v3851 = vpack.c.bf16 %v3568, %v3565
        %v3852 = vpack.c.bf16 %v3576, %v3573
        %v3853 = vpack.c.bf16 %v3584, %v3581
        %v3854 = vpack.c.bf16 %v3592, %v3589
        %v3855 = vpack.c.bf16 %v3600, %v3597
        %v3856 = vpack.c.bf16 %v3608, %v3605
        %v3857 = vpack.c.bf16 %v3616, %v3613
        %v3858 = vpack.c.bf16 %v3624, %v3621
        %v3859 = vpack.c.bf16 %v3632, %v3629
        %v3860 = vpack.c.bf16 %v3640, %v3637
        %v3861 = vpack.c.bf16 %v3648, %v3645
        %v3862 = vpack.c.bf16 %v3656, %v3653
        %v3863 = vpack.c.bf16 %v3664, %v3661
        %v3864 = vpack.c.bf16 %v3672, %v3669
        %v3865 = vpack.c.bf16 %v3680, %v3677
        %v3866 = vpack.c.bf16 %v3688, %v3685
        %v3867 = vpack.c.bf16 %v3696, %v3693
        %v3868 = vpack.c.bf16 %v3704, %v3701
        %v3869 = vpack.c.bf16 %v3712, %v3709
        %v3870 = vpack.c.bf16 %v3720, %v3717
        %v3871 = vpack.c.bf16 %v3728, %v3725
        %v3872 = vpack.c.bf16 %v3736, %v3733
        %v3873 = vpack.c.bf16 %v3744, %v3741
        %v3874 = vpack.c.bf16 %v3752, %v3749
        %v3875 = vpack.c.bf16 %v3760, %v3757
        %v3876 = vpack.c.bf16 %v3768, %v3765
        %v3877 = vpack.c.bf16 %v3776, %v3773
        %v3878 = vpack.c.bf16 %v3784, %v3781
        %v3879 = vpack.c.bf16 %v3792, %v3789
        %v3880 = vpack.c.bf16 %v3800, %v3797
        %v3881 = vpack.c.bf16 %v3808, %v3805
        %v3882 = vpack.c.bf16 %v3816, %v3813
        %v3883 = vpack.c.bf16 %v3824, %v3821
        %v3884 = vpack.c.bf16 %v3832, %v3829
        %v3885 = vpack.c.bf16 %v3840, %v3837
        %v3886 = vpack.c.bf16 %v3848, %v3845
        %3887 = vst [vmem:[#allocation2] sm:$0xff] %v3851
        %3888 = vst [vmem:[#allocation2 + $0x48] sm:$0xff] %v3852
        %3889 = vst [vmem:[#allocation2 + $0x90] sm:$0xff] %v3853
        %3890 = vst [vmem:[#allocation2 + $0xd8] sm:$0xff] %v3854
        %3891 = vst [vmem:[#allocation2 + $0x8] sm:$0xff] %v3855
        %3892 = vst [vmem:[#allocation2 + $0x50] sm:$0xff] %v3856
        %3893 = vst [vmem:[#allocation2 + $0x98] sm:$0xff] %v3857
        %3894 = vst [vmem:[#allocation2 + $0xe0] sm:$0xff] %v3858
        %3895 = vst [vmem:[#allocation2 + $0x10] sm:$0xff] %v3859
        %3896 = vst [vmem:[#allocation2 + $0x58] sm:$0xff] %v3860
        %3897 = vst [vmem:[#allocation2 + $0xa0] sm:$0xff] %v3861
        %3898 = vst [vmem:[#allocation2 + $0xe8] sm:$0xff] %v3862
        %3899 = vst [vmem:[#allocation2 + $0x18] sm:$0xff] %v3863
        %3900 = vst [vmem:[#allocation2 + $0x60] sm:$0xff] %v3864
        %3901 = vst [vmem:[#allocation2 + $0xa8] sm:$0xff] %v3865
        %3902 = vst [vmem:[#allocation2 + $0xf0] sm:$0xff] %v3866
        %3903 = vst [vmem:[#allocation2 + $0x20] sm:$0xff] %v3867
        %3904 = vst [vmem:[#allocation2 + $0x68] sm:$0xff] %v3868
        %3905 = vst [vmem:[#allocation2 + $0xb0] sm:$0xff] %v3869
        %3906 = vst [vmem:[#allocation2 + $0xf8] sm:$0xff] %v3870
        %3907 = vst [vmem:[#allocation2 + $0x28] sm:$0xff] %v3871
        %3908 = vst [vmem:[#allocation2 + $0x70] sm:$0xff] %v3872
        %3909 = vst [vmem:[#allocation2 + $0xb8] sm:$0xff] %v3873
        %3910 = vst [vmem:[#allocation2 + $0x100] sm:$0xff] %v3874
        %3911 = vst [vmem:[#allocation2 + $0x30] sm:$0xff] %v3875
        %3912 = vst [vmem:[#allocation2 + $0x78] sm:$0xff] %v3876
        %3913 = vst [vmem:[#allocation2 + $0xc0] sm:$0xff] %v3877
        %3914 = vst [vmem:[#allocation2 + $0x108] sm:$0xff] %v3878
        %3915 = vst [vmem:[#allocation2 + $0x38] sm:$0xff] %v3879
        %3916 = vst [vmem:[#allocation2 + $0x80] sm:$0xff] %v3880
        %3917 = vst [vmem:[#allocation2 + $0xc8] sm:$0xff] %v3881
        %3918 = vst [vmem:[#allocation2 + $0x110] sm:$0xff] %v3882
        %3919 = vst [vmem:[#allocation2 + $0x40] sm:$0xff] %v3883
        %3920 = vst [vmem:[#allocation2 + $0x88] sm:$0xff] %v3884
        %3921 = vst [vmem:[#allocation2 + $0xd0] sm:$0xff] %v3885
        %3922 = vst [vmem:[#allocation2 + $0x118] sm:$0xff] %v3886
        %v3923 = vld [vmem:[#allocation2] sm:$0xff]
        %v3924 = vld [vmem:[#allocation2 + $0x8] sm:$0xff]
        %v3925 = vld [vmem:[#allocation2 + $0x10] sm:$0xff]
        %v3926 = vld [vmem:[#allocation2 + $0x18] sm:$0xff]
        %v3927 = vld [vmem:[#allocation2 + $0x20] sm:$0xff]
        %v3928 = vld [vmem:[#allocation2 + $0x28] sm:$0xff]
        %v3929 = vld [vmem:[#allocation2 + $0x30] sm:$0xff]
        %v3930 = vld [vmem:[#allocation2 + $0x38] sm:$0xff]
        %v3931 = vld [vmem:[#allocation2 + $0x40] sm:$0xff]
        %v3932 = vld [vmem:[#allocation2 + $0x48] sm:$0xff]
        %v3933 = vld [vmem:[#allocation2 + $0x50] sm:$0xff]
        %v3934 = vld [vmem:[#allocation2 + $0x58] sm:$0xff]
        %v3935 = vld [vmem:[#allocation2 + $0x60] sm:$0xff]
        %v3936 = vld [vmem:[#allocation2 + $0x68] sm:$0xff]
        %v3937 = vld [vmem:[#allocation2 + $0x70] sm:$0xff]
        %v3938 = vld [vmem:[#allocation2 + $0x78] sm:$0xff]
        %v3939 = vld [vmem:[#allocation2 + $0x80] sm:$0xff]
        %v3940 = vld [vmem:[#allocation2 + $0x88] sm:$0xff]
        %v3941 = vld [vmem:[#allocation2 + $0x90] sm:$0xff]
        %v3942 = vld [vmem:[#allocation2 + $0x98] sm:$0xff]
        %v3943 = vld [vmem:[#allocation2 + $0xa0] sm:$0xff]
        %v3944 = vld [vmem:[#allocation2 + $0xa8] sm:$0xff]
        %v3945 = vld [vmem:[#allocation2 + $0xb0] sm:$0xff]
        %v3946 = vld [vmem:[#allocation2 + $0xb8] sm:$0xff]
        %v3947 = vld [vmem:[#allocation2 + $0xc0] sm:$0xff]
        %v3948 = vld [vmem:[#allocation2 + $0xc8] sm:$0xff]
        %v3949 = vld [vmem:[#allocation2 + $0xd0] sm:$0xff]
        %v3950 = vld [vmem:[#allocation2 + $0xd8] sm:$0xff]
        %v3951 = vld [vmem:[#allocation2 + $0xe0] sm:$0xff]
        %v3952 = vld [vmem:[#allocation2 + $0xe8] sm:$0xff]
        %v3953 = vld [vmem:[#allocation2 + $0xf0] sm:$0xff]
        %v3954 = vld [vmem:[#allocation2 + $0xf8] sm:$0xff]
        %v3955 = vld [vmem:[#allocation2 + $0x100] sm:$0xff]
        %v3956 = vld [vmem:[#allocation2 + $0x108] sm:$0xff]
        %v3957 = vld [vmem:[#allocation2 + $0x110] sm:$0xff]
        %v3958 = vld [vmem:[#allocation2 + $0x118] sm:$0xff]
        %v3959 = vld [vmem:[#allocation9] sm:$0xf]
        %v3960 = vld [vmem:[#allocation9 + $0x4] sm:$0xf]
        %v3961 = vld [vmem:[#allocation9 + $0x8] sm:$0xf]
        %v3962 = vld [vmem:[#allocation9 + $0xc] sm:$0xf]
        %v3963 = vld [vmem:[#allocation9 + $0x10] sm:$0xf]
        %v3964 = vld [vmem:[#allocation9 + $0x14] sm:$0xf]
        %v3965 = vld [vmem:[#allocation9 + $0x18] sm:$0xf]
        %v3966 = vld [vmem:[#allocation9 + $0x1c] sm:$0xf]
        %v3967 = vld [vmem:[#allocation9 + $0x20] sm:$0xf]
        %v3968 = vld [vmem:[#allocation9 + $0x24] sm:$0xf]
        %v3969 = vld [vmem:[#allocation9 + $0x28] sm:$0xf]
        %v3970 = vld [vmem:[#allocation9 + $0x2c] sm:$0xf]
        %v3971 = vld [vmem:[#allocation9 + $0x30] sm:$0xf]
        %v3972 = vld [vmem:[#allocation9 + $0x34] sm:$0xf]
        %v3973 = vld [vmem:[#allocation9 + $0x38] sm:$0xf]
        %v3974 = vld [vmem:[#allocation9 + $0x3c] sm:$0xf]
        %v3975 = vld [vmem:[#allocation9 + $0x40] sm:$0xf]
        %v3976 = vld [vmem:[#allocation9 + $0x44] sm:$0xf]
        %v3977 = vld [vmem:[#allocation9 + $0x48] sm:$0xf]
        %v3978 = vld [vmem:[#allocation9 + $0x4c] sm:$0xf]
        %v3979 = vld [vmem:[#allocation9 + $0x50] sm:$0xf]
        %v3980 = vld [vmem:[#allocation9 + $0x54] sm:$0xf]
        %v3981 = vld [vmem:[#allocation9 + $0x58] sm:$0xf]
        %v3982 = vld [vmem:[#allocation9 + $0x5c] sm:$0xf]
        %v3983 = vld [vmem:[#allocation9 + $0x60] sm:$0xf]
        %v3984 = vld [vmem:[#allocation9 + $0x64] sm:$0xf]
        %v3985 = vld [vmem:[#allocation9 + $0x68] sm:$0xf]
        %v3986 = vld [vmem:[#allocation9 + $0x6c] sm:$0xf]
        %v3987 = vld [vmem:[#allocation9 + $0x70] sm:$0xf]
        %v3988 = vld [vmem:[#allocation9 + $0x74] sm:$0xf]
        %v3989 = vld [vmem:[#allocation9 + $0x78] sm:$0xf]
        %v3990 = vld [vmem:[#allocation9 + $0x7c] sm:$0xf]
        %v3991 = vld [vmem:[#allocation9 + $0x80] sm:$0xf]
        %v3992 = vld [vmem:[#allocation9 + $0x84] sm:$0xf]
        %v3993 = vld [vmem:[#allocation9 + $0x88] sm:$0xf]
        %v3994 = vld [vmem:[#allocation9 + $0x8c] sm:$0xf]
        %v3995 = vld [vmem:[#allocation9 + $0x90] sm:$0xf]
        %v3996 = vld [vmem:[#allocation9 + $0x94] sm:$0xf]
        %v3997 = vld [vmem:[#allocation9 + $0x98] sm:$0xf]
        %v3998 = vld [vmem:[#allocation9 + $0x9c] sm:$0xf]
        %v3999 = vld [vmem:[#allocation9 + $0xa0] sm:$0xf]
        %v4000 = vld [vmem:[#allocation9 + $0xa4] sm:$0xf]
        %v4001 = vld [vmem:[#allocation9 + $0xa8] sm:$0xf]
        %v4002 = vld [vmem:[#allocation9 + $0xac] sm:$0xf]
        %v4003 = vld [vmem:[#allocation9 + $0xb0] sm:$0xf]
        %v4004 = vld [vmem:[#allocation9 + $0xb4] sm:$0xf]
        %v4005 = vld [vmem:[#allocation9 + $0xb8] sm:$0xf]
        %v4006 = vld [vmem:[#allocation9 + $0xbc] sm:$0xf]
        %v4007 = vld [vmem:[#allocation9 + $0xc0] sm:$0xf]
        %v4008 = vld [vmem:[#allocation9 + $0xc4] sm:$0xf]
        %v4009 = vld [vmem:[#allocation9 + $0xc8] sm:$0xf]
        %v4010 = vld [vmem:[#allocation9 + $0xcc] sm:$0xf]
        %v4011 = vld [vmem:[#allocation9 + $0xd0] sm:$0xf]
        %v4012 = vld [vmem:[#allocation9 + $0xd4] sm:$0xf]
        %v4013 = vld [vmem:[#allocation9 + $0xd8] sm:$0xf]
        %v4014 = vld [vmem:[#allocation9 + $0xdc] sm:$0xf]
        %v4015 = vld [vmem:[#allocation9 + $0xe0] sm:$0xf]
        %v4016 = vld [vmem:[#allocation9 + $0xe4] sm:$0xf]
        %v4017 = vld [vmem:[#allocation9 + $0xe8] sm:$0xf]
        %v4018 = vld [vmem:[#allocation9 + $0xec] sm:$0xf]
        %v4019 = vld [vmem:[#allocation9 + $0xf0] sm:$0xf]
        %v4020 = vld [vmem:[#allocation9 + $0xf4] sm:$0xf]
        %v4021 = vld [vmem:[#allocation9 + $0xf8] sm:$0xf]
        %v4022 = vld [vmem:[#allocation9 + $0xfc] sm:$0xf]
        %v4023 = vld [vmem:[#allocation9 + $0x100] sm:$0xf]
        %v4024 = vld [vmem:[#allocation9 + $0x104] sm:$0xf]
        %v4025 = vld [vmem:[#allocation9 + $0x108] sm:$0xf]
        %v4026 = vld [vmem:[#allocation9 + $0x10c] sm:$0xf]
        %v4027 = vld [vmem:[#allocation9 + $0x110] sm:$0xf]
        %v4028 = vld [vmem:[#allocation9 + $0x114] sm:$0xf]
        %v4029 = vld [vmem:[#allocation9 + $0x118] sm:$0xf]
        %v4030 = vld [vmem:[#allocation9 + $0x11c] sm:$0xf]
        %v4031 = vld [vmem:[#allocation9 + $0x120] sm:$0xf]
        %v4032 = vld [vmem:[#allocation9 + $0x124] sm:$0xf]
        %v4033 = vld [vmem:[#allocation9 + $0x128] sm:$0xf]
        %v4034 = vld [vmem:[#allocation9 + $0x12c] sm:$0xf]
        %v4035 = vld [vmem:[#allocation9 + $0x130] sm:$0xf]
        %v4036 = vld [vmem:[#allocation9 + $0x134] sm:$0xf]
        %v4037 = vld [vmem:[#allocation9 + $0x138] sm:$0xf]
        %v4038 = vld [vmem:[#allocation9 + $0x13c] sm:$0xf]
        %v4039 = vld [vmem:[#allocation9 + $0x140] sm:$0xf]
        %v4040 = vld [vmem:[#allocation9 + $0x144] sm:$0xf]
        %v4041 = vld [vmem:[#allocation9 + $0x148] sm:$0xf]
        %v4042 = vld [vmem:[#allocation9 + $0x14c] sm:$0xf]
        %v4043 = vld [vmem:[#allocation9 + $0x150] sm:$0xf]
        %v4044 = vld [vmem:[#allocation9 + $0x154] sm:$0xf]
        %v4045 = vld [vmem:[#allocation9 + $0x158] sm:$0xf]
        %v4046 = vld [vmem:[#allocation9 + $0x15c] sm:$0xf]
        %v4047 = vld [vmem:[#allocation9 + $0x160] sm:$0xf]
        %v4048 = vld [vmem:[#allocation9 + $0x164] sm:$0xf]
        %v4049 = vld [vmem:[#allocation9 + $0x168] sm:$0xf]
        %v4050 = vld [vmem:[#allocation9 + $0x16c] sm:$0xf]
        %v4051 = vld [vmem:[#allocation9 + $0x170] sm:$0xf]
        %v4052 = vld [vmem:[#allocation9 + $0x174] sm:$0xf]
        %v4053 = vld [vmem:[#allocation9 + $0x178] sm:$0xf]
        %v4054 = vld [vmem:[#allocation9 + $0x17c] sm:$0xf]
        %v4055 = vld [vmem:[#allocation9 + $0x180] sm:$0xf]
        %v4056 = vld [vmem:[#allocation9 + $0x184] sm:$0xf]
        %v4057 = vld [vmem:[#allocation9 + $0x188] sm:$0xf]
        %v4058 = vld [vmem:[#allocation9 + $0x18c] sm:$0xf]
        %v4059 = vld [vmem:[#allocation9 + $0x190] sm:$0xf]
        %v4060 = vld [vmem:[#allocation9 + $0x194] sm:$0xf]
        %v4061 = vld [vmem:[#allocation9 + $0x198] sm:$0xf]
        %v4062 = vld [vmem:[#allocation9 + $0x19c] sm:$0xf]
        %v4063 = vld [vmem:[#allocation9 + $0x1a0] sm:$0xf]
        %v4064 = vld [vmem:[#allocation9 + $0x1a4] sm:$0xf]
        %v4065 = vld [vmem:[#allocation9 + $0x1a8] sm:$0xf]
        %v4066 = vld [vmem:[#allocation9 + $0x1ac] sm:$0xf]
        %v4067 = vld [vmem:[#allocation9 + $0x1b0] sm:$0xf]
        %v4068 = vld [vmem:[#allocation9 + $0x1b4] sm:$0xf]
        %v4069 = vld [vmem:[#allocation9 + $0x1b8] sm:$0xf]
        %v4070 = vld [vmem:[#allocation9 + $0x1bc] sm:$0xf]
        %v4071 = vld [vmem:[#allocation9 + $0x1c0] sm:$0xf]
        %v4072 = vld [vmem:[#allocation9 + $0x1c4] sm:$0xf]
        %v4073 = vld [vmem:[#allocation9 + $0x1c8] sm:$0xf]
        %v4074 = vld [vmem:[#allocation9 + $0x1cc] sm:$0xf]
        %v4075 = vld [vmem:[#allocation9 + $0x1d0] sm:$0xf]
        %v4076 = vld [vmem:[#allocation9 + $0x1d4] sm:$0xf]
        %v4077 = vld [vmem:[#allocation9 + $0x1d8] sm:$0xf]
        %v4078 = vld [vmem:[#allocation9 + $0x1dc] sm:$0xf]
        %v4079 = vld [vmem:[#allocation9 + $0x1e0] sm:$0xf]
        %v4080 = vld [vmem:[#allocation9 + $0x1e4] sm:$0xf]
        %v4081 = vld [vmem:[#allocation9 + $0x1e8] sm:$0xf]
        %v4082 = vld [vmem:[#allocation9 + $0x1ec] sm:$0xf]
        %v4083 = vld [vmem:[#allocation9 + $0x1f0] sm:$0xf]
        %v4084 = vld [vmem:[#allocation9 + $0x1f4] sm:$0xf]
        %v4085 = vld [vmem:[#allocation9 + $0x1f8] sm:$0xf]
        %v4086 = vld [vmem:[#allocation9 + $0x1fc] sm:$0xf]
        %v4087 = vld [vmem:[#allocation9 + $0x200] sm:$0xf]
        %v4088 = vld [vmem:[#allocation9 + $0x204] sm:$0xf]
        %v4089 = vld [vmem:[#allocation9 + $0x208] sm:$0xf]
        %v4090 = vld [vmem:[#allocation9 + $0x20c] sm:$0xf]
        %v4091 = vld [vmem:[#allocation9 + $0x210] sm:$0xf]
        %v4092 = vld [vmem:[#allocation9 + $0x214] sm:$0xf]
        %v4093 = vld [vmem:[#allocation9 + $0x218] sm:$0xf]
        %v4094 = vld [vmem:[#allocation9 + $0x21c] sm:$0xf]
        %v4095 = vld [vmem:[#allocation9 + $0x220] sm:$0xf]
        %v4096 = vld [vmem:[#allocation9 + $0x224] sm:$0xf]
        %v4097 = vld [vmem:[#allocation9 + $0x228] sm:$0xf]
        %v4098 = vld [vmem:[#allocation9 + $0x22c] sm:$0xf]
        %v4099 = vld [vmem:[#allocation9 + $0x230] sm:$0xf]
        %v4100 = vld [vmem:[#allocation9 + $0x234] sm:$0xf]
        %v4101 = vld [vmem:[#allocation9 + $0x238] sm:$0xf]
        %v4102 = vld [vmem:[#allocation9 + $0x23c] sm:$0xf]
        %v4247 = vunpack.c.l.b16 %v3959
        %v4248 = vunpack.c.l.b16 %v3960
        %v4249 = vunpack.c.l.b16 %v3961
        %v4250 = vunpack.c.l.b16 %v3962
        %v4251 = vunpack.c.l.b16 %v3963
        %v4252 = vunpack.c.l.b16 %v3964
        %v4253 = vunpack.c.l.b16 %v3965
        %v4254 = vunpack.c.l.b16 %v3966
        %v4255 = vunpack.c.l.b16 %v3967
        %v4256 = vunpack.c.l.b16 %v3968
        %v4257 = vunpack.c.l.b16 %v3969
        %v4258 = vunpack.c.l.b16 %v3970
        %v4259 = vunpack.c.l.b16 %v3971
        %v4260 = vunpack.c.l.b16 %v3972
        %v4261 = vunpack.c.l.b16 %v3973
        %v4262 = vunpack.c.l.b16 %v3974
        %v4263 = vunpack.c.l.b16 %v3975
        %v4264 = vunpack.c.l.b16 %v3976
        %v4265 = vunpack.c.l.b16 %v3977
        %v4266 = vunpack.c.l.b16 %v3978
        %v4267 = vunpack.c.l.b16 %v3979
        %v4268 = vunpack.c.l.b16 %v3980
        %v4269 = vunpack.c.l.b16 %v3981
        %v4270 = vunpack.c.l.b16 %v3982
        %v4271 = vunpack.c.l.b16 %v3983
        %v4272 = vunpack.c.l.b16 %v3984
        %v4273 = vunpack.c.l.b16 %v3985
        %v4274 = vunpack.c.l.b16 %v3986
        %v4275 = vunpack.c.l.b16 %v3987
        %v4276 = vunpack.c.l.b16 %v3988
        %v4277 = vunpack.c.l.b16 %v3989
        %v4278 = vunpack.c.l.b16 %v3990
        %v4279 = vunpack.c.l.b16 %v3991
        %v4280 = vunpack.c.l.b16 %v3992
        %v4281 = vunpack.c.l.b16 %v3993
        %v4282 = vunpack.c.l.b16 %v3994
        %v4283 = vunpack.c.l.b16 %v3995
        %v4284 = vunpack.c.l.b16 %v3996
        %v4285 = vunpack.c.l.b16 %v3997
        %v4286 = vunpack.c.l.b16 %v3998
        %v4287 = vunpack.c.l.b16 %v3999
        %v4288 = vunpack.c.l.b16 %v4000
        %v4289 = vunpack.c.l.b16 %v4001
        %v4290 = vunpack.c.l.b16 %v4002
        %v4291 = vunpack.c.l.b16 %v4003
        %v4292 = vunpack.c.l.b16 %v4004
        %v4293 = vunpack.c.l.b16 %v4005
        %v4294 = vunpack.c.l.b16 %v4006
        %v4295 = vunpack.c.l.b16 %v4007
        %v4296 = vunpack.c.l.b16 %v4008
        %v4297 = vunpack.c.l.b16 %v4009
        %v4298 = vunpack.c.l.b16 %v4010
        %v4299 = vunpack.c.l.b16 %v4011
        %v4300 = vunpack.c.l.b16 %v4012
        %v4301 = vunpack.c.l.b16 %v4013
        %v4302 = vunpack.c.l.b16 %v4014
        %v4303 = vunpack.c.l.b16 %v4015
        %v4304 = vunpack.c.l.b16 %v4016
        %v4305 = vunpack.c.l.b16 %v4017
        %v4306 = vunpack.c.l.b16 %v4018
        %v4307 = vunpack.c.l.b16 %v4019
        %v4308 = vunpack.c.l.b16 %v4020
        %v4309 = vunpack.c.l.b16 %v4021
        %v4310 = vunpack.c.l.b16 %v4022
        %v4311 = vunpack.c.l.b16 %v4023
        %v4312 = vunpack.c.l.b16 %v4024
        %v4313 = vunpack.c.l.b16 %v4025
        %v4314 = vunpack.c.l.b16 %v4026
        %v4315 = vunpack.c.l.b16 %v4027
        %v4316 = vunpack.c.l.b16 %v4028
        %v4317 = vunpack.c.l.b16 %v4029
        %v4318 = vunpack.c.l.b16 %v4030
        %v4319 = vunpack.c.l.b16 %v4031
        %v4320 = vunpack.c.l.b16 %v4032
        %v4321 = vunpack.c.l.b16 %v4033
        %v4322 = vunpack.c.l.b16 %v4034
        %v4323 = vunpack.c.l.b16 %v4035
        %v4324 = vunpack.c.l.b16 %v4036
        %v4325 = vunpack.c.l.b16 %v4037
        %v4326 = vunpack.c.l.b16 %v4038
        %v4327 = vunpack.c.l.b16 %v4039
        %v4328 = vunpack.c.l.b16 %v4040
        %v4329 = vunpack.c.l.b16 %v4041
        %v4330 = vunpack.c.l.b16 %v4042
        %v4331 = vunpack.c.l.b16 %v4043
        %v4332 = vunpack.c.l.b16 %v4044
        %v4333 = vunpack.c.l.b16 %v4045
        %v4334 = vunpack.c.l.b16 %v4046
        %v4335 = vunpack.c.l.b16 %v4047
        %v4336 = vunpack.c.l.b16 %v4048
        %v4337 = vunpack.c.l.b16 %v4049
        %v4338 = vunpack.c.l.b16 %v4050
        %v4339 = vunpack.c.l.b16 %v4051
        %v4340 = vunpack.c.l.b16 %v4052
        %v4341 = vunpack.c.l.b16 %v4053
        %v4342 = vunpack.c.l.b16 %v4054
        %v4343 = vunpack.c.l.b16 %v4055
        %v4344 = vunpack.c.l.b16 %v4056
        %v4345 = vunpack.c.l.b16 %v4057
        %v4346 = vunpack.c.l.b16 %v4058
        %v4347 = vunpack.c.l.b16 %v4059
        %v4348 = vunpack.c.l.b16 %v4060
        %v4349 = vunpack.c.l.b16 %v4061
        %v4350 = vunpack.c.l.b16 %v4062
        %v4351 = vunpack.c.l.b16 %v4063
        %v4352 = vunpack.c.l.b16 %v4064
        %v4353 = vunpack.c.l.b16 %v4065
        %v4354 = vunpack.c.l.b16 %v4066
        %v4355 = vunpack.c.l.b16 %v4067
        %v4356 = vunpack.c.l.b16 %v4068
        %v4357 = vunpack.c.l.b16 %v4069
        %v4358 = vunpack.c.l.b16 %v4070
        %v4359 = vunpack.c.l.b16 %v4071
        %v4360 = vunpack.c.l.b16 %v4072
        %v4361 = vunpack.c.l.b16 %v4073
        %v4362 = vunpack.c.l.b16 %v4074
        %v4363 = vunpack.c.l.b16 %v4075
        %v4364 = vunpack.c.l.b16 %v4076
        %v4365 = vunpack.c.l.b16 %v4077
        %v4366 = vunpack.c.l.b16 %v4078
        %v4367 = vunpack.c.l.b16 %v4079
        %v4368 = vunpack.c.l.b16 %v4080
        %v4369 = vunpack.c.l.b16 %v4081
        %v4370 = vunpack.c.l.b16 %v4082
        %v4371 = vunpack.c.l.b16 %v4083
        %v4372 = vunpack.c.l.b16 %v4084
        %v4373 = vunpack.c.l.b16 %v4085
        %v4374 = vunpack.c.l.b16 %v4086
        %v4375 = vunpack.c.l.b16 %v4087
        %v4376 = vunpack.c.l.b16 %v4088
        %v4377 = vunpack.c.l.b16 %v4089
        %v4378 = vunpack.c.l.b16 %v4090
        %v4379 = vunpack.c.l.b16 %v4091
        %v4380 = vunpack.c.l.b16 %v4092
        %v4381 = vunpack.c.l.b16 %v4093
        %v4382 = vunpack.c.l.b16 %v4094
        %v4383 = vunpack.c.l.b16 %v4095
        %v4384 = vunpack.c.l.b16 %v4096
        %v4385 = vunpack.c.l.b16 %v4097
        %v4386 = vunpack.c.l.b16 %v4098
        %v4387 = vunpack.c.l.b16 %v4099
        %v4388 = vunpack.c.l.b16 %v4100
        %v4389 = vunpack.c.l.b16 %v4101
        %v4390 = vunpack.c.l.b16 %v4102
        %v4391 = vpack.c.b16 %v4248, %v4247
        %v4392 = vpack.c.b16 %v4250, %v4249
        %v4393 = vpack.c.b16 %v4252, %v4251
        %v4394 = vpack.c.b16 %v4254, %v4253
        %v4395 = vpack.c.b16 %v4256, %v4255
        %v4396 = vpack.c.b16 %v4258, %v4257
        %v4397 = vpack.c.b16 %v4260, %v4259
        %v4398 = vpack.c.b16 %v4262, %v4261
        %v4399 = vpack.c.b16 %v4264, %v4263
        %v4400 = vpack.c.b16 %v4266, %v4265
        %v4401 = vpack.c.b16 %v4268, %v4267
        %v4402 = vpack.c.b16 %v4270, %v4269
        %v4403 = vpack.c.b16 %v4272, %v4271
        %v4404 = vpack.c.b16 %v4274, %v4273
        %v4405 = vpack.c.b16 %v4276, %v4275
        %v4406 = vpack.c.b16 %v4278, %v4277
        %v4407 = vpack.c.b16 %v4280, %v4279
        %v4408 = vpack.c.b16 %v4282, %v4281
        %v4409 = vpack.c.b16 %v4284, %v4283
        %v4410 = vpack.c.b16 %v4286, %v4285
        %v4411 = vpack.c.b16 %v4288, %v4287
        %v4412 = vpack.c.b16 %v4290, %v4289
        %v4413 = vpack.c.b16 %v4292, %v4291
        %v4414 = vpack.c.b16 %v4294, %v4293
        %v4415 = vpack.c.b16 %v4296, %v4295
        %v4416 = vpack.c.b16 %v4298, %v4297
        %v4417 = vpack.c.b16 %v4300, %v4299
        %v4418 = vpack.c.b16 %v4302, %v4301
        %v4419 = vpack.c.b16 %v4304, %v4303
        %v4420 = vpack.c.b16 %v4306, %v4305
        %v4421 = vpack.c.b16 %v4308, %v4307
        %v4422 = vpack.c.b16 %v4310, %v4309
        %v4423 = vpack.c.b16 %v4312, %v4311
        %v4424 = vpack.c.b16 %v4314, %v4313
        %v4425 = vpack.c.b16 %v4316, %v4315
        %v4426 = vpack.c.b16 %v4318, %v4317
        %v4427 = vpack.c.b16 %v4320, %v4319
        %v4428 = vpack.c.b16 %v4322, %v4321
        %v4429 = vpack.c.b16 %v4324, %v4323
        %v4430 = vpack.c.b16 %v4326, %v4325
        %v4431 = vpack.c.b16 %v4328, %v4327
        %v4432 = vpack.c.b16 %v4330, %v4329
        %v4433 = vpack.c.b16 %v4332, %v4331
        %v4434 = vpack.c.b16 %v4334, %v4333
        %v4435 = vpack.c.b16 %v4336, %v4335
        %v4436 = vpack.c.b16 %v4338, %v4337
        %v4437 = vpack.c.b16 %v4340, %v4339
        %v4438 = vpack.c.b16 %v4342, %v4341
        %v4439 = vpack.c.b16 %v4344, %v4343
        %v4440 = vpack.c.b16 %v4346, %v4345
        %v4441 = vpack.c.b16 %v4348, %v4347
        %v4442 = vpack.c.b16 %v4350, %v4349
        %v4443 = vpack.c.b16 %v4352, %v4351
        %v4444 = vpack.c.b16 %v4354, %v4353
        %v4445 = vpack.c.b16 %v4356, %v4355
        %v4446 = vpack.c.b16 %v4358, %v4357
        %v4447 = vpack.c.b16 %v4360, %v4359
        %v4448 = vpack.c.b16 %v4362, %v4361
        %v4449 = vpack.c.b16 %v4364, %v4363
        %v4450 = vpack.c.b16 %v4366, %v4365
        %v4451 = vpack.c.b16 %v4368, %v4367
        %v4452 = vpack.c.b16 %v4370, %v4369
        %v4453 = vpack.c.b16 %v4372, %v4371
        %v4454 = vpack.c.b16 %v4374, %v4373
        %v4455 = vpack.c.b16 %v4376, %v4375
        %v4456 = vpack.c.b16 %v4378, %v4377
        %v4457 = vpack.c.b16 %v4380, %v4379
        %v4458 = vpack.c.b16 %v4382, %v4381
        %v4459 = vpack.c.b16 %v4384, %v4383
        %v4460 = vpack.c.b16 %v4386, %v4385
        %v4461 = vpack.c.b16 %v4388, %v4387
        %v4462 = vpack.c.b16 %v4390, %v4389
        %4535 = vmatprep.subr.bf16.mxu0 0
        %4536 = vmatpush1.bf16.msra.mxu0 %v4391
        %4537 = vmatprep.subr.bf16.mxu0 0
        %4538 = vmatpush1.bf16.msra.mxu0 %v4392
        %4539 = vmatprep.subr.bf16.mxu0 0
        %4540 = vmatpush1.bf16.msra.mxu0 %v4393
        %4541 = vmatprep.subr.bf16.mxu0 0
        %4542 = vmatpush1.bf16.msra.mxu0 %v4394
        %4543 = vmatprep.subr.bf16.mxu0 0
        %4544 = vmatpush1.bf16.msra.mxu0 %v4395
        %4545 = vmatprep.subr.bf16.mxu0 0
        %4546 = vmatpush1.bf16.msra.mxu0 %v4396
        %4547 = vmatprep.subr.bf16.mxu0 0
        %4548 = vmatpush1.bf16.msra.mxu0 %v4397
        %4549 = vmatprep.subr.bf16.mxu0 0
        %4550 = vmatpush1.bf16.msra.mxu0 %v4398
        %4551 = vmatprep.subr.bf16.mxu0 0
        %4552 = vmatpush1.bf16.msra.mxu0 %v4399
        %4553 = vmatprep.subr.bf16.mxu0 0
        %4554 = vmatpush1.bf16.msra.mxu0 %v4400
        %4555 = vmatprep.subr.bf16.mxu0 0
        %4556 = vmatpush1.bf16.msra.mxu0 %v4401
        %4557 = vmatprep.subr.bf16.mxu0 0
        %4558 = vmatpush1.bf16.msra.mxu0 %v4402
        %4559 = vmatprep.subr.bf16.mxu0 0
        %4560 = vmatpush1.bf16.msra.mxu0 %v4403
        %4561 = vmatprep.subr.bf16.mxu0 0
        %4562 = vmatpush1.bf16.msra.mxu0 %v4404
        %4563 = vmatprep.subr.bf16.mxu0 0
        %4564 = vmatpush1.bf16.msra.mxu0 %v4405
        %4565 = vmatprep.subr.bf16.mxu0 0
        %4566 = vmatpush1.bf16.msra.mxu0 %v4406
        %4567 = vmatprep.mubr.bf16.mxu0 %v3924
        %4568 = vmatmul.mubr.bf16.gmra.mrb[0].mxu0 %v3923
        %v4569 = vpop.f32.mrb[0].mxu0
        %v4570 = vadd.f32 0.0, %v4569
        %v4571 = vpop.f32.mrb[0].mxu0
        %v4572 = vpop.f32.mrb[0].mxu0
        %v4573 = vadd.f32 0.0, %v4572
        %v4574 = vpop.f32.mrb[0].mxu0
        %4575 = vmatprep.mubr.bf16.mxu0 %v3933
        %4576 = vmatmul.mubr.bf16.gmra.mrb[0].mxu0 %v3932
        %v4577 = vpop.f32.mrb[0].mxu0
        %v4578 = vadd.f32 0.0, %v4577
        %v4579 = vpop.f32.mrb[0].mxu0
        %v4580 = vpop.f32.mrb[0].mxu0
        %v4581 = vadd.f32 0.0, %v4580
        %v4582 = vpop.f32.mrb[0].mxu0
        %4583 = vmatprep.mubr.bf16.mxu0 %v3942
        %4584 = vmatmul.mubr.bf16.gmra.mrb[0].mxu0 %v3941
        %v4585 = vpop.f32.mrb[0].mxu0
        %v4586 = vadd.f32 0.0, %v4585
        %v4587 = vpop.f32.mrb[0].mxu0
        %v4588 = vpop.f32.mrb[0].mxu0
        %v4589 = vadd.f32 0.0, %v4588
        %v4590 = vpop.f32.mrb[0].mxu0
        %4591 = vmatprep.mubr.bf16.mxu0 %v3951
        %4592 = vmatmul.mubr.bf16.gmra.mrb[0].mxu0 %v3950
        %v4593 = vpop.f32.mrb[0].mxu0
        %v4594 = vadd.f32 0.0, %v4593
        %v4595 = vpop.f32.mrb[0].mxu0
        %v4596 = vpop.f32.mrb[0].mxu0
        %v4597 = vadd.f32 0.0, %v4596
        %v4598 = vpop.f32.mrb[0].mxu0
        %4599 = vdwg.mxu0
        %4600 = vmatprep.subr.bf16.mxu0 0
        %4601 = vmatpush1.bf16.msra.mxu0 %v4407
        %4602 = vmatprep.subr.bf16.mxu0 0
        %4603 = vmatpush1.bf16.msra.mxu0 %v4408
        %4604 = vmatprep.subr.bf16.mxu0 0
        %4605 = vmatpush1.bf16.msra.mxu0 %v4409
        %4606 = vmatprep.subr.bf16.mxu0 0
        %4607 = vmatpush1.bf16.msra.mxu0 %v4410
        %4608 = vmatprep.subr.bf16.mxu0 0
        %4609 = vmatpush1.bf16.msra.mxu0 %v4411
        %4610 = vmatprep.subr.bf16.mxu0 0
        %4611 = vmatpush1.bf16.msra.mxu0 %v4412
        %4612 = vmatprep.subr.bf16.mxu0 0
        %4613 = vmatpush1.bf16.msra.mxu0 %v4413
        %4614 = vmatprep.subr.bf16.mxu0 0
        %4615 = vmatpush1.bf16.msra.mxu0 %v4414
        %4616 = vmatprep.subr.bf16.mxu0 0
        %4617 = vmatpush1.bf16.msra.mxu0 %v4415
        %4618 = vmatprep.subr.bf16.mxu0 0
        %4619 = vmatpush1.bf16.msra.mxu0 %v4416
        %4620 = vmatprep.subr.bf16.mxu0 0
        %4621 = vmatpush1.bf16.msra.mxu0 %v4417
        %4622 = vmatprep.subr.bf16.mxu0 0
        %4623 = vmatpush1.bf16.msra.mxu0 %v4418
        %4624 = vmatprep.subr.bf16.mxu0 0
        %4625 = vmatpush1.bf16.msra.mxu0 %v4419
        %4626 = vmatprep.subr.bf16.mxu0 0
        %4627 = vmatpush1.bf16.msra.mxu0 %v4420
        %4628 = vmatprep.subr.bf16.mxu0 0
        %4629 = vmatpush1.bf16.msra.mxu0 %v4421
        %4630 = vmatprep.subr.bf16.mxu0 0
        %4631 = vmatpush1.bf16.msra.mxu0 %v4422
        %4632 = vmatprep.mubr.bf16.mxu0 %v3926
        %4633 = vmatmul.mubr.bf16.gmra.mrb[0].mxu0 %v3925
        %v4634 = vpop.f32.mrb[0].mxu0
        %v4635 = vadd.f32 %v4570, %v4634
        %v4636 = vpop.f32.mrb[0].mxu0
        %v4637 = vpop.f32.mrb[0].mxu0
        %v4638 = vadd.f32 %v4573, %v4637
        %v4639 = vpop.f32.mrb[0].mxu0
        %4640 = vmatprep.mubr.bf16.mxu0 %v3935
        %4641 = vmatmul.mubr.bf16.gmra.mrb[0].mxu0 %v3934
        %v4642 = vpop.f32.mrb[0].mxu0
        %v4643 = vadd.f32 %v4578, %v4642
        %v4644 = vpop.f32.mrb[0].mxu0
        %v4645 = vpop.f32.mrb[0].mxu0
        %v4646 = vadd.f32 %v4581, %v4645
        %v4647 = vpop.f32.mrb[0].mxu0
        %4648 = vmatprep.mubr.bf16.mxu0 %v3944
        %4649 = vmatmul.mubr.bf16.gmra.mrb[0].mxu0 %v3943
        %v4650 = vpop.f32.mrb[0].mxu0
        %v4651 = vadd.f32 %v4586, %v4650
        %v4652 = vpop.f32.mrb[0].mxu0
        %v4653 = vpop.f32.mrb[0].mxu0
        %v4654 = vadd.f32 %v4589, %v4653
        %v4655 = vpop.f32.mrb[0].mxu0
        %4656 = vmatprep.mubr.bf16.mxu0 %v3953
        %4657 = vmatmul.mubr.bf16.gmra.mrb[0].mxu0 %v3952
        %v4658 = vpop.f32.mrb[0].mxu0
        %v4659 = vadd.f32 %v4594, %v4658
        %v4660 = vpop.f32.mrb[0].mxu0
        %v4661 = vpop.f32.mrb[0].mxu0
        %v4662 = vadd.f32 %v4597, %v4661
        %v4663 = vpop.f32.mrb[0].mxu0
        %4664 = vdwg.mxu0
        %4665 = vmatprep.subr.bf16.mxu0 0
        %4666 = vmatpush1.bf16.msra.mxu0 %v4423
        %4667 = vmatprep.subr.bf16.mxu0 0
        %4668 = vmatpush1.bf16.msra.mxu0 %v4424
        %4669 = vmatprep.subr.bf16.mxu0 0
        %4670 = vmatpush1.bf16.msra.mxu0 %v4425
        %4671 = vmatprep.subr.bf16.mxu0 0
        %4672 = vmatpush1.bf16.msra.mxu0 %v4426
        %4673 = vmatprep.subr.bf16.mxu0 0
        %4674 = vmatpush1.bf16.msra.mxu0 %v4427
        %4675 = vmatprep.subr.bf16.mxu0 0
        %4676 = vmatpush1.bf16.msra.mxu0 %v4428
        %4677 = vmatprep.subr.bf16.mxu0 0
        %4678 = vmatpush1.bf16.msra.mxu0 %v4429
        %4679 = vmatprep.subr.bf16.mxu0 0
        %4680 = vmatpush1.bf16.msra.mxu0 %v4430
        %4681 = vmatprep.subr.bf16.mxu0 0
        %4682 = vmatpush1.bf16.msra.mxu0 %v4431
        %4683 = vmatprep.subr.bf16.mxu0 0
        %4684 = vmatpush1.bf16.msra.mxu0 %v4432
        %4685 = vmatprep.subr.bf16.mxu0 0
        %4686 = vmatpush1.bf16.msra.mxu0 %v4433
        %4687 = vmatprep.subr.bf16.mxu0 0
        %4688 = vmatpush1.bf16.msra.mxu0 %v4434
        %4689 = vmatprep.subr.bf16.mxu0 0
        %4690 = vmatpush1.bf16.msra.mxu0 %v4435
        %4691 = vmatprep.subr.bf16.mxu0 0
        %4692 = vmatpush1.bf16.msra.mxu0 %v4436
        %4693 = vmatprep.subr.bf16.mxu0 0
        %4694 = vmatpush1.bf16.msra.mxu0 %v4437
        %4695 = vmatprep.subr.bf16.mxu0 0
        %4696 = vmatpush1.bf16.msra.mxu0 %v4438
        %4697 = vmatprep.mubr.bf16.mxu0 %v3928
        %4698 = vmatmul.mubr.bf16.gmra.mrb[0].mxu0 %v3927
        %v4699 = vpop.f32.mrb[0].mxu0
        %v4700 = vadd.f32 %v4635, %v4699
        %v4701 = vpop.f32.mrb[0].mxu0
        %v4702 = vpop.f32.mrb[0].mxu0
        %v4703 = vadd.f32 %v4638, %v4702
        %v4704 = vpop.f32.mrb[0].mxu0
        %4705 = vmatprep.mubr.bf16.mxu0 %v3937
        %4706 = vmatmul.mubr.bf16.gmra.mrb[0].mxu0 %v3936
        %v4707 = vpop.f32.mrb[0].mxu0
        %v4708 = vadd.f32 %v4643, %v4707
        %v4709 = vpop.f32.mrb[0].mxu0
        %v4710 = vpop.f32.mrb[0].mxu0
        %v4711 = vadd.f32 %v4646, %v4710
        %v4712 = vpop.f32.mrb[0].mxu0
        %4713 = vmatprep.mubr.bf16.mxu0 %v3946
        %4714 = vmatmul.mubr.bf16.gmra.mrb[0].mxu0 %v3945
        %v4715 = vpop.f32.mrb[0].mxu0
        %v4716 = vadd.f32 %v4651, %v4715
        %v4717 = vpop.f32.mrb[0].mxu0
        %v4718 = vpop.f32.mrb[0].mxu0
        %v4719 = vadd.f32 %v4654, %v4718
        %v4720 = vpop.f32.mrb[0].mxu0
        %4721 = vmatprep.mubr.bf16.mxu0 %v3955
        %4722 = vmatmul.mubr.bf16.gmra.mrb[0].mxu0 %v3954
        %v4723 = vpop.f32.mrb[0].mxu0
        %v4724 = vadd.f32 %v4659, %v4723
        %v4725 = vpop.f32.mrb[0].mxu0
        %v4726 = vpop.f32.mrb[0].mxu0
        %v4727 = vadd.f32 %v4662, %v4726
        %v4728 = vpop.f32.mrb[0].mxu0
        %4729 = vdwg.mxu0
        %4730 = vmatprep.subr.bf16.mxu0 0
        %4731 = vmatpush1.bf16.msra.mxu0 %v4439
        %4732 = vmatprep.subr.bf16.mxu0 0
        %4733 = vmatpush1.bf16.msra.mxu0 %v4440
        %4734 = vmatprep.subr.bf16.mxu0 0
        %4735 = vmatpush1.bf16.msra.mxu0 %v4441
        %4736 = vmatprep.subr.bf16.mxu0 0
        %4737 = vmatpush1.bf16.msra.mxu0 %v4442
        %4738 = vmatprep.subr.bf16.mxu0 0
        %4739 = vmatpush1.bf16.msra.mxu0 %v4443
        %4740 = vmatprep.subr.bf16.mxu0 0
        %4741 = vmatpush1.bf16.msra.mxu0 %v4444
        %4742 = vmatprep.subr.bf16.mxu0 0
        %4743 = vmatpush1.bf16.msra.mxu0 %v4445
        %4744 = vmatprep.subr.bf16.mxu0 0
        %4745 = vmatpush1.bf16.msra.mxu0 %v4446
        %4746 = vmatprep.subr.bf16.mxu0 0
        %4747 = vmatpush1.bf16.msra.mxu0 %v4447
        %4748 = vmatprep.subr.bf16.mxu0 0
        %4749 = vmatpush1.bf16.msra.mxu0 %v4448
        %4750 = vmatprep.subr.bf16.mxu0 0
        %4751 = vmatpush1.bf16.msra.mxu0 %v4449
        %4752 = vmatprep.subr.bf16.mxu0 0
        %4753 = vmatpush1.bf16.msra.mxu0 %v4450
        %4754 = vmatprep.subr.bf16.mxu0 0
        %4755 = vmatpush1.bf16.msra.mxu0 %v4451
        %4756 = vmatprep.subr.bf16.mxu0 0
        %4757 = vmatpush1.bf16.msra.mxu0 %v4452
        %4758 = vmatprep.subr.bf16.mxu0 0
        %4759 = vmatpush1.bf16.msra.mxu0 %v4453
        %4760 = vmatprep.subr.bf16.mxu0 0
        %4761 = vmatpush1.bf16.msra.mxu0 %v4454
        %4762 = vmatprep.mubr.bf16.mxu0 %v3930
        %4763 = vmatmul.mubr.bf16.gmra.mrb[0].mxu0 %v3929
        %v4764 = vpop.f32.mrb[0].mxu0
        %v4765 = vadd.f32 %v4700, %v4764
        %v4766 = vpop.f32.mrb[0].mxu0
        %v4767 = vpop.f32.mrb[0].mxu0
        %v4768 = vadd.f32 %v4703, %v4767
        %v4769 = vpop.f32.mrb[0].mxu0
        %4770 = vmatprep.mubr.bf16.mxu0 %v3939
        %4771 = vmatmul.mubr.bf16.gmra.mrb[0].mxu0 %v3938
        %v4772 = vpop.f32.mrb[0].mxu0
        %v4773 = vadd.f32 %v4708, %v4772
        %v4774 = vpop.f32.mrb[0].mxu0
        %v4775 = vpop.f32.mrb[0].mxu0
        %v4776 = vadd.f32 %v4711, %v4775
        %v4777 = vpop.f32.mrb[0].mxu0
        %4778 = vmatprep.mubr.bf16.mxu0 %v3948
        %4779 = vmatmul.mubr.bf16.gmra.mrb[0].mxu0 %v3947
        %v4780 = vpop.f32.mrb[0].mxu0
        %v4781 = vadd.f32 %v4716, %v4780
        %v4782 = vpop.f32.mrb[0].mxu0
        %v4783 = vpop.f32.mrb[0].mxu0
        %v4784 = vadd.f32 %v4719, %v4783
        %v4785 = vpop.f32.mrb[0].mxu0
        %4786 = vmatprep.mubr.bf16.mxu0 %v3957
        %4787 = vmatmul.mubr.bf16.gmra.mrb[0].mxu0 %v3956
        %v4788 = vpop.f32.mrb[0].mxu0
        %v4789 = vadd.f32 %v4724, %v4788
        %v4790 = vpop.f32.mrb[0].mxu0
        %v4791 = vpop.f32.mrb[0].mxu0
        %v4792 = vadd.f32 %v4727, %v4791
        %v4793 = vpop.f32.mrb[0].mxu0
        %4794 = vdwg.mxu0
        %4795 = vmatprep.subr.bf16.mxu0 0
        %4796 = vmatpush1.bf16.msra.mxu0 %v4455
        %4797 = vmatprep.subr.bf16.mxu0 0
        %4798 = vmatpush1.bf16.msra.mxu0 %v4456
        %4799 = vmatprep.subr.bf16.mxu0 0
        %4800 = vmatpush1.bf16.msra.mxu0 %v4457
        %4801 = vmatprep.subr.bf16.mxu0 0
        %4802 = vmatpush1.bf16.msra.mxu0 %v4458
        %4803 = vmatprep.subr.bf16.mxu0 0
        %4804 = vmatpush1.bf16.msra.mxu0 %v4459
        %4805 = vmatprep.subr.bf16.mxu0 0
        %4806 = vmatpush1.bf16.msra.mxu0 %v4460
        %4807 = vmatprep.subr.bf16.mxu0 0
        %4808 = vmatpush1.bf16.msra.mxu0 %v4461
        %4809 = vmatprep.subr.bf16.mxu0 0
        %4810 = vmatpush1.bf16.msra.mxu0 %v4462
        %4811 = vmatprep.subr.bf16.mxu0 0
        %4812 = vmatpush1.bf16.msra.mxu0 0
        %4813 = vmatprep.subr.bf16.mxu0 0
        %4814 = vmatpush1.bf16.msra.mxu0 0
        %4815 = vmatprep.subr.bf16.mxu0 0
        %4816 = vmatpush1.bf16.msra.mxu0 0
        %4817 = vmatprep.subr.bf16.mxu0 0
        %4818 = vmatpush1.bf16.msra.mxu0 0
        %4819 = vmatprep.subr.bf16.mxu0 0
        %4820 = vmatpush1.bf16.msra.mxu0 0
        %4821 = vmatprep.subr.bf16.mxu0 0
        %4822 = vmatpush1.bf16.msra.mxu0 0
        %4823 = vmatprep.subr.bf16.mxu0 0
        %4824 = vmatpush1.bf16.msra.mxu0 0
        %4825 = vmatprep.subr.bf16.mxu0 0
        %4826 = vmatpush1.bf16.msra.mxu0 0
        %4827 = vmatprep.mubr.bf16.mxu0 0
        %4828 = vmatmul.mubr.bf16.gmra.mrb[0].mxu0 %v3931
        %v4829 = vpop.f32.mrb[0].mxu0
        %v4830 = vadd.f32 %v4765, %v4829
        %v4831 = vpop.f32.mrb[0].mxu0
        %v4832 = vpop.f32.mrb[0].mxu0
        %v4833 = vadd.f32 %v4768, %v4832
        %v4834 = vpop.f32.mrb[0].mxu0
        %4835 = vmatprep.mubr.bf16.mxu0 0
        %4836 = vmatmul.mubr.bf16.gmra.mrb[0].mxu0 %v3940
        %v4837 = vpop.f32.mrb[0].mxu0
        %v4838 = vadd.f32 %v4773, %v4837
        %v4839 = vpop.f32.mrb[0].mxu0
        %v4840 = vpop.f32.mrb[0].mxu0
        %v4841 = vadd.f32 %v4776, %v4840
        %v4842 = vpop.f32.mrb[0].mxu0
        %4843 = vmatprep.mubr.bf16.mxu0 0
        %4844 = vmatmul.mubr.bf16.gmra.mrb[0].mxu0 %v3949
        %v4845 = vpop.f32.mrb[0].mxu0
        %v4846 = vadd.f32 %v4781, %v4845
        %v4847 = vpop.f32.mrb[0].mxu0
        %v4848 = vpop.f32.mrb[0].mxu0
        %v4849 = vadd.f32 %v4784, %v4848
        %v4850 = vpop.f32.mrb[0].mxu0
        %4851 = vmatprep.mubr.bf16.mxu0 0
        %4852 = vmatmul.mubr.bf16.gmra.mrb[0].mxu0 %v3958
        %v4853 = vpop.f32.mrb[0].mxu0
        %v4854 = vadd.f32 %v4789, %v4853
        %v4855 = vpop.f32.mrb[0].mxu0
        %v4856 = vpop.f32.mrb[0].mxu0
        %v4857 = vadd.f32 %v4792, %v4856
        %v4858 = vpop.f32.mrb[0].mxu0
        %4859 = vdwg.mxu0
        %v4860 = vadd.f32 %v4830, %v4833
        %v4861 = vadd.f32 %v4860, %v4838
        %v4862 = vadd.f32 %v4861, %v4841
        %v4863 = vadd.f32 %v4862, %v4846
        %v4864 = vadd.f32 %v4863, %v4849
        %v4865 = vadd.f32 %v4864, %v4854
        %v4866 = vadd.f32 %v4865, %v4857
        %v4867 = vrot.slane %v4866, 4
        %v4868 = vadd.f32 %v4866, %v4867
        %v4869 = vrot.slane %v4868, 2
        %v4870 = vadd.f32 %v4868, %v4869
        %v4871 = vrot.slane %v4870, 1
        %v4872 = vadd.f32 %v4870, %v4871
        %v4873 = vmul.f32 %v4830, %v4830
        %v4874 = vmul.f32 %v4833, %v4833
        %v4875 = vmul.f32 %v4838, %v4838
        %v4876 = vmul.f32 %v4841, %v4841
        %v4877 = vmul.f32 %v4846, %v4846
        %v4878 = vmul.f32 %v4849, %v4849
        %v4879 = vmul.f32 %v4854, %v4854
        %v4880 = vmul.f32 %v4857, %v4857
        %v4881 = vadd.f32 %v4873, %v4874
        %v4882 = vadd.f32 %v4881, %v4875
        %v4883 = vadd.f32 %v4882, %v4876
        %v4884 = vadd.f32 %v4883, %v4877
        %v4885 = vadd.f32 %v4884, %v4878
        %v4886 = vadd.f32 %v4885, %v4879
        %v4887 = vadd.f32 %v4886, %v4880
        %v4888 = vrot.slane %v4887, 4
        %v4889 = vadd.f32 %v4887, %v4888
        %v4890 = vrot.slane %v4889, 2
        %v4891 = vadd.f32 %v4889, %v4890
        %v4892 = vrot.slane %v4891, 1
        %v4893 = vadd.f32 %v4891, %v4892
        %v4894 = vld [vmem:[#allocation10] sm:$0xff]
        %v4895 = vld [vmem:[#allocation10 + $0x8] sm:$0xff]
        %v4896 = vld [vmem:[#allocation10 + $0x10] sm:$0xff]
        %v4897 = vld [vmem:[#allocation10 + $0x18] sm:$0xff]
        %v4898 = vld [vmem:[#allocation10 + $0x20] sm:$0xff]
        %v4899 = vld [vmem:[#allocation10 + $0x28] sm:$0xff]
        %v4900 = vld [vmem:[#allocation10 + $0x30] sm:$0xff]
        %v4901 = vld [vmem:[#allocation10 + $0x38] sm:$0xff]
        %v4902 = vld [vmem:[#allocation10 + $0x40] sm:$0xff]
        %v4903 = vld [vmem:[#allocation10 + $0x48] sm:$0xff]
        %v4904 = vld [vmem:[#allocation10 + $0x50] sm:$0xff]
        %v4905 = vld [vmem:[#allocation10 + $0x58] sm:$0xff]
        %v4906 = vld [vmem:[#allocation10 + $0x60] sm:$0xff]
        %v4907 = vld [vmem:[#allocation10 + $0x68] sm:$0xff]
        %v4908 = vld [vmem:[#allocation10 + $0x70] sm:$0xff]
        %v4909 = vld [vmem:[#allocation10 + $0x78] sm:$0xff]
        %4910 = vmatprep.subr.mxu0 0.0
        %4911 = vmatpush1.msra.mxu0 %v4894
        %4912 = vmatprep.subr.mxu0 0.0
        %4913 = vmatpush1.msra.mxu0 %v4895
        %4914 = vmatprep.subr.mxu0 0.0
        %4915 = vmatpush1.msra.mxu0 %v4896
        %4916 = vmatprep.subr.mxu0 0.0
        %4917 = vmatpush1.msra.mxu0 %v4897
        %4918 = vmatprep.subr.mxu0 0.0
        %4919 = vmatpush1.msra.mxu0 %v4898
        %4920 = vmatprep.subr.mxu0 0.0
        %4921 = vmatpush1.msra.mxu0 %v4899
        %4922 = vmatprep.subr.mxu0 0.0
        %4923 = vmatpush1.msra.mxu0 %v4900
        %4924 = vmatprep.subr.mxu0 0.0
        %4925 = vmatpush1.msra.mxu0 %v4901
        %4926 = vmatprep.subr.mxu0 0.0
        %4927 = vmatpush1.msra.mxu0 %v4902
        %4928 = vmatprep.subr.mxu0 0.0
        %4929 = vmatpush1.msra.mxu0 %v4903
        %4930 = vmatprep.subr.mxu0 0.0
        %4931 = vmatpush1.msra.mxu0 %v4904
        %4932 = vmatprep.subr.mxu0 0.0
        %4933 = vmatpush1.msra.mxu0 %v4905
        %4934 = vmatprep.subr.mxu0 0.0
        %4935 = vmatpush1.msra.mxu0 %v4906
        %4936 = vmatprep.subr.mxu0 0.0
        %4937 = vmatpush1.msra.mxu0 %v4907
        %4938 = vmatprep.subr.mxu0 0.0
        %4939 = vmatpush1.msra.mxu0 %v4908
        %4940 = vmatprep.subr.mxu0 0.0
        %4941 = vmatpush1.msra.mxu0 %v4909
        %4942 = vmatprep.subr.mxu0 0.0
        %4943 = vmatpush1.msra.mxu0 0.0
        %4944 = vmatprep.subr.mxu0 0.0
        %4945 = vmatpush1.msra.mxu0 0.0
        %4946 = vmatprep.subr.mxu0 0.0
        %4947 = vmatpush1.msra.mxu0 0.0
        %4948 = vmatprep.subr.mxu0 0.0
        %4949 = vmatpush1.msra.mxu0 0.0
        %4950 = vmatprep.subr.mxu0 0.0
        %4951 = vmatpush1.msra.mxu0 0.0
        %4952 = vmatprep.subr.mxu0 0.0
        %4953 = vmatpush1.msra.mxu0 0.0
        %4954 = vmatprep.subr.mxu0 0.0
        %4955 = vmatpush1.msra.mxu0 0.0
        %4956 = vmatprep.subr.mxu0 0.0
        %4957 = vmatpush1.msra.mxu0 0.0
        %4958 = vmatprep.subr.mxu0 0.0
        %4959 = vmatpush1.msra.mxu0 0.0
        %4960 = vmatprep.subr.mxu0 0.0
        %4961 = vmatpush1.msra.mxu0 0.0
        %4962 = vmatprep.subr.mxu0 0.0
        %4963 = vmatpush1.msra.mxu0 0.0
        %4964 = vmatprep.subr.mxu0 0.0
        %4965 = vmatpush1.msra.mxu0 0.0
        %4966 = vmatprep.subr.mxu0 0.0
        %4967 = vmatpush1.msra.mxu0 0.0
        %4968 = vmatprep.subr.mxu0 0.0
        %4969 = vmatpush1.msra.mxu0 0.0
        %4970 = vmatprep.subr.mxu0 0.0
        %4971 = vmatpush1.msra.mxu0 0.0
        %4972 = vmatprep.subr.mxu0 0.0
        %4973 = vmatpush1.msra.mxu0 0.0
        %4974 = vmatprep.mubr.f32.mxu0 0.0
        %4975 = vmatmul.mubr.f32.gmra.mrb[0].mxu0 %v4872
        %v4976 = vpop.f32.mrb[0].mxu0
        %v4977 = vadd.f32 0.0, %v4976
        %v4978 = vpop.f32.mrb[0].mxu0
        %4979 = vdwg.mxu0
        %4980 = vmatprep.subr.mxu0 0.0
        %4981 = vmatpush1.msra.mxu0 %v4894
        %4982 = vmatprep.subr.mxu0 0.0
        %4983 = vmatpush1.msra.mxu0 %v4895
        %4984 = vmatprep.subr.mxu0 0.0
        %4985 = vmatpush1.msra.mxu0 %v4896
        %4986 = vmatprep.subr.mxu0 0.0
        %4987 = vmatpush1.msra.mxu0 %v4897
        %4988 = vmatprep.subr.mxu0 0.0
        %4989 = vmatpush1.msra.mxu0 %v4898
        %4990 = vmatprep.subr.mxu0 0.0
        %4991 = vmatpush1.msra.mxu0 %v4899
        %4992 = vmatprep.subr.mxu0 0.0
        %4993 = vmatpush1.msra.mxu0 %v4900
        %4994 = vmatprep.subr.mxu0 0.0
        %4995 = vmatpush1.msra.mxu0 %v4901
        %4996 = vmatprep.subr.mxu0 0.0
        %4997 = vmatpush1.msra.mxu0 %v4902
        %4998 = vmatprep.subr.mxu0 0.0
        %4999 = vmatpush1.msra.mxu0 %v4903
        %5000 = vmatprep.subr.mxu0 0.0
        %5001 = vmatpush1.msra.mxu0 %v4904
        %5002 = vmatprep.subr.mxu0 0.0
        %5003 = vmatpush1.msra.mxu0 %v4905
        %5004 = vmatprep.subr.mxu0 0.0
        %5005 = vmatpush1.msra.mxu0 %v4906
        %5006 = vmatprep.subr.mxu0 0.0
        %5007 = vmatpush1.msra.mxu0 %v4907
        %5008 = vmatprep.subr.mxu0 0.0
        %5009 = vmatpush1.msra.mxu0 %v4908
        %5010 = vmatprep.subr.mxu0 0.0
        %5011 = vmatpush1.msra.mxu0 %v4909
        %5012 = vmatprep.subr.mxu0 0.0
        %5013 = vmatpush1.msra.mxu0 0.0
        %5014 = vmatprep.subr.mxu0 0.0
        %5015 = vmatpush1.msra.mxu0 0.0
        %5016 = vmatprep.subr.mxu0 0.0
        %5017 = vmatpush1.msra.mxu0 0.0
        %5018 = vmatprep.subr.mxu0 0.0
        %5019 = vmatpush1.msra.mxu0 0.0
        %5020 = vmatprep.subr.mxu0 0.0
        %5021 = vmatpush1.msra.mxu0 0.0
        %5022 = vmatprep.subr.mxu0 0.0
        %5023 = vmatpush1.msra.mxu0 0.0
        %5024 = vmatprep.subr.mxu0 0.0
        %5025 = vmatpush1.msra.mxu0 0.0
        %5026 = vmatprep.subr.mxu0 0.0
        %5027 = vmatpush1.msra.mxu0 0.0
        %5028 = vmatprep.subr.mxu0 0.0
        %5029 = vmatpush1.msra.mxu0 0.0
        %5030 = vmatprep.subr.mxu0 0.0
        %5031 = vmatpush1.msra.mxu0 0.0
        %5032 = vmatprep.subr.mxu0 0.0
        %5033 = vmatpush1.msra.mxu0 0.0
        %5034 = vmatprep.subr.mxu0 0.0
        %5035 = vmatpush1.msra.mxu0 0.0
        %5036 = vmatprep.subr.mxu0 0.0
        %5037 = vmatpush1.msra.mxu0 0.0
        %5038 = vmatprep.subr.mxu0 0.0
        %5039 = vmatpush1.msra.mxu0 0.0
        %5040 = vmatprep.subr.mxu0 0.0
        %5041 = vmatpush1.msra.mxu0 0.0
        %5042 = vmatprep.subr.mxu0 0.0
        %5043 = vmatpush1.msra.mxu0 0.0
        %5044 = vmatprep.mubr.f32.mxu0 0.0
        %5045 = vmatmul.mubr.f32.gmra.mrb[0].mxu0 %v4893
        %v5046 = vpop.f32.mrb[0].mxu0
        %v5047 = vadd.f32 0.0, %v5046
        %v5048 = vpop.f32.mrb[0].mxu0
        %5049 = vdwg.mxu0
        %v5050 = vmul.f32 %v4977, %v4977
        %v5051 = vsub.f32 %v5047, %v5050
        %v5052 = vmax.f32 %v5051, 0.0
        %v5053 = vlaneseq
        %v5054 = vshrl.u32 %v5053, 7
        %v5055 = vsub.s32 0, %v5054
        %v5056 = vrot.slane %v4977, %v5055
        %v5057 = vsub.f32 %v4830, %v5056
        %v5058 = vsub.f32 %v4833, %v5056
        %v5059 = vsub.f32 %v4838, %v5056
        %v5060 = vsub.f32 %v4841, %v5056
        %v5061 = vsub.f32 %v4846, %v5056
        %v5062 = vsub.f32 %v4849, %v5056
        %v5063 = vsub.f32 %v4854, %v5056
        %v5064 = vsub.f32 %v4857, %v5056
        %v5065 = vadd.f32 %v5052, 1e-05
        %v5066 = vrsqrt.pop %v5065
        %v5067 = vlaneseq
        %v5068 = vshrl.u32 %v5067, 7
        %v5069 = vsub.s32 0, %v5068
        %v5070 = vrot.slane %v5066, %v5069
        %v5071 = vmul.f32 %v5057, %v5070
        %v5072 = vmul.f32 %v5058, %v5070
        %v5073 = vmul.f32 %v5059, %v5070
        %v5074 = vmul.f32 %v5060, %v5070
        %v5075 = vmul.f32 %v5061, %v5070
        %v5076 = vmul.f32 %v5062, %v5070
        %v5077 = vmul.f32 %v5063, %v5070
        %v5078 = vmul.f32 %v5064, %v5070
        %v5079 = vld [vmem:[%s9] sm:$0x1]
        %v5081 = vlaneseq
        %v5082 = vshrl.u32 %v5081, 7
        %v5083 = vsub.s32 0, %v5082
        %v5084 = vrot.slane %v5079, %v5083
        %v5086 = vmul.f32 %v5071, %v5084
        %v5087 = vmul.f32 %v5072, %v5084
        %v5088 = vmul.f32 %v5073, %v5084
        %v5089 = vmul.f32 %v5074, %v5084
        %v5090 = vmul.f32 %v5075, %v5084
        %v5091 = vmul.f32 %v5076, %v5084
        %v5092 = vmul.f32 %v5077, %v5084
        %v5093 = vmul.f32 %v5078, %v5084
        %v5094 = vld [vmem:[%s10] sm:$0x1]
        %v5096 = vlaneseq
        %v5097 = vshrl.u32 %v5096, 7
        %v5098 = vsub.s32 0, %v5097
        %v5099 = vrot.slane %v5094, %v5098
        %v5101 = vadd.f32 %v5086, %v5099
        %v5102 = vadd.f32 %v5087, %v5099
        %v5103 = vadd.f32 %v5088, %v5099
        %v5104 = vadd.f32 %v5089, %v5099
        %v5105 = vadd.f32 %v5090, %v5099
        %v5106 = vadd.f32 %v5091, %v5099
        %v5107 = vadd.f32 %v5092, %v5099
        %v5108 = vadd.f32 %v5093, %v5099
        %v5109 = vand.u32 2147483647, %v5101
        %v5110 = vand.u32 2147483647, %v5102
        %v5111 = vand.u32 2147483647, %v5103
        %v5112 = vand.u32 2147483647, %v5104
        %v5113 = vand.u32 2147483647, %v5105
        %v5114 = vand.u32 2147483647, %v5106
        %v5115 = vand.u32 2147483647, %v5107
        %v5116 = vand.u32 2147483647, %v5108
        %v5117 = vsub.f32 0.0, %v5109
        %v5118 = vsub.f32 0.0, %v5110
        %v5119 = vsub.f32 0.0, %v5111
        %v5120 = vsub.f32 0.0, %v5112
        %v5121 = vsub.f32 0.0, %v5113
        %v5122 = vsub.f32 0.0, %v5114
        %v5123 = vsub.f32 0.0, %v5115
        %v5124 = vsub.f32 0.0, %v5116
        %v5125 = vmul.f32 %v5117, 1.442695
        %v5126 = vpow.pop %v5125
        %v5127 = vmul.f32 %v5118, 1.442695
        %v5128 = vpow.pop %v5127
        %v5129 = vmul.f32 %v5119, 1.442695
        %v5130 = vpow.pop %v5129
        %v5131 = vmul.f32 %v5120, 1.442695
        %v5132 = vpow.pop %v5131
        %v5133 = vmul.f32 %v5121, 1.442695
        %v5134 = vpow.pop %v5133
        %v5135 = vmul.f32 %v5122, 1.442695
        %v5136 = vpow.pop %v5135
        %v5137 = vmul.f32 %v5123, 1.442695
        %v5138 = vpow.pop %v5137
        %v5139 = vmul.f32 %v5124, 1.442695
        %v5140 = vpow.pop %v5139
        %v5141 = vadd.f32 %v5126, 1.0
        %v5142 = vadd.f32 %v5128, 1.0
        %v5143 = vadd.f32 %v5130, 1.0
        %v5144 = vadd.f32 %v5132, 1.0
        %v5145 = vadd.f32 %v5134, 1.0
        %v5146 = vadd.f32 %v5136, 1.0
        %v5147 = vadd.f32 %v5138, 1.0
        %v5148 = vadd.f32 %v5140, 1.0
        %v5149 = vlog2.pop %v5141
        %v5150 = vmul.f32 %v5149, 0.6931472
        %v5151 = vlog2.pop %v5142
        %v5152 = vmul.f32 %v5151, 0.6931472
        %v5153 = vlog2.pop %v5143
        %v5154 = vmul.f32 %v5153, 0.6931472
        %v5155 = vlog2.pop %v5144
        %v5156 = vmul.f32 %v5155, 0.6931472
        %v5157 = vlog2.pop %v5145
        %v5158 = vmul.f32 %v5157, 0.6931472
        %v5159 = vlog2.pop %v5146
        %v5160 = vmul.f32 %v5159, 0.6931472
        %v5161 = vlog2.pop %v5147
        %v5162 = vmul.f32 %v5161, 0.6931472
        %v5163 = vlog2.pop %v5148
        %v5164 = vmul.f32 %v5163, 0.6931472
        %v5165 = vmax.f32 %v5101, 0.0
        %v5166 = vmax.f32 %v5102, 0.0
        %v5167 = vmax.f32 %v5103, 0.0
        %v5168 = vmax.f32 %v5104, 0.0
        %v5169 = vmax.f32 %v5105, 0.0
        %v5170 = vmax.f32 %v5106, 0.0
        %v5171 = vmax.f32 %v5107, 0.0
        %v5172 = vmax.f32 %v5108, 0.0
        %v5173 = vadd.f32 %v5150, %v5165
        %v5174 = vadd.f32 %v5152, %v5166
        %v5175 = vadd.f32 %v5154, %v5167
        %v5176 = vadd.f32 %v5156, %v5168
        %v5177 = vadd.f32 %v5158, %v5169
        %v5178 = vadd.f32 %v5160, %v5170
        %v5179 = vadd.f32 %v5162, %v5171
        %v5180 = vadd.f32 %v5164, %v5172
        %v5181 = vtanh.pop %v5173
        %v5182 = vtanh.pop %v5174
        %v5183 = vtanh.pop %v5175
        %v5184 = vtanh.pop %v5176
        %v5185 = vtanh.pop %v5177
        %v5186 = vtanh.pop %v5178
        %v5187 = vtanh.pop %v5179
        %v5188 = vtanh.pop %v5180
        %v5189 = vmul.f32 %v5101, %v5181
        %v5190 = vmul.f32 %v5102, %v5182
        %v5191 = vmul.f32 %v5103, %v5183
        %v5192 = vmul.f32 %v5104, %v5184
        %v5193 = vmul.f32 %v5105, %v5185
        %v5194 = vmul.f32 %v5106, %v5186
        %v5195 = vmul.f32 %v5107, %v5187
        %v5196 = vmul.f32 %v5108, %v5188
        %v5197 = vld [vmem:[%s2] sm:$0xf]
        %v5198 = vld [vmem:[%s2 + $0x4] sm:$0xf]
        %v5199 = vld [vmem:[%s2 + $0x8] sm:$0xf]
        %v5200 = vld [vmem:[%s2 + $0xc] sm:$0xf]
        %v5201 = vld [vmem:[%s2 + $0x10] sm:$0xf]
        %v5202 = vld [vmem:[%s2 + $0x14] sm:$0xf]
        %v5203 = vld [vmem:[%s2 + $0x18] sm:$0xf]
        %v5204 = vld [vmem:[%s2 + $0x1c] sm:$0xf]
        %v5205 = vld [vmem:[%s2 + $0x20] sm:$0xf]
        %v5206 = vld [vmem:[%s2 + $0x24] sm:$0xf]
        %v5207 = vld [vmem:[%s2 + $0x28] sm:$0xf]
        %v5208 = vld [vmem:[%s2 + $0x2c] sm:$0xf]
        %v5209 = vld [vmem:[%s2 + $0x30] sm:$0xf]
        %v5210 = vld [vmem:[%s2 + $0x34] sm:$0xf]
        %v5211 = vld [vmem:[%s2 + $0x38] sm:$0xf]
        %v5212 = vld [vmem:[%s2 + $0x3c] sm:$0xf]
        %v5213 = vld [vmem:[%s2 + $0x40] sm:$0xf]
        %v5214 = vld [vmem:[%s2 + $0x44] sm:$0xf]
        %v5215 = vld [vmem:[%s2 + $0x48] sm:$0xf]
        %v5216 = vld [vmem:[%s2 + $0x4c] sm:$0xf]
        %v5217 = vld [vmem:[%s2 + $0x50] sm:$0xf]
        %v5218 = vld [vmem:[%s2 + $0x54] sm:$0xf]
        %v5219 = vld [vmem:[%s2 + $0x58] sm:$0xf]
        %v5220 = vld [vmem:[%s2 + $0x5c] sm:$0xf]
        %v5221 = vld [vmem:[%s2 + $0x60] sm:$0xf]
        %v5222 = vld [vmem:[%s2 + $0x64] sm:$0xf]
        %v5223 = vld [vmem:[%s2 + $0x68] sm:$0xf]
        %v5224 = vld [vmem:[%s2 + $0x6c] sm:$0xf]
        %v5225 = vld [vmem:[%s2 + $0x70] sm:$0xf]
        %v5226 = vld [vmem:[%s2 + $0x74] sm:$0xf]
        %v5227 = vld [vmem:[%s2 + $0x78] sm:$0xf]
        %v5228 = vld [vmem:[%s2 + $0x7c] sm:$0xf]
        %v5229 = vld [vmem:[%s2 + $0x80] sm:$0xf]
        %v5230 = vld [vmem:[%s2 + $0x84] sm:$0xf]
        %v5231 = vld [vmem:[%s2 + $0x88] sm:$0xf]
        %v5232 = vld [vmem:[%s2 + $0x8c] sm:$0xf]
        %v5233 = vld [vmem:[%s2 + $0x90] sm:$0xf]
        %v5234 = vld [vmem:[%s2 + $0x94] sm:$0xf]
        %v5235 = vld [vmem:[%s2 + $0x98] sm:$0xf]
        %v5236 = vld [vmem:[%s2 + $0x9c] sm:$0xf]
        %v5237 = vld [vmem:[%s2 + $0xa0] sm:$0xf]
        %v5238 = vld [vmem:[%s2 + $0xa4] sm:$0xf]
        %v5239 = vld [vmem:[%s2 + $0xa8] sm:$0xf]
        %v5240 = vld [vmem:[%s2 + $0xac] sm:$0xf]
        %v5241 = vld [vmem:[%s2 + $0xb0] sm:$0xf]
        %v5242 = vld [vmem:[%s2 + $0xb4] sm:$0xf]
        %v5243 = vld [vmem:[%s2 + $0xb8] sm:$0xf]
        %v5244 = vld [vmem:[%s2 + $0xbc] sm:$0xf]
        %v5245 = vld [vmem:[%s2 + $0xc0] sm:$0xf]
        %v5246 = vld [vmem:[%s2 + $0xc4] sm:$0xf]
        %v5247 = vld [vmem:[%s2 + $0xc8] sm:$0xf]
        %v5248 = vld [vmem:[%s2 + $0xcc] sm:$0xf]
        %v5249 = vld [vmem:[%s2 + $0xd0] sm:$0xf]
        %v5250 = vld [vmem:[%s2 + $0xd4] sm:$0xf]
        %v5251 = vld [vmem:[%s2 + $0xd8] sm:$0xf]
        %v5252 = vld [vmem:[%s2 + $0xdc] sm:$0xf]
        %v5253 = vld [vmem:[%s2 + $0xe0] sm:$0xf]
        %v5254 = vld [vmem:[%s2 + $0xe4] sm:$0xf]
        %v5255 = vld [vmem:[%s2 + $0xe8] sm:$0xf]
        %v5256 = vld [vmem:[%s2 + $0xec] sm:$0xf]
        %v5257 = vld [vmem:[%s2 + $0xf0] sm:$0xf]
        %v5258 = vld [vmem:[%s2 + $0xf4] sm:$0xf]
        %v5259 = vld [vmem:[%s2 + $0xf8] sm:$0xf]
        %v5260 = vld [vmem:[%s2 + $0xfc] sm:$0xf]
        %v5261 = vld [vmem:[%s2 + $0x100] sm:$0xf]
        %v5262 = vld [vmem:[%s2 + $0x104] sm:$0xf]
        %v5263 = vld [vmem:[%s2 + $0x108] sm:$0xf]
        %v5264 = vld [vmem:[%s2 + $0x10c] sm:$0xf]
        %v5265 = vld [vmem:[%s2 + $0x110] sm:$0xf]
        %v5266 = vld [vmem:[%s2 + $0x114] sm:$0xf]
        %v5267 = vld [vmem:[%s2 + $0x118] sm:$0xf]
        %v5268 = vld [vmem:[%s2 + $0x11c] sm:$0xf]
        %v5269 = vpack.c.bf16 %v5190, %v5189
        %v5270 = vpack.c.bf16 %v5192, %v5191
        %v5271 = vpack.c.bf16 %v5194, %v5193
        %v5272 = vpack.c.bf16 %v5196, %v5195
        %v5345 = vunpack.c.l.b16 %v5197
        %v5346 = vunpack.c.l.b16 %v5198
        %v5347 = vunpack.c.l.b16 %v5199
        %v5348 = vunpack.c.l.b16 %v5200
        %v5349 = vunpack.c.l.b16 %v5201
        %v5350 = vunpack.c.l.b16 %v5202
        %v5351 = vunpack.c.l.b16 %v5203
        %v5352 = vunpack.c.l.b16 %v5204
        %v5353 = vunpack.c.l.b16 %v5205
        %v5354 = vunpack.c.l.b16 %v5206
        %v5355 = vunpack.c.l.b16 %v5207
        %v5356 = vunpack.c.l.b16 %v5208
        %v5357 = vunpack.c.l.b16 %v5209
        %v5358 = vunpack.c.l.b16 %v5210
        %v5359 = vunpack.c.l.b16 %v5211
        %v5360 = vunpack.c.l.b16 %v5212
        %v5361 = vunpack.c.l.b16 %v5213
        %v5362 = vunpack.c.l.b16 %v5214
        %v5363 = vunpack.c.l.b16 %v5215
        %v5364 = vunpack.c.l.b16 %v5216
        %v5365 = vunpack.c.l.b16 %v5217
        %v5366 = vunpack.c.l.b16 %v5218
        %v5367 = vunpack.c.l.b16 %v5219
        %v5368 = vunpack.c.l.b16 %v5220
        %v5369 = vunpack.c.l.b16 %v5221
        %v5370 = vunpack.c.l.b16 %v5222
        %v5371 = vunpack.c.l.b16 %v5223
        %v5372 = vunpack.c.l.b16 %v5224
        %v5373 = vunpack.c.l.b16 %v5225
        %v5374 = vunpack.c.l.b16 %v5226
        %v5375 = vunpack.c.l.b16 %v5227
        %v5376 = vunpack.c.l.b16 %v5228
        %v5377 = vunpack.c.l.b16 %v5229
        %v5378 = vunpack.c.l.b16 %v5230
        %v5379 = vunpack.c.l.b16 %v5231
        %v5380 = vunpack.c.l.b16 %v5232
        %v5381 = vunpack.c.l.b16 %v5233
        %v5382 = vunpack.c.l.b16 %v5234
        %v5383 = vunpack.c.l.b16 %v5235
        %v5384 = vunpack.c.l.b16 %v5236
        %v5385 = vunpack.c.l.b16 %v5237
        %v5386 = vunpack.c.l.b16 %v5238
        %v5387 = vunpack.c.l.b16 %v5239
        %v5388 = vunpack.c.l.b16 %v5240
        %v5389 = vunpack.c.l.b16 %v5241
        %v5390 = vunpack.c.l.b16 %v5242
        %v5391 = vunpack.c.l.b16 %v5243
        %v5392 = vunpack.c.l.b16 %v5244
        %v5393 = vunpack.c.l.b16 %v5245
        %v5394 = vunpack.c.l.b16 %v5246
        %v5395 = vunpack.c.l.b16 %v5247
        %v5396 = vunpack.c.l.b16 %v5248
        %v5397 = vunpack.c.l.b16 %v5249
        %v5398 = vunpack.c.l.b16 %v5250
        %v5399 = vunpack.c.l.b16 %v5251
        %v5400 = vunpack.c.l.b16 %v5252
        %v5401 = vunpack.c.l.b16 %v5253
        %v5402 = vunpack.c.l.b16 %v5254
        %v5403 = vunpack.c.l.b16 %v5255
        %v5404 = vunpack.c.l.b16 %v5256
        %v5405 = vunpack.c.l.b16 %v5257
        %v5406 = vunpack.c.l.b16 %v5258
        %v5407 = vunpack.c.l.b16 %v5259
        %v5408 = vunpack.c.l.b16 %v5260
        %v5409 = vunpack.c.l.b16 %v5261
        %v5410 = vunpack.c.l.b16 %v5262
        %v5411 = vunpack.c.l.b16 %v5263
        %v5412 = vunpack.c.l.b16 %v5264
        %v5413 = vunpack.c.l.b16 %v5265
        %v5414 = vunpack.c.l.b16 %v5266
        %v5415 = vunpack.c.l.b16 %v5267
        %v5416 = vunpack.c.l.b16 %v5268
        %v5417 = vpack.c.b16 %v5346, %v5345
        %v5418 = vpack.c.b16 %v5348, %v5347
        %v5419 = vpack.c.b16 %v5350, %v5349
        %v5420 = vpack.c.b16 %v5352, %v5351
        %v5421 = vpack.c.b16 %v5354, %v5353
        %v5422 = vpack.c.b16 %v5356, %v5355
        %v5423 = vpack.c.b16 %v5358, %v5357
        %v5424 = vpack.c.b16 %v5360, %v5359
        %v5425 = vpack.c.b16 %v5362, %v5361
        %v5426 = vpack.c.b16 %v5364, %v5363
        %v5427 = vpack.c.b16 %v5366, %v5365
        %v5428 = vpack.c.b16 %v5368, %v5367
        %v5429 = vpack.c.b16 %v5370, %v5369
        %v5430 = vpack.c.b16 %v5372, %v5371
        %v5431 = vpack.c.b16 %v5374, %v5373
        %v5432 = vpack.c.b16 %v5376, %v5375
        %v5433 = vpack.c.b16 %v5378, %v5377
        %v5434 = vpack.c.b16 %v5380, %v5379
        %v5435 = vpack.c.b16 %v5382, %v5381
        %v5436 = vpack.c.b16 %v5384, %v5383
        %v5437 = vpack.c.b16 %v5386, %v5385
        %v5438 = vpack.c.b16 %v5388, %v5387
        %v5439 = vpack.c.b16 %v5390, %v5389
        %v5440 = vpack.c.b16 %v5392, %v5391
        %v5441 = vpack.c.b16 %v5394, %v5393
        %v5442 = vpack.c.b16 %v5396, %v5395
        %v5443 = vpack.c.b16 %v5398, %v5397
        %v5444 = vpack.c.b16 %v5400, %v5399
        %v5445 = vpack.c.b16 %v5402, %v5401
        %v5446 = vpack.c.b16 %v5404, %v5403
        %v5447 = vpack.c.b16 %v5406, %v5405
        %v5448 = vpack.c.b16 %v5408, %v5407
        %v5449 = vpack.c.b16 %v5410, %v5409
        %v5450 = vpack.c.b16 %v5412, %v5411
        %v5451 = vpack.c.b16 %v5414, %v5413
        %v5452 = vpack.c.b16 %v5416, %v5415
        %v5454 = vsel %vm3421, %v5417, 0
        %v5457 = vsel %vm3421, %v5418, 0
        %v5460 = vsel %vm3421, %v5419, 0
        %v5463 = vsel %vm3421, %v5420, 0
        %v5466 = vsel %vm3421, %v5421, 0
        %v5469 = vsel %vm3421, %v5422, 0
        %v5472 = vsel %vm3421, %v5423, 0
        %v5475 = vsel %vm3421, %v5424, 0
        %v5478 = vsel %vm3421, %v5425, 0
        %v5481 = vsel %vm3421, %v5426, 0
        %v5484 = vsel %vm3421, %v5427, 0
        %v5487 = vsel %vm3421, %v5428, 0
        %v5490 = vsel %vm3421, %v5429, 0
        %v5493 = vsel %vm3421, %v5430, 0
        %v5496 = vsel %vm3421, %v5431, 0
        %v5499 = vsel %vm3421, %v5432, 0
        %v5502 = vsel %vm3421, %v5433, 0
        %v5505 = vsel %vm3421, %v5434, 0
        %v5508 = vsel %vm3421, %v5435, 0
        %v5511 = vsel %vm3421, %v5436, 0
        %v5514 = vsel %vm3421, %v5437, 0
        %v5517 = vsel %vm3421, %v5438, 0
        %v5520 = vsel %vm3421, %v5439, 0
        %v5523 = vsel %vm3421, %v5440, 0
        %v5526 = vsel %vm3421, %v5441, 0
        %v5529 = vsel %vm3421, %v5442, 0
        %v5532 = vsel %vm3421, %v5443, 0
        %v5535 = vsel %vm3421, %v5444, 0
        %v5538 = vsel %vm3421, %v5445, 0
        %v5541 = vsel %vm3421, %v5446, 0
        %v5544 = vsel %vm3421, %v5447, 0
        %v5547 = vsel %vm3421, %v5448, 0
        %v5550 = vsel %vm3421, %v5449, 0
        %v5553 = vsel %vm3421, %v5450, 0
        %v5556 = vsel %vm3421, %v5451, 0
        %v5559 = vsel %vm3421, %v5452, 0
        %5561 = vmatprep.subr.bf16.mxu0 0
        %5562 = vmatpush1.bf16.msra.mxu0 %v5269
        %5563 = vmatprep.subr.bf16.mxu0 0
        %5564 = vmatpush1.bf16.msra.mxu0 %v5270
        %5565 = vmatprep.subr.bf16.mxu0 0
        %5566 = vmatpush1.bf16.msra.mxu0 %v5271
        %5567 = vmatprep.subr.bf16.mxu0 0
        %5568 = vmatpush1.bf16.msra.mxu0 %v5272
        %5569 = vmatprep.subr.bf16.mxu0 0
        %5570 = vmatpush1.bf16.msra.mxu0 0
        %5571 = vmatprep.subr.bf16.mxu0 0
        %5572 = vmatpush1.bf16.msra.mxu0 0
        %5573 = vmatprep.subr.bf16.mxu0 0
        %5574 = vmatpush1.bf16.msra.mxu0 0
        %5575 = vmatprep.subr.bf16.mxu0 0
        %5576 = vmatpush1.bf16.msra.mxu0 0
        %5577 = vmatprep.subr.bf16.mxu0 0
        %5578 = vmatpush1.bf16.msra.mxu0 0
        %5579 = vmatprep.subr.bf16.mxu0 0
        %5580 = vmatpush1.bf16.msra.mxu0 0
        %5581 = vmatprep.subr.bf16.mxu0 0
        %5582 = vmatpush1.bf16.msra.mxu0 0
        %5583 = vmatprep.subr.bf16.mxu0 0
        %5584 = vmatpush1.bf16.msra.mxu0 0
        %5585 = vmatprep.subr.bf16.mxu0 0
        %5586 = vmatpush1.bf16.msra.mxu0 0
        %5587 = vmatprep.subr.bf16.mxu0 0
        %5588 = vmatpush1.bf16.msra.mxu0 0
        %5589 = vmatprep.subr.bf16.mxu0 0
        %5590 = vmatpush1.bf16.msra.mxu0 0
        %5591 = vmatprep.subr.bf16.mxu0 0
        %5592 = vmatpush1.bf16.msra.mxu0 0
        %5593 = vmatprep.mubr.bf16.mxu0 0
        %5594 = vmatmul.mubr.bf16.gmra.mrb[0].mxu0 %v5454
        %v5595 = vpop.f32.mrb[0].mxu0
        %v5596 = vadd.f32 0.0, %v5595
        %v5597 = vpop.f32.mrb[0].mxu0
        %v5598 = vpop.f32.mrb[0].mxu0
        %v5599 = vadd.f32 0.0, %v5598
        %v5600 = vpop.f32.mrb[0].mxu0
        %5601 = vmatprep.mubr.bf16.mxu0 0
        %5602 = vmatmul.mubr.bf16.gmra.mrb[0].mxu0 %v5457
        %v5603 = vpop.f32.mrb[0].mxu0
        %v5604 = vadd.f32 0.0, %v5603
        %v5605 = vpop.f32.mrb[0].mxu0
        %v5606 = vpop.f32.mrb[0].mxu0
        %v5607 = vadd.f32 0.0, %v5606
        %v5608 = vpop.f32.mrb[0].mxu0
        %5609 = vmatprep.mubr.bf16.mxu0 0
        %5610 = vmatmul.mubr.bf16.gmra.mrb[0].mxu0 %v5460
        %v5611 = vpop.f32.mrb[0].mxu0
        %v5612 = vadd.f32 0.0, %v5611
        %v5613 = vpop.f32.mrb[0].mxu0
        %v5614 = vpop.f32.mrb[0].mxu0
        %v5615 = vadd.f32 0.0, %v5614
        %v5616 = vpop.f32.mrb[0].mxu0
        %5617 = vmatprep.mubr.bf16.mxu0 0
        %5618 = vmatmul.mubr.bf16.gmra.mrb[0].mxu0 %v5463
        %v5619 = vpop.f32.mrb[0].mxu0
        %v5620 = vadd.f32 0.0, %v5619
        %v5621 = vpop.f32.mrb[0].mxu0
        %v5622 = vpop.f32.mrb[0].mxu0
        %v5623 = vadd.f32 0.0, %v5622
        %v5624 = vpop.f32.mrb[0].mxu0
        %5625 = vmatprep.mubr.bf16.mxu0 0
        %5626 = vmatmul.mubr.bf16.gmra.mrb[0].mxu0 %v5466
        %v5627 = vpop.f32.mrb[0].mxu0
        %v5628 = vadd.f32 0.0, %v5627
        %v5629 = vpop.f32.mrb[0].mxu0
        %v5630 = vpop.f32.mrb[0].mxu0
        %v5631 = vadd.f32 0.0, %v5630
        %v5632 = vpop.f32.mrb[0].mxu0
        %5633 = vmatprep.mubr.bf16.mxu0 0
        %5634 = vmatmul.mubr.bf16.gmra.mrb[0].mxu0 %v5469
        %v5635 = vpop.f32.mrb[0].mxu0
        %v5636 = vadd.f32 0.0, %v5635
        %v5637 = vpop.f32.mrb[0].mxu0
        %v5638 = vpop.f32.mrb[0].mxu0
        %v5639 = vadd.f32 0.0, %v5638
        %v5640 = vpop.f32.mrb[0].mxu0
        %5641 = vmatprep.mubr.bf16.mxu0 0
        %5642 = vmatmul.mubr.bf16.gmra.mrb[0].mxu0 %v5472
        %v5643 = vpop.f32.mrb[0].mxu0
        %v5644 = vadd.f32 0.0, %v5643
        %v5645 = vpop.f32.mrb[0].mxu0
        %v5646 = vpop.f32.mrb[0].mxu0
        %v5647 = vadd.f32 0.0, %v5646
        %v5648 = vpop.f32.mrb[0].mxu0
        %5649 = vmatprep.mubr.bf16.mxu0 0
        %5650 = vmatmul.mubr.bf16.gmra.mrb[0].mxu0 %v5475
        %v5651 = vpop.f32.mrb[0].mxu0
        %v5652 = vadd.f32 0.0, %v5651
        %v5653 = vpop.f32.mrb[0].mxu0
        %v5654 = vpop.f32.mrb[0].mxu0
        %v5655 = vadd.f32 0.0, %v5654
        %v5656 = vpop.f32.mrb[0].mxu0
        %5657 = vmatprep.mubr.bf16.mxu0 0
        %5658 = vmatmul.mubr.bf16.gmra.mrb[0].mxu0 %v5478
        %v5659 = vpop.f32.mrb[0].mxu0
        %v5660 = vadd.f32 0.0, %v5659
        %v5661 = vpop.f32.mrb[0].mxu0
        %v5662 = vpop.f32.mrb[0].mxu0
        %v5663 = vadd.f32 0.0, %v5662
        %v5664 = vpop.f32.mrb[0].mxu0
        %5665 = vmatprep.mubr.bf16.mxu0 0
        %5666 = vmatmul.mubr.bf16.gmra.mrb[0].mxu0 %v5481
        %v5667 = vpop.f32.mrb[0].mxu0
        %v5668 = vadd.f32 0.0, %v5667
        %v5669 = vpop.f32.mrb[0].mxu0
        %v5670 = vpop.f32.mrb[0].mxu0
        %v5671 = vadd.f32 0.0, %v5670
        %v5672 = vpop.f32.mrb[0].mxu0
        %5673 = vmatprep.mubr.bf16.mxu0 0
        %5674 = vmatmul.mubr.bf16.gmra.mrb[0].mxu0 %v5484
        %v5675 = vpop.f32.mrb[0].mxu0
        %v5676 = vadd.f32 0.0, %v5675
        %v5677 = vpop.f32.mrb[0].mxu0
        %v5678 = vpop.f32.mrb[0].mxu0
        %v5679 = vadd.f32 0.0, %v5678
        %v5680 = vpop.f32.mrb[0].mxu0
        %5681 = vmatprep.mubr.bf16.mxu0 0
        %5682 = vmatmul.mubr.bf16.gmra.mrb[0].mxu0 %v5487
        %v5683 = vpop.f32.mrb[0].mxu0
        %v5684 = vadd.f32 0.0, %v5683
        %v5685 = vpop.f32.mrb[0].mxu0
        %v5686 = vpop.f32.mrb[0].mxu0
        %v5687 = vadd.f32 0.0, %v5686
        %v5688 = vpop.f32.mrb[0].mxu0
        %5689 = vmatprep.mubr.bf16.mxu0 0
        %5690 = vmatmul.mubr.bf16.gmra.mrb[0].mxu0 %v5490
        %v5691 = vpop.f32.mrb[0].mxu0
        %v5692 = vadd.f32 0.0, %v5691
        %v5693 = vpop.f32.mrb[0].mxu0
        %v5694 = vpop.f32.mrb[0].mxu0
        %v5695 = vadd.f32 0.0, %v5694
        %v5696 = vpop.f32.mrb[0].mxu0
        %5697 = vmatprep.mubr.bf16.mxu0 0
        %5698 = vmatmul.mubr.bf16.gmra.mrb[0].mxu0 %v5493
        %v5699 = vpop.f32.mrb[0].mxu0
        %v5700 = vadd.f32 0.0, %v5699
        %v5701 = vpop.f32.mrb[0].mxu0
        %v5702 = vpop.f32.mrb[0].mxu0
        %v5703 = vadd.f32 0.0, %v5702
        %v5704 = vpop.f32.mrb[0].mxu0
        %5705 = vmatprep.mubr.bf16.mxu0 0
        %5706 = vmatmul.mubr.bf16.gmra.mrb[0].mxu0 %v5496
        %v5707 = vpop.f32.mrb[0].mxu0
        %v5708 = vadd.f32 0.0, %v5707
        %v5709 = vpop.f32.mrb[0].mxu0
        %v5710 = vpop.f32.mrb[0].mxu0
        %v5711 = vadd.f32 0.0, %v5710
        %v5712 = vpop.f32.mrb[0].mxu0
        %5713 = vmatprep.mubr.bf16.mxu0 0
        %5714 = vmatmul.mubr.bf16.gmra.mrb[0].mxu0 %v5499
        %v5715 = vpop.f32.mrb[0].mxu0
        %v5716 = vadd.f32 0.0, %v5715
        %v5717 = vpop.f32.mrb[0].mxu0
        %v5718 = vpop.f32.mrb[0].mxu0
        %v5719 = vadd.f32 0.0, %v5718
        %v5720 = vpop.f32.mrb[0].mxu0
        %5721 = vmatprep.mubr.bf16.mxu0 0
        %5722 = vmatmul.mubr.bf16.gmra.mrb[0].mxu0 %v5502
        %v5723 = vpop.f32.mrb[0].mxu0
        %v5724 = vadd.f32 0.0, %v5723
        %v5725 = vpop.f32.mrb[0].mxu0
        %v5726 = vpop.f32.mrb[0].mxu0
        %v5727 = vadd.f32 0.0, %v5726
        %v5728 = vpop.f32.mrb[0].mxu0
        %5729 = vmatprep.mubr.bf16.mxu0 0
        %5730 = vmatmul.mubr.bf16.gmra.mrb[0].mxu0 %v5505
        %v5731 = vpop.f32.mrb[0].mxu0
        %v5732 = vadd.f32 0.0, %v5731
        %v5733 = vpop.f32.mrb[0].mxu0
        %v5734 = vpop.f32.mrb[0].mxu0
        %v5735 = vadd.f32 0.0, %v5734
        %v5736 = vpop.f32.mrb[0].mxu0
        %5737 = vmatprep.mubr.bf16.mxu0 0
        %5738 = vmatmul.mubr.bf16.gmra.mrb[0].mxu0 %v5508
        %v5739 = vpop.f32.mrb[0].mxu0
        %v5740 = vadd.f32 0.0, %v5739
        %v5741 = vpop.f32.mrb[0].mxu0
        %v5742 = vpop.f32.mrb[0].mxu0
        %v5743 = vadd.f32 0.0, %v5742
        %v5744 = vpop.f32.mrb[0].mxu0
        %5745 = vmatprep.mubr.bf16.mxu0 0
        %5746 = vmatmul.mubr.bf16.gmra.mrb[0].mxu0 %v5511
        %v5747 = vpop.f32.mrb[0].mxu0
        %v5748 = vadd.f32 0.0, %v5747
        %v5749 = vpop.f32.mrb[0].mxu0
        %v5750 = vpop.f32.mrb[0].mxu0
        %v5751 = vadd.f32 0.0, %v5750
        %v5752 = vpop.f32.mrb[0].mxu0
        %5753 = vmatprep.mubr.bf16.mxu0 0
        %5754 = vmatmul.mubr.bf16.gmra.mrb[0].mxu0 %v5514
        %v5755 = vpop.f32.mrb[0].mxu0
        %v5756 = vadd.f32 0.0, %v5755
        %v5757 = vpop.f32.mrb[0].mxu0
        %v5758 = vpop.f32.mrb[0].mxu0
        %v5759 = vadd.f32 0.0, %v5758
        %v5760 = vpop.f32.mrb[0].mxu0
        %5761 = vmatprep.mubr.bf16.mxu0 0
        %5762 = vmatmul.mubr.bf16.gmra.mrb[0].mxu0 %v5517
        %v5763 = vpop.f32.mrb[0].mxu0
        %v5764 = vadd.f32 0.0, %v5763
        %v5765 = vpop.f32.mrb[0].mxu0
        %v5766 = vpop.f32.mrb[0].mxu0
        %v5767 = vadd.f32 0.0, %v5766
        %v5768 = vpop.f32.mrb[0].mxu0
        %5769 = vmatprep.mubr.bf16.mxu0 0
        %5770 = vmatmul.mubr.bf16.gmra.mrb[0].mxu0 %v5520
        %v5771 = vpop.f32.mrb[0].mxu0
        %v5772 = vadd.f32 0.0, %v5771
        %v5773 = vpop.f32.mrb[0].mxu0
        %v5774 = vpop.f32.mrb[0].mxu0
        %v5775 = vadd.f32 0.0, %v5774
        %v5776 = vpop.f32.mrb[0].mxu0
        %5777 = vmatprep.mubr.bf16.mxu0 0
        %5778 = vmatmul.mubr.bf16.gmra.mrb[0].mxu0 %v5523
        %v5779 = vpop.f32.mrb[0].mxu0
        %v5780 = vadd.f32 0.0, %v5779
        %v5781 = vpop.f32.mrb[0].mxu0
        %v5782 = vpop.f32.mrb[0].mxu0
        %v5783 = vadd.f32 0.0, %v5782
        %v5784 = vpop.f32.mrb[0].mxu0
        %5785 = vmatprep.mubr.bf16.mxu0 0
        %5786 = vmatmul.mubr.bf16.gmra.mrb[0].mxu0 %v5526
        %v5787 = vpop.f32.mrb[0].mxu0
        %v5788 = vadd.f32 0.0, %v5787
        %v5789 = vpop.f32.mrb[0].mxu0
        %v5790 = vpop.f32.mrb[0].mxu0
        %v5791 = vadd.f32 0.0, %v5790
        %v5792 = vpop.f32.mrb[0].mxu0
        %5793 = vmatprep.mubr.bf16.mxu0 0
        %5794 = vmatmul.mubr.bf16.gmra.mrb[0].mxu0 %v5529
        %v5795 = vpop.f32.mrb[0].mxu0
        %v5796 = vadd.f32 0.0, %v5795
        %v5797 = vpop.f32.mrb[0].mxu0
        %v5798 = vpop.f32.mrb[0].mxu0
        %v5799 = vadd.f32 0.0, %v5798
        %v5800 = vpop.f32.mrb[0].mxu0
        %5801 = vmatprep.mubr.bf16.mxu0 0
        %5802 = vmatmul.mubr.bf16.gmra.mrb[0].mxu0 %v5532
        %v5803 = vpop.f32.mrb[0].mxu0
        %v5804 = vadd.f32 0.0, %v5803
        %v5805 = vpop.f32.mrb[0].mxu0
        %v5806 = vpop.f32.mrb[0].mxu0
        %v5807 = vadd.f32 0.0, %v5806
        %v5808 = vpop.f32.mrb[0].mxu0
        %5809 = vmatprep.mubr.bf16.mxu0 0
        %5810 = vmatmul.mubr.bf16.gmra.mrb[0].mxu0 %v5535
        %v5811 = vpop.f32.mrb[0].mxu0
        %v5812 = vadd.f32 0.0, %v5811
        %v5813 = vpop.f32.mrb[0].mxu0
        %v5814 = vpop.f32.mrb[0].mxu0
        %v5815 = vadd.f32 0.0, %v5814
        %v5816 = vpop.f32.mrb[0].mxu0
        %5817 = vmatprep.mubr.bf16.mxu0 0
        %5818 = vmatmul.mubr.bf16.gmra.mrb[0].mxu0 %v5538
        %v5819 = vpop.f32.mrb[0].mxu0
        %v5820 = vadd.f32 0.0, %v5819
        %v5821 = vpop.f32.mrb[0].mxu0
        %v5822 = vpop.f32.mrb[0].mxu0
        %v5823 = vadd.f32 0.0, %v5822
        %v5824 = vpop.f32.mrb[0].mxu0
        %5825 = vmatprep.mubr.bf16.mxu0 0
        %5826 = vmatmul.mubr.bf16.gmra.mrb[0].mxu0 %v5541
        %v5827 = vpop.f32.mrb[0].mxu0
        %v5828 = vadd.f32 0.0, %v5827
        %v5829 = vpop.f32.mrb[0].mxu0
        %v5830 = vpop.f32.mrb[0].mxu0
        %v5831 = vadd.f32 0.0, %v5830
        %v5832 = vpop.f32.mrb[0].mxu0
        %5833 = vmatprep.mubr.bf16.mxu0 0
        %5834 = vmatmul.mubr.bf16.gmra.mrb[0].mxu0 %v5544
        %v5835 = vpop.f32.mrb[0].mxu0
        %v5836 = vadd.f32 0.0, %v5835
        %v5837 = vpop.f32.mrb[0].mxu0
        %v5838 = vpop.f32.mrb[0].mxu0
        %v5839 = vadd.f32 0.0, %v5838
        %v5840 = vpop.f32.mrb[0].mxu0
        %5841 = vmatprep.mubr.bf16.mxu0 0
        %5842 = vmatmul.mubr.bf16.gmra.mrb[0].mxu0 %v5547
        %v5843 = vpop.f32.mrb[0].mxu0
        %v5844 = vadd.f32 0.0, %v5843
        %v5845 = vpop.f32.mrb[0].mxu0
        %v5846 = vpop.f32.mrb[0].mxu0
        %v5847 = vadd.f32 0.0, %v5846
        %v5848 = vpop.f32.mrb[0].mxu0
        %5849 = vmatprep.mubr.bf16.mxu0 0
        %5850 = vmatmul.mubr.bf16.gmra.mrb[0].mxu0 %v5550
        %v5851 = vpop.f32.mrb[0].mxu0
        %v5852 = vadd.f32 0.0, %v5851
        %v5853 = vpop.f32.mrb[0].mxu0
        %v5854 = vpop.f32.mrb[0].mxu0
        %v5855 = vadd.f32 0.0, %v5854
        %v5856 = vpop.f32.mrb[0].mxu0
        %5857 = vmatprep.mubr.bf16.mxu0 0
        %5858 = vmatmul.mubr.bf16.gmra.mrb[0].mxu0 %v5553
        %v5859 = vpop.f32.mrb[0].mxu0
        %v5860 = vadd.f32 0.0, %v5859
        %v5861 = vpop.f32.mrb[0].mxu0
        %v5862 = vpop.f32.mrb[0].mxu0
        %v5863 = vadd.f32 0.0, %v5862
        %v5864 = vpop.f32.mrb[0].mxu0
        %5865 = vmatprep.mubr.bf16.mxu0 0
        %5866 = vmatmul.mubr.bf16.gmra.mrb[0].mxu0 %v5556
        %v5867 = vpop.f32.mrb[0].mxu0
        %v5868 = vadd.f32 0.0, %v5867
        %v5869 = vpop.f32.mrb[0].mxu0
        %v5870 = vpop.f32.mrb[0].mxu0
        %v5871 = vadd.f32 0.0, %v5870
        %v5872 = vpop.f32.mrb[0].mxu0
        %5873 = vmatprep.mubr.bf16.mxu0 0
        %5874 = vmatmul.mubr.bf16.gmra.mrb[0].mxu0 %v5559
        %v5875 = vpop.f32.mrb[0].mxu0
        %v5876 = vadd.f32 0.0, %v5875
        %v5877 = vpop.f32.mrb[0].mxu0
        %v5878 = vpop.f32.mrb[0].mxu0
        %v5879 = vadd.f32 0.0, %v5878
        %v5880 = vpop.f32.mrb[0].mxu0
        %5881 = vdwg.mxu0
        %v5882 = vpack.c.bf16 %v5599, %v5596
        %v5883 = vpack.c.bf16 %v5607, %v5604
        %v5884 = vpack.c.bf16 %v5615, %v5612
        %v5885 = vpack.c.bf16 %v5623, %v5620
        %v5886 = vpack.c.bf16 %v5631, %v5628
        %v5887 = vpack.c.bf16 %v5639, %v5636
        %v5888 = vpack.c.bf16 %v5647, %v5644
        %v5889 = vpack.c.bf16 %v5655, %v5652
        %v5890 = vpack.c.bf16 %v5663, %v5660
        %v5891 = vpack.c.bf16 %v5671, %v5668
        %v5892 = vpack.c.bf16 %v5679, %v5676
        %v5893 = vpack.c.bf16 %v5687, %v5684
        %v5894 = vpack.c.bf16 %v5695, %v5692
        %v5895 = vpack.c.bf16 %v5703, %v5700
        %v5896 = vpack.c.bf16 %v5711, %v5708
        %v5897 = vpack.c.bf16 %v5719, %v5716
        %v5898 = vpack.c.bf16 %v5727, %v5724
        %v5899 = vpack.c.bf16 %v5735, %v5732
        %v5900 = vpack.c.bf16 %v5743, %v5740
        %v5901 = vpack.c.bf16 %v5751, %v5748
        %v5902 = vpack.c.bf16 %v5759, %v5756
        %v5903 = vpack.c.bf16 %v5767, %v5764
        %v5904 = vpack.c.bf16 %v5775, %v5772
        %v5905 = vpack.c.bf16 %v5783, %v5780
        %v5906 = vpack.c.bf16 %v5791, %v5788
        %v5907 = vpack.c.bf16 %v5799, %v5796
        %v5908 = vpack.c.bf16 %v5807, %v5804
        %v5909 = vpack.c.bf16 %v5815, %v5812
        %v5910 = vpack.c.bf16 %v5823, %v5820
        %v5911 = vpack.c.bf16 %v5831, %v5828
        %v5912 = vpack.c.bf16 %v5839, %v5836
        %v5913 = vpack.c.bf16 %v5847, %v5844
        %v5914 = vpack.c.bf16 %v5855, %v5852
        %v5915 = vpack.c.bf16 %v5863, %v5860
        %v5916 = vpack.c.bf16 %v5871, %v5868
        %v5917 = vpack.c.bf16 %v5879, %v5876
        %5918 = vst [vmem:[#allocation2] sm:$0xff] %v5882
        %5919 = vst [vmem:[#allocation2 + $0x48] sm:$0xff] %v5883
        %5920 = vst [vmem:[#allocation2 + $0x90] sm:$0xff] %v5884
        %5921 = vst [vmem:[#allocation2 + $0xd8] sm:$0xff] %v5885
        %5922 = vst [vmem:[#allocation2 + $0x8] sm:$0xff] %v5886
        %5923 = vst [vmem:[#allocation2 + $0x50] sm:$0xff] %v5887
        %5924 = vst [vmem:[#allocation2 + $0x98] sm:$0xff] %v5888
        %5925 = vst [vmem:[#allocation2 + $0xe0] sm:$0xff] %v5889
        %5926 = vst [vmem:[#allocation2 + $0x10] sm:$0xff] %v5890
        %5927 = vst [vmem:[#allocation2 + $0x58] sm:$0xff] %v5891
        %5928 = vst [vmem:[#allocation2 + $0xa0] sm:$0xff] %v5892
        %5929 = vst [vmem:[#allocation2 + $0xe8] sm:$0xff] %v5893
        %5930 = vst [vmem:[#allocation2 + $0x18] sm:$0xff] %v5894
        %5931 = vst [vmem:[#allocation2 + $0x60] sm:$0xff] %v5895
        %5932 = vst [vmem:[#allocation2 + $0xa8] sm:$0xff] %v5896
        %5933 = vst [vmem:[#allocation2 + $0xf0] sm:$0xff] %v5897
        %5934 = vst [vmem:[#allocation2 + $0x20] sm:$0xff] %v5898
        %5935 = vst [vmem:[#allocation2 + $0x68] sm:$0xff] %v5899
        %5936 = vst [vmem:[#allocation2 + $0xb0] sm:$0xff] %v5900
        %5937 = vst [vmem:[#allocation2 + $0xf8] sm:$0xff] %v5901
        %5938 = vst [vmem:[#allocation2 + $0x28] sm:$0xff] %v5902
        %5939 = vst [vmem:[#allocation2 + $0x70] sm:$0xff] %v5903
        %5940 = vst [vmem:[#allocation2 + $0xb8] sm:$0xff] %v5904
        %5941 = vst [vmem:[#allocation2 + $0x100] sm:$0xff] %v5905
        %5942 = vst [vmem:[#allocation2 + $0x30] sm:$0xff] %v5906
        %5943 = vst [vmem:[#allocation2 + $0x78] sm:$0xff] %v5907
        %5944 = vst [vmem:[#allocation2 + $0xc0] sm:$0xff] %v5908
        %5945 = vst [vmem:[#allocation2 + $0x108] sm:$0xff] %v5909
        %5946 = vst [vmem:[#allocation2 + $0x38] sm:$0xff] %v5910
        %5947 = vst [vmem:[#allocation2 + $0x80] sm:$0xff] %v5911
        %5948 = vst [vmem:[#allocation2 + $0xc8] sm:$0xff] %v5912
        %5949 = vst [vmem:[#allocation2 + $0x110] sm:$0xff] %v5913
        %5950 = vst [vmem:[#allocation2 + $0x40] sm:$0xff] %v5914
        %5951 = vst [vmem:[#allocation2 + $0x88] sm:$0xff] %v5915
        %5952 = vst [vmem:[#allocation2 + $0xd0] sm:$0xff] %v5916
        %5953 = vst [vmem:[#allocation2 + $0x118] sm:$0xff] %v5917
        %v5954 = vld [vmem:[#allocation2] sm:$0xff]
        %v5955 = vld [vmem:[#allocation2 + $0x8] sm:$0xff]
        %v5956 = vld [vmem:[#allocation2 + $0x10] sm:$0xff]
        %v5957 = vld [vmem:[#allocation2 + $0x18] sm:$0xff]
        %v5958 = vld [vmem:[#allocation2 + $0x20] sm:$0xff]
        %v5959 = vld [vmem:[#allocation2 + $0x28] sm:$0xff]
        %v5960 = vld [vmem:[#allocation2 + $0x30] sm:$0xff]
        %v5961 = vld [vmem:[#allocation2 + $0x38] sm:$0xff]
        %v5962 = vld [vmem:[#allocation2 + $0x40] sm:$0xff]
        %v5963 = vld [vmem:[#allocation2 + $0x48] sm:$0xff]
        %v5964 = vld [vmem:[#allocation2 + $0x50] sm:$0xff]
        %v5965 = vld [vmem:[#allocation2 + $0x58] sm:$0xff]
        %v5966 = vld [vmem:[#allocation2 + $0x60] sm:$0xff]
        %v5967 = vld [vmem:[#allocation2 + $0x68] sm:$0xff]
        %v5968 = vld [vmem:[#allocation2 + $0x70] sm:$0xff]
        %v5969 = vld [vmem:[#allocation2 + $0x78] sm:$0xff]
        %v5970 = vld [vmem:[#allocation2 + $0x80] sm:$0xff]
        %v5971 = vld [vmem:[#allocation2 + $0x88] sm:$0xff]
        %v5972 = vld [vmem:[#allocation2 + $0x90] sm:$0xff]
        %v5973 = vld [vmem:[#allocation2 + $0x98] sm:$0xff]
        %v5974 = vld [vmem:[#allocation2 + $0xa0] sm:$0xff]
        %v5975 = vld [vmem:[#allocation2 + $0xa8] sm:$0xff]
        %v5976 = vld [vmem:[#allocation2 + $0xb0] sm:$0xff]
        %v5977 = vld [vmem:[#allocation2 + $0xb8] sm:$0xff]
        %v5978 = vld [vmem:[#allocation2 + $0xc0] sm:$0xff]
        %v5979 = vld [vmem:[#allocation2 + $0xc8] sm:$0xff]
        %v5980 = vld [vmem:[#allocation2 + $0xd0] sm:$0xff]
        %v5981 = vld [vmem:[#allocation2 + $0xd8] sm:$0xff]
        %v5982 = vld [vmem:[#allocation2 + $0xe0] sm:$0xff]
        %v5983 = vld [vmem:[#allocation2 + $0xe8] sm:$0xff]
        %v5984 = vld [vmem:[#allocation2 + $0xf0] sm:$0xff]
        %v5985 = vld [vmem:[#allocation2 + $0xf8] sm:$0xff]
        %v5986 = vld [vmem:[#allocation2 + $0x100] sm:$0xff]
        %v5987 = vld [vmem:[#allocation2 + $0x108] sm:$0xff]
        %v5988 = vld [vmem:[#allocation2 + $0x110] sm:$0xff]
        %v5989 = vld [vmem:[#allocation2 + $0x118] sm:$0xff]
        %v5990 = vld [vmem:[#allocation12] sm:$0xf]
        %v5991 = vld [vmem:[#allocation12 + $0x4] sm:$0xf]
        %v5992 = vld [vmem:[#allocation12 + $0x8] sm:$0xf]
        %v5993 = vld [vmem:[#allocation12 + $0xc] sm:$0xf]
        %v5994 = vld [vmem:[#allocation12 + $0x10] sm:$0xf]
        %v5995 = vld [vmem:[#allocation12 + $0x14] sm:$0xf]
        %v5996 = vld [vmem:[#allocation12 + $0x18] sm:$0xf]
        %v5997 = vld [vmem:[#allocation12 + $0x1c] sm:$0xf]
        %v5998 = vld [vmem:[#allocation12 + $0x20] sm:$0xf]
        %v5999 = vld [vmem:[#allocation12 + $0x24] sm:$0xf]
        %v6000 = vld [vmem:[#allocation12 + $0x28] sm:$0xf]
        %v6001 = vld [vmem:[#allocation12 + $0x2c] sm:$0xf]
        %v6002 = vld [vmem:[#allocation12 + $0x30] sm:$0xf]
        %v6003 = vld [vmem:[#allocation12 + $0x34] sm:$0xf]
        %v6004 = vld [vmem:[#allocation12 + $0x38] sm:$0xf]
        %v6005 = vld [vmem:[#allocation12 + $0x3c] sm:$0xf]
        %v6006 = vld [vmem:[#allocation12 + $0x40] sm:$0xf]
        %v6007 = vld [vmem:[#allocation12 + $0x44] sm:$0xf]
        %v6008 = vld [vmem:[#allocation12 + $0x48] sm:$0xf]
        %v6009 = vld [vmem:[#allocation12 + $0x4c] sm:$0xf]
        %v6010 = vld [vmem:[#allocation12 + $0x50] sm:$0xf]
        %v6011 = vld [vmem:[#allocation12 + $0x54] sm:$0xf]
        %v6012 = vld [vmem:[#allocation12 + $0x58] sm:$0xf]
        %v6013 = vld [vmem:[#allocation12 + $0x5c] sm:$0xf]
        %v6014 = vld [vmem:[#allocation12 + $0x60] sm:$0xf]
        %v6015 = vld [vmem:[#allocation12 + $0x64] sm:$0xf]
        %v6016 = vld [vmem:[#allocation12 + $0x68] sm:$0xf]
        %v6017 = vld [vmem:[#allocation12 + $0x6c] sm:$0xf]
        %v6018 = vld [vmem:[#allocation12 + $0x70] sm:$0xf]
        %v6019 = vld [vmem:[#allocation12 + $0x74] sm:$0xf]
        %v6020 = vld [vmem:[#allocation12 + $0x78] sm:$0xf]
        %v6021 = vld [vmem:[#allocation12 + $0x7c] sm:$0xf]
        %v6022 = vld [vmem:[#allocation12 + $0x80] sm:$0xf]
        %v6023 = vld [vmem:[#allocation12 + $0x84] sm:$0xf]
        %v6024 = vld [vmem:[#allocation12 + $0x88] sm:$0xf]
        %v6025 = vld [vmem:[#allocation12 + $0x8c] sm:$0xf]
        %v6026 = vld [vmem:[#allocation12 + $0x90] sm:$0xf]
        %v6027 = vld [vmem:[#allocation12 + $0x94] sm:$0xf]
        %v6028 = vld [vmem:[#allocation12 + $0x98] sm:$0xf]
        %v6029 = vld [vmem:[#allocation12 + $0x9c] sm:$0xf]
        %v6030 = vld [vmem:[#allocation12 + $0xa0] sm:$0xf]
        %v6031 = vld [vmem:[#allocation12 + $0xa4] sm:$0xf]
        %v6032 = vld [vmem:[#allocation12 + $0xa8] sm:$0xf]
        %v6033 = vld [vmem:[#allocation12 + $0xac] sm:$0xf]
        %v6034 = vld [vmem:[#allocation12 + $0xb0] sm:$0xf]
        %v6035 = vld [vmem:[#allocation12 + $0xb4] sm:$0xf]
        %v6036 = vld [vmem:[#allocation12 + $0xb8] sm:$0xf]
        %v6037 = vld [vmem:[#allocation12 + $0xbc] sm:$0xf]
        %v6038 = vld [vmem:[#allocation12 + $0xc0] sm:$0xf]
        %v6039 = vld [vmem:[#allocation12 + $0xc4] sm:$0xf]
        %v6040 = vld [vmem:[#allocation12 + $0xc8] sm:$0xf]
        %v6041 = vld [vmem:[#allocation12 + $0xcc] sm:$0xf]
        %v6042 = vld [vmem:[#allocation12 + $0xd0] sm:$0xf]
        %v6043 = vld [vmem:[#allocation12 + $0xd4] sm:$0xf]
        %v6044 = vld [vmem:[#allocation12 + $0xd8] sm:$0xf]
        %v6045 = vld [vmem:[#allocation12 + $0xdc] sm:$0xf]
        %v6046 = vld [vmem:[#allocation12 + $0xe0] sm:$0xf]
        %v6047 = vld [vmem:[#allocation12 + $0xe4] sm:$0xf]
        %v6048 = vld [vmem:[#allocation12 + $0xe8] sm:$0xf]
        %v6049 = vld [vmem:[#allocation12 + $0xec] sm:$0xf]
        %v6050 = vld [vmem:[#allocation12 + $0xf0] sm:$0xf]
        %v6051 = vld [vmem:[#allocation12 + $0xf4] sm:$0xf]
        %v6052 = vld [vmem:[#allocation12 + $0xf8] sm:$0xf]
        %v6053 = vld [vmem:[#allocation12 + $0xfc] sm:$0xf]
        %v6054 = vld [vmem:[#allocation12 + $0x100] sm:$0xf]
        %v6055 = vld [vmem:[#allocation12 + $0x104] sm:$0xf]
        %v6056 = vld [vmem:[#allocation12 + $0x108] sm:$0xf]
        %v6057 = vld [vmem:[#allocation12 + $0x10c] sm:$0xf]
        %v6058 = vld [vmem:[#allocation12 + $0x110] sm:$0xf]
        %v6059 = vld [vmem:[#allocation12 + $0x114] sm:$0xf]
        %v6060 = vld [vmem:[#allocation12 + $0x118] sm:$0xf]
        %v6061 = vld [vmem:[#allocation12 + $0x11c] sm:$0xf]
        %v6062 = vld [vmem:[#allocation12 + $0x120] sm:$0xf]
        %v6063 = vld [vmem:[#allocation12 + $0x124] sm:$0xf]
        %v6064 = vld [vmem:[#allocation12 + $0x128] sm:$0xf]
        %v6065 = vld [vmem:[#allocation12 + $0x12c] sm:$0xf]
        %v6066 = vld [vmem:[#allocation12 + $0x130] sm:$0xf]
        %v6067 = vld [vmem:[#allocation12 + $0x134] sm:$0xf]
        %v6068 = vld [vmem:[#allocation12 + $0x138] sm:$0xf]
        %v6069 = vld [vmem:[#allocation12 + $0x13c] sm:$0xf]
        %v6070 = vld [vmem:[#allocation12 + $0x140] sm:$0xf]
        %v6071 = vld [vmem:[#allocation12 + $0x144] sm:$0xf]
        %v6072 = vld [vmem:[#allocation12 + $0x148] sm:$0xf]
        %v6073 = vld [vmem:[#allocation12 + $0x14c] sm:$0xf]
        %v6074 = vld [vmem:[#allocation12 + $0x150] sm:$0xf]
        %v6075 = vld [vmem:[#allocation12 + $0x154] sm:$0xf]
        %v6076 = vld [vmem:[#allocation12 + $0x158] sm:$0xf]
        %v6077 = vld [vmem:[#allocation12 + $0x15c] sm:$0xf]
        %v6078 = vld [vmem:[#allocation12 + $0x160] sm:$0xf]
        %v6079 = vld [vmem:[#allocation12 + $0x164] sm:$0xf]
        %v6080 = vld [vmem:[#allocation12 + $0x168] sm:$0xf]
        %v6081 = vld [vmem:[#allocation12 + $0x16c] sm:$0xf]
        %v6082 = vld [vmem:[#allocation12 + $0x170] sm:$0xf]
        %v6083 = vld [vmem:[#allocation12 + $0x174] sm:$0xf]
        %v6084 = vld [vmem:[#allocation12 + $0x178] sm:$0xf]
        %v6085 = vld [vmem:[#allocation12 + $0x17c] sm:$0xf]
        %v6086 = vld [vmem:[#allocation12 + $0x180] sm:$0xf]
        %v6087 = vld [vmem:[#allocation12 + $0x184] sm:$0xf]
        %v6088 = vld [vmem:[#allocation12 + $0x188] sm:$0xf]
        %v6089 = vld [vmem:[#allocation12 + $0x18c] sm:$0xf]
        %v6090 = vld [vmem:[#allocation12 + $0x190] sm:$0xf]
        %v6091 = vld [vmem:[#allocation12 + $0x194] sm:$0xf]
        %v6092 = vld [vmem:[#allocation12 + $0x198] sm:$0xf]
        %v6093 = vld [vmem:[#allocation12 + $0x19c] sm:$0xf]
        %v6094 = vld [vmem:[#allocation12 + $0x1a0] sm:$0xf]
        %v6095 = vld [vmem:[#allocation12 + $0x1a4] sm:$0xf]
        %v6096 = vld [vmem:[#allocation12 + $0x1a8] sm:$0xf]
        %v6097 = vld [vmem:[#allocation12 + $0x1ac] sm:$0xf]
        %v6098 = vld [vmem:[#allocation12 + $0x1b0] sm:$0xf]
        %v6099 = vld [vmem:[#allocation12 + $0x1b4] sm:$0xf]
        %v6100 = vld [vmem:[#allocation12 + $0x1b8] sm:$0xf]
        %v6101 = vld [vmem:[#allocation12 + $0x1bc] sm:$0xf]
        %v6102 = vld [vmem:[#allocation12 + $0x1c0] sm:$0xf]
        %v6103 = vld [vmem:[#allocation12 + $0x1c4] sm:$0xf]
        %v6104 = vld [vmem:[#allocation12 + $0x1c8] sm:$0xf]
        %v6105 = vld [vmem:[#allocation12 + $0x1cc] sm:$0xf]
        %v6106 = vld [vmem:[#allocation12 + $0x1d0] sm:$0xf]
        %v6107 = vld [vmem:[#allocation12 + $0x1d4] sm:$0xf]
        %v6108 = vld [vmem:[#allocation12 + $0x1d8] sm:$0xf]
        %v6109 = vld [vmem:[#allocation12 + $0x1dc] sm:$0xf]
        %v6110 = vld [vmem:[#allocation12 + $0x1e0] sm:$0xf]
        %v6111 = vld [vmem:[#allocation12 + $0x1e4] sm:$0xf]
        %v6112 = vld [vmem:[#allocation12 + $0x1e8] sm:$0xf]
        %v6113 = vld [vmem:[#allocation12 + $0x1ec] sm:$0xf]
        %v6114 = vld [vmem:[#allocation12 + $0x1f0] sm:$0xf]
        %v6115 = vld [vmem:[#allocation12 + $0x1f4] sm:$0xf]
        %v6116 = vld [vmem:[#allocation12 + $0x1f8] sm:$0xf]
        %v6117 = vld [vmem:[#allocation12 + $0x1fc] sm:$0xf]
        %v6118 = vld [vmem:[#allocation12 + $0x200] sm:$0xf]
        %v6119 = vld [vmem:[#allocation12 + $0x204] sm:$0xf]
        %v6120 = vld [vmem:[#allocation12 + $0x208] sm:$0xf]
        %v6121 = vld [vmem:[#allocation12 + $0x20c] sm:$0xf]
        %v6122 = vld [vmem:[#allocation12 + $0x210] sm:$0xf]
        %v6123 = vld [vmem:[#allocation12 + $0x214] sm:$0xf]
        %v6124 = vld [vmem:[#allocation12 + $0x218] sm:$0xf]
        %v6125 = vld [vmem:[#allocation12 + $0x21c] sm:$0xf]
        %v6126 = vld [vmem:[#allocation12 + $0x220] sm:$0xf]
        %v6127 = vld [vmem:[#allocation12 + $0x224] sm:$0xf]
        %v6128 = vld [vmem:[#allocation12 + $0x228] sm:$0xf]
        %v6129 = vld [vmem:[#allocation12 + $0x22c] sm:$0xf]
        %v6130 = vld [vmem:[#allocation12 + $0x230] sm:$0xf]
        %v6131 = vld [vmem:[#allocation12 + $0x234] sm:$0xf]
        %v6132 = vld [vmem:[#allocation12 + $0x238] sm:$0xf]
        %v6133 = vld [vmem:[#allocation12 + $0x23c] sm:$0xf]
        %v6278 = vunpack.c.l.b16 %v5990
        %v6279 = vunpack.c.l.b16 %v5991
        %v6280 = vunpack.c.l.b16 %v5992
        %v6281 = vunpack.c.l.b16 %v5993
        %v6282 = vunpack.c.l.b16 %v5994
        %v6283 = vunpack.c.l.b16 %v5995
        %v6284 = vunpack.c.l.b16 %v5996
        %v6285 = vunpack.c.l.b16 %v5997
        %v6286 = vunpack.c.l.b16 %v5998
        %v6287 = vunpack.c.l.b16 %v5999
        %v6288 = vunpack.c.l.b16 %v6000
        %v6289 = vunpack.c.l.b16 %v6001
        %v6290 = vunpack.c.l.b16 %v6002
        %v6291 = vunpack.c.l.b16 %v6003
        %v6292 = vunpack.c.l.b16 %v6004
        %v6293 = vunpack.c.l.b16 %v6005
        %v6294 = vunpack.c.l.b16 %v6006
        %v6295 = vunpack.c.l.b16 %v6007
        %v6296 = vunpack.c.l.b16 %v6008
        %v6297 = vunpack.c.l.b16 %v6009
        %v6298 = vunpack.c.l.b16 %v6010
        %v6299 = vunpack.c.l.b16 %v6011
        %v6300 = vunpack.c.l.b16 %v6012
        %v6301 = vunpack.c.l.b16 %v6013
        %v6302 = vunpack.c.l.b16 %v6014
        %v6303 = vunpack.c.l.b16 %v6015
        %v6304 = vunpack.c.l.b16 %v6016
        %v6305 = vunpack.c.l.b16 %v6017
        %v6306 = vunpack.c.l.b16 %v6018
        %v6307 = vunpack.c.l.b16 %v6019
        %v6308 = vunpack.c.l.b16 %v6020
        %v6309 = vunpack.c.l.b16 %v6021
        %v6310 = vunpack.c.l.b16 %v6022
        %v6311 = vunpack.c.l.b16 %v6023
        %v6312 = vunpack.c.l.b16 %v6024
        %v6313 = vunpack.c.l.b16 %v6025
        %v6314 = vunpack.c.l.b16 %v6026
        %v6315 = vunpack.c.l.b16 %v6027
        %v6316 = vunpack.c.l.b16 %v6028
        %v6317 = vunpack.c.l.b16 %v6029
        %v6318 = vunpack.c.l.b16 %v6030
        %v6319 = vunpack.c.l.b16 %v6031
        %v6320 = vunpack.c.l.b16 %v6032
        %v6321 = vunpack.c.l.b16 %v6033
        %v6322 = vunpack.c.l.b16 %v6034
        %v6323 = vunpack.c.l.b16 %v6035
        %v6324 = vunpack.c.l.b16 %v6036
        %v6325 = vunpack.c.l.b16 %v6037
        %v6326 = vunpack.c.l.b16 %v6038
        %v6327 = vunpack.c.l.b16 %v6039
        %v6328 = vunpack.c.l.b16 %v6040
        %v6329 = vunpack.c.l.b16 %v6041
        %v6330 = vunpack.c.l.b16 %v6042
        %v6331 = vunpack.c.l.b16 %v6043
        %v6332 = vunpack.c.l.b16 %v6044
        %v6333 = vunpack.c.l.b16 %v6045
        %v6334 = vunpack.c.l.b16 %v6046
        %v6335 = vunpack.c.l.b16 %v6047
        %v6336 = vunpack.c.l.b16 %v6048
        %v6337 = vunpack.c.l.b16 %v6049
        %v6338 = vunpack.c.l.b16 %v6050
        %v6339 = vunpack.c.l.b16 %v6051
        %v6340 = vunpack.c.l.b16 %v6052
        %v6341 = vunpack.c.l.b16 %v6053
        %v6342 = vunpack.c.l.b16 %v6054
        %v6343 = vunpack.c.l.b16 %v6055
        %v6344 = vunpack.c.l.b16 %v6056
        %v6345 = vunpack.c.l.b16 %v6057
        %v6346 = vunpack.c.l.b16 %v6058
        %v6347 = vunpack.c.l.b16 %v6059
        %v6348 = vunpack.c.l.b16 %v6060
        %v6349 = vunpack.c.l.b16 %v6061
        %v6350 = vunpack.c.l.b16 %v6062
        %v6351 = vunpack.c.l.b16 %v6063
        %v6352 = vunpack.c.l.b16 %v6064
        %v6353 = vunpack.c.l.b16 %v6065
        %v6354 = vunpack.c.l.b16 %v6066
        %v6355 = vunpack.c.l.b16 %v6067
        %v6356 = vunpack.c.l.b16 %v6068
        %v6357 = vunpack.c.l.b16 %v6069
        %v6358 = vunpack.c.l.b16 %v6070
        %v6359 = vunpack.c.l.b16 %v6071
        %v6360 = vunpack.c.l.b16 %v6072
        %v6361 = vunpack.c.l.b16 %v6073
        %v6362 = vunpack.c.l.b16 %v6074
        %v6363 = vunpack.c.l.b16 %v6075
        %v6364 = vunpack.c.l.b16 %v6076
        %v6365 = vunpack.c.l.b16 %v6077
        %v6366 = vunpack.c.l.b16 %v6078
        %v6367 = vunpack.c.l.b16 %v6079
        %v6368 = vunpack.c.l.b16 %v6080
        %v6369 = vunpack.c.l.b16 %v6081
        %v6370 = vunpack.c.l.b16 %v6082
        %v6371 = vunpack.c.l.b16 %v6083
        %v6372 = vunpack.c.l.b16 %v6084
        %v6373 = vunpack.c.l.b16 %v6085
        %v6374 = vunpack.c.l.b16 %v6086
        %v6375 = vunpack.c.l.b16 %v6087
        %v6376 = vunpack.c.l.b16 %v6088
        %v6377 = vunpack.c.l.b16 %v6089
        %v6378 = vunpack.c.l.b16 %v6090
        %v6379 = vunpack.c.l.b16 %v6091
        %v6380 = vunpack.c.l.b16 %v6092
        %v6381 = vunpack.c.l.b16 %v6093
        %v6382 = vunpack.c.l.b16 %v6094
        %v6383 = vunpack.c.l.b16 %v6095
        %v6384 = vunpack.c.l.b16 %v6096
        %v6385 = vunpack.c.l.b16 %v6097
        %v6386 = vunpack.c.l.b16 %v6098
        %v6387 = vunpack.c.l.b16 %v6099
        %v6388 = vunpack.c.l.b16 %v6100
        %v6389 = vunpack.c.l.b16 %v6101
        %v6390 = vunpack.c.l.b16 %v6102
        %v6391 = vunpack.c.l.b16 %v6103
        %v6392 = vunpack.c.l.b16 %v6104
        %v6393 = vunpack.c.l.b16 %v6105
        %v6394 = vunpack.c.l.b16 %v6106
        %v6395 = vunpack.c.l.b16 %v6107
        %v6396 = vunpack.c.l.b16 %v6108
        %v6397 = vunpack.c.l.b16 %v6109
        %v6398 = vunpack.c.l.b16 %v6110
        %v6399 = vunpack.c.l.b16 %v6111
        %v6400 = vunpack.c.l.b16 %v6112
        %v6401 = vunpack.c.l.b16 %v6113
        %v6402 = vunpack.c.l.b16 %v6114
        %v6403 = vunpack.c.l.b16 %v6115
        %v6404 = vunpack.c.l.b16 %v6116
        %v6405 = vunpack.c.l.b16 %v6117
        %v6406 = vunpack.c.l.b16 %v6118
        %v6407 = vunpack.c.l.b16 %v6119
        %v6408 = vunpack.c.l.b16 %v6120
        %v6409 = vunpack.c.l.b16 %v6121
        %v6410 = vunpack.c.l.b16 %v6122
        %v6411 = vunpack.c.l.b16 %v6123
        %v6412 = vunpack.c.l.b16 %v6124
        %v6413 = vunpack.c.l.b16 %v6125
        %v6414 = vunpack.c.l.b16 %v6126
        %v6415 = vunpack.c.l.b16 %v6127
        %v6416 = vunpack.c.l.b16 %v6128
        %v6417 = vunpack.c.l.b16 %v6129
        %v6418 = vunpack.c.l.b16 %v6130
        %v6419 = vunpack.c.l.b16 %v6131
        %v6420 = vunpack.c.l.b16 %v6132
        %v6421 = vunpack.c.l.b16 %v6133
        %v6422 = vpack.c.b16 %v6279, %v6278
        %v6423 = vpack.c.b16 %v6281, %v6280
        %v6424 = vpack.c.b16 %v6283, %v6282
        %v6425 = vpack.c.b16 %v6285, %v6284
        %v6426 = vpack.c.b16 %v6287, %v6286
        %v6427 = vpack.c.b16 %v6289, %v6288
        %v6428 = vpack.c.b16 %v6291, %v6290
        %v6429 = vpack.c.b16 %v6293, %v6292
        %v6430 = vpack.c.b16 %v6295, %v6294
        %v6431 = vpack.c.b16 %v6297, %v6296
        %v6432 = vpack.c.b16 %v6299, %v6298
        %v6433 = vpack.c.b16 %v6301, %v6300
        %v6434 = vpack.c.b16 %v6303, %v6302
        %v6435 = vpack.c.b16 %v6305, %v6304
        %v6436 = vpack.c.b16 %v6307, %v6306
        %v6437 = vpack.c.b16 %v6309, %v6308
        %v6438 = vpack.c.b16 %v6311, %v6310
        %v6439 = vpack.c.b16 %v6313, %v6312
        %v6440 = vpack.c.b16 %v6315, %v6314
        %v6441 = vpack.c.b16 %v6317, %v6316
        %v6442 = vpack.c.b16 %v6319, %v6318
        %v6443 = vpack.c.b16 %v6321, %v6320
        %v6444 = vpack.c.b16 %v6323, %v6322
        %v6445 = vpack.c.b16 %v6325, %v6324
        %v6446 = vpack.c.b16 %v6327, %v6326
        %v6447 = vpack.c.b16 %v6329, %v6328
        %v6448 = vpack.c.b16 %v6331, %v6330
        %v6449 = vpack.c.b16 %v6333, %v6332
        %v6450 = vpack.c.b16 %v6335, %v6334
        %v6451 = vpack.c.b16 %v6337, %v6336
        %v6452 = vpack.c.b16 %v6339, %v6338
        %v6453 = vpack.c.b16 %v6341, %v6340
        %v6454 = vpack.c.b16 %v6343, %v6342
        %v6455 = vpack.c.b16 %v6345, %v6344
        %v6456 = vpack.c.b16 %v6347, %v6346
        %v6457 = vpack.c.b16 %v6349, %v6348
        %v6458 = vpack.c.b16 %v6351, %v6350
        %v6459 = vpack.c.b16 %v6353, %v6352
        %v6460 = vpack.c.b16 %v6355, %v6354
        %v6461 = vpack.c.b16 %v6357, %v6356
        %v6462 = vpack.c.b16 %v6359, %v6358
        %v6463 = vpack.c.b16 %v6361, %v6360
        %v6464 = vpack.c.b16 %v6363, %v6362
        %v6465 = vpack.c.b16 %v6365, %v6364
        %v6466 = vpack.c.b16 %v6367, %v6366
        %v6467 = vpack.c.b16 %v6369, %v6368
        %v6468 = vpack.c.b16 %v6371, %v6370
        %v6469 = vpack.c.b16 %v6373, %v6372
        %v6470 = vpack.c.b16 %v6375, %v6374
        %v6471 = vpack.c.b16 %v6377, %v6376
        %v6472 = vpack.c.b16 %v6379, %v6378
        %v6473 = vpack.c.b16 %v6381, %v6380
        %v6474 = vpack.c.b16 %v6383, %v6382
        %v6475 = vpack.c.b16 %v6385, %v6384
        %v6476 = vpack.c.b16 %v6387, %v6386
        %v6477 = vpack.c.b16 %v6389, %v6388
        %v6478 = vpack.c.b16 %v6391, %v6390
        %v6479 = vpack.c.b16 %v6393, %v6392
        %v6480 = vpack.c.b16 %v6395, %v6394
        %v6481 = vpack.c.b16 %v6397, %v6396
        %v6482 = vpack.c.b16 %v6399, %v6398
        %v6483 = vpack.c.b16 %v6401, %v6400
        %v6484 = vpack.c.b16 %v6403, %v6402
        %v6485 = vpack.c.b16 %v6405, %v6404
        %v6486 = vpack.c.b16 %v6407, %v6406
        %v6487 = vpack.c.b16 %v6409, %v6408
        %v6488 = vpack.c.b16 %v6411, %v6410
        %v6489 = vpack.c.b16 %v6413, %v6412
        %v6490 = vpack.c.b16 %v6415, %v6414
        %v6491 = vpack.c.b16 %v6417, %v6416
        %v6492 = vpack.c.b16 %v6419, %v6418
        %v6493 = vpack.c.b16 %v6421, %v6420
        %6566 = vmatprep.subr.bf16.mxu0 0
        %6567 = vmatpush1.bf16.msra.mxu0 %v6422
        %6568 = vmatprep.subr.bf16.mxu0 0
        %6569 = vmatpush1.bf16.msra.mxu0 %v6423
        %6570 = vmatprep.subr.bf16.mxu0 0
        %6571 = vmatpush1.bf16.msra.mxu0 %v6424
        %6572 = vmatprep.subr.bf16.mxu0 0
        %6573 = vmatpush1.bf16.msra.mxu0 %v6425
        %6574 = vmatprep.subr.bf16.mxu0 0
        %6575 = vmatpush1.bf16.msra.mxu0 %v6426
        %6576 = vmatprep.subr.bf16.mxu0 0
        %6577 = vmatpush1.bf16.msra.mxu0 %v6427
        %6578 = vmatprep.subr.bf16.mxu0 0
        %6579 = vmatpush1.bf16.msra.mxu0 %v6428
        %6580 = vmatprep.subr.bf16.mxu0 0
        %6581 = vmatpush1.bf16.msra.mxu0 %v6429
        %6582 = vmatprep.subr.bf16.mxu0 0
        %6583 = vmatpush1.bf16.msra.mxu0 %v6430
        %6584 = vmatprep.subr.bf16.mxu0 0
        %6585 = vmatpush1.bf16.msra.mxu0 %v6431
        %6586 = vmatprep.subr.bf16.mxu0 0
        %6587 = vmatpush1.bf16.msra.mxu0 %v6432
        %6588 = vmatprep.subr.bf16.mxu0 0
        %6589 = vmatpush1.bf16.msra.mxu0 %v6433
        %6590 = vmatprep.subr.bf16.mxu0 0
        %6591 = vmatpush1.bf16.msra.mxu0 %v6434
        %6592 = vmatprep.subr.bf16.mxu0 0
        %6593 = vmatpush1.bf16.msra.mxu0 %v6435
        %6594 = vmatprep.subr.bf16.mxu0 0
        %6595 = vmatpush1.bf16.msra.mxu0 %v6436
        %6596 = vmatprep.subr.bf16.mxu0 0
        %6597 = vmatpush1.bf16.msra.mxu0 %v6437
        %6598 = vmatprep.mubr.bf16.mxu0 %v5955
        %6599 = vmatmul.mubr.bf16.gmra.mrb[0].mxu0 %v5954
        %v6600 = vpop.f32.mrb[0].mxu0
        %v6601 = vadd.f32 0.0, %v6600
        %v6602 = vpop.f32.mrb[0].mxu0
        %v6603 = vpop.f32.mrb[0].mxu0
        %v6604 = vadd.f32 0.0, %v6603
        %v6605 = vpop.f32.mrb[0].mxu0
        %6606 = vmatprep.mubr.bf16.mxu0 %v5964
        %6607 = vmatmul.mubr.bf16.gmra.mrb[0].mxu0 %v5963
        %v6608 = vpop.f32.mrb[0].mxu0
        %v6609 = vadd.f32 0.0, %v6608
        %v6610 = vpop.f32.mrb[0].mxu0
        %v6611 = vpop.f32.mrb[0].mxu0
        %v6612 = vadd.f32 0.0, %v6611
        %v6613 = vpop.f32.mrb[0].mxu0
        %6614 = vmatprep.mubr.bf16.mxu0 %v5973
        %6615 = vmatmul.mubr.bf16.gmra.mrb[0].mxu0 %v5972
        %v6616 = vpop.f32.mrb[0].mxu0
        %v6617 = vadd.f32 0.0, %v6616
        %v6618 = vpop.f32.mrb[0].mxu0
        %v6619 = vpop.f32.mrb[0].mxu0
        %v6620 = vadd.f32 0.0, %v6619
        %v6621 = vpop.f32.mrb[0].mxu0
        %6622 = vmatprep.mubr.bf16.mxu0 %v5982
        %6623 = vmatmul.mubr.bf16.gmra.mrb[0].mxu0 %v5981
        %v6624 = vpop.f32.mrb[0].mxu0
        %v6625 = vadd.f32 0.0, %v6624
        %v6626 = vpop.f32.mrb[0].mxu0
        %v6627 = vpop.f32.mrb[0].mxu0
        %v6628 = vadd.f32 0.0, %v6627
        %v6629 = vpop.f32.mrb[0].mxu0
        %6630 = vdwg.mxu0
        %6631 = vmatprep.subr.bf16.mxu0 0
        %6632 = vmatpush1.bf16.msra.mxu0 %v6438
        %6633 = vmatprep.subr.bf16.mxu0 0
        %6634 = vmatpush1.bf16.msra.mxu0 %v6439
        %6635 = vmatprep.subr.bf16.mxu0 0
        %6636 = vmatpush1.bf16.msra.mxu0 %v6440
        %6637 = vmatprep.subr.bf16.mxu0 0
        %6638 = vmatpush1.bf16.msra.mxu0 %v6441
        %6639 = vmatprep.subr.bf16.mxu0 0
        %6640 = vmatpush1.bf16.msra.mxu0 %v6442
        %6641 = vmatprep.subr.bf16.mxu0 0
        %6642 = vmatpush1.bf16.msra.mxu0 %v6443
        %6643 = vmatprep.subr.bf16.mxu0 0
        %6644 = vmatpush1.bf16.msra.mxu0 %v6444
        %6645 = vmatprep.subr.bf16.mxu0 0
        %6646 = vmatpush1.bf16.msra.mxu0 %v6445
        %6647 = vmatprep.subr.bf16.mxu0 0
        %6648 = vmatpush1.bf16.msra.mxu0 %v6446
        %6649 = vmatprep.subr.bf16.mxu0 0
        %6650 = vmatpush1.bf16.msra.mxu0 %v6447
        %6651 = vmatprep.subr.bf16.mxu0 0
        %6652 = vmatpush1.bf16.msra.mxu0 %v6448
        %6653 = vmatprep.subr.bf16.mxu0 0
        %6654 = vmatpush1.bf16.msra.mxu0 %v6449
        %6655 = vmatprep.subr.bf16.mxu0 0
        %6656 = vmatpush1.bf16.msra.mxu0 %v6450
        %6657 = vmatprep.subr.bf16.mxu0 0
        %6658 = vmatpush1.bf16.msra.mxu0 %v6451
        %6659 = vmatprep.subr.bf16.mxu0 0
        %6660 = vmatpush1.bf16.msra.mxu0 %v6452
        %6661 = vmatprep.subr.bf16.mxu0 0
        %6662 = vmatpush1.bf16.msra.mxu0 %v6453
        %6663 = vmatprep.mubr.bf16.mxu0 %v5957
        %6664 = vmatmul.mubr.bf16.gmra.mrb[0].mxu0 %v5956
        %v6665 = vpop.f32.mrb[0].mxu0
        %v6666 = vadd.f32 %v6601, %v6665
        %v6667 = vpop.f32.mrb[0].mxu0
        %v6668 = vpop.f32.mrb[0].mxu0
        %v6669 = vadd.f32 %v6604, %v6668
        %v6670 = vpop.f32.mrb[0].mxu0
        %6671 = vmatprep.mubr.bf16.mxu0 %v5966
        %6672 = vmatmul.mubr.bf16.gmra.mrb[0].mxu0 %v5965
        %v6673 = vpop.f32.mrb[0].mxu0
        %v6674 = vadd.f32 %v6609, %v6673
        %v6675 = vpop.f32.mrb[0].mxu0
        %v6676 = vpop.f32.mrb[0].mxu0
        %v6677 = vadd.f32 %v6612, %v6676
        %v6678 = vpop.f32.mrb[0].mxu0
        %6679 = vmatprep.mubr.bf16.mxu0 %v5975
        %6680 = vmatmul.mubr.bf16.gmra.mrb[0].mxu0 %v5974
        %v6681 = vpop.f32.mrb[0].mxu0
        %v6682 = vadd.f32 %v6617, %v6681
        %v6683 = vpop.f32.mrb[0].mxu0
        %v6684 = vpop.f32.mrb[0].mxu0
        %v6685 = vadd.f32 %v6620, %v6684
        %v6686 = vpop.f32.mrb[0].mxu0
        %6687 = vmatprep.mubr.bf16.mxu0 %v5984
        %6688 = vmatmul.mubr.bf16.gmra.mrb[0].mxu0 %v5983
        %v6689 = vpop.f32.mrb[0].mxu0
        %v6690 = vadd.f32 %v6625, %v6689
        %v6691 = vpop.f32.mrb[0].mxu0
        %v6692 = vpop.f32.mrb[0].mxu0
        %v6693 = vadd.f32 %v6628, %v6692
        %v6694 = vpop.f32.mrb[0].mxu0
        %6695 = vdwg.mxu0
        %6696 = vmatprep.subr.bf16.mxu0 0
        %6697 = vmatpush1.bf16.msra.mxu0 %v6454
        %6698 = vmatprep.subr.bf16.mxu0 0
        %6699 = vmatpush1.bf16.msra.mxu0 %v6455
        %6700 = vmatprep.subr.bf16.mxu0 0
        %6701 = vmatpush1.bf16.msra.mxu0 %v6456
        %6702 = vmatprep.subr.bf16.mxu0 0
        %6703 = vmatpush1.bf16.msra.mxu0 %v6457
        %6704 = vmatprep.subr.bf16.mxu0 0
        %6705 = vmatpush1.bf16.msra.mxu0 %v6458
        %6706 = vmatprep.subr.bf16.mxu0 0
        %6707 = vmatpush1.bf16.msra.mxu0 %v6459
        %6708 = vmatprep.subr.bf16.mxu0 0
        %6709 = vmatpush1.bf16.msra.mxu0 %v6460
        %6710 = vmatprep.subr.bf16.mxu0 0
        %6711 = vmatpush1.bf16.msra.mxu0 %v6461
        %6712 = vmatprep.subr.bf16.mxu0 0
        %6713 = vmatpush1.bf16.msra.mxu0 %v6462
        %6714 = vmatprep.subr.bf16.mxu0 0
        %6715 = vmatpush1.bf16.msra.mxu0 %v6463
        %6716 = vmatprep.subr.bf16.mxu0 0
        %6717 = vmatpush1.bf16.msra.mxu0 %v6464
        %6718 = vmatprep.subr.bf16.mxu0 0
        %6719 = vmatpush1.bf16.msra.mxu0 %v6465
        %6720 = vmatprep.subr.bf16.mxu0 0
        %6721 = vmatpush1.bf16.msra.mxu0 %v6466
        %6722 = vmatprep.subr.bf16.mxu0 0
        %6723 = vmatpush1.bf16.msra.mxu0 %v6467
        %6724 = vmatprep.subr.bf16.mxu0 0
        %6725 = vmatpush1.bf16.msra.mxu0 %v6468
        %6726 = vmatprep.subr.bf16.mxu0 0
        %6727 = vmatpush1.bf16.msra.mxu0 %v6469
        %6728 = vmatprep.mubr.bf16.mxu0 %v5959
        %6729 = vmatmul.mubr.bf16.gmra.mrb[0].mxu0 %v5958
        %v6730 = vpop.f32.mrb[0].mxu0
        %v6731 = vadd.f32 %v6666, %v6730
        %v6732 = vpop.f32.mrb[0].mxu0
        %v6733 = vpop.f32.mrb[0].mxu0
        %v6734 = vadd.f32 %v6669, %v6733
        %v6735 = vpop.f32.mrb[0].mxu0
        %6736 = vmatprep.mubr.bf16.mxu0 %v5968
        %6737 = vmatmul.mubr.bf16.gmra.mrb[0].mxu0 %v5967
        %v6738 = vpop.f32.mrb[0].mxu0
        %v6739 = vadd.f32 %v6674, %v6738
        %v6740 = vpop.f32.mrb[0].mxu0
        %v6741 = vpop.f32.mrb[0].mxu0
        %v6742 = vadd.f32 %v6677, %v6741
        %v6743 = vpop.f32.mrb[0].mxu0
        %6744 = vmatprep.mubr.bf16.mxu0 %v5977
        %6745 = vmatmul.mubr.bf16.gmra.mrb[0].mxu0 %v5976
        %v6746 = vpop.f32.mrb[0].mxu0
        %v6747 = vadd.f32 %v6682, %v6746
        %v6748 = vpop.f32.mrb[0].mxu0
        %v6749 = vpop.f32.mrb[0].mxu0
        %v6750 = vadd.f32 %v6685, %v6749
        %v6751 = vpop.f32.mrb[0].mxu0
        %6752 = vmatprep.mubr.bf16.mxu0 %v5986
        %6753 = vmatmul.mubr.bf16.gmra.mrb[0].mxu0 %v5985
        %v6754 = vpop.f32.mrb[0].mxu0
        %v6755 = vadd.f32 %v6690, %v6754
        %v6756 = vpop.f32.mrb[0].mxu0
        %v6757 = vpop.f32.mrb[0].mxu0
        %v6758 = vadd.f32 %v6693, %v6757
        %v6759 = vpop.f32.mrb[0].mxu0
        %6760 = vdwg.mxu0
        %6761 = vmatprep.subr.bf16.mxu0 0
        %6762 = vmatpush1.bf16.msra.mxu0 %v6470
        %6763 = vmatprep.subr.bf16.mxu0 0
        %6764 = vmatpush1.bf16.msra.mxu0 %v6471
        %6765 = vmatprep.subr.bf16.mxu0 0
        %6766 = vmatpush1.bf16.msra.mxu0 %v6472
        %6767 = vmatprep.subr.bf16.mxu0 0
        %6768 = vmatpush1.bf16.msra.mxu0 %v6473
        %6769 = vmatprep.subr.bf16.mxu0 0
        %6770 = vmatpush1.bf16.msra.mxu0 %v6474
        %6771 = vmatprep.subr.bf16.mxu0 0
        %6772 = vmatpush1.bf16.msra.mxu0 %v6475
        %6773 = vmatprep.subr.bf16.mxu0 0
        %6774 = vmatpush1.bf16.msra.mxu0 %v6476
        %6775 = vmatprep.subr.bf16.mxu0 0
        %6776 = vmatpush1.bf16.msra.mxu0 %v6477
        %6777 = vmatprep.subr.bf16.mxu0 0
        %6778 = vmatpush1.bf16.msra.mxu0 %v6478
        %6779 = vmatprep.subr.bf16.mxu0 0
        %6780 = vmatpush1.bf16.msra.mxu0 %v6479
        %6781 = vmatprep.subr.bf16.mxu0 0
        %6782 = vmatpush1.bf16.msra.mxu0 %v6480
        %6783 = vmatprep.subr.bf16.mxu0 0
        %6784 = vmatpush1.bf16.msra.mxu0 %v6481
        %6785 = vmatprep.subr.bf16.mxu0 0
        %6786 = vmatpush1.bf16.msra.mxu0 %v6482
        %6787 = vmatprep.subr.bf16.mxu0 0
        %6788 = vmatpush1.bf16.msra.mxu0 %v6483
        %6789 = vmatprep.subr.bf16.mxu0 0
        %6790 = vmatpush1.bf16.msra.mxu0 %v6484
        %6791 = vmatprep.subr.bf16.mxu0 0
        %6792 = vmatpush1.bf16.msra.mxu0 %v6485
        %6793 = vmatprep.mubr.bf16.mxu0 %v5961
        %6794 = vmatmul.mubr.bf16.gmra.mrb[0].mxu0 %v5960
        %v6795 = vpop.f32.mrb[0].mxu0
        %v6796 = vadd.f32 %v6731, %v6795
        %v6797 = vpop.f32.mrb[0].mxu0
        %v6798 = vpop.f32.mrb[0].mxu0
        %v6799 = vadd.f32 %v6734, %v6798
        %v6800 = vpop.f32.mrb[0].mxu0
        %6801 = vmatprep.mubr.bf16.mxu0 %v5970
        %6802 = vmatmul.mubr.bf16.gmra.mrb[0].mxu0 %v5969
        %v6803 = vpop.f32.mrb[0].mxu0
        %v6804 = vadd.f32 %v6739, %v6803
        %v6805 = vpop.f32.mrb[0].mxu0
        %v6806 = vpop.f32.mrb[0].mxu0
        %v6807 = vadd.f32 %v6742, %v6806
        %v6808 = vpop.f32.mrb[0].mxu0
        %6809 = vmatprep.mubr.bf16.mxu0 %v5979
        %6810 = vmatmul.mubr.bf16.gmra.mrb[0].mxu0 %v5978
        %v6811 = vpop.f32.mrb[0].mxu0
        %v6812 = vadd.f32 %v6747, %v6811
        %v6813 = vpop.f32.mrb[0].mxu0
        %v6814 = vpop.f32.mrb[0].mxu0
        %v6815 = vadd.f32 %v6750, %v6814
        %v6816 = vpop.f32.mrb[0].mxu0
        %6817 = vmatprep.mubr.bf16.mxu0 %v5988
        %6818 = vmatmul.mubr.bf16.gmra.mrb[0].mxu0 %v5987
        %v6819 = vpop.f32.mrb[0].mxu0
        %v6820 = vadd.f32 %v6755, %v6819
        %v6821 = vpop.f32.mrb[0].mxu0
        %v6822 = vpop.f32.mrb[0].mxu0
        %v6823 = vadd.f32 %v6758, %v6822
        %v6824 = vpop.f32.mrb[0].mxu0
        %6825 = vdwg.mxu0
        %6826 = vmatprep.subr.bf16.mxu0 0
        %6827 = vmatpush1.bf16.msra.mxu0 %v6486
        %6828 = vmatprep.subr.bf16.mxu0 0
        %6829 = vmatpush1.bf16.msra.mxu0 %v6487
        %6830 = vmatprep.subr.bf16.mxu0 0
        %6831 = vmatpush1.bf16.msra.mxu0 %v6488
        %6832 = vmatprep.subr.bf16.mxu0 0
        %6833 = vmatpush1.bf16.msra.mxu0 %v6489
        %6834 = vmatprep.subr.bf16.mxu0 0
        %6835 = vmatpush1.bf16.msra.mxu0 %v6490
        %6836 = vmatprep.subr.bf16.mxu0 0
        %6837 = vmatpush1.bf16.msra.mxu0 %v6491
        %6838 = vmatprep.subr.bf16.mxu0 0
        %6839 = vmatpush1.bf16.msra.mxu0 %v6492
        %6840 = vmatprep.subr.bf16.mxu0 0
        %6841 = vmatpush1.bf16.msra.mxu0 %v6493
        %6842 = vmatprep.subr.bf16.mxu0 0
        %6843 = vmatpush1.bf16.msra.mxu0 0
        %6844 = vmatprep.subr.bf16.mxu0 0
        %6845 = vmatpush1.bf16.msra.mxu0 0
        %6846 = vmatprep.subr.bf16.mxu0 0
        %6847 = vmatpush1.bf16.msra.mxu0 0
        %6848 = vmatprep.subr.bf16.mxu0 0
        %6849 = vmatpush1.bf16.msra.mxu0 0
        %6850 = vmatprep.subr.bf16.mxu0 0
        %6851 = vmatpush1.bf16.msra.mxu0 0
        %6852 = vmatprep.subr.bf16.mxu0 0
        %6853 = vmatpush1.bf16.msra.mxu0 0
        %6854 = vmatprep.subr.bf16.mxu0 0
        %6855 = vmatpush1.bf16.msra.mxu0 0
        %6856 = vmatprep.subr.bf16.mxu0 0
        %6857 = vmatpush1.bf16.msra.mxu0 0
        %6858 = vmatprep.mubr.bf16.mxu0 0
        %6859 = vmatmul.mubr.bf16.gmra.mrb[0].mxu0 %v5962
        %v6860 = vpop.f32.mrb[0].mxu0
        %v6861 = vadd.f32 %v6796, %v6860
        %v6862 = vpop.f32.mrb[0].mxu0
        %v6863 = vpop.f32.mrb[0].mxu0
        %v6864 = vadd.f32 %v6799, %v6863
        %v6865 = vpop.f32.mrb[0].mxu0
        %6866 = vmatprep.mubr.bf16.mxu0 0
        %6867 = vmatmul.mubr.bf16.gmra.mrb[0].mxu0 %v5971
        %v6868 = vpop.f32.mrb[0].mxu0
        %v6869 = vadd.f32 %v6804, %v6868
        %v6870 = vpop.f32.mrb[0].mxu0
        %v6871 = vpop.f32.mrb[0].mxu0
        %v6872 = vadd.f32 %v6807, %v6871
        %v6873 = vpop.f32.mrb[0].mxu0
        %6874 = vmatprep.mubr.bf16.mxu0 0
        %6875 = vmatmul.mubr.bf16.gmra.mrb[0].mxu0 %v5980
        %v6876 = vpop.f32.mrb[0].mxu0
        %v6877 = vadd.f32 %v6812, %v6876
        %v6878 = vpop.f32.mrb[0].mxu0
        %v6879 = vpop.f32.mrb[0].mxu0
        %v6880 = vadd.f32 %v6815, %v6879
        %v6881 = vpop.f32.mrb[0].mxu0
        %6882 = vmatprep.mubr.bf16.mxu0 0
        %6883 = vmatmul.mubr.bf16.gmra.mrb[0].mxu0 %v5989
        %v6884 = vpop.f32.mrb[0].mxu0
        %v6885 = vadd.f32 %v6820, %v6884
        %v6886 = vpop.f32.mrb[0].mxu0
        %v6887 = vpop.f32.mrb[0].mxu0
        %v6888 = vadd.f32 %v6823, %v6887
        %v6889 = vpop.f32.mrb[0].mxu0
        %6890 = vdwg.mxu0
        %v6891 = vadd.f32 %v6861, %v6864
        %v6892 = vadd.f32 %v6891, %v6869
        %v6893 = vadd.f32 %v6892, %v6872
        %v6894 = vadd.f32 %v6893, %v6877
        %v6895 = vadd.f32 %v6894, %v6880
        %v6896 = vadd.f32 %v6895, %v6885
        %v6897 = vadd.f32 %v6896, %v6888
        %v6898 = vrot.slane %v6897, 4
        %v6899 = vadd.f32 %v6897, %v6898
        %v6900 = vrot.slane %v6899, 2
        %v6901 = vadd.f32 %v6899, %v6900
        %v6902 = vrot.slane %v6901, 1
        %v6903 = vadd.f32 %v6901, %v6902
        %v6904 = vmul.f32 %v6861, %v6861
        %v6905 = vmul.f32 %v6864, %v6864
        %v6906 = vmul.f32 %v6869, %v6869
        %v6907 = vmul.f32 %v6872, %v6872
        %v6908 = vmul.f32 %v6877, %v6877
        %v6909 = vmul.f32 %v6880, %v6880
        %v6910 = vmul.f32 %v6885, %v6885
        %v6911 = vmul.f32 %v6888, %v6888
        %v6912 = vadd.f32 %v6904, %v6905
        %v6913 = vadd.f32 %v6912, %v6906
        %v6914 = vadd.f32 %v6913, %v6907
        %v6915 = vadd.f32 %v6914, %v6908
        %v6916 = vadd.f32 %v6915, %v6909
        %v6917 = vadd.f32 %v6916, %v6910
        %v6918 = vadd.f32 %v6917, %v6911
        %v6919 = vrot.slane %v6918, 4
        %v6920 = vadd.f32 %v6918, %v6919
        %v6921 = vrot.slane %v6920, 2
        %v6922 = vadd.f32 %v6920, %v6921
        %v6923 = vrot.slane %v6922, 1
        %v6924 = vadd.f32 %v6922, %v6923
        %v6925 = vld [vmem:[#allocation13] sm:$0xff]
        %v6926 = vld [vmem:[#allocation13 + $0x8] sm:$0xff]
        %v6927 = vld [vmem:[#allocation13 + $0x10] sm:$0xff]
        %v6928 = vld [vmem:[#allocation13 + $0x18] sm:$0xff]
        %v6929 = vld [vmem:[#allocation13 + $0x20] sm:$0xff]
        %v6930 = vld [vmem:[#allocation13 + $0x28] sm:$0xff]
        %v6931 = vld [vmem:[#allocation13 + $0x30] sm:$0xff]
        %v6932 = vld [vmem:[#allocation13 + $0x38] sm:$0xff]
        %v6933 = vld [vmem:[#allocation13 + $0x40] sm:$0xff]
        %v6934 = vld [vmem:[#allocation13 + $0x48] sm:$0xff]
        %v6935 = vld [vmem:[#allocation13 + $0x50] sm:$0xff]
        %v6936 = vld [vmem:[#allocation13 + $0x58] sm:$0xff]
        %v6937 = vld [vmem:[#allocation13 + $0x60] sm:$0xff]
        %v6938 = vld [vmem:[#allocation13 + $0x68] sm:$0xff]
        %v6939 = vld [vmem:[#allocation13 + $0x70] sm:$0xff]
        %v6940 = vld [vmem:[#allocation13 + $0x78] sm:$0xff]
        %6941 = vmatprep.subr.mxu0 0.0
        %6942 = vmatpush1.msra.mxu0 %v6925
        %6943 = vmatprep.subr.mxu0 0.0
        %6944 = vmatpush1.msra.mxu0 %v6926
        %6945 = vmatprep.subr.mxu0 0.0
        %6946 = vmatpush1.msra.mxu0 %v6927
        %6947 = vmatprep.subr.mxu0 0.0
        %6948 = vmatpush1.msra.mxu0 %v6928
        %6949 = vmatprep.subr.mxu0 0.0
        %6950 = vmatpush1.msra.mxu0 %v6929
        %6951 = vmatprep.subr.mxu0 0.0
        %6952 = vmatpush1.msra.mxu0 %v6930
        %6953 = vmatprep.subr.mxu0 0.0
        %6954 = vmatpush1.msra.mxu0 %v6931
        %6955 = vmatprep.subr.mxu0 0.0
        %6956 = vmatpush1.msra.mxu0 %v6932
        %6957 = vmatprep.subr.mxu0 0.0
        %6958 = vmatpush1.msra.mxu0 %v6933
        %6959 = vmatprep.subr.mxu0 0.0
        %6960 = vmatpush1.msra.mxu0 %v6934
        %6961 = vmatprep.subr.mxu0 0.0
        %6962 = vmatpush1.msra.mxu0 %v6935
        %6963 = vmatprep.subr.mxu0 0.0
        %6964 = vmatpush1.msra.mxu0 %v6936
        %6965 = vmatprep.subr.mxu0 0.0
        %6966 = vmatpush1.msra.mxu0 %v6937
        %6967 = vmatprep.subr.mxu0 0.0
        %6968 = vmatpush1.msra.mxu0 %v6938
        %6969 = vmatprep.subr.mxu0 0.0
        %6970 = vmatpush1.msra.mxu0 %v6939
        %6971 = vmatprep.subr.mxu0 0.0
        %6972 = vmatpush1.msra.mxu0 %v6940
        %6973 = vmatprep.subr.mxu0 0.0
        %6974 = vmatpush1.msra.mxu0 0.0
        %6975 = vmatprep.subr.mxu0 0.0
        %6976 = vmatpush1.msra.mxu0 0.0
        %6977 = vmatprep.subr.mxu0 0.0
        %6978 = vmatpush1.msra.mxu0 0.0
        %6979 = vmatprep.subr.mxu0 0.0
        %6980 = vmatpush1.msra.mxu0 0.0
        %6981 = vmatprep.subr.mxu0 0.0
        %6982 = vmatpush1.msra.mxu0 0.0
        %6983 = vmatprep.subr.mxu0 0.0
        %6984 = vmatpush1.msra.mxu0 0.0
        %6985 = vmatprep.subr.mxu0 0.0
        %6986 = vmatpush1.msra.mxu0 0.0
        %6987 = vmatprep.subr.mxu0 0.0
        %6988 = vmatpush1.msra.mxu0 0.0
        %6989 = vmatprep.subr.mxu0 0.0
        %6990 = vmatpush1.msra.mxu0 0.0
        %6991 = vmatprep.subr.mxu0 0.0
        %6992 = vmatpush1.msra.mxu0 0.0
        %6993 = vmatprep.subr.mxu0 0.0
        %6994 = vmatpush1.msra.mxu0 0.0
        %6995 = vmatprep.subr.mxu0 0.0
        %6996 = vmatpush1.msra.mxu0 0.0
        %6997 = vmatprep.subr.mxu0 0.0
        %6998 = vmatpush1.msra.mxu0 0.0
        %6999 = vmatprep.subr.mxu0 0.0
        %7000 = vmatpush1.msra.mxu0 0.0
        %7001 = vmatprep.subr.mxu0 0.0
        %7002 = vmatpush1.msra.mxu0 0.0
        %7003 = vmatprep.subr.mxu0 0.0
        %7004 = vmatpush1.msra.mxu0 0.0
        %7005 = vmatprep.mubr.f32.mxu0 0.0
        %7006 = vmatmul.mubr.f32.gmra.mrb[0].mxu0 %v6903
        %v7007 = vpop.f32.mrb[0].mxu0
        %v7008 = vadd.f32 0.0, %v7007
        %v7009 = vpop.f32.mrb[0].mxu0
        %7010 = vdwg.mxu0
        %7011 = vmatprep.subr.mxu0 0.0
        %7012 = vmatpush1.msra.mxu0 %v6925
        %7013 = vmatprep.subr.mxu0 0.0
        %7014 = vmatpush1.msra.mxu0 %v6926
        %7015 = vmatprep.subr.mxu0 0.0
        %7016 = vmatpush1.msra.mxu0 %v6927
        %7017 = vmatprep.subr.mxu0 0.0
        %7018 = vmatpush1.msra.mxu0 %v6928
        %7019 = vmatprep.subr.mxu0 0.0
        %7020 = vmatpush1.msra.mxu0 %v6929
        %7021 = vmatprep.subr.mxu0 0.0
        %7022 = vmatpush1.msra.mxu0 %v6930
        %7023 = vmatprep.subr.mxu0 0.0
        %7024 = vmatpush1.msra.mxu0 %v6931
        %7025 = vmatprep.subr.mxu0 0.0
        %7026 = vmatpush1.msra.mxu0 %v6932
        %7027 = vmatprep.subr.mxu0 0.0
        %7028 = vmatpush1.msra.mxu0 %v6933
        %7029 = vmatprep.subr.mxu0 0.0
        %7030 = vmatpush1.msra.mxu0 %v6934
        %7031 = vmatprep.subr.mxu0 0.0
        %7032 = vmatpush1.msra.mxu0 %v6935
        %7033 = vmatprep.subr.mxu0 0.0
        %7034 = vmatpush1.msra.mxu0 %v6936
        %7035 = vmatprep.subr.mxu0 0.0
        %7036 = vmatpush1.msra.mxu0 %v6937
        %7037 = vmatprep.subr.mxu0 0.0
        %7038 = vmatpush1.msra.mxu0 %v6938
        %7039 = vmatprep.subr.mxu0 0.0
        %7040 = vmatpush1.msra.mxu0 %v6939
        %7041 = vmatprep.subr.mxu0 0.0
        %7042 = vmatpush1.msra.mxu0 %v6940
        %7043 = vmatprep.subr.mxu0 0.0
        %7044 = vmatpush1.msra.mxu0 0.0
        %7045 = vmatprep.subr.mxu0 0.0
        %7046 = vmatpush1.msra.mxu0 0.0
        %7047 = vmatprep.subr.mxu0 0.0
        %7048 = vmatpush1.msra.mxu0 0.0
        %7049 = vmatprep.subr.mxu0 0.0
        %7050 = vmatpush1.msra.mxu0 0.0
        %7051 = vmatprep.subr.mxu0 0.0
        %7052 = vmatpush1.msra.mxu0 0.0
        %7053 = vmatprep.subr.mxu0 0.0
        %7054 = vmatpush1.msra.mxu0 0.0
        %7055 = vmatprep.subr.mxu0 0.0
        %7056 = vmatpush1.msra.mxu0 0.0
        %7057 = vmatprep.subr.mxu0 0.0
        %7058 = vmatpush1.msra.mxu0 0.0
        %7059 = vmatprep.subr.mxu0 0.0
        %7060 = vmatpush1.msra.mxu0 0.0
        %7061 = vmatprep.subr.mxu0 0.0
        %7062 = vmatpush1.msra.mxu0 0.0
        %7063 = vmatprep.subr.mxu0 0.0
        %7064 = vmatpush1.msra.mxu0 0.0
        %7065 = vmatprep.subr.mxu0 0.0
        %7066 = vmatpush1.msra.mxu0 0.0
        %7067 = vmatprep.subr.mxu0 0.0
        %7068 = vmatpush1.msra.mxu0 0.0
        %7069 = vmatprep.subr.mxu0 0.0
        %7070 = vmatpush1.msra.mxu0 0.0
        %7071 = vmatprep.subr.mxu0 0.0
        %7072 = vmatpush1.msra.mxu0 0.0
        %7073 = vmatprep.subr.mxu0 0.0
        %7074 = vmatpush1.msra.mxu0 0.0
        %7075 = vmatprep.mubr.f32.mxu0 0.0
        %7076 = vmatmul.mubr.f32.gmra.mrb[0].mxu0 %v6924
        %v7077 = vpop.f32.mrb[0].mxu0
        %v7078 = vadd.f32 0.0, %v7077
        %v7079 = vpop.f32.mrb[0].mxu0
        %7080 = vdwg.mxu0
        %v7081 = vmul.f32 %v7008, %v7008
        %v7082 = vsub.f32 %v7078, %v7081
        %v7083 = vmax.f32 %v7082, 0.0
        %v7084 = vlaneseq
        %v7085 = vshrl.u32 %v7084, 7
        %v7086 = vsub.s32 0, %v7085
        %v7087 = vrot.slane %v7008, %v7086
        %v7088 = vsub.f32 %v6861, %v7087
        %v7089 = vsub.f32 %v6864, %v7087
        %v7090 = vsub.f32 %v6869, %v7087
        %v7091 = vsub.f32 %v6872, %v7087
        %v7092 = vsub.f32 %v6877, %v7087
        %v7093 = vsub.f32 %v6880, %v7087
        %v7094 = vsub.f32 %v6885, %v7087
        %v7095 = vsub.f32 %v6888, %v7087
        %v7096 = vadd.f32 %v7083, 1e-05
        %v7097 = vrsqrt.pop %v7096
        %v7098 = vlaneseq
        %v7099 = vshrl.u32 %v7098, 7
        %v7100 = vsub.s32 0, %v7099
        %v7101 = vrot.slane %v7097, %v7100
        %v7102 = vmul.f32 %v7088, %v7101
        %v7103 = vmul.f32 %v7089, %v7101
        %v7104 = vmul.f32 %v7090, %v7101
        %v7105 = vmul.f32 %v7091, %v7101
        %v7106 = vmul.f32 %v7092, %v7101
        %v7107 = vmul.f32 %v7093, %v7101
        %v7108 = vmul.f32 %v7094, %v7101
        %v7109 = vmul.f32 %v7095, %v7101
        %v7110 = vld [vmem:[#allocation15] sm:$0x1]
        %v7112 = vlaneseq
        %v7113 = vshrl.u32 %v7112, 7
        %v7114 = vsub.s32 0, %v7113
        %v7115 = vrot.slane %v7110, %v7114
        %v7117 = vmul.f32 %v7102, %v7115
        %v7118 = vmul.f32 %v7103, %v7115
        %v7119 = vmul.f32 %v7104, %v7115
        %v7120 = vmul.f32 %v7105, %v7115
        %v7121 = vmul.f32 %v7106, %v7115
        %v7122 = vmul.f32 %v7107, %v7115
        %v7123 = vmul.f32 %v7108, %v7115
        %v7124 = vmul.f32 %v7109, %v7115
        %v7125 = vld [vmem:[#allocation16] sm:$0x1]
        %v7127 = vlaneseq
        %v7128 = vshrl.u32 %v7127, 7
        %v7129 = vsub.s32 0, %v7128
        %v7130 = vrot.slane %v7125, %v7129
        %v7132 = vadd.f32 %v7117, %v7130
        %v7133 = vadd.f32 %v7118, %v7130
        %v7134 = vadd.f32 %v7119, %v7130
        %v7135 = vadd.f32 %v7120, %v7130
        %v7136 = vadd.f32 %v7121, %v7130
        %v7137 = vadd.f32 %v7122, %v7130
        %v7138 = vadd.f32 %v7123, %v7130
        %v7139 = vadd.f32 %v7124, %v7130
        %v7140 = vand.u32 2147483647, %v7132
        %v7141 = vand.u32 2147483647, %v7133
        %v7142 = vand.u32 2147483647, %v7134
        %v7143 = vand.u32 2147483647, %v7135
        %v7144 = vand.u32 2147483647, %v7136
        %v7145 = vand.u32 2147483647, %v7137
        %v7146 = vand.u32 2147483647, %v7138
        %v7147 = vand.u32 2147483647, %v7139
        %v7148 = vsub.f32 0.0, %v7140
        %v7149 = vsub.f32 0.0, %v7141
        %v7150 = vsub.f32 0.0, %v7142
        %v7151 = vsub.f32 0.0, %v7143
        %v7152 = vsub.f32 0.0, %v7144
        %v7153 = vsub.f32 0.0, %v7145
        %v7154 = vsub.f32 0.0, %v7146
        %v7155 = vsub.f32 0.0, %v7147
        %v7156 = vmul.f32 %v7148, 1.442695
        %v7157 = vpow.pop %v7156
        %v7158 = vmul.f32 %v7149, 1.442695
        %v7159 = vpow.pop %v7158
        %v7160 = vmul.f32 %v7150, 1.442695
        %v7161 = vpow.pop %v7160
        %v7162 = vmul.f32 %v7151, 1.442695
        %v7163 = vpow.pop %v7162
        %v7164 = vmul.f32 %v7152, 1.442695
        %v7165 = vpow.pop %v7164
        %v7166 = vmul.f32 %v7153, 1.442695
        %v7167 = vpow.pop %v7166
        %v7168 = vmul.f32 %v7154, 1.442695
        %v7169 = vpow.pop %v7168
        %v7170 = vmul.f32 %v7155, 1.442695
        %v7171 = vpow.pop %v7170
        %v7172 = vadd.f32 %v7157, 1.0
        %v7173 = vadd.f32 %v7159, 1.0
        %v7174 = vadd.f32 %v7161, 1.0
        %v7175 = vadd.f32 %v7163, 1.0
        %v7176 = vadd.f32 %v7165, 1.0
        %v7177 = vadd.f32 %v7167, 1.0
        %v7178 = vadd.f32 %v7169, 1.0
        %v7179 = vadd.f32 %v7171, 1.0
        %v7180 = vlog2.pop %v7172
        %v7181 = vmul.f32 %v7180, 0.6931472
        %v7182 = vlog2.pop %v7173
        %v7183 = vmul.f32 %v7182, 0.6931472
        %v7184 = vlog2.pop %v7174
        %v7185 = vmul.f32 %v7184, 0.6931472
        %v7186 = vlog2.pop %v7175
        %v7187 = vmul.f32 %v7186, 0.6931472
        %v7188 = vlog2.pop %v7176
        %v7189 = vmul.f32 %v7188, 0.6931472
        %v7190 = vlog2.pop %v7177
        %v7191 = vmul.f32 %v7190, 0.6931472
        %v7192 = vlog2.pop %v7178
        %v7193 = vmul.f32 %v7192, 0.6931472
        %v7194 = vlog2.pop %v7179
        %v7195 = vmul.f32 %v7194, 0.6931472
        %v7196 = vmax.f32 %v7132, 0.0
        %v7197 = vmax.f32 %v7133, 0.0
        %v7198 = vmax.f32 %v7134, 0.0
        %v7199 = vmax.f32 %v7135, 0.0
        %v7200 = vmax.f32 %v7136, 0.0
        %v7201 = vmax.f32 %v7137, 0.0
        %v7202 = vmax.f32 %v7138, 0.0
        %v7203 = vmax.f32 %v7139, 0.0
        %v7204 = vadd.f32 %v7181, %v7196
        %v7205 = vadd.f32 %v7183, %v7197
        %v7206 = vadd.f32 %v7185, %v7198
        %v7207 = vadd.f32 %v7187, %v7199
        %v7208 = vadd.f32 %v7189, %v7200
        %v7209 = vadd.f32 %v7191, %v7201
        %v7210 = vadd.f32 %v7193, %v7202
        %v7211 = vadd.f32 %v7195, %v7203
        %v7212 = vtanh.pop %v7204
        %v7213 = vtanh.pop %v7205
        %v7214 = vtanh.pop %v7206
        %v7215 = vtanh.pop %v7207
        %v7216 = vtanh.pop %v7208
        %v7217 = vtanh.pop %v7209
        %v7218 = vtanh.pop %v7210
        %v7219 = vtanh.pop %v7211
        %v7220 = vmul.f32 %v7132, %v7212
        %v7221 = vmul.f32 %v7133, %v7213
        %v7222 = vmul.f32 %v7134, %v7214
        %v7223 = vmul.f32 %v7135, %v7215
        %v7224 = vmul.f32 %v7136, %v7216
        %v7225 = vmul.f32 %v7137, %v7217
        %v7226 = vmul.f32 %v7138, %v7218
        %v7227 = vmul.f32 %v7139, %v7219
        %v7228 = vld [vmem:[%s2] sm:$0xf]
        %v7229 = vld [vmem:[%s2 + $0x4] sm:$0xf]
        %v7230 = vld [vmem:[%s2 + $0x8] sm:$0xf]
        %v7231 = vld [vmem:[%s2 + $0xc] sm:$0xf]
        %v7232 = vld [vmem:[%s2 + $0x10] sm:$0xf]
        %v7233 = vld [vmem:[%s2 + $0x14] sm:$0xf]
        %v7234 = vld [vmem:[%s2 + $0x18] sm:$0xf]
        %v7235 = vld [vmem:[%s2 + $0x1c] sm:$0xf]
        %v7236 = vld [vmem:[%s2 + $0x20] sm:$0xf]
        %v7237 = vld [vmem:[%s2 + $0x24] sm:$0xf]
        %v7238 = vld [vmem:[%s2 + $0x28] sm:$0xf]
        %v7239 = vld [vmem:[%s2 + $0x2c] sm:$0xf]
        %v7240 = vld [vmem:[%s2 + $0x30] sm:$0xf]
        %v7241 = vld [vmem:[%s2 + $0x34] sm:$0xf]
        %v7242 = vld [vmem:[%s2 + $0x38] sm:$0xf]
        %v7243 = vld [vmem:[%s2 + $0x3c] sm:$0xf]
        %v7244 = vld [vmem:[%s2 + $0x40] sm:$0xf]
        %v7245 = vld [vmem:[%s2 + $0x44] sm:$0xf]
        %v7246 = vld [vmem:[%s2 + $0x48] sm:$0xf]
        %v7247 = vld [vmem:[%s2 + $0x4c] sm:$0xf]
        %v7248 = vld [vmem:[%s2 + $0x50] sm:$0xf]
        %v7249 = vld [vmem:[%s2 + $0x54] sm:$0xf]
        %v7250 = vld [vmem:[%s2 + $0x58] sm:$0xf]
        %v7251 = vld [vmem:[%s2 + $0x5c] sm:$0xf]
        %v7252 = vld [vmem:[%s2 + $0x60] sm:$0xf]
        %v7253 = vld [vmem:[%s2 + $0x64] sm:$0xf]
        %v7254 = vld [vmem:[%s2 + $0x68] sm:$0xf]
        %v7255 = vld [vmem:[%s2 + $0x6c] sm:$0xf]
        %v7256 = vld [vmem:[%s2 + $0x70] sm:$0xf]
        %v7257 = vld [vmem:[%s2 + $0x74] sm:$0xf]
        %v7258 = vld [vmem:[%s2 + $0x78] sm:$0xf]
        %v7259 = vld [vmem:[%s2 + $0x7c] sm:$0xf]
        %v7260 = vld [vmem:[%s2 + $0x80] sm:$0xf]
        %v7261 = vld [vmem:[%s2 + $0x84] sm:$0xf]
        %v7262 = vld [vmem:[%s2 + $0x88] sm:$0xf]
        %v7263 = vld [vmem:[%s2 + $0x8c] sm:$0xf]
        %v7264 = vld [vmem:[%s2 + $0x90] sm:$0xf]
        %v7265 = vld [vmem:[%s2 + $0x94] sm:$0xf]
        %v7266 = vld [vmem:[%s2 + $0x98] sm:$0xf]
        %v7267 = vld [vmem:[%s2 + $0x9c] sm:$0xf]
        %v7268 = vld [vmem:[%s2 + $0xa0] sm:$0xf]
        %v7269 = vld [vmem:[%s2 + $0xa4] sm:$0xf]
        %v7270 = vld [vmem:[%s2 + $0xa8] sm:$0xf]
        %v7271 = vld [vmem:[%s2 + $0xac] sm:$0xf]
        %v7272 = vld [vmem:[%s2 + $0xb0] sm:$0xf]
        %v7273 = vld [vmem:[%s2 + $0xb4] sm:$0xf]
        %v7274 = vld [vmem:[%s2 + $0xb8] sm:$0xf]
        %v7275 = vld [vmem:[%s2 + $0xbc] sm:$0xf]
        %v7276 = vld [vmem:[%s2 + $0xc0] sm:$0xf]
        %v7277 = vld [vmem:[%s2 + $0xc4] sm:$0xf]
        %v7278 = vld [vmem:[%s2 + $0xc8] sm:$0xf]
        %v7279 = vld [vmem:[%s2 + $0xcc] sm:$0xf]
        %v7280 = vld [vmem:[%s2 + $0xd0] sm:$0xf]
        %v7281 = vld [vmem:[%s2 + $0xd4] sm:$0xf]
        %v7282 = vld [vmem:[%s2 + $0xd8] sm:$0xf]
        %v7283 = vld [vmem:[%s2 + $0xdc] sm:$0xf]
        %v7284 = vld [vmem:[%s2 + $0xe0] sm:$0xf]
        %v7285 = vld [vmem:[%s2 + $0xe4] sm:$0xf]
        %v7286 = vld [vmem:[%s2 + $0xe8] sm:$0xf]
        %v7287 = vld [vmem:[%s2 + $0xec] sm:$0xf]
        %v7288 = vld [vmem:[%s2 + $0xf0] sm:$0xf]
        %v7289 = vld [vmem:[%s2 + $0xf4] sm:$0xf]
        %v7290 = vld [vmem:[%s2 + $0xf8] sm:$0xf]
        %v7291 = vld [vmem:[%s2 + $0xfc] sm:$0xf]
        %v7292 = vld [vmem:[%s2 + $0x100] sm:$0xf]
        %v7293 = vld [vmem:[%s2 + $0x104] sm:$0xf]
        %v7294 = vld [vmem:[%s2 + $0x108] sm:$0xf]
        %v7295 = vld [vmem:[%s2 + $0x10c] sm:$0xf]
        %v7296 = vld [vmem:[%s2 + $0x110] sm:$0xf]
        %v7297 = vld [vmem:[%s2 + $0x114] sm:$0xf]
        %v7298 = vld [vmem:[%s2 + $0x118] sm:$0xf]
        %v7299 = vld [vmem:[%s2 + $0x11c] sm:$0xf]
        %v7300 = vpack.c.bf16 %v7221, %v7220
        %v7301 = vpack.c.bf16 %v7223, %v7222
        %v7302 = vpack.c.bf16 %v7225, %v7224
        %v7303 = vpack.c.bf16 %v7227, %v7226
        %v7376 = vunpack.c.l.b16 %v7228
        %v7377 = vunpack.c.l.b16 %v7229
        %v7378 = vunpack.c.l.b16 %v7230
        %v7379 = vunpack.c.l.b16 %v7231
        %v7380 = vunpack.c.l.b16 %v7232
        %v7381 = vunpack.c.l.b16 %v7233
        %v7382 = vunpack.c.l.b16 %v7234
        %v7383 = vunpack.c.l.b16 %v7235
        %v7384 = vunpack.c.l.b16 %v7236
        %v7385 = vunpack.c.l.b16 %v7237
        %v7386 = vunpack.c.l.b16 %v7238
        %v7387 = vunpack.c.l.b16 %v7239
        %v7388 = vunpack.c.l.b16 %v7240
        %v7389 = vunpack.c.l.b16 %v7241
        %v7390 = vunpack.c.l.b16 %v7242
        %v7391 = vunpack.c.l.b16 %v7243
        %v7392 = vunpack.c.l.b16 %v7244
        %v7393 = vunpack.c.l.b16 %v7245
        %v7394 = vunpack.c.l.b16 %v7246
        %v7395 = vunpack.c.l.b16 %v7247
        %v7396 = vunpack.c.l.b16 %v7248
        %v7397 = vunpack.c.l.b16 %v7249
        %v7398 = vunpack.c.l.b16 %v7250
        %v7399 = vunpack.c.l.b16 %v7251
        %v7400 = vunpack.c.l.b16 %v7252
        %v7401 = vunpack.c.l.b16 %v7253
        %v7402 = vunpack.c.l.b16 %v7254
        %v7403 = vunpack.c.l.b16 %v7255
        %v7404 = vunpack.c.l.b16 %v7256
        %v7405 = vunpack.c.l.b16 %v7257
        %v7406 = vunpack.c.l.b16 %v7258
        %v7407 = vunpack.c.l.b16 %v7259
        %v7408 = vunpack.c.l.b16 %v7260
        %v7409 = vunpack.c.l.b16 %v7261
        %v7410 = vunpack.c.l.b16 %v7262
        %v7411 = vunpack.c.l.b16 %v7263
        %v7412 = vunpack.c.l.b16 %v7264
        %v7413 = vunpack.c.l.b16 %v7265
        %v7414 = vunpack.c.l.b16 %v7266
        %v7415 = vunpack.c.l.b16 %v7267
        %v7416 = vunpack.c.l.b16 %v7268
        %v7417 = vunpack.c.l.b16 %v7269
        %v7418 = vunpack.c.l.b16 %v7270
        %v7419 = vunpack.c.l.b16 %v7271
        %v7420 = vunpack.c.l.b16 %v7272
        %v7421 = vunpack.c.l.b16 %v7273
        %v7422 = vunpack.c.l.b16 %v7274
        %v7423 = vunpack.c.l.b16 %v7275
        %v7424 = vunpack.c.l.b16 %v7276
        %v7425 = vunpack.c.l.b16 %v7277
        %v7426 = vunpack.c.l.b16 %v7278
        %v7427 = vunpack.c.l.b16 %v7279
        %v7428 = vunpack.c.l.b16 %v7280
        %v7429 = vunpack.c.l.b16 %v7281
        %v7430 = vunpack.c.l.b16 %v7282
        %v7431 = vunpack.c.l.b16 %v7283
        %v7432 = vunpack.c.l.b16 %v7284
        %v7433 = vunpack.c.l.b16 %v7285
        %v7434 = vunpack.c.l.b16 %v7286
        %v7435 = vunpack.c.l.b16 %v7287
        %v7436 = vunpack.c.l.b16 %v7288
        %v7437 = vunpack.c.l.b16 %v7289
        %v7438 = vunpack.c.l.b16 %v7290
        %v7439 = vunpack.c.l.b16 %v7291
        %v7440 = vunpack.c.l.b16 %v7292
        %v7441 = vunpack.c.l.b16 %v7293
        %v7442 = vunpack.c.l.b16 %v7294
        %v7443 = vunpack.c.l.b16 %v7295
        %v7444 = vunpack.c.l.b16 %v7296
        %v7445 = vunpack.c.l.b16 %v7297
        %v7446 = vunpack.c.l.b16 %v7298
        %v7447 = vunpack.c.l.b16 %v7299
        %v7448 = vpack.c.b16 %v7377, %v7376
        %v7449 = vpack.c.b16 %v7379, %v7378
        %v7450 = vpack.c.b16 %v7381, %v7380
        %v7451 = vpack.c.b16 %v7383, %v7382
        %v7452 = vpack.c.b16 %v7385, %v7384
        %v7453 = vpack.c.b16 %v7387, %v7386
        %v7454 = vpack.c.b16 %v7389, %v7388
        %v7455 = vpack.c.b16 %v7391, %v7390
        %v7456 = vpack.c.b16 %v7393, %v7392
        %v7457 = vpack.c.b16 %v7395, %v7394
        %v7458 = vpack.c.b16 %v7397, %v7396
        %v7459 = vpack.c.b16 %v7399, %v7398
        %v7460 = vpack.c.b16 %v7401, %v7400
        %v7461 = vpack.c.b16 %v7403, %v7402
        %v7462 = vpack.c.b16 %v7405, %v7404
        %v7463 = vpack.c.b16 %v7407, %v7406
        %v7464 = vpack.c.b16 %v7409, %v7408
        %v7465 = vpack.c.b16 %v7411, %v7410
        %v7466 = vpack.c.b16 %v7413, %v7412
        %v7467 = vpack.c.b16 %v7415, %v7414
        %v7468 = vpack.c.b16 %v7417, %v7416
        %v7469 = vpack.c.b16 %v7419, %v7418
        %v7470 = vpack.c.b16 %v7421, %v7420
        %v7471 = vpack.c.b16 %v7423, %v7422
        %v7472 = vpack.c.b16 %v7425, %v7424
        %v7473 = vpack.c.b16 %v7427, %v7426
        %v7474 = vpack.c.b16 %v7429, %v7428
        %v7475 = vpack.c.b16 %v7431, %v7430
        %v7476 = vpack.c.b16 %v7433, %v7432
        %v7477 = vpack.c.b16 %v7435, %v7434
        %v7478 = vpack.c.b16 %v7437, %v7436
        %v7479 = vpack.c.b16 %v7439, %v7438
        %v7480 = vpack.c.b16 %v7441, %v7440
        %v7481 = vpack.c.b16 %v7443, %v7442
        %v7482 = vpack.c.b16 %v7445, %v7444
        %v7483 = vpack.c.b16 %v7447, %v7446
        %v7485 = vsel %vm3421, %v7448, 0
        %v7488 = vsel %vm3421, %v7449, 0
        %v7491 = vsel %vm3421, %v7450, 0
        %v7494 = vsel %vm3421, %v7451, 0
        %v7497 = vsel %vm3421, %v7452, 0
        %v7500 = vsel %vm3421, %v7453, 0
        %v7503 = vsel %vm3421, %v7454, 0
        %v7506 = vsel %vm3421, %v7455, 0
        %v7509 = vsel %vm3421, %v7456, 0
        %v7512 = vsel %vm3421, %v7457, 0
        %v7515 = vsel %vm3421, %v7458, 0
        %v7518 = vsel %vm3421, %v7459, 0
        %v7521 = vsel %vm3421, %v7460, 0
        %v7524 = vsel %vm3421, %v7461, 0
        %v7527 = vsel %vm3421, %v7462, 0
        %v7530 = vsel %vm3421, %v7463, 0
        %v7533 = vsel %vm3421, %v7464, 0
        %v7536 = vsel %vm3421, %v7465, 0
        %v7539 = vsel %vm3421, %v7466, 0
        %v7542 = vsel %vm3421, %v7467, 0
        %v7545 = vsel %vm3421, %v7468, 0
        %v7548 = vsel %vm3421, %v7469, 0
        %v7551 = vsel %vm3421, %v7470, 0
        %v7554 = vsel %vm3421, %v7471, 0
        %v7557 = vsel %vm3421, %v7472, 0
        %v7560 = vsel %vm3421, %v7473, 0
        %v7563 = vsel %vm3421, %v7474, 0
        %v7566 = vsel %vm3421, %v7475, 0
        %v7569 = vsel %vm3421, %v7476, 0
        %v7572 = vsel %vm3421, %v7477, 0
        %v7575 = vsel %vm3421, %v7478, 0
        %v7578 = vsel %vm3421, %v7479, 0
        %v7581 = vsel %vm3421, %v7480, 0
        %v7584 = vsel %vm3421, %v7481, 0
        %v7587 = vsel %vm3421, %v7482, 0
        %v7590 = vsel %vm3421, %v7483, 0
        %7592 = vmatprep.subr.bf16.mxu0 0
        %7593 = vmatpush1.bf16.msra.mxu0 %v7300
        %7594 = vmatprep.subr.bf16.mxu0 0
        %7595 = vmatpush1.bf16.msra.mxu0 %v7301
        %7596 = vmatprep.subr.bf16.mxu0 0
        %7597 = vmatpush1.bf16.msra.mxu0 %v7302
        %7598 = vmatprep.subr.bf16.mxu0 0
        %7599 = vmatpush1.bf16.msra.mxu0 %v7303
        %7600 = vmatprep.subr.bf16.mxu0 0
        %7601 = vmatpush1.bf16.msra.mxu0 0
        %7602 = vmatprep.subr.bf16.mxu0 0
        %7603 = vmatpush1.bf16.msra.mxu0 0
        %7604 = vmatprep.subr.bf16.mxu0 0
        %7605 = vmatpush1.bf16.msra.mxu0 0
        %7606 = vmatprep.subr.bf16.mxu0 0
        %7607 = vmatpush1.bf16.msra.mxu0 0
        %7608 = vmatprep.subr.bf16.mxu0 0
        %7609 = vmatpush1.bf16.msra.mxu0 0
        %7610 = vmatprep.subr.bf16.mxu0 0
        %7611 = vmatpush1.bf16.msra.mxu0 0
        %7612 = vmatprep.subr.bf16.mxu0 0
        %7613 = vmatpush1.bf16.msra.mxu0 0
        %7614 = vmatprep.subr.bf16.mxu0 0
        %7615 = vmatpush1.bf16.msra.mxu0 0
        %7616 = vmatprep.subr.bf16.mxu0 0
        %7617 = vmatpush1.bf16.msra.mxu0 0
        %7618 = vmatprep.subr.bf16.mxu0 0
        %7619 = vmatpush1.bf16.msra.mxu0 0
        %7620 = vmatprep.subr.bf16.mxu0 0
        %7621 = vmatpush1.bf16.msra.mxu0 0
        %7622 = vmatprep.subr.bf16.mxu0 0
        %7623 = vmatpush1.bf16.msra.mxu0 0
        %7624 = vmatprep.mubr.bf16.mxu0 0
        %7625 = vmatmul.mubr.bf16.gmra.mrb[0].mxu0 %v7485
        %v7626 = vpop.f32.mrb[0].mxu0
        %v7627 = vadd.f32 0.0, %v7626
        %v7628 = vpop.f32.mrb[0].mxu0
        %v7629 = vpop.f32.mrb[0].mxu0
        %v7630 = vadd.f32 0.0, %v7629
        %v7631 = vpop.f32.mrb[0].mxu0
        %7632 = vmatprep.mubr.bf16.mxu0 0
        %7633 = vmatmul.mubr.bf16.gmra.mrb[0].mxu0 %v7488
        %v7634 = vpop.f32.mrb[0].mxu0
        %v7635 = vadd.f32 0.0, %v7634
        %v7636 = vpop.f32.mrb[0].mxu0
        %v7637 = vpop.f32.mrb[0].mxu0
        %v7638 = vadd.f32 0.0, %v7637
        %v7639 = vpop.f32.mrb[0].mxu0
        %7640 = vmatprep.mubr.bf16.mxu0 0
        %7641 = vmatmul.mubr.bf16.gmra.mrb[0].mxu0 %v7491
        %v7642 = vpop.f32.mrb[0].mxu0
        %v7643 = vadd.f32 0.0, %v7642
        %v7644 = vpop.f32.mrb[0].mxu0
        %v7645 = vpop.f32.mrb[0].mxu0
        %v7646 = vadd.f32 0.0, %v7645
        %v7647 = vpop.f32.mrb[0].mxu0
        %7648 = vmatprep.mubr.bf16.mxu0 0
        %7649 = vmatmul.mubr.bf16.gmra.mrb[0].mxu0 %v7494
        %v7650 = vpop.f32.mrb[0].mxu0
        %v7651 = vadd.f32 0.0, %v7650
        %v7652 = vpop.f32.mrb[0].mxu0
        %v7653 = vpop.f32.mrb[0].mxu0
        %v7654 = vadd.f32 0.0, %v7653
        %v7655 = vpop.f32.mrb[0].mxu0
        %7656 = vmatprep.mubr.bf16.mxu0 0
        %7657 = vmatmul.mubr.bf16.gmra.mrb[0].mxu0 %v7497
        %v7658 = vpop.f32.mrb[0].mxu0
        %v7659 = vadd.f32 0.0, %v7658
        %v7660 = vpop.f32.mrb[0].mxu0
        %v7661 = vpop.f32.mrb[0].mxu0
        %v7662 = vadd.f32 0.0, %v7661
        %v7663 = vpop.f32.mrb[0].mxu0
        %7664 = vmatprep.mubr.bf16.mxu0 0
        %7665 = vmatmul.mubr.bf16.gmra.mrb[0].mxu0 %v7500
        %v7666 = vpop.f32.mrb[0].mxu0
        %v7667 = vadd.f32 0.0, %v7666
        %v7668 = vpop.f32.mrb[0].mxu0
        %v7669 = vpop.f32.mrb[0].mxu0
        %v7670 = vadd.f32 0.0, %v7669
        %v7671 = vpop.f32.mrb[0].mxu0
        %7672 = vmatprep.mubr.bf16.mxu0 0
        %7673 = vmatmul.mubr.bf16.gmra.mrb[0].mxu0 %v7503
        %v7674 = vpop.f32.mrb[0].mxu0
        %v7675 = vadd.f32 0.0, %v7674
        %v7676 = vpop.f32.mrb[0].mxu0
        %v7677 = vpop.f32.mrb[0].mxu0
        %v7678 = vadd.f32 0.0, %v7677
        %v7679 = vpop.f32.mrb[0].mxu0
        %7680 = vmatprep.mubr.bf16.mxu0 0
        %7681 = vmatmul.mubr.bf16.gmra.mrb[0].mxu0 %v7506
        %v7682 = vpop.f32.mrb[0].mxu0
        %v7683 = vadd.f32 0.0, %v7682
        %v7684 = vpop.f32.mrb[0].mxu0
        %v7685 = vpop.f32.mrb[0].mxu0
        %v7686 = vadd.f32 0.0, %v7685
        %v7687 = vpop.f32.mrb[0].mxu0
        %7688 = vmatprep.mubr.bf16.mxu0 0
        %7689 = vmatmul.mubr.bf16.gmra.mrb[0].mxu0 %v7509
        %v7690 = vpop.f32.mrb[0].mxu0
        %v7691 = vadd.f32 0.0, %v7690
        %v7692 = vpop.f32.mrb[0].mxu0
        %v7693 = vpop.f32.mrb[0].mxu0
        %v7694 = vadd.f32 0.0, %v7693
        %v7695 = vpop.f32.mrb[0].mxu0
        %7696 = vmatprep.mubr.bf16.mxu0 0
        %7697 = vmatmul.mubr.bf16.gmra.mrb[0].mxu0 %v7512
        %v7698 = vpop.f32.mrb[0].mxu0
        %v7699 = vadd.f32 0.0, %v7698
        %v7700 = vpop.f32.mrb[0].mxu0
        %v7701 = vpop.f32.mrb[0].mxu0
        %v7702 = vadd.f32 0.0, %v7701
        %v7703 = vpop.f32.mrb[0].mxu0
        %7704 = vmatprep.mubr.bf16.mxu0 0
        %7705 = vmatmul.mubr.bf16.gmra.mrb[0].mxu0 %v7515
        %v7706 = vpop.f32.mrb[0].mxu0
        %v7707 = vadd.f32 0.0, %v7706
        %v7708 = vpop.f32.mrb[0].mxu0
        %v7709 = vpop.f32.mrb[0].mxu0
        %v7710 = vadd.f32 0.0, %v7709
        %v7711 = vpop.f32.mrb[0].mxu0
        %7712 = vmatprep.mubr.bf16.mxu0 0
        %7713 = vmatmul.mubr.bf16.gmra.mrb[0].mxu0 %v7518
        %v7714 = vpop.f32.mrb[0].mxu0
        %v7715 = vadd.f32 0.0, %v7714
        %v7716 = vpop.f32.mrb[0].mxu0
        %v7717 = vpop.f32.mrb[0].mxu0
        %v7718 = vadd.f32 0.0, %v7717
        %v7719 = vpop.f32.mrb[0].mxu0
        %7720 = vmatprep.mubr.bf16.mxu0 0
        %7721 = vmatmul.mubr.bf16.gmra.mrb[0].mxu0 %v7521
        %v7722 = vpop.f32.mrb[0].mxu0
        %v7723 = vadd.f32 0.0, %v7722
        %v7724 = vpop.f32.mrb[0].mxu0
        %v7725 = vpop.f32.mrb[0].mxu0
        %v7726 = vadd.f32 0.0, %v7725
        %v7727 = vpop.f32.mrb[0].mxu0
        %7728 = vmatprep.mubr.bf16.mxu0 0
        %7729 = vmatmul.mubr.bf16.gmra.mrb[0].mxu0 %v7524
        %v7730 = vpop.f32.mrb[0].mxu0
        %v7731 = vadd.f32 0.0, %v7730
        %v7732 = vpop.f32.mrb[0].mxu0
        %v7733 = vpop.f32.mrb[0].mxu0
        %v7734 = vadd.f32 0.0, %v7733
        %v7735 = vpop.f32.mrb[0].mxu0
        %7736 = vmatprep.mubr.bf16.mxu0 0
        %7737 = vmatmul.mubr.bf16.gmra.mrb[0].mxu0 %v7527
        %v7738 = vpop.f32.mrb[0].mxu0
        %v7739 = vadd.f32 0.0, %v7738
        %v7740 = vpop.f32.mrb[0].mxu0
        %v7741 = vpop.f32.mrb[0].mxu0
        %v7742 = vadd.f32 0.0, %v7741
        %v7743 = vpop.f32.mrb[0].mxu0
        %7744 = vmatprep.mubr.bf16.mxu0 0
        %7745 = vmatmul.mubr.bf16.gmra.mrb[0].mxu0 %v7530
        %v7746 = vpop.f32.mrb[0].mxu0
        %v7747 = vadd.f32 0.0, %v7746
        %v7748 = vpop.f32.mrb[0].mxu0
        %v7749 = vpop.f32.mrb[0].mxu0
        %v7750 = vadd.f32 0.0, %v7749
        %v7751 = vpop.f32.mrb[0].mxu0
        %7752 = vmatprep.mubr.bf16.mxu0 0
        %7753 = vmatmul.mubr.bf16.gmra.mrb[0].mxu0 %v7533
        %v7754 = vpop.f32.mrb[0].mxu0
        %v7755 = vadd.f32 0.0, %v7754
        %v7756 = vpop.f32.mrb[0].mxu0
        %v7757 = vpop.f32.mrb[0].mxu0
        %v7758 = vadd.f32 0.0, %v7757
        %v7759 = vpop.f32.mrb[0].mxu0
        %7760 = vmatprep.mubr.bf16.mxu0 0
        %7761 = vmatmul.mubr.bf16.gmra.mrb[0].mxu0 %v7536
        %v7762 = vpop.f32.mrb[0].mxu0
        %v7763 = vadd.f32 0.0, %v7762
        %v7764 = vpop.f32.mrb[0].mxu0
        %v7765 = vpop.f32.mrb[0].mxu0
        %v7766 = vadd.f32 0.0, %v7765
        %v7767 = vpop.f32.mrb[0].mxu0
        %7768 = vmatprep.mubr.bf16.mxu0 0
        %7769 = vmatmul.mubr.bf16.gmra.mrb[0].mxu0 %v7539
        %v7770 = vpop.f32.mrb[0].mxu0
        %v7771 = vadd.f32 0.0, %v7770
        %v7772 = vpop.f32.mrb[0].mxu0
        %v7773 = vpop.f32.mrb[0].mxu0
        %v7774 = vadd.f32 0.0, %v7773
        %v7775 = vpop.f32.mrb[0].mxu0
        %7776 = vmatprep.mubr.bf16.mxu0 0
        %7777 = vmatmul.mubr.bf16.gmra.mrb[0].mxu0 %v7542
        %v7778 = vpop.f32.mrb[0].mxu0
        %v7779 = vadd.f32 0.0, %v7778
        %v7780 = vpop.f32.mrb[0].mxu0
        %v7781 = vpop.f32.mrb[0].mxu0
        %v7782 = vadd.f32 0.0, %v7781
        %v7783 = vpop.f32.mrb[0].mxu0
        %7784 = vmatprep.mubr.bf16.mxu0 0
        %7785 = vmatmul.mubr.bf16.gmra.mrb[0].mxu0 %v7545
        %v7786 = vpop.f32.mrb[0].mxu0
        %v7787 = vadd.f32 0.0, %v7786
        %v7788 = vpop.f32.mrb[0].mxu0
        %v7789 = vpop.f32.mrb[0].mxu0
        %v7790 = vadd.f32 0.0, %v7789
        %v7791 = vpop.f32.mrb[0].mxu0
        %7792 = vmatprep.mubr.bf16.mxu0 0
        %7793 = vmatmul.mubr.bf16.gmra.mrb[0].mxu0 %v7548
        %v7794 = vpop.f32.mrb[0].mxu0
        %v7795 = vadd.f32 0.0, %v7794
        %v7796 = vpop.f32.mrb[0].mxu0
        %v7797 = vpop.f32.mrb[0].mxu0
        %v7798 = vadd.f32 0.0, %v7797
        %v7799 = vpop.f32.mrb[0].mxu0
        %7800 = vmatprep.mubr.bf16.mxu0 0
        %7801 = vmatmul.mubr.bf16.gmra.mrb[0].mxu0 %v7551
        %v7802 = vpop.f32.mrb[0].mxu0
        %v7803 = vadd.f32 0.0, %v7802
        %v7804 = vpop.f32.mrb[0].mxu0
        %v7805 = vpop.f32.mrb[0].mxu0
        %v7806 = vadd.f32 0.0, %v7805
        %v7807 = vpop.f32.mrb[0].mxu0
        %7808 = vmatprep.mubr.bf16.mxu0 0
        %7809 = vmatmul.mubr.bf16.gmra.mrb[0].mxu0 %v7554
        %v7810 = vpop.f32.mrb[0].mxu0
        %v7811 = vadd.f32 0.0, %v7810
        %v7812 = vpop.f32.mrb[0].mxu0
        %v7813 = vpop.f32.mrb[0].mxu0
        %v7814 = vadd.f32 0.0, %v7813
        %v7815 = vpop.f32.mrb[0].mxu0
        %7816 = vmatprep.mubr.bf16.mxu0 0
        %7817 = vmatmul.mubr.bf16.gmra.mrb[0].mxu0 %v7557
        %v7818 = vpop.f32.mrb[0].mxu0
        %v7819 = vadd.f32 0.0, %v7818
        %v7820 = vpop.f32.mrb[0].mxu0
        %v7821 = vpop.f32.mrb[0].mxu0
        %v7822 = vadd.f32 0.0, %v7821
        %v7823 = vpop.f32.mrb[0].mxu0
        %7824 = vmatprep.mubr.bf16.mxu0 0
        %7825 = vmatmul.mubr.bf16.gmra.mrb[0].mxu0 %v7560
        %v7826 = vpop.f32.mrb[0].mxu0
        %v7827 = vadd.f32 0.0, %v7826
        %v7828 = vpop.f32.mrb[0].mxu0
        %v7829 = vpop.f32.mrb[0].mxu0
        %v7830 = vadd.f32 0.0, %v7829
        %v7831 = vpop.f32.mrb[0].mxu0
        %7832 = vmatprep.mubr.bf16.mxu0 0
        %7833 = vmatmul.mubr.bf16.gmra.mrb[0].mxu0 %v7563
        %v7834 = vpop.f32.mrb[0].mxu0
        %v7835 = vadd.f32 0.0, %v7834
        %v7836 = vpop.f32.mrb[0].mxu0
        %v7837 = vpop.f32.mrb[0].mxu0
        %v7838 = vadd.f32 0.0, %v7837
        %v7839 = vpop.f32.mrb[0].mxu0
        %7840 = vmatprep.mubr.bf16.mxu0 0
        %7841 = vmatmul.mubr.bf16.gmra.mrb[0].mxu0 %v7566
        %v7842 = vpop.f32.mrb[0].mxu0
        %v7843 = vadd.f32 0.0, %v7842
        %v7844 = vpop.f32.mrb[0].mxu0
        %v7845 = vpop.f32.mrb[0].mxu0
        %v7846 = vadd.f32 0.0, %v7845
        %v7847 = vpop.f32.mrb[0].mxu0
        %7848 = vmatprep.mubr.bf16.mxu0 0
        %7849 = vmatmul.mubr.bf16.gmra.mrb[0].mxu0 %v7569
        %v7850 = vpop.f32.mrb[0].mxu0
        %v7851 = vadd.f32 0.0, %v7850
        %v7852 = vpop.f32.mrb[0].mxu0
        %v7853 = vpop.f32.mrb[0].mxu0
        %v7854 = vadd.f32 0.0, %v7853
        %v7855 = vpop.f32.mrb[0].mxu0
        %7856 = vmatprep.mubr.bf16.mxu0 0
        %7857 = vmatmul.mubr.bf16.gmra.mrb[0].mxu0 %v7572
        %v7858 = vpop.f32.mrb[0].mxu0
        %v7859 = vadd.f32 0.0, %v7858
        %v7860 = vpop.f32.mrb[0].mxu0
        %v7861 = vpop.f32.mrb[0].mxu0
        %v7862 = vadd.f32 0.0, %v7861
        %v7863 = vpop.f32.mrb[0].mxu0
        %7864 = vmatprep.mubr.bf16.mxu0 0
        %7865 = vmatmul.mubr.bf16.gmra.mrb[0].mxu0 %v7575
        %v7866 = vpop.f32.mrb[0].mxu0
        %v7867 = vadd.f32 0.0, %v7866
        %v7868 = vpop.f32.mrb[0].mxu0
        %v7869 = vpop.f32.mrb[0].mxu0
        %v7870 = vadd.f32 0.0, %v7869
        %v7871 = vpop.f32.mrb[0].mxu0
        %7872 = vmatprep.mubr.bf16.mxu0 0
        %7873 = vmatmul.mubr.bf16.gmra.mrb[0].mxu0 %v7578
        %v7874 = vpop.f32.mrb[0].mxu0
        %v7875 = vadd.f32 0.0, %v7874
        %v7876 = vpop.f32.mrb[0].mxu0
        %v7877 = vpop.f32.mrb[0].mxu0
        %v7878 = vadd.f32 0.0, %v7877
        %v7879 = vpop.f32.mrb[0].mxu0
        %7880 = vmatprep.mubr.bf16.mxu0 0
        %7881 = vmatmul.mubr.bf16.gmra.mrb[0].mxu0 %v7581
        %v7882 = vpop.f32.mrb[0].mxu0
        %v7883 = vadd.f32 0.0, %v7882
        %v7884 = vpop.f32.mrb[0].mxu0
        %v7885 = vpop.f32.mrb[0].mxu0
        %v7886 = vadd.f32 0.0, %v7885
        %v7887 = vpop.f32.mrb[0].mxu0
        %7888 = vmatprep.mubr.bf16.mxu0 0
        %7889 = vmatmul.mubr.bf16.gmra.mrb[0].mxu0 %v7584
        %v7890 = vpop.f32.mrb[0].mxu0
        %v7891 = vadd.f32 0.0, %v7890
        %v7892 = vpop.f32.mrb[0].mxu0
        %v7893 = vpop.f32.mrb[0].mxu0
        %v7894 = vadd.f32 0.0, %v7893
        %v7895 = vpop.f32.mrb[0].mxu0
        %7896 = vmatprep.mubr.bf16.mxu0 0
        %7897 = vmatmul.mubr.bf16.gmra.mrb[0].mxu0 %v7587
        %v7898 = vpop.f32.mrb[0].mxu0
        %v7899 = vadd.f32 0.0, %v7898
        %v7900 = vpop.f32.mrb[0].mxu0
        %v7901 = vpop.f32.mrb[0].mxu0
        %v7902 = vadd.f32 0.0, %v7901
        %v7903 = vpop.f32.mrb[0].mxu0
        %7904 = vmatprep.mubr.bf16.mxu0 0
        %7905 = vmatmul.mubr.bf16.gmra.mrb[0].mxu0 %v7590
        %v7906 = vpop.f32.mrb[0].mxu0
        %v7907 = vadd.f32 0.0, %v7906
        %v7908 = vpop.f32.mrb[0].mxu0
        %v7909 = vpop.f32.mrb[0].mxu0
        %v7910 = vadd.f32 0.0, %v7909
        %v7911 = vpop.f32.mrb[0].mxu0
        %7912 = vdwg.mxu0
        %v7913 = vpack.c.bf16 %v7630, %v7627
        %v7914 = vpack.c.bf16 %v7638, %v7635
        %v7915 = vpack.c.bf16 %v7646, %v7643
        %v7916 = vpack.c.bf16 %v7654, %v7651
        %v7917 = vpack.c.bf16 %v7662, %v7659
        %v7918 = vpack.c.bf16 %v7670, %v7667
        %v7919 = vpack.c.bf16 %v7678, %v7675
        %v7920 = vpack.c.bf16 %v7686, %v7683
        %v7921 = vpack.c.bf16 %v7694, %v7691
        %v7922 = vpack.c.bf16 %v7702, %v7699
        %v7923 = vpack.c.bf16 %v7710, %v7707
        %v7924 = vpack.c.bf16 %v7718, %v7715
        %v7925 = vpack.c.bf16 %v7726, %v7723
        %v7926 = vpack.c.bf16 %v7734, %v7731
        %v7927 = vpack.c.bf16 %v7742, %v7739
        %v7928 = vpack.c.bf16 %v7750, %v7747
        %v7929 = vpack.c.bf16 %v7758, %v7755
        %v7930 = vpack.c.bf16 %v7766, %v7763
        %v7931 = vpack.c.bf16 %v7774, %v7771
        %v7932 = vpack.c.bf16 %v7782, %v7779
        %v7933 = vpack.c.bf16 %v7790, %v7787
        %v7934 = vpack.c.bf16 %v7798, %v7795
        %v7935 = vpack.c.bf16 %v7806, %v7803
        %v7936 = vpack.c.bf16 %v7814, %v7811
        %v7937 = vpack.c.bf16 %v7822, %v7819
        %v7938 = vpack.c.bf16 %v7830, %v7827
        %v7939 = vpack.c.bf16 %v7838, %v7835
        %v7940 = vpack.c.bf16 %v7846, %v7843
        %v7941 = vpack.c.bf16 %v7854, %v7851
        %v7942 = vpack.c.bf16 %v7862, %v7859
        %v7943 = vpack.c.bf16 %v7870, %v7867
        %v7944 = vpack.c.bf16 %v7878, %v7875
        %v7945 = vpack.c.bf16 %v7886, %v7883
        %v7946 = vpack.c.bf16 %v7894, %v7891
        %v7947 = vpack.c.bf16 %v7902, %v7899
        %v7948 = vpack.c.bf16 %v7910, %v7907
        %7949 = vst [vmem:[#allocation2] sm:$0xff] %v7913
        %7950 = vst [vmem:[#allocation2 + $0x48] sm:$0xff] %v7914
        %7951 = vst [vmem:[#allocation2 + $0x90] sm:$0xff] %v7915
        %7952 = vst [vmem:[#allocation2 + $0xd8] sm:$0xff] %v7916
        %7953 = vst [vmem:[#allocation2 + $0x8] sm:$0xff] %v7917
        %7954 = vst [vmem:[#allocation2 + $0x50] sm:$0xff] %v7918
        %7955 = vst [vmem:[#allocation2 + $0x98] sm:$0xff] %v7919
        %7956 = vst [vmem:[#allocation2 + $0xe0] sm:$0xff] %v7920
        %7957 = vst [vmem:[#allocation2 + $0x10] sm:$0xff] %v7921
        %7958 = vst [vmem:[#allocation2 + $0x58] sm:$0xff] %v7922
        %7959 = vst [vmem:[#allocation2 + $0xa0] sm:$0xff] %v7923
        %7960 = vst [vmem:[#allocation2 + $0xe8] sm:$0xff] %v7924
        %7961 = vst [vmem:[#allocation2 + $0x18] sm:$0xff] %v7925
        %7962 = vst [vmem:[#allocation2 + $0x60] sm:$0xff] %v7926
        %7963 = vst [vmem:[#allocation2 + $0xa8] sm:$0xff] %v7927
        %7964 = vst [vmem:[#allocation2 + $0xf0] sm:$0xff] %v7928
        %7965 = vst [vmem:[#allocation2 + $0x20] sm:$0xff] %v7929
        %7966 = vst [vmem:[#allocation2 + $0x68] sm:$0xff] %v7930
        %7967 = vst [vmem:[#allocation2 + $0xb0] sm:$0xff] %v7931
        %7968 = vst [vmem:[#allocation2 + $0xf8] sm:$0xff] %v7932
        %7969 = vst [vmem:[#allocation2 + $0x28] sm:$0xff] %v7933
        %7970 = vst [vmem:[#allocation2 + $0x70] sm:$0xff] %v7934
        %7971 = vst [vmem:[#allocation2 + $0xb8] sm:$0xff] %v7935
        %7972 = vst [vmem:[#allocation2 + $0x100] sm:$0xff] %v7936
        %7973 = vst [vmem:[#allocation2 + $0x30] sm:$0xff] %v7937
        %7974 = vst [vmem:[#allocation2 + $0x78] sm:$0xff] %v7938
        %7975 = vst [vmem:[#allocation2 + $0xc0] sm:$0xff] %v7939
        %7976 = vst [vmem:[#allocation2 + $0x108] sm:$0xff] %v7940
        %7977 = vst [vmem:[#allocation2 + $0x38] sm:$0xff] %v7941
        %7978 = vst [vmem:[#allocation2 + $0x80] sm:$0xff] %v7942
        %7979 = vst [vmem:[#allocation2 + $0xc8] sm:$0xff] %v7943
        %7980 = vst [vmem:[#allocation2 + $0x110] sm:$0xff] %v7944
        %7981 = vst [vmem:[#allocation2 + $0x40] sm:$0xff] %v7945
        %7982 = vst [vmem:[#allocation2 + $0x88] sm:$0xff] %v7946
        %7983 = vst [vmem:[#allocation2 + $0xd0] sm:$0xff] %v7947
        %7984 = vst [vmem:[#allocation2 + $0x118] sm:$0xff] %v7948
        %v7985 = vld [vmem:[#allocation2] sm:$0xff]
        %v7986 = vld [vmem:[#allocation2 + $0x8] sm:$0xff]
        %v7987 = vld [vmem:[#allocation2 + $0x10] sm:$0xff]
        %v7988 = vld [vmem:[#allocation2 + $0x18] sm:$0xff]
        %v7989 = vld [vmem:[#allocation2 + $0x20] sm:$0xff]
        %v7990 = vld [vmem:[#allocation2 + $0x28] sm:$0xff]
        %v7991 = vld [vmem:[#allocation2 + $0x30] sm:$0xff]
        %v7992 = vld [vmem:[#allocation2 + $0x38] sm:$0xff]
        %v7993 = vld [vmem:[#allocation2 + $0x40] sm:$0xff]
        %v7994 = vld [vmem:[#allocation2 + $0x48] sm:$0xff]
        %v7995 = vld [vmem:[#allocation2 + $0x50] sm:$0xff]
        %v7996 = vld [vmem:[#allocation2 + $0x58] sm:$0xff]
        %v7997 = vld [vmem:[#allocation2 + $0x60] sm:$0xff]
        %v7998 = vld [vmem:[#allocation2 + $0x68] sm:$0xff]
        %v7999 = vld [vmem:[#allocation2 + $0x70] sm:$0xff]
        %v8000 = vld [vmem:[#allocation2 + $0x78] sm:$0xff]
        %v8001 = vld [vmem:[#allocation2 + $0x80] sm:$0xff]
        %v8002 = vld [vmem:[#allocation2 + $0x88] sm:$0xff]
        %v8003 = vld [vmem:[#allocation2 + $0x90] sm:$0xff]
        %v8004 = vld [vmem:[#allocation2 + $0x98] sm:$0xff]
        %v8005 = vld [vmem:[#allocation2 + $0xa0] sm:$0xff]
        %v8006 = vld [vmem:[#allocation2 + $0xa8] sm:$0xff]
        %v8007 = vld [vmem:[#allocation2 + $0xb0] sm:$0xff]
        %v8008 = vld [vmem:[#allocation2 + $0xb8] sm:$0xff]
        %v8009 = vld [vmem:[#allocation2 + $0xc0] sm:$0xff]
        %v8010 = vld [vmem:[#allocation2 + $0xc8] sm:$0xff]
        %v8011 = vld [vmem:[#allocation2 + $0xd0] sm:$0xff]
        %v8012 = vld [vmem:[#allocation2 + $0xd8] sm:$0xff]
        %v8013 = vld [vmem:[#allocation2 + $0xe0] sm:$0xff]
        %v8014 = vld [vmem:[#allocation2 + $0xe8] sm:$0xff]
        %v8015 = vld [vmem:[#allocation2 + $0xf0] sm:$0xff]
        %v8016 = vld [vmem:[#allocation2 + $0xf8] sm:$0xff]
        %v8017 = vld [vmem:[#allocation2 + $0x100] sm:$0xff]
        %v8018 = vld [vmem:[#allocation2 + $0x108] sm:$0xff]
        %v8019 = vld [vmem:[#allocation2 + $0x110] sm:$0xff]
        %v8020 = vld [vmem:[#allocation2 + $0x118] sm:$0xff]
        %v8021 = vld [vmem:[#allocation18] sm:$0xf]
        %v8022 = vld [vmem:[#allocation18 + $0x4] sm:$0xf]
        %v8023 = vld [vmem:[#allocation18 + $0x8] sm:$0xf]
        %v8024 = vld [vmem:[#allocation18 + $0xc] sm:$0xf]
        %v8025 = vld [vmem:[#allocation18 + $0x10] sm:$0xf]
        %v8026 = vld [vmem:[#allocation18 + $0x14] sm:$0xf]
        %v8027 = vld [vmem:[#allocation18 + $0x18] sm:$0xf]
        %v8028 = vld [vmem:[#allocation18 + $0x1c] sm:$0xf]
        %v8029 = vld [vmem:[#allocation18 + $0x20] sm:$0xf]
        %v8030 = vld [vmem:[#allocation18 + $0x24] sm:$0xf]
        %v8031 = vld [vmem:[#allocation18 + $0x28] sm:$0xf]
        %v8032 = vld [vmem:[#allocation18 + $0x2c] sm:$0xf]
        %v8033 = vld [vmem:[#allocation18 + $0x30] sm:$0xf]
        %v8034 = vld [vmem:[#allocation18 + $0x34] sm:$0xf]
        %v8035 = vld [vmem:[#allocation18 + $0x38] sm:$0xf]
        %v8036 = vld [vmem:[#allocation18 + $0x3c] sm:$0xf]
        %v8037 = vld [vmem:[#allocation18 + $0x40] sm:$0xf]
        %v8038 = vld [vmem:[#allocation18 + $0x44] sm:$0xf]
        %v8039 = vld [vmem:[#allocation18 + $0x48] sm:$0xf]
        %v8040 = vld [vmem:[#allocation18 + $0x4c] sm:$0xf]
        %v8041 = vld [vmem:[#allocation18 + $0x50] sm:$0xf]
        %v8042 = vld [vmem:[#allocation18 + $0x54] sm:$0xf]
        %v8043 = vld [vmem:[#allocation18 + $0x58] sm:$0xf]
        %v8044 = vld [vmem:[#allocation18 + $0x5c] sm:$0xf]
        %v8045 = vld [vmem:[#allocation18 + $0x60] sm:$0xf]
        %v8046 = vld [vmem:[#allocation18 + $0x64] sm:$0xf]
        %v8047 = vld [vmem:[#allocation18 + $0x68] sm:$0xf]
        %v8048 = vld [vmem:[#allocation18 + $0x6c] sm:$0xf]
        %v8049 = vld [vmem:[#allocation18 + $0x70] sm:$0xf]
        %v8050 = vld [vmem:[#allocation18 + $0x74] sm:$0xf]
        %v8051 = vld [vmem:[#allocation18 + $0x78] sm:$0xf]
        %v8052 = vld [vmem:[#allocation18 + $0x7c] sm:$0xf]
        %v8053 = vld [vmem:[#allocation18 + $0x80] sm:$0xf]
        %v8054 = vld [vmem:[#allocation18 + $0x84] sm:$0xf]
        %v8055 = vld [vmem:[#allocation18 + $0x88] sm:$0xf]
        %v8056 = vld [vmem:[#allocation18 + $0x8c] sm:$0xf]
        %v8057 = vld [vmem:[#allocation18 + $0x90] sm:$0xf]
        %v8058 = vld [vmem:[#allocation18 + $0x94] sm:$0xf]
        %v8059 = vld [vmem:[#allocation18 + $0x98] sm:$0xf]
        %v8060 = vld [vmem:[#allocation18 + $0x9c] sm:$0xf]
        %v8061 = vld [vmem:[#allocation18 + $0xa0] sm:$0xf]
        %v8062 = vld [vmem:[#allocation18 + $0xa4] sm:$0xf]
        %v8063 = vld [vmem:[#allocation18 + $0xa8] sm:$0xf]
        %v8064 = vld [vmem:[#allocation18 + $0xac] sm:$0xf]
        %v8065 = vld [vmem:[#allocation18 + $0xb0] sm:$0xf]
        %v8066 = vld [vmem:[#allocation18 + $0xb4] sm:$0xf]
        %v8067 = vld [vmem:[#allocation18 + $0xb8] sm:$0xf]
        %v8068 = vld [vmem:[#allocation18 + $0xbc] sm:$0xf]
        %v8069 = vld [vmem:[#allocation18 + $0xc0] sm:$0xf]
        %v8070 = vld [vmem:[#allocation18 + $0xc4] sm:$0xf]
        %v8071 = vld [vmem:[#allocation18 + $0xc8] sm:$0xf]
        %v8072 = vld [vmem:[#allocation18 + $0xcc] sm:$0xf]
        %v8073 = vld [vmem:[#allocation18 + $0xd0] sm:$0xf]
        %v8074 = vld [vmem:[#allocation18 + $0xd4] sm:$0xf]
        %v8075 = vld [vmem:[#allocation18 + $0xd8] sm:$0xf]
        %v8076 = vld [vmem:[#allocation18 + $0xdc] sm:$0xf]
        %v8077 = vld [vmem:[#allocation18 + $0xe0] sm:$0xf]
        %v8078 = vld [vmem:[#allocation18 + $0xe4] sm:$0xf]
        %v8079 = vld [vmem:[#allocation18 + $0xe8] sm:$0xf]
        %v8080 = vld [vmem:[#allocation18 + $0xec] sm:$0xf]
        %v8081 = vld [vmem:[#allocation18 + $0xf0] sm:$0xf]
        %v8082 = vld [vmem:[#allocation18 + $0xf4] sm:$0xf]
        %v8083 = vld [vmem:[#allocation18 + $0xf8] sm:$0xf]
        %v8084 = vld [vmem:[#allocation18 + $0xfc] sm:$0xf]
        %v8085 = vld [vmem:[#allocation18 + $0x100] sm:$0xf]
        %v8086 = vld [vmem:[#allocation18 + $0x104] sm:$0xf]
        %v8087 = vld [vmem:[#allocation18 + $0x108] sm:$0xf]
        %v8088 = vld [vmem:[#allocation18 + $0x10c] sm:$0xf]
        %v8089 = vld [vmem:[#allocation18 + $0x110] sm:$0xf]
        %v8090 = vld [vmem:[#allocation18 + $0x114] sm:$0xf]
        %v8091 = vld [vmem:[#allocation18 + $0x118] sm:$0xf]
        %v8092 = vld [vmem:[#allocation18 + $0x11c] sm:$0xf]
        %v8093 = vld [vmem:[#allocation18 + $0x120] sm:$0xf]
        %v8094 = vld [vmem:[#allocation18 + $0x124] sm:$0xf]
        %v8095 = vld [vmem:[#allocation18 + $0x128] sm:$0xf]
        %v8096 = vld [vmem:[#allocation18 + $0x12c] sm:$0xf]
        %v8097 = vld [vmem:[#allocation18 + $0x130] sm:$0xf]
        %v8098 = vld [vmem:[#allocation18 + $0x134] sm:$0xf]
        %v8099 = vld [vmem:[#allocation18 + $0x138] sm:$0xf]
        %v8100 = vld [vmem:[#allocation18 + $0x13c] sm:$0xf]
        %v8101 = vld [vmem:[#allocation18 + $0x140] sm:$0xf]
        %v8102 = vld [vmem:[#allocation18 + $0x144] sm:$0xf]
        %v8103 = vld [vmem:[#allocation18 + $0x148] sm:$0xf]
        %v8104 = vld [vmem:[#allocation18 + $0x14c] sm:$0xf]
        %v8105 = vld [vmem:[#allocation18 + $0x150] sm:$0xf]
        %v8106 = vld [vmem:[#allocation18 + $0x154] sm:$0xf]
        %v8107 = vld [vmem:[#allocation18 + $0x158] sm:$0xf]
        %v8108 = vld [vmem:[#allocation18 + $0x15c] sm:$0xf]
        %v8109 = vld [vmem:[#allocation18 + $0x160] sm:$0xf]
        %v8110 = vld [vmem:[#allocation18 + $0x164] sm:$0xf]
        %v8111 = vld [vmem:[#allocation18 + $0x168] sm:$0xf]
        %v8112 = vld [vmem:[#allocation18 + $0x16c] sm:$0xf]
        %v8113 = vld [vmem:[#allocation18 + $0x170] sm:$0xf]
        %v8114 = vld [vmem:[#allocation18 + $0x174] sm:$0xf]
        %v8115 = vld [vmem:[#allocation18 + $0x178] sm:$0xf]
        %v8116 = vld [vmem:[#allocation18 + $0x17c] sm:$0xf]
        %v8117 = vld [vmem:[#allocation18 + $0x180] sm:$0xf]
        %v8118 = vld [vmem:[#allocation18 + $0x184] sm:$0xf]
        %v8119 = vld [vmem:[#allocation18 + $0x188] sm:$0xf]
        %v8120 = vld [vmem:[#allocation18 + $0x18c] sm:$0xf]
        %v8121 = vld [vmem:[#allocation18 + $0x190] sm:$0xf]
        %v8122 = vld [vmem:[#allocation18 + $0x194] sm:$0xf]
        %v8123 = vld [vmem:[#allocation18 + $0x198] sm:$0xf]
        %v8124 = vld [vmem:[#allocation18 + $0x19c] sm:$0xf]
        %v8125 = vld [vmem:[#allocation18 + $0x1a0] sm:$0xf]
        %v8126 = vld [vmem:[#allocation18 + $0x1a4] sm:$0xf]
        %v8127 = vld [vmem:[#allocation18 + $0x1a8] sm:$0xf]
        %v8128 = vld [vmem:[#allocation18 + $0x1ac] sm:$0xf]
        %v8129 = vld [vmem:[#allocation18 + $0x1b0] sm:$0xf]
        %v8130 = vld [vmem:[#allocation18 + $0x1b4] sm:$0xf]
        %v8131 = vld [vmem:[#allocation18 + $0x1b8] sm:$0xf]
        %v8132 = vld [vmem:[#allocation18 + $0x1bc] sm:$0xf]
        %v8133 = vld [vmem:[#allocation18 + $0x1c0] sm:$0xf]
        %v8134 = vld [vmem:[#allocation18 + $0x1c4] sm:$0xf]
        %v8135 = vld [vmem:[#allocation18 + $0x1c8] sm:$0xf]
        %v8136 = vld [vmem:[#allocation18 + $0x1cc] sm:$0xf]
        %v8137 = vld [vmem:[#allocation18 + $0x1d0] sm:$0xf]
        %v8138 = vld [vmem:[#allocation18 + $0x1d4] sm:$0xf]
        %v8139 = vld [vmem:[#allocation18 + $0x1d8] sm:$0xf]
        %v8140 = vld [vmem:[#allocation18 + $0x1dc] sm:$0xf]
        %v8141 = vld [vmem:[#allocation18 + $0x1e0] sm:$0xf]
        %v8142 = vld [vmem:[#allocation18 + $0x1e4] sm:$0xf]
        %v8143 = vld [vmem:[#allocation18 + $0x1e8] sm:$0xf]
        %v8144 = vld [vmem:[#allocation18 + $0x1ec] sm:$0xf]
        %v8145 = vld [vmem:[#allocation18 + $0x1f0] sm:$0xf]
        %v8146 = vld [vmem:[#allocation18 + $0x1f4] sm:$0xf]
        %v8147 = vld [vmem:[#allocation18 + $0x1f8] sm:$0xf]
        %v8148 = vld [vmem:[#allocation18 + $0x1fc] sm:$0xf]
        %v8149 = vld [vmem:[#allocation18 + $0x200] sm:$0xf]
        %v8150 = vld [vmem:[#allocation18 + $0x204] sm:$0xf]
        %v8151 = vld [vmem:[#allocation18 + $0x208] sm:$0xf]
        %v8152 = vld [vmem:[#allocation18 + $0x20c] sm:$0xf]
        %v8153 = vld [vmem:[#allocation18 + $0x210] sm:$0xf]
        %v8154 = vld [vmem:[#allocation18 + $0x214] sm:$0xf]
        %v8155 = vld [vmem:[#allocation18 + $0x218] sm:$0xf]
        %v8156 = vld [vmem:[#allocation18 + $0x21c] sm:$0xf]
        %v8157 = vld [vmem:[#allocation18 + $0x220] sm:$0xf]
        %v8158 = vld [vmem:[#allocation18 + $0x224] sm:$0xf]
        %v8159 = vld [vmem:[#allocation18 + $0x228] sm:$0xf]
        %v8160 = vld [vmem:[#allocation18 + $0x22c] sm:$0xf]
        %v8161 = vld [vmem:[#allocation18 + $0x230] sm:$0xf]
        %v8162 = vld [vmem:[#allocation18 + $0x234] sm:$0xf]
        %v8163 = vld [vmem:[#allocation18 + $0x238] sm:$0xf]
        %v8164 = vld [vmem:[#allocation18 + $0x23c] sm:$0xf]
        %v8309 = vunpack.c.l.b16 %v8021
        %v8310 = vunpack.c.l.b16 %v8022
        %v8311 = vunpack.c.l.b16 %v8023
        %v8312 = vunpack.c.l.b16 %v8024
        %v8313 = vunpack.c.l.b16 %v8025
        %v8314 = vunpack.c.l.b16 %v8026
        %v8315 = vunpack.c.l.b16 %v8027
        %v8316 = vunpack.c.l.b16 %v8028
        %v8317 = vunpack.c.l.b16 %v8029
        %v8318 = vunpack.c.l.b16 %v8030
        %v8319 = vunpack.c.l.b16 %v8031
        %v8320 = vunpack.c.l.b16 %v8032
        %v8321 = vunpack.c.l.b16 %v8033
        %v8322 = vunpack.c.l.b16 %v8034
        %v8323 = vunpack.c.l.b16 %v8035
        %v8324 = vunpack.c.l.b16 %v8036
        %v8325 = vunpack.c.l.b16 %v8037
        %v8326 = vunpack.c.l.b16 %v8038
        %v8327 = vunpack.c.l.b16 %v8039
        %v8328 = vunpack.c.l.b16 %v8040
        %v8329 = vunpack.c.l.b16 %v8041
        %v8330 = vunpack.c.l.b16 %v8042
        %v8331 = vunpack.c.l.b16 %v8043
        %v8332 = vunpack.c.l.b16 %v8044
        %v8333 = vunpack.c.l.b16 %v8045
        %v8334 = vunpack.c.l.b16 %v8046
        %v8335 = vunpack.c.l.b16 %v8047
        %v8336 = vunpack.c.l.b16 %v8048
        %v8337 = vunpack.c.l.b16 %v8049
        %v8338 = vunpack.c.l.b16 %v8050
        %v8339 = vunpack.c.l.b16 %v8051
        %v8340 = vunpack.c.l.b16 %v8052
        %v8341 = vunpack.c.l.b16 %v8053
        %v8342 = vunpack.c.l.b16 %v8054
        %v8343 = vunpack.c.l.b16 %v8055
        %v8344 = vunpack.c.l.b16 %v8056
        %v8345 = vunpack.c.l.b16 %v8057
        %v8346 = vunpack.c.l.b16 %v8058
        %v8347 = vunpack.c.l.b16 %v8059
        %v8348 = vunpack.c.l.b16 %v8060
        %v8349 = vunpack.c.l.b16 %v8061
        %v8350 = vunpack.c.l.b16 %v8062
        %v8351 = vunpack.c.l.b16 %v8063
        %v8352 = vunpack.c.l.b16 %v8064
        %v8353 = vunpack.c.l.b16 %v8065
        %v8354 = vunpack.c.l.b16 %v8066
        %v8355 = vunpack.c.l.b16 %v8067
        %v8356 = vunpack.c.l.b16 %v8068
        %v8357 = vunpack.c.l.b16 %v8069
        %v8358 = vunpack.c.l.b16 %v8070
        %v8359 = vunpack.c.l.b16 %v8071
        %v8360 = vunpack.c.l.b16 %v8072
        %v8361 = vunpack.c.l.b16 %v8073
        %v8362 = vunpack.c.l.b16 %v8074
        %v8363 = vunpack.c.l.b16 %v8075
        %v8364 = vunpack.c.l.b16 %v8076
        %v8365 = vunpack.c.l.b16 %v8077
        %v8366 = vunpack.c.l.b16 %v8078
        %v8367 = vunpack.c.l.b16 %v8079
        %v8368 = vunpack.c.l.b16 %v8080
        %v8369 = vunpack.c.l.b16 %v8081
        %v8370 = vunpack.c.l.b16 %v8082
        %v8371 = vunpack.c.l.b16 %v8083
        %v8372 = vunpack.c.l.b16 %v8084
        %v8373 = vunpack.c.l.b16 %v8085
        %v8374 = vunpack.c.l.b16 %v8086
        %v8375 = vunpack.c.l.b16 %v8087
        %v8376 = vunpack.c.l.b16 %v8088
        %v8377 = vunpack.c.l.b16 %v8089
        %v8378 = vunpack.c.l.b16 %v8090
        %v8379 = vunpack.c.l.b16 %v8091
        %v8380 = vunpack.c.l.b16 %v8092
        %v8381 = vunpack.c.l.b16 %v8093
        %v8382 = vunpack.c.l.b16 %v8094
        %v8383 = vunpack.c.l.b16 %v8095
        %v8384 = vunpack.c.l.b16 %v8096
        %v8385 = vunpack.c.l.b16 %v8097
        %v8386 = vunpack.c.l.b16 %v8098
        %v8387 = vunpack.c.l.b16 %v8099
        %v8388 = vunpack.c.l.b16 %v8100
        %v8389 = vunpack.c.l.b16 %v8101
        %v8390 = vunpack.c.l.b16 %v8102
        %v8391 = vunpack.c.l.b16 %v8103
        %v8392 = vunpack.c.l.b16 %v8104
        %v8393 = vunpack.c.l.b16 %v8105
        %v8394 = vunpack.c.l.b16 %v8106
        %v8395 = vunpack.c.l.b16 %v8107
        %v8396 = vunpack.c.l.b16 %v8108
        %v8397 = vunpack.c.l.b16 %v8109
        %v8398 = vunpack.c.l.b16 %v8110
        %v8399 = vunpack.c.l.b16 %v8111
        %v8400 = vunpack.c.l.b16 %v8112
        %v8401 = vunpack.c.l.b16 %v8113
        %v8402 = vunpack.c.l.b16 %v8114
        %v8403 = vunpack.c.l.b16 %v8115
        %v8404 = vunpack.c.l.b16 %v8116
        %v8405 = vunpack.c.l.b16 %v8117
        %v8406 = vunpack.c.l.b16 %v8118
        %v8407 = vunpack.c.l.b16 %v8119
        %v8408 = vunpack.c.l.b16 %v8120
        %v8409 = vunpack.c.l.b16 %v8121
        %v8410 = vunpack.c.l.b16 %v8122
        %v8411 = vunpack.c.l.b16 %v8123
        %v8412 = vunpack.c.l.b16 %v8124
        %v8413 = vunpack.c.l.b16 %v8125
        %v8414 = vunpack.c.l.b16 %v8126
        %v8415 = vunpack.c.l.b16 %v8127
        %v8416 = vunpack.c.l.b16 %v8128
        %v8417 = vunpack.c.l.b16 %v8129
        %v8418 = vunpack.c.l.b16 %v8130
        %v8419 = vunpack.c.l.b16 %v8131
        %v8420 = vunpack.c.l.b16 %v8132
        %v8421 = vunpack.c.l.b16 %v8133
        %v8422 = vunpack.c.l.b16 %v8134
        %v8423 = vunpack.c.l.b16 %v8135
        %v8424 = vunpack.c.l.b16 %v8136
        %v8425 = vunpack.c.l.b16 %v8137
        %v8426 = vunpack.c.l.b16 %v8138
        %v8427 = vunpack.c.l.b16 %v8139
        %v8428 = vunpack.c.l.b16 %v8140
        %v8429 = vunpack.c.l.b16 %v8141
        %v8430 = vunpack.c.l.b16 %v8142
        %v8431 = vunpack.c.l.b16 %v8143
        %v8432 = vunpack.c.l.b16 %v8144
        %v8433 = vunpack.c.l.b16 %v8145
        %v8434 = vunpack.c.l.b16 %v8146
        %v8435 = vunpack.c.l.b16 %v8147
        %v8436 = vunpack.c.l.b16 %v8148
        %v8437 = vunpack.c.l.b16 %v8149
        %v8438 = vunpack.c.l.b16 %v8150
        %v8439 = vunpack.c.l.b16 %v8151
        %v8440 = vunpack.c.l.b16 %v8152
        %v8441 = vunpack.c.l.b16 %v8153
        %v8442 = vunpack.c.l.b16 %v8154
        %v8443 = vunpack.c.l.b16 %v8155
        %v8444 = vunpack.c.l.b16 %v8156
        %v8445 = vunpack.c.l.b16 %v8157
        %v8446 = vunpack.c.l.b16 %v8158
        %v8447 = vunpack.c.l.b16 %v8159
        %v8448 = vunpack.c.l.b16 %v8160
        %v8449 = vunpack.c.l.b16 %v8161
        %v8450 = vunpack.c.l.b16 %v8162
        %v8451 = vunpack.c.l.b16 %v8163
        %v8452 = vunpack.c.l.b16 %v8164
        %v8453 = vpack.c.b16 %v8310, %v8309
        %v8454 = vpack.c.b16 %v8312, %v8311
        %v8455 = vpack.c.b16 %v8314, %v8313
        %v8456 = vpack.c.b16 %v8316, %v8315
        %v8457 = vpack.c.b16 %v8318, %v8317
        %v8458 = vpack.c.b16 %v8320, %v8319
        %v8459 = vpack.c.b16 %v8322, %v8321
        %v8460 = vpack.c.b16 %v8324, %v8323
        %v8461 = vpack.c.b16 %v8326, %v8325
        %v8462 = vpack.c.b16 %v8328, %v8327
        %v8463 = vpack.c.b16 %v8330, %v8329
        %v8464 = vpack.c.b16 %v8332, %v8331
        %v8465 = vpack.c.b16 %v8334, %v8333
        %v8466 = vpack.c.b16 %v8336, %v8335
        %v8467 = vpack.c.b16 %v8338, %v8337
        %v8468 = vpack.c.b16 %v8340, %v8339
        %v8469 = vpack.c.b16 %v8342, %v8341
        %v8470 = vpack.c.b16 %v8344, %v8343
        %v8471 = vpack.c.b16 %v8346, %v8345
        %v8472 = vpack.c.b16 %v8348, %v8347
        %v8473 = vpack.c.b16 %v8350, %v8349
        %v8474 = vpack.c.b16 %v8352, %v8351
        %v8475 = vpack.c.b16 %v8354, %v8353
        %v8476 = vpack.c.b16 %v8356, %v8355
        %v8477 = vpack.c.b16 %v8358, %v8357
        %v8478 = vpack.c.b16 %v8360, %v8359
        %v8479 = vpack.c.b16 %v8362, %v8361
        %v8480 = vpack.c.b16 %v8364, %v8363
        %v8481 = vpack.c.b16 %v8366, %v8365
        %v8482 = vpack.c.b16 %v8368, %v8367
        %v8483 = vpack.c.b16 %v8370, %v8369
        %v8484 = vpack.c.b16 %v8372, %v8371
        %v8485 = vpack.c.b16 %v8374, %v8373
        %v8486 = vpack.c.b16 %v8376, %v8375
        %v8487 = vpack.c.b16 %v8378, %v8377
        %v8488 = vpack.c.b16 %v8380, %v8379
        %v8489 = vpack.c.b16 %v8382, %v8381
        %v8490 = vpack.c.b16 %v8384, %v8383
        %v8491 = vpack.c.b16 %v8386, %v8385
        %v8492 = vpack.c.b16 %v8388, %v8387
        %v8493 = vpack.c.b16 %v8390, %v8389
        %v8494 = vpack.c.b16 %v8392, %v8391
        %v8495 = vpack.c.b16 %v8394, %v8393
        %v8496 = vpack.c.b16 %v8396, %v8395
        %v8497 = vpack.c.b16 %v8398, %v8397
        %v8498 = vpack.c.b16 %v8400, %v8399
        %v8499 = vpack.c.b16 %v8402, %v8401
        %v8500 = vpack.c.b16 %v8404, %v8403
        %v8501 = vpack.c.b16 %v8406, %v8405
        %v8502 = vpack.c.b16 %v8408, %v8407
        %v8503 = vpack.c.b16 %v8410, %v8409
        %v8504 = vpack.c.b16 %v8412, %v8411
        %v8505 = vpack.c.b16 %v8414, %v8413
        %v8506 = vpack.c.b16 %v8416, %v8415
        %v8507 = vpack.c.b16 %v8418, %v8417
        %v8508 = vpack.c.b16 %v8420, %v8419
        %v8509 = vpack.c.b16 %v8422, %v8421
        %v8510 = vpack.c.b16 %v8424, %v8423
        %v8511 = vpack.c.b16 %v8426, %v8425
        %v8512 = vpack.c.b16 %v8428, %v8427
        %v8513 = vpack.c.b16 %v8430, %v8429
        %v8514 = vpack.c.b16 %v8432, %v8431
        %v8515 = vpack.c.b16 %v8434, %v8433
        %v8516 = vpack.c.b16 %v8436, %v8435
        %v8517 = vpack.c.b16 %v8438, %v8437
        %v8518 = vpack.c.b16 %v8440, %v8439
        %v8519 = vpack.c.b16 %v8442, %v8441
        %v8520 = vpack.c.b16 %v8444, %v8443
        %v8521 = vpack.c.b16 %v8446, %v8445
        %v8522 = vpack.c.b16 %v8448, %v8447
        %v8523 = vpack.c.b16 %v8450, %v8449
        %v8524 = vpack.c.b16 %v8452, %v8451
        %8597 = vmatprep.subr.bf16.mxu0 0
        %8598 = vmatpush1.bf16.msra.mxu0 %v8453
        %8599 = vmatprep.subr.bf16.mxu0 0
        %8600 = vmatpush1.bf16.msra.mxu0 %v8454
        %8601 = vmatprep.subr.bf16.mxu0 0
        %8602 = vmatpush1.bf16.msra.mxu0 %v8455
        %8603 = vmatprep.subr.bf16.mxu0 0
        %8604 = vmatpush1.bf16.msra.mxu0 %v8456
        %8605 = vmatprep.subr.bf16.mxu0 0
        %8606 = vmatpush1.bf16.msra.mxu0 %v8457
        %8607 = vmatprep.subr.bf16.mxu0 0
        %8608 = vmatpush1.bf16.msra.mxu0 %v8458
        %8609 = vmatprep.subr.bf16.mxu0 0
        %8610 = vmatpush1.bf16.msra.mxu0 %v8459
        %8611 = vmatprep.subr.bf16.mxu0 0
        %8612 = vmatpush1.bf16.msra.mxu0 %v8460
        %8613 = vmatprep.subr.bf16.mxu0 0
        %8614 = vmatpush1.bf16.msra.mxu0 %v8461
        %8615 = vmatprep.subr.bf16.mxu0 0
        %8616 = vmatpush1.bf16.msra.mxu0 %v8462
        %8617 = vmatprep.subr.bf16.mxu0 0
        %8618 = vmatpush1.bf16.msra.mxu0 %v8463
        %8619 = vmatprep.subr.bf16.mxu0 0
        %8620 = vmatpush1.bf16.msra.mxu0 %v8464
        %8621 = vmatprep.subr.bf16.mxu0 0
        %8622 = vmatpush1.bf16.msra.mxu0 %v8465
        %8623 = vmatprep.subr.bf16.mxu0 0
        %8624 = vmatpush1.bf16.msra.mxu0 %v8466
        %8625 = vmatprep.subr.bf16.mxu0 0
        %8626 = vmatpush1.bf16.msra.mxu0 %v8467
        %8627 = vmatprep.subr.bf16.mxu0 0
        %8628 = vmatpush1.bf16.msra.mxu0 %v8468
        %8629 = vmatprep.mubr.bf16.mxu0 %v7986
        %8630 = vmatmul.mubr.bf16.gmra.mrb[0].mxu0 %v7985
        %v8631 = vpop.f32.mrb[0].mxu0
        %v8632 = vadd.f32 0.0, %v8631
        %v8633 = vpop.f32.mrb[0].mxu0
        %v8634 = vpop.f32.mrb[0].mxu0
        %v8635 = vadd.f32 0.0, %v8634
        %v8636 = vpop.f32.mrb[0].mxu0
        %8637 = vmatprep.mubr.bf16.mxu0 %v7995
        %8638 = vmatmul.mubr.bf16.gmra.mrb[0].mxu0 %v7994
        %v8639 = vpop.f32.mrb[0].mxu0
        %v8640 = vadd.f32 0.0, %v8639
        %v8641 = vpop.f32.mrb[0].mxu0
        %v8642 = vpop.f32.mrb[0].mxu0
        %v8643 = vadd.f32 0.0, %v8642
        %v8644 = vpop.f32.mrb[0].mxu0
        %8645 = vmatprep.mubr.bf16.mxu0 %v8004
        %8646 = vmatmul.mubr.bf16.gmra.mrb[0].mxu0 %v8003
        %v8647 = vpop.f32.mrb[0].mxu0
        %v8648 = vadd.f32 0.0, %v8647
        %v8649 = vpop.f32.mrb[0].mxu0
        %v8650 = vpop.f32.mrb[0].mxu0
        %v8651 = vadd.f32 0.0, %v8650
        %v8652 = vpop.f32.mrb[0].mxu0
        %8653 = vmatprep.mubr.bf16.mxu0 %v8013
        %8654 = vmatmul.mubr.bf16.gmra.mrb[0].mxu0 %v8012
        %v8655 = vpop.f32.mrb[0].mxu0
        %v8656 = vadd.f32 0.0, %v8655
        %v8657 = vpop.f32.mrb[0].mxu0
        %v8658 = vpop.f32.mrb[0].mxu0
        %v8659 = vadd.f32 0.0, %v8658
        %v8660 = vpop.f32.mrb[0].mxu0
        %8661 = vdwg.mxu0
        %8662 = vmatprep.subr.bf16.mxu0 0
        %8663 = vmatpush1.bf16.msra.mxu0 %v8469
        %8664 = vmatprep.subr.bf16.mxu0 0
        %8665 = vmatpush1.bf16.msra.mxu0 %v8470
        %8666 = vmatprep.subr.bf16.mxu0 0
        %8667 = vmatpush1.bf16.msra.mxu0 %v8471
        %8668 = vmatprep.subr.bf16.mxu0 0
        %8669 = vmatpush1.bf16.msra.mxu0 %v8472
        %8670 = vmatprep.subr.bf16.mxu0 0
        %8671 = vmatpush1.bf16.msra.mxu0 %v8473
        %8672 = vmatprep.subr.bf16.mxu0 0
        %8673 = vmatpush1.bf16.msra.mxu0 %v8474
        %8674 = vmatprep.subr.bf16.mxu0 0
        %8675 = vmatpush1.bf16.msra.mxu0 %v8475
        %8676 = vmatprep.subr.bf16.mxu0 0
        %8677 = vmatpush1.bf16.msra.mxu0 %v8476
        %8678 = vmatprep.subr.bf16.mxu0 0
        %8679 = vmatpush1.bf16.msra.mxu0 %v8477
        %8680 = vmatprep.subr.bf16.mxu0 0
        %8681 = vmatpush1.bf16.msra.mxu0 %v8478
        %8682 = vmatprep.subr.bf16.mxu0 0
        %8683 = vmatpush1.bf16.msra.mxu0 %v8479
        %8684 = vmatprep.subr.bf16.mxu0 0
        %8685 = vmatpush1.bf16.msra.mxu0 %v8480
        %8686 = vmatprep.subr.bf16.mxu0 0
        %8687 = vmatpush1.bf16.msra.mxu0 %v8481
        %8688 = vmatprep.subr.bf16.mxu0 0
        %8689 = vmatpush1.bf16.msra.mxu0 %v8482
        %8690 = vmatprep.subr.bf16.mxu0 0
        %8691 = vmatpush1.bf16.msra.mxu0 %v8483
        %8692 = vmatprep.subr.bf16.mxu0 0
        %8693 = vmatpush1.bf16.msra.mxu0 %v8484
        %8694 = vmatprep.mubr.bf16.mxu0 %v7988
        %8695 = vmatmul.mubr.bf16.gmra.mrb[0].mxu0 %v7987
        %v8696 = vpop.f32.mrb[0].mxu0
        %v8697 = vadd.f32 %v8632, %v8696
        %v8698 = vpop.f32.mrb[0].mxu0
        %v8699 = vpop.f32.mrb[0].mxu0
        %v8700 = vadd.f32 %v8635, %v8699
        %v8701 = vpop.f32.mrb[0].mxu0
        %8702 = vmatprep.mubr.bf16.mxu0 %v7997
        %8703 = vmatmul.mubr.bf16.gmra.mrb[0].mxu0 %v7996
        %v8704 = vpop.f32.mrb[0].mxu0
        %v8705 = vadd.f32 %v8640, %v8704
        %v8706 = vpop.f32.mrb[0].mxu0
        %v8707 = vpop.f32.mrb[0].mxu0
        %v8708 = vadd.f32 %v8643, %v8707
        %v8709 = vpop.f32.mrb[0].mxu0
        %8710 = vmatprep.mubr.bf16.mxu0 %v8006
        %8711 = vmatmul.mubr.bf16.gmra.mrb[0].mxu0 %v8005
        %v8712 = vpop.f32.mrb[0].mxu0
        %v8713 = vadd.f32 %v8648, %v8712
        %v8714 = vpop.f32.mrb[0].mxu0
        %v8715 = vpop.f32.mrb[0].mxu0
        %v8716 = vadd.f32 %v8651, %v8715
        %v8717 = vpop.f32.mrb[0].mxu0
        %8718 = vmatprep.mubr.bf16.mxu0 %v8015
        %8719 = vmatmul.mubr.bf16.gmra.mrb[0].mxu0 %v8014
        %v8720 = vpop.f32.mrb[0].mxu0
        %v8721 = vadd.f32 %v8656, %v8720
        %v8722 = vpop.f32.mrb[0].mxu0
        %v8723 = vpop.f32.mrb[0].mxu0
        %v8724 = vadd.f32 %v8659, %v8723
        %v8725 = vpop.f32.mrb[0].mxu0
        %8726 = vdwg.mxu0
        %8727 = vmatprep.subr.bf16.mxu0 0
        %8728 = vmatpush1.bf16.msra.mxu0 %v8485
        %8729 = vmatprep.subr.bf16.mxu0 0
        %8730 = vmatpush1.bf16.msra.mxu0 %v8486
        %8731 = vmatprep.subr.bf16.mxu0 0
        %8732 = vmatpush1.bf16.msra.mxu0 %v8487
        %8733 = vmatprep.subr.bf16.mxu0 0
        %8734 = vmatpush1.bf16.msra.mxu0 %v8488
        %8735 = vmatprep.subr.bf16.mxu0 0
        %8736 = vmatpush1.bf16.msra.mxu0 %v8489
        %8737 = vmatprep.subr.bf16.mxu0 0
        %8738 = vmatpush1.bf16.msra.mxu0 %v8490
        %8739 = vmatprep.subr.bf16.mxu0 0
        %8740 = vmatpush1.bf16.msra.mxu0 %v8491
        %8741 = vmatprep.subr.bf16.mxu0 0
        %8742 = vmatpush1.bf16.msra.mxu0 %v8492
        %8743 = vmatprep.subr.bf16.mxu0 0
        %8744 = vmatpush1.bf16.msra.mxu0 %v8493
        %8745 = vmatprep.subr.bf16.mxu0 0
        %8746 = vmatpush1.bf16.msra.mxu0 %v8494
        %8747 = vmatprep.subr.bf16.mxu0 0
        %8748 = vmatpush1.bf16.msra.mxu0 %v8495
        %8749 = vmatprep.subr.bf16.mxu0 0
        %8750 = vmatpush1.bf16.msra.mxu0 %v8496
        %8751 = vmatprep.subr.bf16.mxu0 0
        %8752 = vmatpush1.bf16.msra.mxu0 %v8497
        %8753 = vmatprep.subr.bf16.mxu0 0
        %8754 = vmatpush1.bf16.msra.mxu0 %v8498
        %8755 = vmatprep.subr.bf16.mxu0 0
        %8756 = vmatpush1.bf16.msra.mxu0 %v8499
        %8757 = vmatprep.subr.bf16.mxu0 0
        %8758 = vmatpush1.bf16.msra.mxu0 %v8500
        %8759 = vmatprep.mubr.bf16.mxu0 %v7990
        %8760 = vmatmul.mubr.bf16.gmra.mrb[0].mxu0 %v7989
        %v8761 = vpop.f32.mrb[0].mxu0
        %v8762 = vadd.f32 %v8697, %v8761
        %v8763 = vpop.f32.mrb[0].mxu0
        %v8764 = vpop.f32.mrb[0].mxu0
        %v8765 = vadd.f32 %v8700, %v8764
        %v8766 = vpop.f32.mrb[0].mxu0
        %8767 = vmatprep.mubr.bf16.mxu0 %v7999
        %8768 = vmatmul.mubr.bf16.gmra.mrb[0].mxu0 %v7998
        %v8769 = vpop.f32.mrb[0].mxu0
        %v8770 = vadd.f32 %v8705, %v8769
        %v8771 = vpop.f32.mrb[0].mxu0
        %v8772 = vpop.f32.mrb[0].mxu0
        %v8773 = vadd.f32 %v8708, %v8772
        %v8774 = vpop.f32.mrb[0].mxu0
        %8775 = vmatprep.mubr.bf16.mxu0 %v8008
        %8776 = vmatmul.mubr.bf16.gmra.mrb[0].mxu0 %v8007
        %v8777 = vpop.f32.mrb[0].mxu0
        %v8778 = vadd.f32 %v8713, %v8777
        %v8779 = vpop.f32.mrb[0].mxu0
        %v8780 = vpop.f32.mrb[0].mxu0
        %v8781 = vadd.f32 %v8716, %v8780
        %v8782 = vpop.f32.mrb[0].mxu0
        %8783 = vmatprep.mubr.bf16.mxu0 %v8017
        %8784 = vmatmul.mubr.bf16.gmra.mrb[0].mxu0 %v8016
        %v8785 = vpop.f32.mrb[0].mxu0
        %v8786 = vadd.f32 %v8721, %v8785
        %v8787 = vpop.f32.mrb[0].mxu0
        %v8788 = vpop.f32.mrb[0].mxu0
        %v8789 = vadd.f32 %v8724, %v8788
        %v8790 = vpop.f32.mrb[0].mxu0
        %8791 = vdwg.mxu0
        %8792 = vmatprep.subr.bf16.mxu0 0
        %8793 = vmatpush1.bf16.msra.mxu0 %v8501
        %8794 = vmatprep.subr.bf16.mxu0 0
        %8795 = vmatpush1.bf16.msra.mxu0 %v8502
        %8796 = vmatprep.subr.bf16.mxu0 0
        %8797 = vmatpush1.bf16.msra.mxu0 %v8503
        %8798 = vmatprep.subr.bf16.mxu0 0
        %8799 = vmatpush1.bf16.msra.mxu0 %v8504
        %8800 = vmatprep.subr.bf16.mxu0 0
        %8801 = vmatpush1.bf16.msra.mxu0 %v8505
        %8802 = vmatprep.subr.bf16.mxu0 0
        %8803 = vmatpush1.bf16.msra.mxu0 %v8506
        %8804 = vmatprep.subr.bf16.mxu0 0
        %8805 = vmatpush1.bf16.msra.mxu0 %v8507
        %8806 = vmatprep.subr.bf16.mxu0 0
        %8807 = vmatpush1.bf16.msra.mxu0 %v8508
        %8808 = vmatprep.subr.bf16.mxu0 0
        %8809 = vmatpush1.bf16.msra.mxu0 %v8509
        %8810 = vmatprep.subr.bf16.mxu0 0
        %8811 = vmatpush1.bf16.msra.mxu0 %v8510
        %8812 = vmatprep.subr.bf16.mxu0 0
        %8813 = vmatpush1.bf16.msra.mxu0 %v8511
        %8814 = vmatprep.subr.bf16.mxu0 0
        %8815 = vmatpush1.bf16.msra.mxu0 %v8512
        %8816 = vmatprep.subr.bf16.mxu0 0
        %8817 = vmatpush1.bf16.msra.mxu0 %v8513
        %8818 = vmatprep.subr.bf16.mxu0 0
        %8819 = vmatpush1.bf16.msra.mxu0 %v8514
        %8820 = vmatprep.subr.bf16.mxu0 0
        %8821 = vmatpush1.bf16.msra.mxu0 %v8515
        %8822 = vmatprep.subr.bf16.mxu0 0
        %8823 = vmatpush1.bf16.msra.mxu0 %v8516
        %8824 = vmatprep.mubr.bf16.mxu0 %v7992
        %8825 = vmatmul.mubr.bf16.gmra.mrb[0].mxu0 %v7991
        %v8826 = vpop.f32.mrb[0].mxu0
        %v8827 = vadd.f32 %v8762, %v8826
        %v8828 = vpop.f32.mrb[0].mxu0
        %v8829 = vpop.f32.mrb[0].mxu0
        %v8830 = vadd.f32 %v8765, %v8829
        %v8831 = vpop.f32.mrb[0].mxu0
        %8832 = vmatprep.mubr.bf16.mxu0 %v8001
        %8833 = vmatmul.mubr.bf16.gmra.mrb[0].mxu0 %v8000
        %v8834 = vpop.f32.mrb[0].mxu0
        %v8835 = vadd.f32 %v8770, %v8834
        %v8836 = vpop.f32.mrb[0].mxu0
        %v8837 = vpop.f32.mrb[0].mxu0
        %v8838 = vadd.f32 %v8773, %v8837
        %v8839 = vpop.f32.mrb[0].mxu0
        %8840 = vmatprep.mubr.bf16.mxu0 %v8010
        %8841 = vmatmul.mubr.bf16.gmra.mrb[0].mxu0 %v8009
        %v8842 = vpop.f32.mrb[0].mxu0
        %v8843 = vadd.f32 %v8778, %v8842
        %v8844 = vpop.f32.mrb[0].mxu0
        %v8845 = vpop.f32.mrb[0].mxu0
        %v8846 = vadd.f32 %v8781, %v8845
        %v8847 = vpop.f32.mrb[0].mxu0
        %8848 = vmatprep.mubr.bf16.mxu0 %v8019
        %8849 = vmatmul.mubr.bf16.gmra.mrb[0].mxu0 %v8018
        %v8850 = vpop.f32.mrb[0].mxu0
        %v8851 = vadd.f32 %v8786, %v8850
        %v8852 = vpop.f32.mrb[0].mxu0
        %v8853 = vpop.f32.mrb[0].mxu0
        %v8854 = vadd.f32 %v8789, %v8853
        %v8855 = vpop.f32.mrb[0].mxu0
        %8856 = vdwg.mxu0
        %8857 = vmatprep.subr.bf16.mxu0 0
        %8858 = vmatpush1.bf16.msra.mxu0 %v8517
        %8859 = vmatprep.subr.bf16.mxu0 0
        %8860 = vmatpush1.bf16.msra.mxu0 %v8518
        %8861 = vmatprep.subr.bf16.mxu0 0
        %8862 = vmatpush1.bf16.msra.mxu0 %v8519
        %8863 = vmatprep.subr.bf16.mxu0 0
        %8864 = vmatpush1.bf16.msra.mxu0 %v8520
        %8865 = vmatprep.subr.bf16.mxu0 0
        %8866 = vmatpush1.bf16.msra.mxu0 %v8521
        %8867 = vmatprep.subr.bf16.mxu0 0
        %8868 = vmatpush1.bf16.msra.mxu0 %v8522
        %8869 = vmatprep.subr.bf16.mxu0 0
        %8870 = vmatpush1.bf16.msra.mxu0 %v8523
        %8871 = vmatprep.subr.bf16.mxu0 0
        %8872 = vmatpush1.bf16.msra.mxu0 %v8524
        %8873 = vmatprep.subr.bf16.mxu0 0
        %8874 = vmatpush1.bf16.msra.mxu0 0
        %8875 = vmatprep.subr.bf16.mxu0 0
        %8876 = vmatpush1.bf16.msra.mxu0 0
        %8877 = vmatprep.subr.bf16.mxu0 0
        %8878 = vmatpush1.bf16.msra.mxu0 0
        %8879 = vmatprep.subr.bf16.mxu0 0
        %8880 = vmatpush1.bf16.msra.mxu0 0
        %8881 = vmatprep.subr.bf16.mxu0 0
        %8882 = vmatpush1.bf16.msra.mxu0 0
        %8883 = vmatprep.subr.bf16.mxu0 0
        %8884 = vmatpush1.bf16.msra.mxu0 0
        %8885 = vmatprep.subr.bf16.mxu0 0
        %8886 = vmatpush1.bf16.msra.mxu0 0
        %8887 = vmatprep.subr.bf16.mxu0 0
        %8888 = vmatpush1.bf16.msra.mxu0 0
        %8889 = vmatprep.mubr.bf16.mxu0 0
        %8890 = vmatmul.mubr.bf16.gmra.mrb[0].mxu0 %v7993
        %v8891 = vpop.f32.mrb[0].mxu0
        %v8892 = vadd.f32 %v8827, %v8891
        %v8893 = vpop.f32.mrb[0].mxu0
        %v8894 = vpop.f32.mrb[0].mxu0
        %v8895 = vadd.f32 %v8830, %v8894
        %v8896 = vpop.f32.mrb[0].mxu0
        %8897 = vmatprep.mubr.bf16.mxu0 0
        %8898 = vmatmul.mubr.bf16.gmra.mrb[0].mxu0 %v8002
        %v8899 = vpop.f32.mrb[0].mxu0
        %v8900 = vadd.f32 %v8835, %v8899
        %v8901 = vpop.f32.mrb[0].mxu0
        %v8902 = vpop.f32.mrb[0].mxu0
        %v8903 = vadd.f32 %v8838, %v8902
        %v8904 = vpop.f32.mrb[0].mxu0
        %8905 = vmatprep.mubr.bf16.mxu0 0
        %8906 = vmatmul.mubr.bf16.gmra.mrb[0].mxu0 %v8011
        %v8907 = vpop.f32.mrb[0].mxu0
        %v8908 = vadd.f32 %v8843, %v8907
        %v8909 = vpop.f32.mrb[0].mxu0
        %v8910 = vpop.f32.mrb[0].mxu0
        %v8911 = vadd.f32 %v8846, %v8910
        %v8912 = vpop.f32.mrb[0].mxu0
        %8913 = vmatprep.mubr.bf16.mxu0 0
        %8914 = vmatmul.mubr.bf16.gmra.mrb[0].mxu0 %v8020
        %v8915 = vpop.f32.mrb[0].mxu0
        %v8916 = vadd.f32 %v8851, %v8915
        %v8917 = vpop.f32.mrb[0].mxu0
        %v8918 = vpop.f32.mrb[0].mxu0
        %v8919 = vadd.f32 %v8854, %v8918
        %v8920 = vpop.f32.mrb[0].mxu0
        %8921 = vdwg.mxu0
        %v8922 = vadd.f32 %v8892, %v8895
        %v8923 = vadd.f32 %v8922, %v8900
        %v8924 = vadd.f32 %v8923, %v8903
        %v8925 = vadd.f32 %v8924, %v8908
        %v8926 = vadd.f32 %v8925, %v8911
        %v8927 = vadd.f32 %v8926, %v8916
        %v8928 = vadd.f32 %v8927, %v8919
        %v8929 = vrot.slane %v8928, 4
        %v8930 = vadd.f32 %v8928, %v8929
        %v8931 = vrot.slane %v8930, 2
        %v8932 = vadd.f32 %v8930, %v8931
        %v8933 = vrot.slane %v8932, 1
        %v8934 = vadd.f32 %v8932, %v8933
        %v8935 = vmul.f32 %v8892, %v8892
        %v8936 = vmul.f32 %v8895, %v8895
        %v8937 = vmul.f32 %v8900, %v8900
        %v8938 = vmul.f32 %v8903, %v8903
        %v8939 = vmul.f32 %v8908, %v8908
        %v8940 = vmul.f32 %v8911, %v8911
        %v8941 = vmul.f32 %v8916, %v8916
        %v8942 = vmul.f32 %v8919, %v8919
        %v8943 = vadd.f32 %v8935, %v8936
        %v8944 = vadd.f32 %v8943, %v8937
        %v8945 = vadd.f32 %v8944, %v8938
        %v8946 = vadd.f32 %v8945, %v8939
        %v8947 = vadd.f32 %v8946, %v8940
        %v8948 = vadd.f32 %v8947, %v8941
        %v8949 = vadd.f32 %v8948, %v8942
        %v8950 = vrot.slane %v8949, 4
        %v8951 = vadd.f32 %v8949, %v8950
        %v8952 = vrot.slane %v8951, 2
        %v8953 = vadd.f32 %v8951, %v8952
        %v8954 = vrot.slane %v8953, 1
        %v8955 = vadd.f32 %v8953, %v8954
        %v8956 = vld [vmem:[#allocation19] sm:$0xff]
        %v8957 = vld [vmem:[#allocation19 + $0x8] sm:$0xff]
        %v8958 = vld [vmem:[#allocation19 + $0x10] sm:$0xff]
        %v8959 = vld [vmem:[#allocation19 + $0x18] sm:$0xff]
        %v8960 = vld [vmem:[#allocation19 + $0x20] sm:$0xff]
        %v8961 = vld [vmem:[#allocation19 + $0x28] sm:$0xff]
        %v8962 = vld [vmem:[#allocation19 + $0x30] sm:$0xff]
        %v8963 = vld [vmem:[#allocation19 + $0x38] sm:$0xff]
        %v8964 = vld [vmem:[#allocation19 + $0x40] sm:$0xff]
        %v8965 = vld [vmem:[#allocation19 + $0x48] sm:$0xff]
        %v8966 = vld [vmem:[#allocation19 + $0x50] sm:$0xff]
        %v8967 = vld [vmem:[#allocation19 + $0x58] sm:$0xff]
        %v8968 = vld [vmem:[#allocation19 + $0x60] sm:$0xff]
        %v8969 = vld [vmem:[#allocation19 + $0x68] sm:$0xff]
        %v8970 = vld [vmem:[#allocation19 + $0x70] sm:$0xff]
        %v8971 = vld [vmem:[#allocation19 + $0x78] sm:$0xff]
        %8972 = vmatprep.subr.mxu0 0.0
        %8973 = vmatpush1.msra.mxu0 %v8956
        %8974 = vmatprep.subr.mxu0 0.0
        %8975 = vmatpush1.msra.mxu0 %v8957
        %8976 = vmatprep.subr.mxu0 0.0
        %8977 = vmatpush1.msra.mxu0 %v8958
        %8978 = vmatprep.subr.mxu0 0.0
        %8979 = vmatpush1.msra.mxu0 %v8959
        %8980 = vmatprep.subr.mxu0 0.0
        %8981 = vmatpush1.msra.mxu0 %v8960
        %8982 = vmatprep.subr.mxu0 0.0
        %8983 = vmatpush1.msra.mxu0 %v8961
        %8984 = vmatprep.subr.mxu0 0.0
        %8985 = vmatpush1.msra.mxu0 %v8962
        %8986 = vmatprep.subr.mxu0 0.0
        %8987 = vmatpush1.msra.mxu0 %v8963
        %8988 = vmatprep.subr.mxu0 0.0
        %8989 = vmatpush1.msra.mxu0 %v8964
        %8990 = vmatprep.subr.mxu0 0.0
        %8991 = vmatpush1.msra.mxu0 %v8965
        %8992 = vmatprep.subr.mxu0 0.0
        %8993 = vmatpush1.msra.mxu0 %v8966
        %8994 = vmatprep.subr.mxu0 0.0
        %8995 = vmatpush1.msra.mxu0 %v8967
        %8996 = vmatprep.subr.mxu0 0.0
        %8997 = vmatpush1.msra.mxu0 %v8968
        %8998 = vmatprep.subr.mxu0 0.0
        %8999 = vmatpush1.msra.mxu0 %v8969
        %9000 = vmatprep.subr.mxu0 0.0
        %9001 = vmatpush1.msra.mxu0 %v8970
        %9002 = vmatprep.subr.mxu0 0.0
        %9003 = vmatpush1.msra.mxu0 %v8971
        %9004 = vmatprep.subr.mxu0 0.0
        %9005 = vmatpush1.msra.mxu0 0.0
        %9006 = vmatprep.subr.mxu0 0.0
        %9007 = vmatpush1.msra.mxu0 0.0
        %9008 = vmatprep.subr.mxu0 0.0
        %9009 = vmatpush1.msra.mxu0 0.0
        %9010 = vmatprep.subr.mxu0 0.0
        %9011 = vmatpush1.msra.mxu0 0.0
        %9012 = vmatprep.subr.mxu0 0.0
        %9013 = vmatpush1.msra.mxu0 0.0
        %9014 = vmatprep.subr.mxu0 0.0
        %9015 = vmatpush1.msra.mxu0 0.0
        %9016 = vmatprep.subr.mxu0 0.0
        %9017 = vmatpush1.msra.mxu0 0.0
        %9018 = vmatprep.subr.mxu0 0.0
        %9019 = vmatpush1.msra.mxu0 0.0
        %9020 = vmatprep.subr.mxu0 0.0
        %9021 = vmatpush1.msra.mxu0 0.0
        %9022 = vmatprep.subr.mxu0 0.0
        %9023 = vmatpush1.msra.mxu0 0.0
        %9024 = vmatprep.subr.mxu0 0.0
        %9025 = vmatpush1.msra.mxu0 0.0
        %9026 = vmatprep.subr.mxu0 0.0
        %9027 = vmatpush1.msra.mxu0 0.0
        %9028 = vmatprep.subr.mxu0 0.0
        %9029 = vmatpush1.msra.mxu0 0.0
        %9030 = vmatprep.subr.mxu0 0.0
        %9031 = vmatpush1.msra.mxu0 0.0
        %9032 = vmatprep.subr.mxu0 0.0
        %9033 = vmatpush1.msra.mxu0 0.0
        %9034 = vmatprep.subr.mxu0 0.0
        %9035 = vmatpush1.msra.mxu0 0.0
        %9036 = vmatprep.mubr.f32.mxu0 0.0
        %9037 = vmatmul.mubr.f32.gmra.mrb[0].mxu0 %v8934
        %v9038 = vpop.f32.mrb[0].mxu0
        %v9039 = vadd.f32 0.0, %v9038
        %v9040 = vpop.f32.mrb[0].mxu0
        %9041 = vdwg.mxu0
        %9042 = vmatprep.subr.mxu0 0.0
        %9043 = vmatpush1.msra.mxu0 %v8956
        %9044 = vmatprep.subr.mxu0 0.0
        %9045 = vmatpush1.msra.mxu0 %v8957
        %9046 = vmatprep.subr.mxu0 0.0
        %9047 = vmatpush1.msra.mxu0 %v8958
        %9048 = vmatprep.subr.mxu0 0.0
        %9049 = vmatpush1.msra.mxu0 %v8959
        %9050 = vmatprep.subr.mxu0 0.0
        %9051 = vmatpush1.msra.mxu0 %v8960
        %9052 = vmatprep.subr.mxu0 0.0
        %9053 = vmatpush1.msra.mxu0 %v8961
        %9054 = vmatprep.subr.mxu0 0.0
        %9055 = vmatpush1.msra.mxu0 %v8962
        %9056 = vmatprep.subr.mxu0 0.0
        %9057 = vmatpush1.msra.mxu0 %v8963
        %9058 = vmatprep.subr.mxu0 0.0
        %9059 = vmatpush1.msra.mxu0 %v8964
        %9060 = vmatprep.subr.mxu0 0.0
        %9061 = vmatpush1.msra.mxu0 %v8965
        %9062 = vmatprep.subr.mxu0 0.0
        %9063 = vmatpush1.msra.mxu0 %v8966
        %9064 = vmatprep.subr.mxu0 0.0
        %9065 = vmatpush1.msra.mxu0 %v8967
        %9066 = vmatprep.subr.mxu0 0.0
        %9067 = vmatpush1.msra.mxu0 %v8968
        %9068 = vmatprep.subr.mxu0 0.0
        %9069 = vmatpush1.msra.mxu0 %v8969
        %9070 = vmatprep.subr.mxu0 0.0
        %9071 = vmatpush1.msra.mxu0 %v8970
        %9072 = vmatprep.subr.mxu0 0.0
        %9073 = vmatpush1.msra.mxu0 %v8971
        %9074 = vmatprep.subr.mxu0 0.0
        %9075 = vmatpush1.msra.mxu0 0.0
        %9076 = vmatprep.subr.mxu0 0.0
        %9077 = vmatpush1.msra.mxu0 0.0
        %9078 = vmatprep.subr.mxu0 0.0
        %9079 = vmatpush1.msra.mxu0 0.0
        %9080 = vmatprep.subr.mxu0 0.0
        %9081 = vmatpush1.msra.mxu0 0.0
        %9082 = vmatprep.subr.mxu0 0.0
        %9083 = vmatpush1.msra.mxu0 0.0
        %9084 = vmatprep.subr.mxu0 0.0
        %9085 = vmatpush1.msra.mxu0 0.0
        %9086 = vmatprep.subr.mxu0 0.0
        %9087 = vmatpush1.msra.mxu0 0.0
        %9088 = vmatprep.subr.mxu0 0.0
        %9089 = vmatpush1.msra.mxu0 0.0
        %9090 = vmatprep.subr.mxu0 0.0
        %9091 = vmatpush1.msra.mxu0 0.0
        %9092 = vmatprep.subr.mxu0 0.0
        %9093 = vmatpush1.msra.mxu0 0.0
        %9094 = vmatprep.subr.mxu0 0.0
        %9095 = vmatpush1.msra.mxu0 0.0
        %9096 = vmatprep.subr.mxu0 0.0
        %9097 = vmatpush1.msra.mxu0 0.0
        %9098 = vmatprep.subr.mxu0 0.0
        %9099 = vmatpush1.msra.mxu0 0.0
        %9100 = vmatprep.subr.mxu0 0.0
        %9101 = vmatpush1.msra.mxu0 0.0
        %9102 = vmatprep.subr.mxu0 0.0
        %9103 = vmatpush1.msra.mxu0 0.0
        %9104 = vmatprep.subr.mxu0 0.0
        %9105 = vmatpush1.msra.mxu0 0.0
        %9106 = vmatprep.mubr.f32.mxu0 0.0
        %9107 = vmatmul.mubr.f32.gmra.mrb[0].mxu0 %v8955
        %v9108 = vpop.f32.mrb[0].mxu0
        %v9109 = vadd.f32 0.0, %v9108
        %v9110 = vpop.f32.mrb[0].mxu0
        %9111 = vdwg.mxu0
        %v9112 = vmul.f32 %v9039, %v9039
        %v9113 = vsub.f32 %v9109, %v9112
        %v9114 = vmax.f32 %v9113, 0.0
        %v9115 = vlaneseq
        %v9116 = vshrl.u32 %v9115, 7
        %v9117 = vsub.s32 0, %v9116
        %v9118 = vrot.slane %v9039, %v9117
        %v9119 = vsub.f32 %v8892, %v9118
        %v9120 = vsub.f32 %v8895, %v9118
        %v9121 = vsub.f32 %v8900, %v9118
        %v9122 = vsub.f32 %v8903, %v9118
        %v9123 = vsub.f32 %v8908, %v9118
        %v9124 = vsub.f32 %v8911, %v9118
        %v9125 = vsub.f32 %v8916, %v9118
        %v9126 = vsub.f32 %v8919, %v9118
        %v9127 = vadd.f32 %v9114, 1e-05
        %v9128 = vrsqrt.pop %v9127
        %v9129 = vlaneseq
        %v9130 = vshrl.u32 %v9129, 7
        %v9131 = vsub.s32 0, %v9130
        %v9132 = vrot.slane %v9128, %v9131
        %v9133 = vmul.f32 %v9119, %v9132
        %v9134 = vmul.f32 %v9120, %v9132
        %v9135 = vmul.f32 %v9121, %v9132
        %v9136 = vmul.f32 %v9122, %v9132
        %v9137 = vmul.f32 %v9123, %v9132
        %v9138 = vmul.f32 %v9124, %v9132
        %v9139 = vmul.f32 %v9125, %v9132
        %v9140 = vmul.f32 %v9126, %v9132
        %v9141 = vld [vmem:[#allocation21] sm:$0x1]
        %v9143 = vlaneseq
        %v9144 = vshrl.u32 %v9143, 7
        %v9145 = vsub.s32 0, %v9144
        %v9146 = vrot.slane %v9141, %v9145
        %v9148 = vmul.f32 %v9133, %v9146
        %v9149 = vmul.f32 %v9134, %v9146
        %v9150 = vmul.f32 %v9135, %v9146
        %v9151 = vmul.f32 %v9136, %v9146
        %v9152 = vmul.f32 %v9137, %v9146
        %v9153 = vmul.f32 %v9138, %v9146
        %v9154 = vmul.f32 %v9139, %v9146
        %v9155 = vmul.f32 %v9140, %v9146
        %v9156 = vld [vmem:[#allocation22] sm:$0x1]
        %v9158 = vlaneseq
        %v9159 = vshrl.u32 %v9158, 7
        %v9160 = vsub.s32 0, %v9159
        %v9161 = vrot.slane %v9156, %v9160
        %v9163 = vadd.f32 %v9148, %v9161
        %v9164 = vadd.f32 %v9149, %v9161
        %v9165 = vadd.f32 %v9150, %v9161
        %v9166 = vadd.f32 %v9151, %v9161
        %v9167 = vadd.f32 %v9152, %v9161
        %v9168 = vadd.f32 %v9153, %v9161
        %v9169 = vadd.f32 %v9154, %v9161
        %v9170 = vadd.f32 %v9155, %v9161
        %v9171 = vand.u32 2147483647, %v9163
        %v9172 = vand.u32 2147483647, %v9164
        %v9173 = vand.u32 2147483647, %v9165
        %v9174 = vand.u32 2147483647, %v9166
        %v9175 = vand.u32 2147483647, %v9167
        %v9176 = vand.u32 2147483647, %v9168
        %v9177 = vand.u32 2147483647, %v9169
        %v9178 = vand.u32 2147483647, %v9170
        %v9179 = vsub.f32 0.0, %v9171
        %v9180 = vsub.f32 0.0, %v9172
        %v9181 = vsub.f32 0.0, %v9173
        %v9182 = vsub.f32 0.0, %v9174
        %v9183 = vsub.f32 0.0, %v9175
        %v9184 = vsub.f32 0.0, %v9176
        %v9185 = vsub.f32 0.0, %v9177
        %v9186 = vsub.f32 0.0, %v9178
        %v9187 = vmul.f32 %v9179, 1.442695
        %v9188 = vpow.pop %v9187
        %v9189 = vmul.f32 %v9180, 1.442695
        %v9190 = vpow.pop %v9189
        %v9191 = vmul.f32 %v9181, 1.442695
        %v9192 = vpow.pop %v9191
        %v9193 = vmul.f32 %v9182, 1.442695
        %v9194 = vpow.pop %v9193
        %v9195 = vmul.f32 %v9183, 1.442695
        %v9196 = vpow.pop %v9195
        %v9197 = vmul.f32 %v9184, 1.442695
        %v9198 = vpow.pop %v9197
        %v9199 = vmul.f32 %v9185, 1.442695
        %v9200 = vpow.pop %v9199
        %v9201 = vmul.f32 %v9186, 1.442695
        %v9202 = vpow.pop %v9201
        %v9203 = vadd.f32 %v9188, 1.0
        %v9204 = vadd.f32 %v9190, 1.0
        %v9205 = vadd.f32 %v9192, 1.0
        %v9206 = vadd.f32 %v9194, 1.0
        %v9207 = vadd.f32 %v9196, 1.0
        %v9208 = vadd.f32 %v9198, 1.0
        %v9209 = vadd.f32 %v9200, 1.0
        %v9210 = vadd.f32 %v9202, 1.0
        %v9211 = vlog2.pop %v9203
        %v9212 = vmul.f32 %v9211, 0.6931472
        %v9213 = vlog2.pop %v9204
        %v9214 = vmul.f32 %v9213, 0.6931472
        %v9215 = vlog2.pop %v9205
        %v9216 = vmul.f32 %v9215, 0.6931472
        %v9217 = vlog2.pop %v9206
        %v9218 = vmul.f32 %v9217, 0.6931472
        %v9219 = vlog2.pop %v9207
        %v9220 = vmul.f32 %v9219, 0.6931472
        %v9221 = vlog2.pop %v9208
        %v9222 = vmul.f32 %v9221, 0.6931472
        %v9223 = vlog2.pop %v9209
        %v9224 = vmul.f32 %v9223, 0.6931472
        %v9225 = vlog2.pop %v9210
        %v9226 = vmul.f32 %v9225, 0.6931472
        %v9227 = vmax.f32 %v9163, 0.0
        %v9228 = vmax.f32 %v9164, 0.0
        %v9229 = vmax.f32 %v9165, 0.0
        %v9230 = vmax.f32 %v9166, 0.0
        %v9231 = vmax.f32 %v9167, 0.0
        %v9232 = vmax.f32 %v9168, 0.0
        %v9233 = vmax.f32 %v9169, 0.0
        %v9234 = vmax.f32 %v9170, 0.0
        %v9235 = vadd.f32 %v9212, %v9227
        %v9236 = vadd.f32 %v9214, %v9228
        %v9237 = vadd.f32 %v9216, %v9229
        %v9238 = vadd.f32 %v9218, %v9230
        %v9239 = vadd.f32 %v9220, %v9231
        %v9240 = vadd.f32 %v9222, %v9232
        %v9241 = vadd.f32 %v9224, %v9233
        %v9242 = vadd.f32 %v9226, %v9234
        %v9243 = vtanh.pop %v9235
        %v9244 = vtanh.pop %v9236
        %v9245 = vtanh.pop %v9237
        %v9246 = vtanh.pop %v9238
        %v9247 = vtanh.pop %v9239
        %v9248 = vtanh.pop %v9240
        %v9249 = vtanh.pop %v9241
        %v9250 = vtanh.pop %v9242
        %v9251 = vmul.f32 %v9163, %v9243
        %v9252 = vmul.f32 %v9164, %v9244
        %v9253 = vmul.f32 %v9165, %v9245
        %v9254 = vmul.f32 %v9166, %v9246
        %v9255 = vmul.f32 %v9167, %v9247
        %v9256 = vmul.f32 %v9168, %v9248
        %v9257 = vmul.f32 %v9169, %v9249
        %v9258 = vmul.f32 %v9170, %v9250
        %v9259 = vlaneseq
        %v9260 = vand.u32 %v9259, 127
        %vm9261 = vcmp.ge.s32.totalorder %v9260, 0
        %vm9262 = vcmp.lt.s32.totalorder %v9260, 64
        %vm9263 = vmand %vm9261, %vm9262
        %vm9264 = vcmp.ge.s32.totalorder %v9260, 64
        %vm9265 = vcmp.lt.s32.totalorder %v9260, 128
        %vm9266 = vmand %vm9264, %vm9265
        %v9267 = vsel %vm9263, 1, 0
        %v9268 = vcvt.s32.f32 %v9267
        %v9269 = vmul.f32 %v9251, %v9268
        %v9270 = vmul.f32 %v9252, %v9268
        %v9271 = vmul.f32 %v9253, %v9268
        %v9272 = vmul.f32 %v9254, %v9268
        %v9273 = vmul.f32 %v9255, %v9268
        %v9274 = vmul.f32 %v9256, %v9268
        %v9275 = vmul.f32 %v9257, %v9268
        %v9276 = vmul.f32 %v9258, %v9268
        %9277 = vadd.xlane.f32.xlu0 %v9269
        %v9278 = vpop.xlane.xlu0 %9277
        %9279 = vadd.xlane.f32.xlu0 %v9270
        %v9280 = vpop.xlane.xlu0 %9279
        %9281 = vadd.xlane.f32.xlu0 %v9271
        %v9282 = vpop.xlane.xlu0 %9281
        %9283 = vadd.xlane.f32.xlu0 %v9272
        %v9284 = vpop.xlane.xlu0 %9283
        %9285 = vadd.xlane.f32.xlu0 %v9273
        %v9286 = vpop.xlane.xlu0 %9285
        %9287 = vadd.xlane.f32.xlu0 %v9274
        %v9288 = vpop.xlane.xlu0 %9287
        %9289 = vadd.xlane.f32.xlu0 %v9275
        %v9290 = vpop.xlane.xlu0 %9289
        %9291 = vadd.xlane.f32.xlu0 %v9276
        %v9292 = vpop.xlane.xlu0 %9291
        %v9293 = vmul.f32 %v9278, 0.015625
        %v9294 = vmul.f32 %v9280, 0.015625
        %v9295 = vmul.f32 %v9282, 0.015625
        %v9296 = vmul.f32 %v9284, 0.015625
        %v9297 = vmul.f32 %v9286, 0.015625
        %v9298 = vmul.f32 %v9288, 0.015625
        %v9299 = vmul.f32 %v9290, 0.015625
        %v9300 = vmul.f32 %v9292, 0.015625
        %vm9301 = vcmp.eq.s32.totalorder %v9267, 1
        %v9302 = vsel %vm9301, %v9251, -inf
        %v9303 = vsel %vm9301, %v9252, -inf
        %v9304 = vsel %vm9301, %v9253, -inf
        %v9305 = vsel %vm9301, %v9254, -inf
        %v9306 = vsel %vm9301, %v9255, -inf
        %v9307 = vsel %vm9301, %v9256, -inf
        %v9308 = vsel %vm9301, %v9257, -inf
        %v9309 = vsel %vm9301, %v9258, -inf
        %9310 = vmax.xlane.f32.xlu0 %v9302
        %v9311 = vpop.xlane.xlu0 %9310
        %9312 = vmax.xlane.f32.xlu0 %v9303
        %v9313 = vpop.xlane.xlu0 %9312
        %9314 = vmax.xlane.f32.xlu0 %v9304
        %v9315 = vpop.xlane.xlu0 %9314
        %9316 = vmax.xlane.f32.xlu0 %v9305
        %v9317 = vpop.xlane.xlu0 %9316
        %9318 = vmax.xlane.f32.xlu0 %v9306
        %v9319 = vpop.xlane.xlu0 %9318
        %9320 = vmax.xlane.f32.xlu0 %v9307
        %v9321 = vpop.xlane.xlu0 %9320
        %9322 = vmax.xlane.f32.xlu0 %v9308
        %v9323 = vpop.xlane.xlu0 %9322
        %9324 = vmax.xlane.f32.xlu0 %v9309
        %v9325 = vpop.xlane.xlu0 %9324
        %v9326 = vld [vmem:[%s19] sm:$0xff]
        %v9327 = vld [vmem:[%s19 + $0x8] sm:$0xff]
        %v9328 = vld [vmem:[%s19 + $0x10] sm:$0xff]
        %v9329 = vld [vmem:[%s19 + $0x18] sm:$0xff]
        %v9330 = vld [vmem:[%s19 + $0x20] sm:$0xff]
        %v9331 = vld [vmem:[%s19 + $0x28] sm:$0xff]
        %v9332 = vld [vmem:[%s19 + $0x30] sm:$0xff]
        %v9333 = vld [vmem:[%s19 + $0x38] sm:$0xff]
        %v9334 = vld [vmem:[%s20] sm:$0xff]
        %v9335 = vld [vmem:[%s20 + $0x8] sm:$0xff]
        %v9336 = vld [vmem:[%s20 + $0x10] sm:$0xff]
        %v9337 = vld [vmem:[%s20 + $0x18] sm:$0xff]
        %v9338 = vld [vmem:[%s20 + $0x20] sm:$0xff]
        %v9339 = vld [vmem:[%s20 + $0x28] sm:$0xff]
        %v9340 = vld [vmem:[%s20 + $0x30] sm:$0xff]
        %v9341 = vld [vmem:[%s20 + $0x38] sm:$0xff]
        %v9343 = vsel %vm3421, %v9334, 0
        %v9346 = vsel %vm3421, %v9335, 0
        %v9349 = vsel %vm3421, %v9336, 0
        %v9352 = vsel %vm3421, %v9337, 0
        %v9355 = vsel %vm3421, %v9338, 0
        %v9358 = vsel %vm3421, %v9339, 0
        %v9361 = vsel %vm3421, %v9340, 0
        %v9364 = vsel %vm3421, %v9341, 0
        %9366 = vmatprep.subr.mxu0 0.0
        %9367 = vmatpush1.msra.mxu0 %v9311
        %9368 = vmatprep.subr.mxu0 0.0
        %9369 = vmatpush1.msra.mxu0 %v9313
        %9370 = vmatprep.subr.mxu0 0.0
        %9371 = vmatpush1.msra.mxu0 %v9315
        %9372 = vmatprep.subr.mxu0 0.0
        %9373 = vmatpush1.msra.mxu0 %v9317
        %9374 = vmatprep.subr.mxu0 0.0
        %9375 = vmatpush1.msra.mxu0 %v9319
        %9376 = vmatprep.subr.mxu0 0.0
        %9377 = vmatpush1.msra.mxu0 %v9321
        %9378 = vmatprep.subr.mxu0 0.0
        %9379 = vmatpush1.msra.mxu0 %v9323
        %9380 = vmatprep.subr.mxu0 0.0
        %9381 = vmatpush1.msra.mxu0 %v9325
        %9382 = vmatprep.subr.mxu0 0.0
        %9383 = vmatpush1.msra.mxu0 0.0
        %9384 = vmatprep.subr.mxu0 0.0
        %9385 = vmatpush1.msra.mxu0 0.0
        %9386 = vmatprep.subr.mxu0 0.0
        %9387 = vmatpush1.msra.mxu0 0.0
        %9388 = vmatprep.subr.mxu0 0.0
        %9389 = vmatpush1.msra.mxu0 0.0
        %9390 = vmatprep.subr.mxu0 0.0
        %9391 = vmatpush1.msra.mxu0 0.0
        %9392 = vmatprep.subr.mxu0 0.0
        %9393 = vmatpush1.msra.mxu0 0.0
        %9394 = vmatprep.subr.mxu0 0.0
        %9395 = vmatpush1.msra.mxu0 0.0
        %9396 = vmatprep.subr.mxu0 0.0
        %9397 = vmatpush1.msra.mxu0 0.0
        %9398 = vmatprep.subr.mxu0 0.0
        %9399 = vmatpush1.msra.mxu0 0.0
        %9400 = vmatprep.subr.mxu0 0.0
        %9401 = vmatpush1.msra.mxu0 0.0
        %9402 = vmatprep.subr.mxu0 0.0
        %9403 = vmatpush1.msra.mxu0 0.0
        %9404 = vmatprep.subr.mxu0 0.0
        %9405 = vmatpush1.msra.mxu0 0.0
        %9406 = vmatprep.subr.mxu0 0.0
        %9407 = vmatpush1.msra.mxu0 0.0
        %9408 = vmatprep.subr.mxu0 0.0
        %9409 = vmatpush1.msra.mxu0 0.0
        %9410 = vmatprep.subr.mxu0 0.0
        %9411 = vmatpush1.msra.mxu0 0.0
        %9412 = vmatprep.subr.mxu0 0.0
        %9413 = vmatpush1.msra.mxu0 0.0
        %9414 = vmatprep.subr.mxu0 0.0
        %9415 = vmatpush1.msra.mxu0 0.0
        %9416 = vmatprep.subr.mxu0 0.0
        %9417 = vmatpush1.msra.mxu0 0.0
        %9418 = vmatprep.subr.mxu0 0.0
        %9419 = vmatpush1.msra.mxu0 0.0
        %9420 = vmatprep.subr.mxu0 0.0
        %9421 = vmatpush1.msra.mxu0 0.0
        %9422 = vmatprep.subr.mxu0 0.0
        %9423 = vmatpush1.msra.mxu0 0.0
        %9424 = vmatprep.subr.mxu0 0.0
        %9425 = vmatpush1.msra.mxu0 0.0
        %9426 = vmatprep.subr.mxu0 0.0
        %9427 = vmatpush1.msra.mxu0 0.0
        %9428 = vmatprep.subr.mxu0 0.0
        %9429 = vmatpush1.msra.mxu0 0.0
        %9430 = vmatprep.mubr.f32.mxu0 0.0
        %9431 = vmatmul.mubr.f32.gmra.mrb[0].mxu0 %v9343
        %v9432 = vpop.f32.mrb[0].mxu0
        %v9433 = vadd.f32 0.0, %v9432
        %v9434 = vpop.f32.mrb[0].mxu0
        %9435 = vmatprep.mubr.f32.mxu0 0.0
        %9436 = vmatmul.mubr.f32.gmra.mrb[0].mxu0 %v9346
        %v9437 = vpop.f32.mrb[0].mxu0
        %v9438 = vadd.f32 0.0, %v9437
        %v9439 = vpop.f32.mrb[0].mxu0
        %9440 = vmatprep.mubr.f32.mxu0 0.0
        %9441 = vmatmul.mubr.f32.gmra.mrb[0].mxu0 %v9349
        %v9442 = vpop.f32.mrb[0].mxu0
        %v9443 = vadd.f32 0.0, %v9442
        %v9444 = vpop.f32.mrb[0].mxu0
        %9445 = vmatprep.mubr.f32.mxu0 0.0
        %9446 = vmatmul.mubr.f32.gmra.mrb[0].mxu0 %v9352
        %v9447 = vpop.f32.mrb[0].mxu0
        %v9448 = vadd.f32 0.0, %v9447
        %v9449 = vpop.f32.mrb[0].mxu0
        %9450 = vmatprep.mubr.f32.mxu0 0.0
        %9451 = vmatmul.mubr.f32.gmra.mrb[0].mxu0 %v9355
        %v9452 = vpop.f32.mrb[0].mxu0
        %v9453 = vadd.f32 0.0, %v9452
        %v9454 = vpop.f32.mrb[0].mxu0
        %9455 = vmatprep.mubr.f32.mxu0 0.0
        %9456 = vmatmul.mubr.f32.gmra.mrb[0].mxu0 %v9358
        %v9457 = vpop.f32.mrb[0].mxu0
        %v9458 = vadd.f32 0.0, %v9457
        %v9459 = vpop.f32.mrb[0].mxu0
        %9460 = vmatprep.mubr.f32.mxu0 0.0
        %9461 = vmatmul.mubr.f32.gmra.mrb[0].mxu0 %v9361
        %v9462 = vpop.f32.mrb[0].mxu0
        %v9463 = vadd.f32 0.0, %v9462
        %v9464 = vpop.f32.mrb[0].mxu0
        %9465 = vmatprep.mubr.f32.mxu0 0.0
        %9466 = vmatmul.mubr.f32.gmra.mrb[0].mxu0 %v9364
        %v9467 = vpop.f32.mrb[0].mxu0
        %v9468 = vadd.f32 0.0, %v9467
        %v9469 = vpop.f32.mrb[0].mxu0
        %9470 = vdwg.mxu0
        %v9472 = vsel %vm3421, %v9326, 0
        %v9475 = vsel %vm3421, %v9327, 0
        %v9478 = vsel %vm3421, %v9328, 0
        %v9481 = vsel %vm3421, %v9329, 0
        %v9484 = vsel %vm3421, %v9330, 0
        %v9487 = vsel %vm3421, %v9331, 0
        %v9490 = vsel %vm3421, %v9332, 0
        %v9493 = vsel %vm3421, %v9333, 0
        %9495 = vmatprep.subr.mxu0 0.0
        %9496 = vmatpush1.msra.mxu0 %v9293
        %9497 = vmatprep.subr.mxu0 0.0
        %9498 = vmatpush1.msra.mxu0 %v9294
        %9499 = vmatprep.subr.mxu0 0.0
        %9500 = vmatpush1.msra.mxu0 %v9295
        %9501 = vmatprep.subr.mxu0 0.0
        %9502 = vmatpush1.msra.mxu0 %v9296
        %9503 = vmatprep.subr.mxu0 0.0
        %9504 = vmatpush1.msra.mxu0 %v9297
        %9505 = vmatprep.subr.mxu0 0.0
        %9506 = vmatpush1.msra.mxu0 %v9298
        %9507 = vmatprep.subr.mxu0 0.0
        %9508 = vmatpush1.msra.mxu0 %v9299
        %9509 = vmatprep.subr.mxu0 0.0
        %9510 = vmatpush1.msra.mxu0 %v9300
        %9511 = vmatprep.subr.mxu0 0.0
        %9512 = vmatpush1.msra.mxu0 0.0
        %9513 = vmatprep.subr.mxu0 0.0
        %9514 = vmatpush1.msra.mxu0 0.0
        %9515 = vmatprep.subr.mxu0 0.0
        %9516 = vmatpush1.msra.mxu0 0.0
        %9517 = vmatprep.subr.mxu0 0.0
        %9518 = vmatpush1.msra.mxu0 0.0
        %9519 = vmatprep.subr.mxu0 0.0
        %9520 = vmatpush1.msra.mxu0 0.0
        %9521 = vmatprep.subr.mxu0 0.0
        %9522 = vmatpush1.msra.mxu0 0.0
        %9523 = vmatprep.subr.mxu0 0.0
        %9524 = vmatpush1.msra.mxu0 0.0
        %9525 = vmatprep.subr.mxu0 0.0
        %9526 = vmatpush1.msra.mxu0 0.0
        %9527 = vmatprep.subr.mxu0 0.0
        %9528 = vmatpush1.msra.mxu0 0.0
        %9529 = vmatprep.subr.mxu0 0.0
        %9530 = vmatpush1.msra.mxu0 0.0
        %9531 = vmatprep.subr.mxu0 0.0
        %9532 = vmatpush1.msra.mxu0 0.0
        %9533 = vmatprep.subr.mxu0 0.0
        %9534 = vmatpush1.msra.mxu0 0.0
        %9535 = vmatprep.subr.mxu0 0.0
        %9536 = vmatpush1.msra.mxu0 0.0
        %9537 = vmatprep.subr.mxu0 0.0
        %9538 = vmatpush1.msra.mxu0 0.0
        %9539 = vmatprep.subr.mxu0 0.0
        %9540 = vmatpush1.msra.mxu0 0.0
        %9541 = vmatprep.subr.mxu0 0.0
        %9542 = vmatpush1.msra.mxu0 0.0
        %9543 = vmatprep.subr.mxu0 0.0
        %9544 = vmatpush1.msra.mxu0 0.0
        %9545 = vmatprep.subr.mxu0 0.0
        %9546 = vmatpush1.msra.mxu0 0.0
        %9547 = vmatprep.subr.mxu0 0.0
        %9548 = vmatpush1.msra.mxu0 0.0
        %9549 = vmatprep.subr.mxu0 0.0
        %9550 = vmatpush1.msra.mxu0 0.0
        %9551 = vmatprep.subr.mxu0 0.0
        %9552 = vmatpush1.msra.mxu0 0.0
        %9553 = vmatprep.subr.mxu0 0.0
        %9554 = vmatpush1.msra.mxu0 0.0
        %9555 = vmatprep.subr.mxu0 0.0
        %9556 = vmatpush1.msra.mxu0 0.0
        %9557 = vmatprep.subr.mxu0 0.0
        %9558 = vmatpush1.msra.mxu0 0.0
        %9559 = vmatprep.mubr.f32.mxu0 0.0
        %9560 = vmatmul.mubr.f32.gmra.mrb[0].mxu0 %v9472
        %v9561 = vpop.f32.mrb[0].mxu0
        %v9562 = vadd.f32 %v9433, %v9561
        %v9563 = vpop.f32.mrb[0].mxu0
        %9564 = vmatprep.mubr.f32.mxu0 0.0
        %9565 = vmatmul.mubr.f32.gmra.mrb[0].mxu0 %v9475
        %v9566 = vpop.f32.mrb[0].mxu0
        %v9567 = vadd.f32 %v9438, %v9566
        %v9568 = vpop.f32.mrb[0].mxu0
        %9569 = vmatprep.mubr.f32.mxu0 0.0
        %9570 = vmatmul.mubr.f32.gmra.mrb[0].mxu0 %v9478
        %v9571 = vpop.f32.mrb[0].mxu0
        %v9572 = vadd.f32 %v9443, %v9571
        %v9573 = vpop.f32.mrb[0].mxu0
        %9574 = vmatprep.mubr.f32.mxu0 0.0
        %9575 = vmatmul.mubr.f32.gmra.mrb[0].mxu0 %v9481
        %v9576 = vpop.f32.mrb[0].mxu0
        %v9577 = vadd.f32 %v9448, %v9576
        %v9578 = vpop.f32.mrb[0].mxu0
        %9579 = vmatprep.mubr.f32.mxu0 0.0
        %9580 = vmatmul.mubr.f32.gmra.mrb[0].mxu0 %v9484
        %v9581 = vpop.f32.mrb[0].mxu0
        %v9582 = vadd.f32 %v9453, %v9581
        %v9583 = vpop.f32.mrb[0].mxu0
        %9584 = vmatprep.mubr.f32.mxu0 0.0
        %9585 = vmatmul.mubr.f32.gmra.mrb[0].mxu0 %v9487
        %v9586 = vpop.f32.mrb[0].mxu0
        %v9587 = vadd.f32 %v9458, %v9586
        %v9588 = vpop.f32.mrb[0].mxu0
        %9589 = vmatprep.mubr.f32.mxu0 0.0
        %9590 = vmatmul.mubr.f32.gmra.mrb[0].mxu0 %v9490
        %v9591 = vpop.f32.mrb[0].mxu0
        %v9592 = vadd.f32 %v9463, %v9591
        %v9593 = vpop.f32.mrb[0].mxu0
        %9594 = vmatprep.mubr.f32.mxu0 0.0
        %9595 = vmatmul.mubr.f32.gmra.mrb[0].mxu0 %v9493
        %v9596 = vpop.f32.mrb[0].mxu0
        %v9597 = vadd.f32 %v9468, %v9596
        %v9598 = vpop.f32.mrb[0].mxu0
        %9599 = vdwg.mxu0
        %v9600 = vld [vmem:[#allocation3] sm:$0x1]
        %v9602 = vlaneseq
        %v9603 = vshrl.u32 %v9602, 7
        %v9604 = vsub.s32 0, %v9603
        %v9605 = vrot.slane %v9600, %v9604
        %v9607 = vadd.f32 %v9562, %v9605
        %v9608 = vadd.f32 %v9567, %v9605
        %v9609 = vadd.f32 %v9572, %v9605
        %v9610 = vadd.f32 %v9577, %v9605
        %v9611 = vadd.f32 %v9582, %v9605
        %v9612 = vadd.f32 %v9587, %v9605
        %v9613 = vadd.f32 %v9592, %v9605
        %v9614 = vadd.f32 %v9597, %v9605
        %v9615 = vsub.f32 0.0, %v9607
        %v9616 = vsub.f32 0.0, %v9608
        %v9617 = vsub.f32 0.0, %v9609
        %v9618 = vsub.f32 0.0, %v9610
        %v9619 = vsub.f32 0.0, %v9611
        %v9620 = vsub.f32 0.0, %v9612
        %v9621 = vsub.f32 0.0, %v9613
        %v9622 = vsub.f32 0.0, %v9614
        %v9623 = vmul.f32 %v9615, 1.442695
        %v9624 = vpow.pop %v9623
        %v9625 = vmul.f32 %v9616, 1.442695
        %v9626 = vpow.pop %v9625
        %v9627 = vmul.f32 %v9617, 1.442695
        %v9628 = vpow.pop %v9627
        %v9629 = vmul.f32 %v9618, 1.442695
        %v9630 = vpow.pop %v9629
        %v9631 = vmul.f32 %v9619, 1.442695
        %v9632 = vpow.pop %v9631
        %v9633 = vmul.f32 %v9620, 1.442695
        %v9634 = vpow.pop %v9633
        %v9635 = vmul.f32 %v9621, 1.442695
        %v9636 = vpow.pop %v9635
        %v9637 = vmul.f32 %v9622, 1.442695
        %v9638 = vpow.pop %v9637
        %v9639 = vadd.f32 %v9624, 1.0
        %v9640 = vadd.f32 %v9626, 1.0
        %v9641 = vadd.f32 %v9628, 1.0
        %v9642 = vadd.f32 %v9630, 1.0
        %v9643 = vadd.f32 %v9632, 1.0
        %v9644 = vadd.f32 %v9634, 1.0
        %v9645 = vadd.f32 %v9636, 1.0
        %v9646 = vadd.f32 %v9638, 1.0
        %v9647 = vrcp.pop %v9639
        %v9648 = vmul.f32 1.0, %v9647
        %v9649 = vrcp.pop %v9640
        %v9650 = vmul.f32 1.0, %v9649
        %v9651 = vrcp.pop %v9641
        %v9652 = vmul.f32 1.0, %v9651
        %v9653 = vrcp.pop %v9642
        %v9654 = vmul.f32 1.0, %v9653
        %v9655 = vrcp.pop %v9643
        %v9656 = vmul.f32 1.0, %v9655
        %v9657 = vrcp.pop %v9644
        %v9658 = vmul.f32 1.0, %v9657
        %v9659 = vrcp.pop %v9645
        %v9660 = vmul.f32 1.0, %v9659
        %v9661 = vrcp.pop %v9646
        %v9662 = vmul.f32 1.0, %v9661
        %9664 = vset.pattern.permute.xlu0 0
        %9665 = vperm.xlu0 %9664, %v9648
        %v9666 = vpop.permute.xlu0 %9665
        %9669 = vset.pattern.permute.xlu0 0
        %9670 = vperm.xlu0 %9669, %v9650
        %v9671 = vpop.permute.xlu0 %9670
        %9674 = vset.pattern.permute.xlu0 0
        %9675 = vperm.xlu0 %9674, %v9652
        %v9676 = vpop.permute.xlu0 %9675
        %9679 = vset.pattern.permute.xlu0 0
        %9680 = vperm.xlu0 %9679, %v9654
        %v9681 = vpop.permute.xlu0 %9680
        %9684 = vset.pattern.permute.xlu0 0
        %9685 = vperm.xlu0 %9684, %v9656
        %v9686 = vpop.permute.xlu0 %9685
        %9689 = vset.pattern.permute.xlu0 0
        %9690 = vperm.xlu0 %9689, %v9658
        %v9691 = vpop.permute.xlu0 %9690
        %9694 = vset.pattern.permute.xlu0 0
        %9695 = vperm.xlu0 %9694, %v9660
        %v9696 = vpop.permute.xlu0 %9695
        %9699 = vset.pattern.permute.xlu0 0
        %9700 = vperm.xlu0 %9699, %v9662
        %v9701 = vpop.permute.xlu0 %9700
        %v9703 = vmul.f32 %v9666, %v9268
        %v9704 = vmul.f32 %v9671, %v9268
        %v9705 = vmul.f32 %v9676, %v9268
        %v9706 = vmul.f32 %v9681, %v9268
        %v9707 = vmul.f32 %v9686, %v9268
        %v9708 = vmul.f32 %v9691, %v9268
        %v9709 = vmul.f32 %v9696, %v9268
        %v9710 = vmul.f32 %v9701, %v9268
        %v9711 = vadd.f32 %v9703, 0.0
        %v9712 = vadd.f32 %v9704, 0.0
        %v9713 = vadd.f32 %v9705, 0.0
        %v9714 = vadd.f32 %v9706, 0.0
        %v9715 = vadd.f32 %v9707, 0.0
        %v9716 = vadd.f32 %v9708, 0.0
        %v9717 = vadd.f32 %v9709, 0.0
        %v9718 = vadd.f32 %v9710, 0.0
        %v9719 = vsel %vm9266, 1, 0
        %v9720 = vcvt.s32.f32 %v9719
        %v9721 = vmul.f32 %v9251, %v9720
        %v9722 = vmul.f32 %v9252, %v9720
        %v9723 = vmul.f32 %v9253, %v9720
        %v9724 = vmul.f32 %v9254, %v9720
        %v9725 = vmul.f32 %v9255, %v9720
        %v9726 = vmul.f32 %v9256, %v9720
        %v9727 = vmul.f32 %v9257, %v9720
        %v9728 = vmul.f32 %v9258, %v9720
        %9729 = vadd.xlane.f32.xlu0 %v9721
        %v9730 = vpop.xlane.xlu0 %9729
        %9731 = vadd.xlane.f32.xlu0 %v9722
        %v9732 = vpop.xlane.xlu0 %9731
        %9733 = vadd.xlane.f32.xlu0 %v9723
        %v9734 = vpop.xlane.xlu0 %9733
        %9735 = vadd.xlane.f32.xlu0 %v9724
        %v9736 = vpop.xlane.xlu0 %9735
        %9737 = vadd.xlane.f32.xlu0 %v9725
        %v9738 = vpop.xlane.xlu0 %9737
        %9739 = vadd.xlane.f32.xlu0 %v9726
        %v9740 = vpop.xlane.xlu0 %9739
        %9741 = vadd.xlane.f32.xlu0 %v9727
        %v9742 = vpop.xlane.xlu0 %9741
        %9743 = vadd.xlane.f32.xlu0 %v9728
        %v9744 = vpop.xlane.xlu0 %9743
        %v9745 = vmul.f32 %v9730, 0.015625
        %v9746 = vmul.f32 %v9732, 0.015625
        %v9747 = vmul.f32 %v9734, 0.015625
        %v9748 = vmul.f32 %v9736, 0.015625
        %v9749 = vmul.f32 %v9738, 0.015625
        %v9750 = vmul.f32 %v9740, 0.015625
        %v9751 = vmul.f32 %v9742, 0.015625
        %v9752 = vmul.f32 %v9744, 0.015625
        %vm9753 = vcmp.eq.s32.totalorder %v9719, 1
        %v9754 = vsel %vm9753, %v9251, -inf
        %v9755 = vsel %vm9753, %v9252, -inf
        %v9756 = vsel %vm9753, %v9253, -inf
        %v9757 = vsel %vm9753, %v9254, -inf
        %v9758 = vsel %vm9753, %v9255, -inf
        %v9759 = vsel %vm9753, %v9256, -inf
        %v9760 = vsel %vm9753, %v9257, -inf
        %v9761 = vsel %vm9753, %v9258, -inf
        %9762 = vmax.xlane.f32.xlu0 %v9754
        %v9763 = vpop.xlane.xlu0 %9762
        %9764 = vmax.xlane.f32.xlu0 %v9755
        %v9765 = vpop.xlane.xlu0 %9764
        %9766 = vmax.xlane.f32.xlu0 %v9756
        %v9767 = vpop.xlane.xlu0 %9766
        %9768 = vmax.xlane.f32.xlu0 %v9757
        %v9769 = vpop.xlane.xlu0 %9768
        %9770 = vmax.xlane.f32.xlu0 %v9758
        %v9771 = vpop.xlane.xlu0 %9770
        %9772 = vmax.xlane.f32.xlu0 %v9759
        %v9773 = vpop.xlane.xlu0 %9772
        %9774 = vmax.xlane.f32.xlu0 %v9760
        %v9775 = vpop.xlane.xlu0 %9774
        %9776 = vmax.xlane.f32.xlu0 %v9761
        %v9777 = vpop.xlane.xlu0 %9776
        %9778 = vmatprep.subr.mxu0 0.0
        %9779 = vmatpush1.msra.mxu0 %v9763
        %9780 = vmatprep.subr.mxu0 0.0
        %9781 = vmatpush1.msra.mxu0 %v9765
        %9782 = vmatprep.subr.mxu0 0.0
        %9783 = vmatpush1.msra.mxu0 %v9767
        %9784 = vmatprep.subr.mxu0 0.0
        %9785 = vmatpush1.msra.mxu0 %v9769
        %9786 = vmatprep.subr.mxu0 0.0
        %9787 = vmatpush1.msra.mxu0 %v9771
        %9788 = vmatprep.subr.mxu0 0.0
        %9789 = vmatpush1.msra.mxu0 %v9773
        %9790 = vmatprep.subr.mxu0 0.0
        %9791 = vmatpush1.msra.mxu0 %v9775
        %9792 = vmatprep.subr.mxu0 0.0
        %9793 = vmatpush1.msra.mxu0 %v9777
        %9794 = vmatprep.subr.mxu0 0.0
        %9795 = vmatpush1.msra.mxu0 0.0
        %9796 = vmatprep.subr.mxu0 0.0
        %9797 = vmatpush1.msra.mxu0 0.0
        %9798 = vmatprep.subr.mxu0 0.0
        %9799 = vmatpush1.msra.mxu0 0.0
        %9800 = vmatprep.subr.mxu0 0.0
        %9801 = vmatpush1.msra.mxu0 0.0
        %9802 = vmatprep.subr.mxu0 0.0
        %9803 = vmatpush1.msra.mxu0 0.0
        %9804 = vmatprep.subr.mxu0 0.0
        %9805 = vmatpush1.msra.mxu0 0.0
        %9806 = vmatprep.subr.mxu0 0.0
        %9807 = vmatpush1.msra.mxu0 0.0
        %9808 = vmatprep.subr.mxu0 0.0
        %9809 = vmatpush1.msra.mxu0 0.0
        %9810 = vmatprep.subr.mxu0 0.0
        %9811 = vmatpush1.msra.mxu0 0.0
        %9812 = vmatprep.subr.mxu0 0.0
        %9813 = vmatpush1.msra.mxu0 0.0
        %9814 = vmatprep.subr.mxu0 0.0
        %9815 = vmatpush1.msra.mxu0 0.0
        %9816 = vmatprep.subr.mxu0 0.0
        %9817 = vmatpush1.msra.mxu0 0.0
        %9818 = vmatprep.subr.mxu0 0.0
        %9819 = vmatpush1.msra.mxu0 0.0
        %9820 = vmatprep.subr.mxu0 0.0
        %9821 = vmatpush1.msra.mxu0 0.0
        %9822 = vmatprep.subr.mxu0 0.0
        %9823 = vmatpush1.msra.mxu0 0.0
        %9824 = vmatprep.subr.mxu0 0.0
        %9825 = vmatpush1.msra.mxu0 0.0
        %9826 = vmatprep.subr.mxu0 0.0
        %9827 = vmatpush1.msra.mxu0 0.0
        %9828 = vmatprep.subr.mxu0 0.0
        %9829 = vmatpush1.msra.mxu0 0.0
        %9830 = vmatprep.subr.mxu0 0.0
        %9831 = vmatpush1.msra.mxu0 0.0
        %9832 = vmatprep.subr.mxu0 0.0
        %9833 = vmatpush1.msra.mxu0 0.0
        %9834 = vmatprep.subr.mxu0 0.0
        %9835 = vmatpush1.msra.mxu0 0.0
        %9836 = vmatprep.subr.mxu0 0.0
        %9837 = vmatpush1.msra.mxu0 0.0
        %9838 = vmatprep.subr.mxu0 0.0
        %9839 = vmatpush1.msra.mxu0 0.0
        %9840 = vmatprep.subr.mxu0 0.0
        %9841 = vmatpush1.msra.mxu0 0.0
        %9842 = vmatprep.mubr.f32.mxu0 0.0
        %9843 = vmatmul.mubr.f32.gmra.mrb[0].mxu0 %v9343
        %v9844 = vpop.f32.mrb[0].mxu0
        %v9845 = vadd.f32 0.0, %v9844
        %v9846 = vpop.f32.mrb[0].mxu0
        %9847 = vmatprep.mubr.f32.mxu0 0.0
        %9848 = vmatmul.mubr.f32.gmra.mrb[0].mxu0 %v9346
        %v9849 = vpop.f32.mrb[0].mxu0
        %v9850 = vadd.f32 0.0, %v9849
        %v9851 = vpop.f32.mrb[0].mxu0
        %9852 = vmatprep.mubr.f32.mxu0 0.0
        %9853 = vmatmul.mubr.f32.gmra.mrb[0].mxu0 %v9349
        %v9854 = vpop.f32.mrb[0].mxu0
        %v9855 = vadd.f32 0.0, %v9854
        %v9856 = vpop.f32.mrb[0].mxu0
        %9857 = vmatprep.mubr.f32.mxu0 0.0
        %9858 = vmatmul.mubr.f32.gmra.mrb[0].mxu0 %v9352
        %v9859 = vpop.f32.mrb[0].mxu0
        %v9860 = vadd.f32 0.0, %v9859
        %v9861 = vpop.f32.mrb[0].mxu0
        %9862 = vmatprep.mubr.f32.mxu0 0.0
        %9863 = vmatmul.mubr.f32.gmra.mrb[0].mxu0 %v9355
        %v9864 = vpop.f32.mrb[0].mxu0
        %v9865 = vadd.f32 0.0, %v9864
        %v9866 = vpop.f32.mrb[0].mxu0
        %9867 = vmatprep.mubr.f32.mxu0 0.0
        %9868 = vmatmul.mubr.f32.gmra.mrb[0].mxu0 %v9358
        %v9869 = vpop.f32.mrb[0].mxu0
        %v9870 = vadd.f32 0.0, %v9869
        %v9871 = vpop.f32.mrb[0].mxu0
        %9872 = vmatprep.mubr.f32.mxu0 0.0
        %9873 = vmatmul.mubr.f32.gmra.mrb[0].mxu0 %v9361
        %v9874 = vpop.f32.mrb[0].mxu0
        %v9875 = vadd.f32 0.0, %v9874
        %v9876 = vpop.f32.mrb[0].mxu0
        %9877 = vmatprep.mubr.f32.mxu0 0.0
        %9878 = vmatmul.mubr.f32.gmra.mrb[0].mxu0 %v9364
        %v9879 = vpop.f32.mrb[0].mxu0
        %v9880 = vadd.f32 0.0, %v9879
        %v9881 = vpop.f32.mrb[0].mxu0
        %9882 = vdwg.mxu0
        %9883 = vmatprep.subr.mxu0 0.0
        %9884 = vmatpush1.msra.mxu0 %v9745
        %9885 = vmatprep.subr.mxu0 0.0
        %9886 = vmatpush1.msra.mxu0 %v9746
        %9887 = vmatprep.subr.mxu0 0.0
        %9888 = vmatpush1.msra.mxu0 %v9747
        %9889 = vmatprep.subr.mxu0 0.0
        %9890 = vmatpush1.msra.mxu0 %v9748
        %9891 = vmatprep.subr.mxu0 0.0
        %9892 = vmatpush1.msra.mxu0 %v9749
        %9893 = vmatprep.subr.mxu0 0.0
        %9894 = vmatpush1.msra.mxu0 %v9750
        %9895 = vmatprep.subr.mxu0 0.0
        %9896 = vmatpush1.msra.mxu0 %v9751
        %9897 = vmatprep.subr.mxu0 0.0
        %9898 = vmatpush1.msra.mxu0 %v9752
        %9899 = vmatprep.subr.mxu0 0.0
        %9900 = vmatpush1.msra.mxu0 0.0
        %9901 = vmatprep.subr.mxu0 0.0
        %9902 = vmatpush1.msra.mxu0 0.0
        %9903 = vmatprep.subr.mxu0 0.0
        %9904 = vmatpush1.msra.mxu0 0.0
        %9905 = vmatprep.subr.mxu0 0.0
        %9906 = vmatpush1.msra.mxu0 0.0
        %9907 = vmatprep.subr.mxu0 0.0
        %9908 = vmatpush1.msra.mxu0 0.0
        %9909 = vmatprep.subr.mxu0 0.0
        %9910 = vmatpush1.msra.mxu0 0.0
        %9911 = vmatprep.subr.mxu0 0.0
        %9912 = vmatpush1.msra.mxu0 0.0
        %9913 = vmatprep.subr.mxu0 0.0
        %9914 = vmatpush1.msra.mxu0 0.0
        %9915 = vmatprep.subr.mxu0 0.0
        %9916 = vmatpush1.msra.mxu0 0.0
        %9917 = vmatprep.subr.mxu0 0.0
        %9918 = vmatpush1.msra.mxu0 0.0
        %9919 = vmatprep.subr.mxu0 0.0
        %9920 = vmatpush1.msra.mxu0 0.0
        %9921 = vmatprep.subr.mxu0 0.0
        %9922 = vmatpush1.msra.mxu0 0.0
        %9923 = vmatprep.subr.mxu0 0.0
        %9924 = vmatpush1.msra.mxu0 0.0
        %9925 = vmatprep.subr.mxu0 0.0
        %9926 = vmatpush1.msra.mxu0 0.0
        %9927 = vmatprep.subr.mxu0 0.0
        %9928 = vmatpush1.msra.mxu0 0.0
        %9929 = vmatprep.subr.mxu0 0.0
        %9930 = vmatpush1.msra.mxu0 0.0
        %9931 = vmatprep.subr.mxu0 0.0
        %9932 = vmatpush1.msra.mxu0 0.0
        %9933 = vmatprep.subr.mxu0 0.0
        %9934 = vmatpush1.msra.mxu0 0.0
        %9935 = vmatprep.subr.mxu0 0.0
        %9936 = vmatpush1.msra.mxu0 0.0
        %9937 = vmatprep.subr.mxu0 0.0
        %9938 = vmatpush1.msra.mxu0 0.0
        %9939 = vmatprep.subr.mxu0 0.0
        %9940 = vmatpush1.msra.mxu0 0.0
        %9941 = vmatprep.subr.mxu0 0.0
        %9942 = vmatpush1.msra.mxu0 0.0
        %9943 = vmatprep.subr.mxu0 0.0
        %9944 = vmatpush1.msra.mxu0 0.0
        %9945 = vmatprep.subr.mxu0 0.0
        %9946 = vmatpush1.msra.mxu0 0.0
        %9947 = vmatprep.mubr.f32.mxu0 0.0
        %9948 = vmatmul.mubr.f32.gmra.mrb[0].mxu0 %v9472
        %v9949 = vpop.f32.mrb[0].mxu0
        %v9950 = vadd.f32 %v9845, %v9949
        %v9951 = vpop.f32.mrb[0].mxu0
        %9952 = vmatprep.mubr.f32.mxu0 0.0
        %9953 = vmatmul.mubr.f32.gmra.mrb[0].mxu0 %v9475
        %v9954 = vpop.f32.mrb[0].mxu0
        %v9955 = vadd.f32 %v9850, %v9954
        %v9956 = vpop.f32.mrb[0].mxu0
        %9957 = vmatprep.mubr.f32.mxu0 0.0
        %9958 = vmatmul.mubr.f32.gmra.mrb[0].mxu0 %v9478
        %v9959 = vpop.f32.mrb[0].mxu0
        %v9960 = vadd.f32 %v9855, %v9959
        %v9961 = vpop.f32.mrb[0].mxu0
        %9962 = vmatprep.mubr.f32.mxu0 0.0
        %9963 = vmatmul.mubr.f32.gmra.mrb[0].mxu0 %v9481
        %v9964 = vpop.f32.mrb[0].mxu0
        %v9965 = vadd.f32 %v9860, %v9964
        %v9966 = vpop.f32.mrb[0].mxu0
        %9967 = vmatprep.mubr.f32.mxu0 0.0
        %9968 = vmatmul.mubr.f32.gmra.mrb[0].mxu0 %v9484
        %v9969 = vpop.f32.mrb[0].mxu0
        %v9970 = vadd.f32 %v9865, %v9969
        %v9971 = vpop.f32.mrb[0].mxu0
        %9972 = vmatprep.mubr.f32.mxu0 0.0
        %9973 = vmatmul.mubr.f32.gmra.mrb[0].mxu0 %v9487
        %v9974 = vpop.f32.mrb[0].mxu0
        %v9975 = vadd.f32 %v9870, %v9974
        %v9976 = vpop.f32.mrb[0].mxu0
        %9977 = vmatprep.mubr.f32.mxu0 0.0
        %9978 = vmatmul.mubr.f32.gmra.mrb[0].mxu0 %v9490
        %v9979 = vpop.f32.mrb[0].mxu0
        %v9980 = vadd.f32 %v9875, %v9979
        %v9981 = vpop.f32.mrb[0].mxu0
        %9982 = vmatprep.mubr.f32.mxu0 0.0
        %9983 = vmatmul.mubr.f32.gmra.mrb[0].mxu0 %v9493
        %v9984 = vpop.f32.mrb[0].mxu0
        %v9985 = vadd.f32 %v9880, %v9984
        %v9986 = vpop.f32.mrb[0].mxu0
        %9987 = vdwg.mxu0
        %v9988 = vadd.f32 %v9950, %v9605
        %v9989 = vadd.f32 %v9955, %v9605
        %v9990 = vadd.f32 %v9960, %v9605
        %v9991 = vadd.f32 %v9965, %v9605
        %v9992 = vadd.f32 %v9970, %v9605
        %v9993 = vadd.f32 %v9975, %v9605
        %v9994 = vadd.f32 %v9980, %v9605
        %v9995 = vadd.f32 %v9985, %v9605
        %v9996 = vsub.f32 0.0, %v9988
        %v9997 = vsub.f32 0.0, %v9989
        %v9998 = vsub.f32 0.0, %v9990
        %v9999 = vsub.f32 0.0, %v9991
        %v10000 = vsub.f32 0.0, %v9992
        %v10001 = vsub.f32 0.0, %v9993
        %v10002 = vsub.f32 0.0, %v9994
        %v10003 = vsub.f32 0.0, %v9995
        %v10004 = vmul.f32 %v9996, 1.442695
        %v10005 = vpow.pop %v10004
        %v10006 = vmul.f32 %v9997, 1.442695
        %v10007 = vpow.pop %v10006
        %v10008 = vmul.f32 %v9998, 1.442695
        %v10009 = vpow.pop %v10008
        %v10010 = vmul.f32 %v9999, 1.442695
        %v10011 = vpow.pop %v10010
        %v10012 = vmul.f32 %v10000, 1.442695
        %v10013 = vpow.pop %v10012
        %v10014 = vmul.f32 %v10001, 1.442695
        %v10015 = vpow.pop %v10014
        %v10016 = vmul.f32 %v10002, 1.442695
        %v10017 = vpow.pop %v10016
        %v10018 = vmul.f32 %v10003, 1.442695
        %v10019 = vpow.pop %v10018
        %v10020 = vadd.f32 %v10005, 1.0
        %v10021 = vadd.f32 %v10007, 1.0
        %v10022 = vadd.f32 %v10009, 1.0
        %v10023 = vadd.f32 %v10011, 1.0
        %v10024 = vadd.f32 %v10013, 1.0
        %v10025 = vadd.f32 %v10015, 1.0
        %v10026 = vadd.f32 %v10017, 1.0
        %v10027 = vadd.f32 %v10019, 1.0
        %v10028 = vrcp.pop %v10020
        %v10029 = vmul.f32 1.0, %v10028
        %v10030 = vrcp.pop %v10021
        %v10031 = vmul.f32 1.0, %v10030
        %v10032 = vrcp.pop %v10022
        %v10033 = vmul.f32 1.0, %v10032
        %v10034 = vrcp.pop %v10023
        %v10035 = vmul.f32 1.0, %v10034
        %v10036 = vrcp.pop %v10024
        %v10037 = vmul.f32 1.0, %v10036
        %v10038 = vrcp.pop %v10025
        %v10039 = vmul.f32 1.0, %v10038
        %v10040 = vrcp.pop %v10026
        %v10041 = vmul.f32 1.0, %v10040
        %v10042 = vrcp.pop %v10027
        %v10043 = vmul.f32 1.0, %v10042
        %10045 = vset.pattern.permute.xlu0 0
        %10046 = vperm.xlu0 %10045, %v10029
        %v10047 = vpop.permute.xlu0 %10046
        %10050 = vset.pattern.permute.xlu0 0
        %10051 = vperm.xlu0 %10050, %v10031
        %v10052 = vpop.permute.xlu0 %10051
        %10055 = vset.pattern.permute.xlu0 0
        %10056 = vperm.xlu0 %10055, %v10033
        %v10057 = vpop.permute.xlu0 %10056
        %10060 = vset.pattern.permute.xlu0 0
        %10061 = vperm.xlu0 %10060, %v10035
        %v10062 = vpop.permute.xlu0 %10061
        %10065 = vset.pattern.permute.xlu0 0
        %10066 = vperm.xlu0 %10065, %v10037
        %v10067 = vpop.permute.xlu0 %10066
        %10070 = vset.pattern.permute.xlu0 0
        %10071 = vperm.xlu0 %10070, %v10039
        %v10072 = vpop.permute.xlu0 %10071
        %10075 = vset.pattern.permute.xlu0 0
        %10076 = vperm.xlu0 %10075, %v10041
        %v10077 = vpop.permute.xlu0 %10076
        %10080 = vset.pattern.permute.xlu0 0
        %10081 = vperm.xlu0 %10080, %v10043
        %v10082 = vpop.permute.xlu0 %10081
        %v10084 = vmul.f32 %v10047, %v9720
        %v10085 = vmul.f32 %v10052, %v9720
        %v10086 = vmul.f32 %v10057, %v9720
        %v10087 = vmul.f32 %v10062, %v9720
        %v10088 = vmul.f32 %v10067, %v9720
        %v10089 = vmul.f32 %v10072, %v9720
        %v10090 = vmul.f32 %v10077, %v9720
        %v10091 = vmul.f32 %v10082, %v9720
        %v10092 = vadd.f32 %v9711, %v10084
        %v10093 = vadd.f32 %v9712, %v10085
        %v10094 = vadd.f32 %v9713, %v10086
        %v10095 = vadd.f32 %v9714, %v10087
        %v10096 = vadd.f32 %v9715, %v10088
        %v10097 = vadd.f32 %v9716, %v10089
        %v10098 = vadd.f32 %v9717, %v10090
        %v10099 = vadd.f32 %v9718, %v10091
        %v10100 = vadd.f32 %v10092, 1.0
        %v10101 = vadd.f32 %v10093, 1.0
        %v10102 = vadd.f32 %v10094, 1.0
        %v10103 = vadd.f32 %v10095, 1.0
        %v10104 = vadd.f32 %v10096, 1.0
        %v10105 = vadd.f32 %v10097, 1.0
        %v10106 = vadd.f32 %v10098, 1.0
        %v10107 = vadd.f32 %v10099, 1.0
        %v10108 = vmul.f32 %v9251, %v10100
        %v10109 = vmul.f32 %v9252, %v10101
        %v10110 = vmul.f32 %v9253, %v10102
        %v10111 = vmul.f32 %v9254, %v10103
        %v10112 = vmul.f32 %v9255, %v10104
        %v10113 = vmul.f32 %v9256, %v10105
        %v10114 = vmul.f32 %v9257, %v10106
        %v10115 = vmul.f32 %v9258, %v10107
        %v10116 = vmul.f32 %v10108, %v9268
        %v10117 = vmul.f32 %v10109, %v9268
        %v10118 = vmul.f32 %v10110, %v9268
        %v10119 = vmul.f32 %v10111, %v9268
        %v10120 = vmul.f32 %v10112, %v9268
        %v10121 = vmul.f32 %v10113, %v9268
        %v10122 = vmul.f32 %v10114, %v9268
        %v10123 = vmul.f32 %v10115, %v9268
        %v10124 = vadd.f32 %v10116, %v10117
        %v10125 = vadd.f32 %v10124, %v10118
        %v10126 = vadd.f32 %v10125, %v10119
        %v10127 = vadd.f32 %v10126, %v10120
        %v10128 = vadd.f32 %v10127, %v10121
        %v10129 = vadd.f32 %v10128, %v10122
        %v10130 = vadd.f32 %v10129, %v10123
        %10131 = vadd.xlane.f32.xlu0 %v10130
        %v10132 = vpop.xlane.xlu0 %10131
        %v10133 = vrot.slane %v10132, 4
        %v10134 = vadd.f32 %v10132, %v10133
        %v10135 = vrot.slane %v10134, 2
        %v10136 = vadd.f32 %v10134, %v10135
        %v10137 = vrot.slane %v10136, 1
        %v10138 = vadd.f32 %v10136, %v10137
        %s10139 = vtos %v10138
        %v10140 = vrcp.pop 4096.0
        %s10141 = vtos %v10140
        %s10142 = smul.f32 %s10139, %s10141
        %v10143 = vstv %s10142
        %v10144 = vmul.f32 %v10143, %v9268
        %v10145 = vadd.f32 %v10144, 0.0
        %v10146 = vmul.f32 %v10108, %v9720
        %v10147 = vmul.f32 %v10109, %v9720
        %v10148 = vmul.f32 %v10110, %v9720
        %v10149 = vmul.f32 %v10111, %v9720
        %v10150 = vmul.f32 %v10112, %v9720
        %v10151 = vmul.f32 %v10113, %v9720
        %v10152 = vmul.f32 %v10114, %v9720
        %v10153 = vmul.f32 %v10115, %v9720
        %v10154 = vadd.f32 %v10146, %v10147
        %v10155 = vadd.f32 %v10154, %v10148
        %v10156 = vadd.f32 %v10155, %v10149
        %v10157 = vadd.f32 %v10156, %v10150
        %v10158 = vadd.f32 %v10157, %v10151
        %v10159 = vadd.f32 %v10158, %v10152
        %v10160 = vadd.f32 %v10159, %v10153
        %10161 = vadd.xlane.f32.xlu0 %v10160
        %v10162 = vpop.xlane.xlu0 %10161
        %v10163 = vrot.slane %v10162, 4
        %v10164 = vadd.f32 %v10162, %v10163
        %v10165 = vrot.slane %v10164, 2
        %v10166 = vadd.f32 %v10164, %v10165
        %v10167 = vrot.slane %v10166, 1
        %v10168 = vadd.f32 %v10166, %v10167
        %s10169 = vtos %v10168
        %v10170 = vrcp.pop 4096.0
        %s10171 = vtos %v10170
        %s10172 = smul.f32 %s10169, %s10171
        %v10173 = vstv %s10172
        %v10174 = vmul.f32 %v10173, %v9720
        %v10175 = vadd.f32 %v10145, %v10174
        %v10176 = vsub.f32 %v10108, %v10175
        %v10177 = vsub.f32 %v10109, %v10175
        %v10178 = vsub.f32 %v10110, %v10175
        %v10179 = vsub.f32 %v10111, %v10175
        %v10180 = vsub.f32 %v10112, %v10175
        %v10181 = vsub.f32 %v10113, %v10175
        %v10182 = vsub.f32 %v10114, %v10175
        %v10183 = vsub.f32 %v10115, %v10175
        %v10184 = vmul.f32 %v10176, %v10176
        %v10185 = vmul.f32 %v10177, %v10177
        %v10186 = vmul.f32 %v10178, %v10178
        %v10187 = vmul.f32 %v10179, %v10179
        %v10188 = vmul.f32 %v10180, %v10180
        %v10189 = vmul.f32 %v10181, %v10181
        %v10190 = vmul.f32 %v10182, %v10182
        %v10191 = vmul.f32 %v10183, %v10183
        %v10192 = vmul.f32 %v10184, %v9268
        %v10193 = vmul.f32 %v10185, %v9268
        %v10194 = vmul.f32 %v10186, %v9268
        %v10195 = vmul.f32 %v10187, %v9268
        %v10196 = vmul.f32 %v10188, %v9268
        %v10197 = vmul.f32 %v10189, %v9268
        %v10198 = vmul.f32 %v10190, %v9268
        %v10199 = vmul.f32 %v10191, %v9268
        %v10200 = vadd.f32 %v10192, %v10193
        %v10201 = vadd.f32 %v10200, %v10194
        %v10202 = vadd.f32 %v10201, %v10195
        %v10203 = vadd.f32 %v10202, %v10196
        %v10204 = vadd.f32 %v10203, %v10197
        %v10205 = vadd.f32 %v10204, %v10198
        %v10206 = vadd.f32 %v10205, %v10199
        %10207 = vadd.xlane.f32.xlu0 %v10206
        %v10208 = vpop.xlane.xlu0 %10207
        %v10209 = vrot.slane %v10208, 4
        %v10210 = vadd.f32 %v10208, %v10209
        %v10211 = vrot.slane %v10210, 2
        %v10212 = vadd.f32 %v10210, %v10211
        %v10213 = vrot.slane %v10212, 1
        %v10214 = vadd.f32 %v10212, %v10213
        %s10215 = vtos %v10214
        %v10216 = vrcp.pop 4096.0
        %s10217 = vtos %v10216
        %s10218 = smul.f32 %s10215, %s10217
        %s10219 = sadd.f32 %s10218, 1e-05
        %v10220 = vstv %s10219
        %v10221 = vrsqrt.pop %v10220
        %s10222 = vtos %v10221
        %v10223 = vstv %s10222
        %v10224 = vmul.f32 %v10223, %v9268
        %v10225 = vadd.f32 %v10224, 0.0
        %v10226 = vmul.f32 %v10184, %v9720
        %v10227 = vmul.f32 %v10185, %v9720
        %v10228 = vmul.f32 %v10186, %v9720
        %v10229 = vmul.f32 %v10187, %v9720
        %v10230 = vmul.f32 %v10188, %v9720
        %v10231 = vmul.f32 %v10189, %v9720
        %v10232 = vmul.f32 %v10190, %v9720
        %v10233 = vmul.f32 %v10191, %v9720
        %v10234 = vadd.f32 %v10226, %v10227
        %v10235 = vadd.f32 %v10234, %v10228
        %v10236 = vadd.f32 %v10235, %v10229
        %v10237 = vadd.f32 %v10236, %v10230
        %v10238 = vadd.f32 %v10237, %v10231
        %v10239 = vadd.f32 %v10238, %v10232
        %v10240 = vadd.f32 %v10239, %v10233
        %10241 = vadd.xlane.f32.xlu0 %v10240
        %v10242 = vpop.xlane.xlu0 %10241
        %v10243 = vrot.slane %v10242, 4
        %v10244 = vadd.f32 %v10242, %v10243
        %v10245 = vrot.slane %v10244, 2
        %v10246 = vadd.f32 %v10244, %v10245
        %v10247 = vrot.slane %v10246, 1
        %v10248 = vadd.f32 %v10246, %v10247
        %s10249 = vtos %v10248
        %v10250 = vrcp.pop 4096.0
        %s10251 = vtos %v10250
        %s10252 = smul.f32 %s10249, %s10251
        %s10253 = sadd.f32 %s10252, 1e-05
        %v10254 = vstv %s10253
        %v10255 = vrsqrt.pop %v10254
        %s10256 = vtos %v10255
        %v10257 = vstv %s10256
        %v10258 = vmul.f32 %v10257, %v9720
        %v10259 = vadd.f32 %v10225, %v10258
        %v10260 = vmul.f32 %v10176, %v10259
        %v10261 = vmul.f32 %v10177, %v10259
        %v10262 = vmul.f32 %v10178, %v10259
        %v10263 = vmul.f32 %v10179, %v10259
        %v10264 = vmul.f32 %v10180, %v10259
        %v10265 = vmul.f32 %v10181, %v10259
        %v10266 = vmul.f32 %v10182, %v10259
        %v10267 = vmul.f32 %v10183, %v10259
        %v10268 = vld [vmem:[#allocation24] sm:$0xff]
        %v10269 = vld [vmem:[#allocation24 + $0x8] sm:$0xff]
        %v10270 = vld [vmem:[#allocation24 + $0x10] sm:$0xff]
        %v10271 = vld [vmem:[#allocation24 + $0x18] sm:$0xff]
        %v10272 = vld [vmem:[#allocation24 + $0x20] sm:$0xff]
        %v10273 = vld [vmem:[#allocation24 + $0x28] sm:$0xff]
        %v10274 = vld [vmem:[#allocation24 + $0x30] sm:$0xff]
        %v10275 = vld [vmem:[#allocation24 + $0x38] sm:$0xff]
        %v10276 = vmul.f32 %v10260, %v10268
        %v10277 = vmul.f32 %v10261, %v10269
        %v10278 = vmul.f32 %v10262, %v10270
        %v10279 = vmul.f32 %v10263, %v10271
        %v10280 = vmul.f32 %v10264, %v10272
        %v10281 = vmul.f32 %v10265, %v10273
        %v10282 = vmul.f32 %v10266, %v10274
        %v10283 = vmul.f32 %v10267, %v10275
        %v10284 = vld [vmem:[#allocation25] sm:$0xff]
        %v10285 = vld [vmem:[#allocation25 + $0x8] sm:$0xff]
        %v10286 = vld [vmem:[#allocation25 + $0x10] sm:$0xff]
        %v10287 = vld [vmem:[#allocation25 + $0x18] sm:$0xff]
        %v10288 = vld [vmem:[#allocation25 + $0x20] sm:$0xff]
        %v10289 = vld [vmem:[#allocation25 + $0x28] sm:$0xff]
        %v10290 = vld [vmem:[#allocation25 + $0x30] sm:$0xff]
        %v10291 = vld [vmem:[#allocation25 + $0x38] sm:$0xff]
        %v10292 = vadd.f32 %v10276, %v10284
        %v10293 = vadd.f32 %v10277, %v10285
        %v10294 = vadd.f32 %v10278, %v10286
        %v10295 = vadd.f32 %v10279, %v10287
        %v10296 = vadd.f32 %v10280, %v10288
        %v10297 = vadd.f32 %v10281, %v10289
        %v10298 = vadd.f32 %v10282, %v10290
        %v10299 = vadd.f32 %v10283, %v10291
        %v10300 = vpack.c.bf16 %v10293, %v10292
        %v10301 = vpack.c.bf16 %v10295, %v10294
        %v10302 = vpack.c.bf16 %v10297, %v10296
        %v10303 = vpack.c.bf16 %v10299, %v10298
        %v10308 = vunpack.c.l.b16 %v10300
        %v10309 = vunpack.c.h.b16 %v10300
        %v10310 = vunpack.c.l.b16 %v10301
        %v10311 = vunpack.c.h.b16 %v10301
        %v10312 = vunpack.c.l.b16 %v10302
        %v10313 = vunpack.c.h.b16 %v10302
        %v10314 = vunpack.c.l.b16 %v10303
        %v10315 = vunpack.c.h.b16 %v10303
        %v10316 = vpack.c.b16 %v10308, %v10308
        %v10317 = vpack.c.b16 %v10309, %v10309
        %v10318 = vpack.c.b16 %v10310, %v10310
        %v10319 = vpack.c.b16 %v10311, %v10311
        %v10320 = vpack.c.b16 %v10312, %v10312
        %v10321 = vpack.c.b16 %v10313, %v10313
        %v10322 = vpack.c.b16 %v10314, %v10314
        %v10323 = vpack.c.b16 %v10315, %v10315
        %10332 = vst [vmem:[%s929] sm:$0xf] %v10316
        %10333 = vst [vmem:[%s929 + $0x4] sm:$0xf] %v10317
        %10334 = vst [vmem:[%s929 + $0x8] sm:$0xf] %v10318
        %10335 = vst [vmem:[%s929 + $0xc] sm:$0xf] %v10319
        %10336 = vst [vmem:[%s929 + $0x10] sm:$0xf] %v10320
        %10337 = vst [vmem:[%s929 + $0x14] sm:$0xf] %v10321
        %10338 = vst [vmem:[%s929 + $0x18] sm:$0xf] %v10322
        %10339 = vst [vmem:[%s929 + $0x1c] sm:$0xf] %v10323
        %s10340 = sand.u32 %s565, 1
        %s10341 = scalar_lea.sflag [#allocation6], %s10340
        %s10342 = sand.u32 %s565, 1
        %s10343 = smul.addr %s10342, 32
        %s10344 = scalar_lea.vmem [#allocation27], %s10343
        // Predicated region
        $region173: #{tpu_custom_call.1} parent=115 // pred_check
          %p10345 = pneg %p575
        $region174: #{tpu_custom_call.1} parent=115 // pred_check_branch
          %10347 = sbr.rel (%p10345) target = $region176
        $region175: #{tpu_custom_call.1} parent=115 // pred_region
          %s10348 = smul.u32 8, %s48
          %s10350 = ssub.s32 512, 512
          %10351 = vsyncadd %s10341, %s10350
          %s10352 = smul.addr %s10348, 64
          %s10353 = scalar_lea.hbm %s24, %s10352
          %s10354 = sshll.u32 %s10344, 4
          %s10355 = int_to_ptr.vmem [resolvable:$true] %s10354
          %10360 = dma.vmem_to_hbm [thread:$0]  %s10355, 512, %s10353, %s10341, 64, 64, 4
        $region176: #{tpu_custom_call.1} parent=115 // pred_fallthru
          _
      $region116: #{tpu_custom_call.1} parent=5 // pred_fallthru
        _
      %p10361 = scmp.le.s32.totalorder 2, %s43
      // Predicated region
      $region177: #{tpu_custom_call.1} parent=5 // pred_check
        %p10362 = pneg %p10361
      $region178: #{tpu_custom_call.1} parent=5 // pred_check_branch
        %10364 = sbr.rel (%p10362) target = $region180
      $region179: #{tpu_custom_call.1} parent=5 // pred_region
        %s10365 = ssub.s32 %s43, 2
        // Predicated region
        $region181: #{tpu_custom_call.1} parent=179 // pred_check
          %p10366 = pneg %p581
        $region182: #{tpu_custom_call.1} parent=179 // pred_check_branch
          %10368 = sbr.rel (%p10366) target = $region184
        $region183: #{tpu_custom_call.1} parent=179 // pred_region
          %s10369 = sand.u32 %s566, 1
          %s10370 = scalar_lea.sflag [#allocation6], %s10369
          %s10371 = sand.u32 %s566, 1
          %s10372 = smul.addr %s10371, 32
          %s10373 = scalar_lea.vmem [#allocation27], %s10372
          %10374 = dma.done %s10370, 512
        $region184: #{tpu_custom_call.1} parent=179 // pred_fallthru
          _
      $region180: #{tpu_custom_call.1} parent=5 // pred_fallthru
        _
    $region6: #{tpu_custom_call.1} parent=1 // loop_footer
      %s47 = sadd.s32 1, %s43
    $region7: #{tpu_custom_call.1} parent=1 // loop_footer_branch
      %42 = sbr.rel target = $region3
    $region8: #{tpu_custom_call.1} parent=1 // loop_exit
      _
    %10375 = vsyncpa [#allocation5], 1
    %s10376 = scalar_lea.sflag [#allocation5], 1
    %10377 = vsyncpa %s10376, 1
    %10378 = vsyncpa [#allocation8], 1
    %10379 = vsyncpa [#allocation11], 1
    %10380 = vsyncpa [#allocation14], 1
    %10381 = vsyncpa [#allocation17], 1
    %10382 = vsyncpa [#allocation20], 1
    %10383 = vsyncpa [#allocation23], 1
    %10384 = vsyncpa [#allocation26], 1
    %10385 = vsyncpa [#allocation6], 1
    %s10386 = scalar_lea.sflag [#allocation6], 1
    %10387 = vsyncpa %s10386, 1

</llo_original>
